<compile_context>
chip_gen: v6e
topology: v6e:2x2x1
jax: 0.10.0
libtpu: 0.0.40
codegen_flags: <defaults>
</compile_context>

<pallas_src>
import numpy as np
import jax
import jax.numpy as jnp
from jax.experimental import pallas as pl
from jax.experimental.pallas import tpu as pltpu

# ------------------------- synthetic config (mirrors cfg_background) ----------
LEVELS = 4             # cfg_background.encoding.levels  (fourier)  -> enc_dim = 8*L
LEVELS_VIEW = 2        # cfg_background.encoding_view.levels (fourier) -> 6*L
APPEAR_DIM = 8         # appear_embed.dim (enabled=True)
HIDDEN = 32            # cfg_background.mlp.hidden_dim
NUM_LAYERS = 4         # cfg_background.mlp.num_layers
SKIP = (2,)            # cfg_background.mlp.skip
HIDDEN_RGB = 32        # cfg_background.mlp.hidden_dim_rgb
NUM_LAYERS_RGB = 2     # cfg_background.mlp.num_layers_rgb
SKIP_RGB = ()          # cfg_background.mlp.skip_rgb
# activ = relu, activ_density = softplus, view_dep = True

ENC_DIM = 8 * LEVELS
ENC_VIEW_DIM = 6 * LEVELS_VIEW
INPUT_DIM = 4 + ENC_DIM                                   # 36
INPUT_VIEW_DIM = HIDDEN + ENC_VIEW_DIM + APPEAR_DIM       # 52

FEAT_DIMS = [INPUT_DIM] + [HIDDEN] * (NUM_LAYERS - 1) + [HIDDEN + 1]
RGB_DIMS = [INPUT_VIEW_DIM] + [HIDDEN_RGB] * (NUM_LAYERS_RGB - 1) + [3]

CHUNK = 512            # lanes processed per in-kernel chunk (multiple of 128)
NUM_CHUNKS = 2         # chunks per grid step
TILE = CHUNK * NUM_CHUNKS   # points per grid step

_PI = float(np.pi)

# In-kernel row layouts (all 8-aligned groups):
#   enc  [40,T] = [p4(4) | ones(1) | zeros(3) | sin l0,l2 (8) | sin l1,l3 (8)
#                  | cos l0,l2 (8) | cos l1,l3 (8)]          (ones row folds bias)
#   vcat [24,T] = [sin l0 (r0..r2,pad) | sin l1 | cos l0 (r0..r2, BIAS row)
#                  | cos l1 | app(8)]
_W1_R, _W2X_R, _W3_R, _WR0F_R, _WR1_R, _W32_ROWS = 0, 32, 64, 104, 136, 144
_B1_R, _B3_R, _BR1_R, _B_ROWS = 0, 32, 72, 80


# ------------------------- reference-side math helpers ------------------------
def _positional_encoding(x, levels):
    """nerf_util.positional_encoding: for each channel d emit
    [sin(x_d * 2^0 pi) ... sin(x_d * 2^{L-1} pi), cos(...)]."""
    outs = []
    for d in range(x.shape[-1]):
        col = x[:, d:d + 1]
        spec = jnp.concatenate(
            [col * float(2.0 ** l * np.pi) for l in range(levels)], axis=-1)
        outs.append(jnp.sin(spec))
        outs.append(jnp.cos(spec))
    return jnp.concatenate(outs, axis=-1)


def _mlp_skip(x, weights, biases, skip):
    """nerf_util.MLPwithSkipConnection forward (relu activ, no norm)."""
    inp = x
    n = len(weights)
    for li in range(n):
        if li in skip:
            x = jnp.concatenate([x, inp], axis=-1)
        x = jnp.dot(x, weights[li], preferred_element_type=jnp.float32) + biases[li]
        if li != n - 1:
            x = jnp.maximum(x, 0.0)           # relu
    return x


def _softplus(x):
    return jnp.maximum(x, 0.0) + jnp.log1p(jnp.exp(-jnp.abs(x)))


def _sigmoid(x):
    return 1.0 / (1.0 + jnp.exp(-x))


# ------------------------------- Pallas kernel --------------------------------
def _bg_nerf_kernel(pts_ref, rays_ref, app_ref,
                    w40_ref, w32_ref, wv_ref, b_ref,
                    out_ref):
    dot = lambda a, b: jnp.dot(a, b, preferred_element_type=jnp.float32)

    # Hoisted broadcast constants (reused by both chunks).
    ones1 = jnp.ones((1, CHUNK), jnp.float32)
    zeros3 = jnp.zeros((3, CHUNK), jnp.float32)
    zeros1 = jnp.zeros((1, CHUNK), jnp.float32)

    for c in range(NUM_CHUNKS):                       # static slices, unrolled
        sl = pl.ds(c * CHUNK, CHUNK)

        # ---- encode(points_3D): [x/|x|, 1/|x|] + fourier PE -------------------
        x = pts_ref[:, sl]                            # [3, C]
        sq = x * x
        inv = jax.lax.rsqrt(sq[0:1] + sq[1:2] + sq[2:3])     # [1, C]
        p4 = jnp.concatenate([x * inv, inv], axis=0)         # [4, C]
        ang = jnp.concatenate([p4 * _PI, p4 * (4.0 * _PI)], axis=0)   # levels 0,2
        s_a = jnp.sin(ang)                            # [8, C]
        c_a = jnp.cos(ang)                            # [8, C]
        s_b = 2.0 * s_a * c_a                         # levels 1,3 (double angle)
        c_b = 1.0 - 2.0 * s_a * s_a
        enc = jnp.concatenate([p4, ones1, zeros3, s_a, s_b, c_a, c_b], axis=0)  # [40, C]

        # ---- mlp_feat (skip layer + biases folded into the enc block) ---------
        h = jnp.maximum(dot(w40_ref[0:HIDDEN, :], enc), 0.0)
        h = jnp.maximum(dot(w32_ref[_W1_R:_W1_R + 32, :], h)
                        + b_ref[_B1_R:_B1_R + 32, :], 0.0)
        h = jnp.maximum(dot(w32_ref[_W2X_R:_W2X_R + 32, :], h)
                        + dot(w40_ref[HIDDEN:2 * HIDDEN, :], enc), 0.0)
        o3 = dot(w32_ref[_W3_R:_W3_R + 33, :], h) + b_ref[_B3_R:_B3_R + 33, :]  # [33, C]
        feat = jnp.maximum(o3[0:HIDDEN, :], 0.0)      # [32, C]
        d_raw = o3[HIDDEN:HIDDEN + 1, :]              # [1, C]
        density = jnp.maximum(d_raw, 0.0) + jnp.log1p(jnp.exp(-jnp.abs(d_raw)))

        # ---- view-dependent rgb branch -----------------------------------------
        r = rays_ref[:, sl]                           # [3, C]
        vb = jnp.concatenate([r * _PI, zeros1], axis=0)      # [4, C], level 0 (+pad)
        s_v = jnp.sin(vb)
        c_v = jnp.cos(vb)                             # pad row = cos(0) = 1 -> bias
        vcat = jnp.concatenate(
            [s_v, 2.0 * s_v * c_v, c_v, 1.0 - 2.0 * s_v * s_v, app_ref[:, sl]],
            axis=0)                                   # [24, C]
        g = jnp.maximum(dot(w32_ref[_WR0F_R:_WR0F_R + 32, :], feat)
                        + dot(wv_ref[...], vcat), 0.0)        # [32, C]
        rgb = 1.0 / (1.0 + jnp.exp(-(dot(w32_ref[_WR1_R:_WR1_R + 3, :], g)
                                     + b_ref[_BR1_R:_BR1_R + 3, :])))   # [3, C]

        out_ref[:, sl] = jnp.concatenate([rgb, density], axis=0)        # [4, C]


# ------------------------------- param preparation ----------------------------
def _enc40_weight(W, b, pts_off, pe_off):
    """Rows of the original [in,out] weight rearranged to match the kernel's
    40-row enc block: [p4(4) | bias(ones row) | zeros(3) | sin l0,l2 | sin l1,l3
    | cos l0,l2 | cos l1,l3]."""
    out = W.shape[1]
    L = LEVELS

    def trig(base, lvls):
        idx = np.asarray([pe_off + d * 2 * L + base + l
                          for l in lvls for d in range(4)])
        return W[idx]

    return jnp.concatenate([
        W[pts_off:pts_off + 4],
        jnp.reshape(b, (1, out)),
        jnp.zeros((3, out), jnp.float32),
        trig(0, (0, 2)), trig(0, (1, 3)),
        trig(L, (0, 2)), trig(L, (1, 3)),
    ], axis=0)                                        # [40, out]


def _view24_weight(Wr0, br0):
    """Rows of the rgb-layer-0 weight rearranged to match the kernel's 24-row
    vcat block (bias goes on the cos(0)=1 pad row)."""
    out = Wr0.shape[1]
    Lv = LEVELS_VIEW
    off = HIDDEN
    z1 = jnp.zeros((1, out), jnp.float32)

    def trig(base, l):
        idx = np.asarray([off + d * 2 * Lv + base + l for d in range(3)])
        return Wr0[idx]

    return jnp.concatenate([
        trig(0, 0), z1,                               # sin level 0 (+pad)
        trig(0, 1), z1,                               # sin level 1 (+pad)
        trig(Lv, 0), jnp.reshape(br0, (1, out)),      # cos level 0 (+bias row)
        trig(Lv, 1), z1,                              # cos level 1 (+pad)
        Wr0[off + ENC_VIEW_DIM: off + ENC_VIEW_DIM + APPEAR_DIM],   # app
    ], axis=0)                                        # [24, out]


def _pad_rows(m, rows):
    return jnp.concatenate(
        [m, jnp.zeros((rows - m.shape[0], m.shape[1]), jnp.float32)], axis=0)


def _prepare_params(params):
    """Permute / split / pack the original [in,out] weights into 4 kernel slabs."""
    f32 = lambda m: jnp.asarray(m, jnp.float32)
    W0, b0 = f32(params["feat"][0][0]), f32(params["feat"][0][1])
    W1, b1 = f32(params["feat"][1][0]), f32(params["feat"][1][1])
    W2, b2 = f32(params["feat"][2][0]), f32(params["feat"][2][1])
    W3, b3 = f32(params["feat"][3][0]), f32(params["feat"][3][1])
    Wr0, br0 = f32(params["rgb"][0][0]), f32(params["rgb"][0][1])
    Wr1, br1 = f32(params["rgb"][1][0]), f32(params["rgb"][1][1])

    # last feat layer: reorder outputs to [feat(32) | density(1)]
    b3 = jnp.reshape(b3, (1, -1))
    W3r = jnp.concatenate([W3[:, 1:], W3[:, 0:1]], axis=1)    # [32, 33]
    b3r = jnp.concatenate([b3[:, 1:], b3[:, 0:1]], axis=1)    # [1, 33]

    # slab of K=40 weights (feat layers 0 and 2 against the enc block)
    w40 = jnp.concatenate([_enc40_weight(W0, b0, 0, 4).T,
                           _enc40_weight(W2, b2, HIDDEN, HIDDEN + 4).T],
                          axis=0)                             # [64, 40]

    # slab of K=32 weights
    w32 = jnp.concatenate([
        W1.T,                                                 # rows   0: 32
        W2[0:HIDDEN].T,                                       # rows  32: 64
        _pad_rows(W3r.T, _WR0F_R - _W3_R),                    # rows  64: 97 (+pad)
        Wr0[0:HIDDEN].T,                                      # rows 104:136
        _pad_rows(Wr1.T, _W32_ROWS - _WR1_R),                 # rows 136:139 (+pad)
    ], axis=0)                                                # [144, 32]

    wv = _view24_weight(Wr0, br0).T                           # [32, 24]

    bias = jnp.concatenate([
        jnp.reshape(b1, (-1, 1)),                             # rows  0:32
        _pad_rows(b3r.T, _BR1_R - _B3_R),                     # rows 32:65 (+pad)
        _pad_rows(jnp.reshape(br1, (-1, 1)), _B_ROWS - _BR1_R),  # rows 72:75 (+pad)
    ], axis=0)                                                # [80, 1]

    return w40, w32, wv, bias


# ------------------------------- wrapper ---------------------------------------
def background_nerf_forward(points_3D, rays_unit, app_outside, params):
    lead = points_3D.shape[:-1]
    n = int(np.prod(lead))

    pts_t = jnp.asarray(points_3D, jnp.float32).reshape(n, 3).T        # [3, n]
    rays_t = jnp.asarray(rays_unit, jnp.float32).reshape(n, 3).T       # [3, n]
    app_t = jnp.asarray(app_outside, jnp.float32).reshape(n, APPEAR_DIM).T

    n_pad = pl.cdiv(n, TILE) * TILE
    pad = n_pad - n
    if pad:
        # pad points with 1s so rsqrt stays finite; padded columns are dropped.
        pts_t = jnp.pad(pts_t, ((0, 0), (0, pad)), constant_values=1.0)
        rays_t = jnp.pad(rays_t, ((0, 0), (0, pad)), constant_values=0.0)
        app_t = jnp.pad(app_t, ((0, 0), (0, pad)), constant_values=0.0)

    w40, w32, wv, bias = _prepare_params(params)

    in_specs = [
        pl.BlockSpec((3, TILE), lambda i: (0, i)),            # pts
        pl.BlockSpec((3, TILE), lambda i: (0, i)),            # rays
        pl.BlockSpec((APPEAR_DIM, TILE), lambda i: (0, i)),   # app
        pl.BlockSpec(w40.shape, lambda i: (0, 0)),            # resident weights
        pl.BlockSpec(w32.shape, lambda i: (0, 0)),
        pl.BlockSpec(wv.shape, lambda i: (0, 0)),
        pl.BlockSpec(bias.shape, lambda i: (0, 0)),
    ]
    out_specs = pl.BlockSpec((4, TILE), lambda i: (0, i))     # [rgb(3) | density(1)]

    out = pl.pallas_call(
        _bg_nerf_kernel,
        out_shape=jax.ShapeDtypeStruct((4, n_pad), jnp.float32),
        grid_spec=pltpu.PrefetchScalarGridSpec(
            num_scalar_prefetch=0,
            grid=(n_pad // TILE,),
            in_specs=in_specs,
            out_specs=out_specs),
        compiler_params=pltpu.CompilerParams(dimension_semantics=("parallel",)),
    )(pts_t, rays_t, app_t, w40, w32, wv, bias)

    rgb = out[0:3, :n].T.reshape(lead + (3,))
    density = out[3, :n].reshape(lead)
    return rgb, density


# ------------------------------- reference (pure JAX) --------------------------
def reference_forward(points_3D, rays_unit, app_outside, params):
    lead = points_3D.shape[:-1]
    n = int(np.prod(lead))
    pts = points_3D.reshape(n, 3).astype(jnp.float32)
    rays = rays_unit.reshape(n, 3).astype(jnp.float32)
    app = app_outside.reshape(n, APPEAR_DIM).astype(jnp.float32)

    norm = jnp.linalg.norm(pts, axis=-1, keepdims=True)
    points4 = jnp.concatenate([pts / norm, 1.0 / norm], axis=-1)
    points_enc = jnp.concatenate(
        [points4, _positional_encoding(points4, LEVELS)], axis=-1)

    fw = [w for (w, b) in params["feat"]]
    fb = [b for (w, b) in params["feat"]]
    out = _mlp_skip(points_enc, fw, fb, SKIP)
    density = _softplus(out[:, 0:1])
    feat = jnp.maximum(out[:, 1:], 0.0)

    view_enc = _positional_encoding(rays, LEVELS_VIEW)
    input_vec = jnp.concatenate([feat, view_enc, app], axis=-1)
    rw = [w for (w, b) in params["rgb"]]
    rb = [b for (w, b) in params["rgb"]]
    rgb = _sigmoid(_mlp_skip(input_vec, rw, rb, SKIP_RGB))
    return rgb.reshape(lead + (3,)), density[:, 0].reshape(lead)


# ------------------------------- parameter init --------------------------------
def init_params(key):
    """torch.nn.Linear-style init; last layer of each MLP has zero bias."""
    def make_mlp(key, layer_dims, skip):
        pairs = list(zip(layer_dims[:-1], layer_dims[1:]))
        layers = []
        for li, (k_in, k_out) in enumerate(pairs):
            if li in skip:
                k_in += layer_dims[0]
            key, kw, kb = jax.random.split(key, 3)
            bound = 1.0 / np.sqrt(k_in)
            w = jax.random.uniform(kw, (k_in, k_out), jnp.float32, -bound, bound)
            if li == len(pairs) - 1:
                b = jnp.zeros((1, k_out), jnp.float32)
            else:
                b = jax.random.uniform(kb, (1, k_out), jnp.float32, -bound, bound)
            layers.append((w, b))
        return key, layers

    key, feat_layers = make_mlp(key, FEAT_DIMS, SKIP)
    key, rgb_layers = make_mlp(key, RGB_DIMS, SKIP_RGB)
    return {"feat": feat_layers, "rgb": rgb_layers}


# ------------------------------- main -------------------------------------------
if __name__ == "__main__":
    key = jax.random.PRNGKey(0)
    params = init_params(key)

    # small shapes: batch=2, rays=16, samples=8  ->  N = 256 points
    k1, k2, k3 = jax.random.split(jax.random.PRNGKey(0), 3)
    points_3D = jax.random.normal(k1, (2, 16, 8, 3), jnp.float32) * 3.0 + 0.1
    rays = jax.random.normal(k2, (2, 16, 8, 3), jnp.float32)
    rays_unit = rays / jnp.linalg.norm(rays, axis=-1, keepdims=True)
    app_outside = jax.random.normal(k3, (2, 16, 8, APPEAR_DIM), jnp.float32)

    rgb, density = background_nerf_forward(points_3D, rays_unit, app_outside, params)
    jax.block_until_ready((rgb, density))

    rgb_ref, density_ref = reference_forward(points_3D, rays_unit, app_outside, params)
    np.testing.assert_allclose(np.asarray(rgb), np.asarray(rgb_ref), rtol=1e-3, atol=1e-3)
    np.testing.assert_allclose(np.asarray(density), np.asarray(density_ref),
                               rtol=1e-3, atol=1e-3)
    assert rgb.shape == (2, 16, 8, 3) and density.shape == (2, 16, 8)

    print("KERNEL_OK")
</pallas_src>

<mosaic_0001>
module attributes {stable_mosaic.version = 11 : i64} {
  func.func @_bg_nerf_kernel(%arg0: i32, %arg1: memref<3x1024xf32, #tpu.memory_space<vmem>>, %arg2: memref<3x1024xf32, #tpu.memory_space<vmem>>, %arg3: memref<8x1024xf32, #tpu.memory_space<vmem>>, %arg4: memref<64x40xf32, #tpu.memory_space<vmem>>, %arg5: memref<144x32xf32, #tpu.memory_space<vmem>>, %arg6: memref<32x24xf32, #tpu.memory_space<vmem>>, %arg7: memref<80x1xf32, #tpu.memory_space<vmem>>, %arg8: memref<4x1024xf32, #tpu.memory_space<vmem>>) attributes {dimension_semantics = [#tpu.dimension_semantics<parallel>], iteration_bounds = array<i64: 1>, scalar_prefetch = 0 : i64, scratch_operands = 0 : i64, tpu.core_type = #tpu.core_type<tc>, window_params = [{transform_indices = @transform_0, window_bounds = array<i64: 3, 1024>}, {transform_indices = @transform_1, window_bounds = array<i64: 3, 1024>}, {transform_indices = @transform_2, window_bounds = array<i64: 8, 1024>}, {pipeline_mode = #tpu.pipeline_mode<synchronous>, transform_indices = @transform_3, window_bounds = array<i64: 64, 40>}, {pipeline_mode = #tpu.pipeline_mode<synchronous>, transform_indices = @transform_4, window_bounds = array<i64: 144, 32>}, {pipeline_mode = #tpu.pipeline_mode<synchronous>, transform_indices = @transform_5, window_bounds = array<i64: 32, 24>}, {pipeline_mode = #tpu.pipeline_mode<synchronous>, transform_indices = @transform_6, window_bounds = array<i64: 80, 1>}, {transform_indices = @transform_7, window_bounds = array<i64: 4, 1024>}]} {
    %cst = arith.constant 1.000000e+00 : f32
    %0 = vector.broadcast %cst : f32 to vector<1x512xf32>
    %cst_0 = arith.constant 0.000000e+00 : f32
    %1 = vector.broadcast %cst_0 : f32 to vector<3x512xf32>
    %cst_1 = arith.constant 0.000000e+00 : f32
    %2 = vector.broadcast %cst_1 : f32 to vector<1x512xf32>
    %c0 = arith.constant 0 : index
    %c0_2 = arith.constant 0 : index
    %3 = vector.load %arg1[%c0, %c0_2] : memref<3x1024xf32, #tpu.memory_space<vmem>>, vector<3x512xf32>
    %4 = arith.mulf %3, %3 : vector<3x512xf32>
    %5 = vector.extract_strided_slice %4 {offsets = [0, 0], sizes = [1, 512], strides = [1, 1]} : vector<3x512xf32> to vector<1x512xf32>
    %6 = vector.extract_strided_slice %4 {offsets = [1, 0], sizes = [1, 512], strides = [1, 1]} : vector<3x512xf32> to vector<1x512xf32>
    %7 = arith.addf %5, %6 : vector<1x512xf32>
    %8 = vector.extract_strided_slice %4 {offsets = [2, 0], sizes = [1, 512], strides = [1, 1]} : vector<3x512xf32> to vector<1x512xf32>
    %9 = arith.addf %7, %8 : vector<1x512xf32>
    %10 = math.rsqrt %9 : vector<1x512xf32>
    %11 = vector.broadcast %10 : vector<1x512xf32> to vector<3x512xf32>
    %12 = arith.mulf %3, %11 : vector<3x512xf32>
    %13 = tpu.concatenate %12, %10 in 0 : vector<3x512xf32>, vector<1x512xf32> -> vector<4x512xf32>
    %cst_3 = arith.constant 3.14159274 : f32
    %14 = vector.broadcast %cst_3 : f32 to vector<4x512xf32>
    %15 = arith.mulf %13, %14 : vector<4x512xf32>
    %cst_4 = arith.constant 12.566371 : f32
    %16 = vector.broadcast %cst_4 : f32 to vector<4x512xf32>
    %17 = arith.mulf %13, %16 : vector<4x512xf32>
    %18 = tpu.concatenate %15, %17 in 0 : vector<4x512xf32>, vector<4x512xf32> -> vector<8x512xf32>
    %19 = math.sin %18 : vector<8x512xf32>
    %20 = math.cos %18 : vector<8x512xf32>
    %cst_5 = arith.constant 2.000000e+00 : f32
    %21 = vector.broadcast %cst_5 : f32 to vector<8x512xf32>
    %22 = arith.mulf %21, %19 : vector<8x512xf32>
    %23 = arith.mulf %22, %20 : vector<8x512xf32>
    %cst_6 = arith.constant 2.000000e+00 : f32
    %24 = vector.broadcast %cst_6 : f32 to vector<8x512xf32>
    %25 = arith.mulf %24, %19 : vector<8x512xf32>
    %26 = arith.mulf %25, %19 : vector<8x512xf32>
    %cst_7 = arith.constant 1.000000e+00 : f32
    %27 = vector.broadcast %cst_7 : f32 to vector<8x512xf32>
    %28 = arith.subf %27, %26 : vector<8x512xf32>
    %29 = tpu.concatenate %13, %0, %1, %19, %23, %20, %28 in 0 : vector<4x512xf32>, vector<1x512xf32>, vector<3x512xf32>, vector<8x512xf32>, vector<8x512xf32>, vector<8x512xf32>, vector<8x512xf32> -> vector<40x512xf32>
    %c0_8 = arith.constant 0 : index
    %c0_9 = arith.constant 0 : index
    %30 = vector.load %arg4[%c0_8, %c0_9] : memref<64x40xf32, #tpu.memory_space<vmem>>, vector<32x40xf32>
    %cst_10 = arith.constant dense<0.000000e+00> : vector<32x512xf32>
    %31 = tpu.matmul %30, %29, %cst_10 {dimension_numbers = #tpu.dot_dimension_numbers<[1], [0], [0], [1], [0, 0, 1, 1], [], []>} : vector<32x40xf32>, vector<40x512xf32>, vector<32x512xf32> -> vector<32x512xf32>
    %cst_11 = arith.constant 0.000000e+00 : f32
    %32 = vector.broadcast %cst_11 : f32 to vector<32x512xf32>
    %33 = arith.maximumf %31, %32 : vector<32x512xf32>
    %c0_12 = arith.constant 0 : index
    %c0_13 = arith.constant 0 : index
    %34 = vector.load %arg5[%c0_12, %c0_13] : memref<144x32xf32, #tpu.memory_space<vmem>>, vector<32x32xf32>
    %cst_14 = arith.constant dense<0.000000e+00> : vector<32x512xf32>
    %35 = tpu.matmul %34, %33, %cst_14 {dimension_numbers = #tpu.dot_dimension_numbers<[1], [0], [0], [1], [0, 0, 1, 1], [], []>} : vector<32x32xf32>, vector<32x512xf32>, vector<32x512xf32> -> vector<32x512xf32>
    %c0_15 = arith.constant 0 : index
    %c0_16 = arith.constant 0 : index
    %36 = vector.load %arg7[%c0_15, %c0_16] : memref<80x1xf32, #tpu.memory_space<vmem>>, vector<32x1xf32>
    %37 = vector.broadcast %36 : vector<32x1xf32> to vector<32x512xf32>
    %38 = arith.addf %35, %37 : vector<32x512xf32>
    %cst_17 = arith.constant 0.000000e+00 : f32
    %39 = vector.broadcast %cst_17 : f32 to vector<32x512xf32>
    %40 = arith.maximumf %38, %39 : vector<32x512xf32>
    %c32 = arith.constant 32 : index
    %c0_18 = arith.constant 0 : index
    %41 = vector.load %arg5[%c32, %c0_18] : memref<144x32xf32, #tpu.memory_space<vmem>>, vector<32x32xf32>
    %cst_19 = arith.constant dense<0.000000e+00> : vector<32x512xf32>
    %42 = tpu.matmul %41, %40, %cst_19 {dimension_numbers = #tpu.dot_dimension_numbers<[1], [0], [0], [1], [0, 0, 1, 1], [], []>} : vector<32x32xf32>, vector<32x512xf32>, vector<32x512xf32> -> vector<32x512xf32>
    %c32_20 = arith.constant 32 : index
    %c0_21 = arith.constant 0 : index
    %43 = vector.load %arg4[%c32_20, %c0_21] : memref<64x40xf32, #tpu.memory_space<vmem>>, vector<32x40xf32>
    %cst_22 = arith.constant dense<0.000000e+00> : vector<32x512xf32>
    %44 = tpu.matmul %43, %29, %cst_22 {dimension_numbers = #tpu.dot_dimension_numbers<[1], [0], [0], [1], [0, 0, 1, 1], [], []>} : vector<32x40xf32>, vector<40x512xf32>, vector<32x512xf32> -> vector<32x512xf32>
    %45 = arith.addf %42, %44 : vector<32x512xf32>
    %cst_23 = arith.constant 0.000000e+00 : f32
    %46 = vector.broadcast %cst_23 : f32 to vector<32x512xf32>
    %47 = arith.maximumf %45, %46 : vector<32x512xf32>
    %c64 = arith.constant 64 : index
    %c0_24 = arith.constant 0 : index
    %48 = vector.load %arg5[%c64, %c0_24] : memref<144x32xf32, #tpu.memory_space<vmem>>, vector<33x32xf32>
    %cst_25 = arith.constant dense<0.000000e+00> : vector<33x512xf32>
    %49 = tpu.matmul %48, %47, %cst_25 {dimension_numbers = #tpu.dot_dimension_numbers<[1], [0], [0], [1], [0, 0, 1, 1], [], []>} : vector<33x32xf32>, vector<32x512xf32>, vector<33x512xf32> -> vector<33x512xf32>
    %c32_26 = arith.constant 32 : index
    %c0_27 = arith.constant 0 : index
    %50 = vector.load %arg7[%c32_26, %c0_27] : memref<80x1xf32, #tpu.memory_space<vmem>>, vector<33x1xf32>
    %51 = vector.broadcast %50 : vector<33x1xf32> to vector<33x512xf32>
    %52 = arith.addf %49, %51 : vector<33x512xf32>
    %53 = vector.extract_strided_slice %52 {offsets = [0, 0], sizes = [32, 512], strides = [1, 1]} : vector<33x512xf32> to vector<32x512xf32>
    %cst_28 = arith.constant 0.000000e+00 : f32
    %54 = vector.broadcast %cst_28 : f32 to vector<32x512xf32>
    %55 = arith.maximumf %53, %54 : vector<32x512xf32>
    %56 = vector.extract_strided_slice %52 {offsets = [32, 0], sizes = [1, 512], strides = [1, 1]} : vector<33x512xf32> to vector<1x512xf32>
    %cst_29 = arith.constant 0.000000e+00 : f32
    %57 = vector.broadcast %cst_29 : f32 to vector<1x512xf32>
    %58 = arith.maximumf %56, %57 : vector<1x512xf32>
    %59 = math.absf %56 : vector<1x512xf32>
    %cst_30 = arith.constant 0.000000e+00 : f32
    %60 = vector.broadcast %cst_30 : f32 to vector<1x512xf32>
    %61 = arith.subf %60, %59 : vector<1x512xf32>
    %62 = math.exp %61 : vector<1x512xf32>
    %63 = math.log1p %62 : vector<1x512xf32>
    %64 = arith.addf %58, %63 : vector<1x512xf32>
    %c0_31 = arith.constant 0 : index
    %c0_32 = arith.constant 0 : index
    %65 = vector.load %arg2[%c0_31, %c0_32] : memref<3x1024xf32, #tpu.memory_space<vmem>>, vector<3x512xf32>
    %cst_33 = arith.constant 3.14159274 : f32
    %66 = vector.broadcast %cst_33 : f32 to vector<3x512xf32>
    %67 = arith.mulf %65, %66 : vector<3x512xf32>
    %68 = tpu.concatenate %67, %2 in 0 : vector<3x512xf32>, vector<1x512xf32> -> vector<4x512xf32>
    %69 = math.sin %68 : vector<4x512xf32>
    %70 = math.cos %68 : vector<4x512xf32>
    %cst_34 = arith.constant 2.000000e+00 : f32
    %71 = vector.broadcast %cst_34 : f32 to vector<4x512xf32>
    %72 = arith.mulf %71, %69 : vector<4x512xf32>
    %73 = arith.mulf %72, %70 : vector<4x512xf32>
    %cst_35 = arith.constant 2.000000e+00 : f32
    %74 = vector.broadcast %cst_35 : f32 to vector<4x512xf32>
    %75 = arith.mulf %74, %69 : vector<4x512xf32>
    %76 = arith.mulf %75, %69 : vector<4x512xf32>
    %cst_36 = arith.constant 1.000000e+00 : f32
    %77 = vector.broadcast %cst_36 : f32 to vector<4x512xf32>
    %78 = arith.subf %77, %76 : vector<4x512xf32>
    %c0_37 = arith.constant 0 : index
    %c0_38 = arith.constant 0 : index
    %79 = vector.load %arg3[%c0_37, %c0_38] : memref<8x1024xf32, #tpu.memory_space<vmem>>, vector<8x512xf32>
    %80 = tpu.concatenate %69, %73, %70, %78, %79 in 0 : vector<4x512xf32>, vector<4x512xf32>, vector<4x512xf32>, vector<4x512xf32>, vector<8x512xf32> -> vector<24x512xf32>
    %c104 = arith.constant 104 : index
    %c0_39 = arith.constant 0 : index
    %81 = vector.load %arg5[%c104, %c0_39] : memref<144x32xf32, #tpu.memory_space<vmem>>, vector<32x32xf32>
    %cst_40 = arith.constant dense<0.000000e+00> : vector<32x512xf32>
    %82 = tpu.matmul %81, %55, %cst_40 {dimension_numbers = #tpu.dot_dimension_numbers<[1], [0], [0], [1], [0, 0, 1, 1], [], []>} : vector<32x32xf32>, vector<32x512xf32>, vector<32x512xf32> -> vector<32x512xf32>
    %c0_41 = arith.constant 0 : index
    %c0_42 = arith.constant 0 : index
    %83 = vector.load %arg6[%c0_41, %c0_42] : memref<32x24xf32, #tpu.memory_space<vmem>>, vector<32x24xf32>
    %cst_43 = arith.constant dense<0.000000e+00> : vector<32x512xf32>
    %84 = tpu.matmul %83, %80, %cst_43 {dimension_numbers = #tpu.dot_dimension_numbers<[1], [0], [0], [1], [0, 0, 1, 1], [], []>} : vector<32x24xf32>, vector<24x512xf32>, vector<32x512xf32> -> vector<32x512xf32>
    %85 = arith.addf %82, %84 : vector<32x512xf32>
    %cst_44 = arith.constant 0.000000e+00 : f32
    %86 = vector.broadcast %cst_44 : f32 to vector<32x512xf32>
    %87 = arith.maximumf %85, %86 : vector<32x512xf32>
    %c136 = arith.constant 136 : index
    %c0_45 = arith.constant 0 : index
    %88 = vector.load %arg5[%c136, %c0_45] : memref<144x32xf32, #tpu.memory_space<vmem>>, vector<3x32xf32>
    %cst_46 = arith.constant dense<0.000000e+00> : vector<3x512xf32>
    %89 = tpu.matmul %88, %87, %cst_46 {dimension_numbers = #tpu.dot_dimension_numbers<[1], [0], [0], [1], [0, 0, 1, 1], [], []>} : vector<3x32xf32>, vector<32x512xf32>, vector<3x512xf32> -> vector<3x512xf32>
    %c72 = arith.constant 72 : index
    %c0_47 = arith.constant 0 : index
    %90 = vector.load %arg7[%c72, %c0_47] : memref<80x1xf32, #tpu.memory_space<vmem>>, vector<3x1xf32>
    %91 = vector.broadcast %90 : vector<3x1xf32> to vector<3x512xf32>
    %92 = arith.addf %89, %91 : vector<3x512xf32>
    %cst_48 = arith.constant 0.000000e+00 : f32
    %93 = vector.broadcast %cst_48 : f32 to vector<3x512xf32>
    %94 = arith.subf %93, %92 : vector<3x512xf32>
    %95 = math.exp %94 : vector<3x512xf32>
    %cst_49 = arith.constant 1.000000e+00 : f32
    %96 = vector.broadcast %cst_49 : f32 to vector<3x512xf32>
    %97 = arith.addf %96, %95 : vector<3x512xf32>
    %cst_50 = arith.constant 1.000000e+00 : f32
    %98 = vector.broadcast %cst_50 : f32 to vector<3x512xf32>
    %99 = arith.divf %98, %97 : vector<3x512xf32>
    %100 = tpu.concatenate %99, %64 in 0 : vector<3x512xf32>, vector<1x512xf32> -> vector<4x512xf32>
    %c0_51 = arith.constant 0 : index
    %c0_52 = arith.constant 0 : index
    %101 = vector.load %arg8[%c0_51, %c0_52] : memref<4x1024xf32, #tpu.memory_space<vmem>>, vector<4x512xf32>
    tpu.vector_store %arg8[%c0_51, %c0_52], %100 {strides = array<i32>} : memref<4x1024xf32, #tpu.memory_space<vmem>>, vector<4x512xf32>,
    %c0_53 = arith.constant 0 : index
    %c512 = arith.constant 512 : index
    %102 = vector.load %arg1[%c0_53, %c512] : memref<3x1024xf32, #tpu.memory_space<vmem>>, vector<3x512xf32>
    %103 = arith.mulf %102, %102 : vector<3x512xf32>
    %104 = vector.extract_strided_slice %103 {offsets = [0, 0], sizes = [1, 512], strides = [1, 1]} : vector<3x512xf32> to vector<1x512xf32>
    %105 = vector.extract_strided_slice %103 {offsets = [1, 0], sizes = [1, 512], strides = [1, 1]} : vector<3x512xf32> to vector<1x512xf32>
    %106 = arith.addf %104, %105 : vector<1x512xf32>
    %107 = vector.extract_strided_slice %103 {offsets = [2, 0], sizes = [1, 512], strides = [1, 1]} : vector<3x512xf32> to vector<1x512xf32>
    %108 = arith.addf %106, %107 : vector<1x512xf32>
    %109 = math.rsqrt %108 : vector<1x512xf32>
    %110 = vector.broadcast %109 : vector<1x512xf32> to vector<3x512xf32>
    %111 = arith.mulf %102, %110 : vector<3x512xf32>
    %112 = tpu.concatenate %111, %109 in 0 : vector<3x512xf32>, vector<1x512xf32> -> vector<4x512xf32>
    %cst_54 = arith.constant 3.14159274 : f32
    %113 = vector.broadcast %cst_54 : f32 to vector<4x512xf32>
    %114 = arith.mulf %112, %113 : vector<4x512xf32>
    %cst_55 = arith.constant 12.566371 : f32
    %115 = vector.broadcast %cst_55 : f32 to vector<4x512xf32>
    %116 = arith.mulf %112, %115 : vector<4x512xf32>
    %117 = tpu.concatenate %114, %116 in 0 : vector<4x512xf32>, vector<4x512xf32> -> vector<8x512xf32>
    %118 = math.sin %117 : vector<8x512xf32>
    %119 = math.cos %117 : vector<8x512xf32>
    %cst_56 = arith.constant 2.000000e+00 : f32
    %120 = vector.broadcast %cst_56 : f32 to vector<8x512xf32>
    %121 = arith.mulf %120, %118 : vector<8x512xf32>
    %122 = arith.mulf %121, %119 : vector<8x512xf32>
    %cst_57 = arith.constant 2.000000e+00 : f32
    %123 = vector.broadcast %cst_57 : f32 to vector<8x512xf32>
    %124 = arith.mulf %123, %118 : vector<8x512xf32>
    %125 = arith.mulf %124, %118 : vector<8x512xf32>
    %cst_58 = arith.constant 1.000000e+00 : f32
    %126 = vector.broadcast %cst_58 : f32 to vector<8x512xf32>
    %127 = arith.subf %126, %125 : vector<8x512xf32>
    %128 = tpu.concatenate %112, %0, %1, %118, %122, %119, %127 in 0 : vector<4x512xf32>, vector<1x512xf32>, vector<3x512xf32>, vector<8x512xf32>, vector<8x512xf32>, vector<8x512xf32>, vector<8x512xf32> -> vector<40x512xf32>
    %c0_59 = arith.constant 0 : index
    %c0_60 = arith.constant 0 : index
    %129 = vector.load %arg4[%c0_59, %c0_60] : memref<64x40xf32, #tpu.memory_space<vmem>>, vector<32x40xf32>
    %cst_61 = arith.constant dense<0.000000e+00> : vector<32x512xf32>
    %130 = tpu.matmul %129, %128, %cst_61 {dimension_numbers = #tpu.dot_dimension_numbers<[1], [0], [0], [1], [0, 0, 1, 1], [], []>} : vector<32x40xf32>, vector<40x512xf32>, vector<32x512xf32> -> vector<32x512xf32>
    %cst_62 = arith.constant 0.000000e+00 : f32
    %131 = vector.broadcast %cst_62 : f32 to vector<32x512xf32>
    %132 = arith.maximumf %130, %131 : vector<32x512xf32>
    %c0_63 = arith.constant 0 : index
    %c0_64 = arith.constant 0 : index
    %133 = vector.load %arg5[%c0_63, %c0_64] : memref<144x32xf32, #tpu.memory_space<vmem>>, vector<32x32xf32>
    %cst_65 = arith.constant dense<0.000000e+00> : vector<32x512xf32>
    %134 = tpu.matmul %133, %132, %cst_65 {dimension_numbers = #tpu.dot_dimension_numbers<[1], [0], [0], [1], [0, 0, 1, 1], [], []>} : vector<32x32xf32>, vector<32x512xf32>, vector<32x512xf32> -> vector<32x512xf32>
    %c0_66 = arith.constant 0 : index
    %c0_67 = arith.constant 0 : index
    %135 = vector.load %arg7[%c0_66, %c0_67] : memref<80x1xf32, #tpu.memory_space<vmem>>, vector<32x1xf32>
    %136 = vector.broadcast %135 : vector<32x1xf32> to vector<32x512xf32>
    %137 = arith.addf %134, %136 : vector<32x512xf32>
    %cst_68 = arith.constant 0.000000e+00 : f32
    %138 = vector.broadcast %cst_68 : f32 to vector<32x512xf32>
    %139 = arith.maximumf %137, %138 : vector<32x512xf32>
    %c32_69 = arith.constant 32 : index
    %c0_70 = arith.constant 0 : index
    %140 = vector.load %arg5[%c32_69, %c0_70] : memref<144x32xf32, #tpu.memory_space<vmem>>, vector<32x32xf32>
    %cst_71 = arith.constant dense<0.000000e+00> : vector<32x512xf32>
    %141 = tpu.matmul %140, %139, %cst_71 {dimension_numbers = #tpu.dot_dimension_numbers<[1], [0], [0], [1], [0, 0, 1, 1], [], []>} : vector<32x32xf32>, vector<32x512xf32>, vector<32x512xf32> -> vector<32x512xf32>
    %c32_72 = arith.constant 32 : index
    %c0_73 = arith.constant 0 : index
    %142 = vector.load %arg4[%c32_72, %c0_73] : memref<64x40xf32, #tpu.memory_space<vmem>>, vector<32x40xf32>
    %cst_74 = arith.constant dense<0.000000e+00> : vector<32x512xf32>
    %143 = tpu.matmul %142, %128, %cst_74 {dimension_numbers = #tpu.dot_dimension_numbers<[1], [0], [0], [1], [0, 0, 1, 1], [], []>} : vector<32x40xf32>, vector<40x512xf32>, vector<32x512xf32> -> vector<32x512xf32>
    %144 = arith.addf %141, %143 : vector<32x512xf32>
    %cst_75 = arith.constant 0.000000e+00 : f32
    %145 = vector.broadcast %cst_75 : f32 to vector<32x512xf32>
    %146 = arith.maximumf %144, %145 : vector<32x512xf32>
    %c64_76 = arith.constant 64 : index
    %c0_77 = arith.constant 0 : index
    %147 = vector.load %arg5[%c64_76, %c0_77] : memref<144x32xf32, #tpu.memory_space<vmem>>, vector<33x32xf32>
    %cst_78 = arith.constant dense<0.000000e+00> : vector<33x512xf32>
    %148 = tpu.matmul %147, %146, %cst_78 {dimension_numbers = #tpu.dot_dimension_numbers<[1], [0], [0], [1], [0, 0, 1, 1], [], []>} : vector<33x32xf32>, vector<32x512xf32>, vector<33x512xf32> -> vector<33x512xf32>
    %c32_79 = arith.constant 32 : index
    %c0_80 = arith.constant 0 : index
    %149 = vector.load %arg7[%c32_79, %c0_80] : memref<80x1xf32, #tpu.memory_space<vmem>>, vector<33x1xf32>
    %150 = vector.broadcast %149 : vector<33x1xf32> to vector<33x512xf32>
    %151 = arith.addf %148, %150 : vector<33x512xf32>
    %152 = vector.extract_strided_slice %151 {offsets = [0, 0], sizes = [32, 512], strides = [1, 1]} : vector<33x512xf32> to vector<32x512xf32>
    %cst_81 = arith.constant 0.000000e+00 : f32
    %153 = vector.broadcast %cst_81 : f32 to vector<32x512xf32>
    %154 = arith.maximumf %152, %153 : vector<32x512xf32>
    %155 = vector.extract_strided_slice %151 {offsets = [32, 0], sizes = [1, 512], strides = [1, 1]} : vector<33x512xf32> to vector<1x512xf32>
    %cst_82 = arith.constant 0.000000e+00 : f32
    %156 = vector.broadcast %cst_82 : f32 to vector<1x512xf32>
    %157 = arith.maximumf %155, %156 : vector<1x512xf32>
    %158 = math.absf %155 : vector<1x512xf32>
    %cst_83 = arith.constant 0.000000e+00 : f32
    %159 = vector.broadcast %cst_83 : f32 to vector<1x512xf32>
    %160 = arith.subf %159, %158 : vector<1x512xf32>
    %161 = math.exp %160 : vector<1x512xf32>
    %162 = math.log1p %161 : vector<1x512xf32>
    %163 = arith.addf %157, %162 : vector<1x512xf32>
    %c0_84 = arith.constant 0 : index
    %c512_85 = arith.constant 512 : index
    %164 = vector.load %arg2[%c0_84, %c512_85] : memref<3x1024xf32, #tpu.memory_space<vmem>>, vector<3x512xf32>
    %cst_86 = arith.constant 3.14159274 : f32
    %165 = vector.broadcast %cst_86 : f32 to vector<3x512xf32>
    %166 = arith.mulf %164, %165 : vector<3x512xf32>
    %167 = tpu.concatenate %166, %2 in 0 : vector<3x512xf32>, vector<1x512xf32> -> vector<4x512xf32>
    %168 = math.sin %167 : vector<4x512xf32>
    %169 = math.cos %167 : vector<4x512xf32>
    %cst_87 = arith.constant 2.000000e+00 : f32
    %170 = vector.broadcast %cst_87 : f32 to vector<4x512xf32>
    %171 = arith.mulf %170, %168 : vector<4x512xf32>
    %172 = arith.mulf %171, %169 : vector<4x512xf32>
    %cst_88 = arith.constant 2.000000e+00 : f32
    %173 = vector.broadcast %cst_88 : f32 to vector<4x512xf32>
    %174 = arith.mulf %173, %168 : vector<4x512xf32>
    %175 = arith.mulf %174, %168 : vector<4x512xf32>
    %cst_89 = arith.constant 1.000000e+00 : f32
    %176 = vector.broadcast %cst_89 : f32 to vector<4x512xf32>
    %177 = arith.subf %176, %175 : vector<4x512xf32>
    %c0_90 = arith.constant 0 : index
    %c512_91 = arith.constant 512 : index
    %178 = vector.load %arg3[%c0_90, %c512_91] : memref<8x1024xf32, #tpu.memory_space<vmem>>, vector<8x512xf32>
    %179 = tpu.concatenate %168, %172, %169, %177, %178 in 0 : vector<4x512xf32>, vector<4x512xf32>, vector<4x512xf32>, vector<4x512xf32>, vector<8x512xf32> -> vector<24x512xf32>
    %c104_92 = arith.constant 104 : index
    %c0_93 = arith.constant 0 : index
    %180 = vector.load %arg5[%c104_92, %c0_93] : memref<144x32xf32, #tpu.memory_space<vmem>>, vector<32x32xf32>
    %cst_94 = arith.constant dense<0.000000e+00> : vector<32x512xf32>
    %181 = tpu.matmul %180, %154, %cst_94 {dimension_numbers = #tpu.dot_dimension_numbers<[1], [0], [0], [1], [0, 0, 1, 1], [], []>} : vector<32x32xf32>, vector<32x512xf32>, vector<32x512xf32> -> vector<32x512xf32>
    %c0_95 = arith.constant 0 : index
    %c0_96 = arith.constant 0 : index
    %182 = vector.load %arg6[%c0_95, %c0_96] : memref<32x24xf32, #tpu.memory_space<vmem>>, vector<32x24xf32>
    %cst_97 = arith.constant dense<0.000000e+00> : vector<32x512xf32>
    %183 = tpu.matmul %182, %179, %cst_97 {dimension_numbers = #tpu.dot_dimension_numbers<[1], [0], [0], [1], [0, 0, 1, 1], [], []>} : vector<32x24xf32>, vector<24x512xf32>, vector<32x512xf32> -> vector<32x512xf32>
    %184 = arith.addf %181, %183 : vector<32x512xf32>
    %cst_98 = arith.constant 0.000000e+00 : f32
    %185 = vector.broadcast %cst_98 : f32 to vector<32x512xf32>
    %186 = arith.maximumf %184, %185 : vector<32x512xf32>
    %c136_99 = arith.constant 136 : index
    %c0_100 = arith.constant 0 : index
    %187 = vector.load %arg5[%c136_99, %c0_100] : memref<144x32xf32, #tpu.memory_space<vmem>>, vector<3x32xf32>
    %cst_101 = arith.constant dense<0.000000e+00> : vector<3x512xf32>
    %188 = tpu.matmul %187, %186, %cst_101 {dimension_numbers = #tpu.dot_dimension_numbers<[1], [0], [0], [1], [0, 0, 1, 1], [], []>} : vector<3x32xf32>, vector<32x512xf32>, vector<3x512xf32> -> vector<3x512xf32>
    %c72_102 = arith.constant 72 : index
    %c0_103 = arith.constant 0 : index
    %189 = vector.load %arg7[%c72_102, %c0_103] : memref<80x1xf32, #tpu.memory_space<vmem>>, vector<3x1xf32>
    %190 = vector.broadcast %189 : vector<3x1xf32> to vector<3x512xf32>
    %191 = arith.addf %188, %190 : vector<3x512xf32>
    %cst_104 = arith.constant 0.000000e+00 : f32
    %192 = vector.broadcast %cst_104 : f32 to vector<3x512xf32>
    %193 = arith.subf %192, %191 : vector<3x512xf32>
    %194 = math.exp %193 : vector<3x512xf32>
    %cst_105 = arith.constant 1.000000e+00 : f32
    %195 = vector.broadcast %cst_105 : f32 to vector<3x512xf32>
    %196 = arith.addf %195, %194 : vector<3x512xf32>
    %cst_106 = arith.constant 1.000000e+00 : f32
    %197 = vector.broadcast %cst_106 : f32 to vector<3x512xf32>
    %198 = arith.divf %197, %196 : vector<3x512xf32>
    %199 = tpu.concatenate %198, %163 in 0 : vector<3x512xf32>, vector<1x512xf32> -> vector<4x512xf32>
    %c0_107 = arith.constant 0 : index
    %c512_108 = arith.constant 512 : index
    %200 = vector.load %arg8[%c0_107, %c512_108] : memref<4x1024xf32, #tpu.memory_space<vmem>>, vector<4x512xf32>
    tpu.vector_store %arg8[%c0_107, %c512_108], %199 {strides = array<i32>} : memref<4x1024xf32, #tpu.memory_space<vmem>>, vector<4x512xf32>,
    return
  }
  func.func @transform_0(%arg0: i32) -> (i32, i32) {
    %c0_i32 = arith.constant 0 : i32
    %c0_i32_0 = arith.constant 0 : i32
    return %c0_i32, %arg0 : i32, i32
  }
  func.func @transform_1(%arg0: i32) -> (i32, i32) {
    %c0_i32 = arith.constant 0 : i32
    %c0_i32_0 = arith.constant 0 : i32
    return %c0_i32, %arg0 : i32, i32
  }
  func.func @transform_2(%arg0: i32) -> (i32, i32) {
    %c0_i32 = arith.constant 0 : i32
    %c0_i32_0 = arith.constant 0 : i32
    return %c0_i32, %arg0 : i32, i32
  }
  func.func @transform_3(%arg0: i32) -> (i32, i32) {
    %c0_i32 = arith.constant 0 : i32
    %c0_i32_0 = arith.constant 0 : i32
    %c0_i32_1 = arith.constant 0 : i32
    return %c0_i32, %c0_i32_0 : i32, i32
  }
  func.func @transform_4(%arg0: i32) -> (i32, i32) {
    %c0_i32 = arith.constant 0 : i32
    %c0_i32_0 = arith.constant 0 : i32
    %c0_i32_1 = arith.constant 0 : i32
    return %c0_i32, %c0_i32_0 : i32, i32
  }
  func.func @transform_5(%arg0: i32) -> (i32, i32) {
    %c0_i32 = arith.constant 0 : i32
    %c0_i32_0 = arith.constant 0 : i32
    %c0_i32_1 = arith.constant 0 : i32
    return %c0_i32, %c0_i32_0 : i32, i32
  }
  func.func @transform_6(%arg0: i32) -> (i32, i32) {
    %c0_i32 = arith.constant 0 : i32
    %c0_i32_0 = arith.constant 0 : i32
    %c0_i32_1 = arith.constant 0 : i32
    return %c0_i32, %c0_i32_0 : i32, i32
  }
  func.func @transform_7(%arg0: i32) -> (i32, i32) {
    %c0_i32 = arith.constant 0 : i32
    %c0_i32_0 = arith.constant 0 : i32
    return %c0_i32, %arg0 : i32, i32
  }
}

</mosaic_0001>

<llo_original>
// kernel: tpu_custom_call.1
$region0: #{tpu_custom_call.1}
  #allocation0 [shape = 'u32[]', space=smem, size = 0x4, offset = 0x4, fixed_abs, tag = 'smem constant byte address 0x4 - core index']
  #allocation1 [shape = 'u32[144,128]{1,0:T(1,128)}', space=vmem, size = 0x12000, scoped, tag = 'internal scratch']
  %s0 = inlined_call_operand.vmem [shape: f32[3,1024], index: 0, kind: input, shape index: {}]
  %s1 = inlined_call_operand.vmem [shape: f32[3,1024], index: 1, kind: input, shape index: {}]
  %s2 = inlined_call_operand.vmem [shape: f32[8,1024], index: 2, kind: input, shape index: {}]
  %s3 = inlined_call_operand.vmem [shape: f32[64,40], index: 3, kind: input, shape index: {}]
  %s4 = inlined_call_operand.vmem [shape: f32[144,32], index: 4, kind: input, shape index: {}]
  %s5 = inlined_call_operand.vmem [shape: f32[32,24], index: 5, kind: input, shape index: {}]
  %s6 = inlined_call_operand.vmem [shape: f32[80,1], index: 6, kind: input, shape index: {}]
  %s7 = inlined_call_operand.hbm [shape: f32[4,1024], index: 7, kind: output, shape index: {}]
  %s8 = sld [smem:[#allocation0]]
  $region38: #{tpu_custom_call.1} parent=0
    _
  %s10 = ssub.s32 1, %s8
  %s11 = scalar_select 0, %s10, %s8
  $region1: #{tpu_custom_call.1} parent=0
    #allocation2 [shape = 'u8[16384]{0}', space=vmem, size = 0x4000, scoped, tag = 'output window, operand 0, single buffered']
    #allocation3 [shape = 's32[1]{0}', space=sflag, size = 0x4, scoped, tag = 'scoped memory for tpu_custom_call.1']
    %12 = vsyncpa [#allocation3], 0
    // Predicated region
    $region2: #{tpu_custom_call.1} parent=1 // pred_check
      _
    $region3: #{tpu_custom_call.1} parent=1 // pred_check_branch
      %14 = sbr.rel (0) target = $region5
    $region4: #{tpu_custom_call.1} parent=1 // pred_region
      _
    $region5: #{tpu_custom_call.1} parent=1 // pred_fallthru
      _
    // Predicated region
    $region6: #{tpu_custom_call.1} parent=1 // pred_check
      _
    $region7: #{tpu_custom_call.1} parent=1 // pred_check_branch
      %16 = sbr.rel (0) target = $region9
    $region8: #{tpu_custom_call.1} parent=1 // pred_region
      _
    $region9: #{tpu_custom_call.1} parent=1 // pred_fallthru
      _
    // Predicated region
    $region10: #{tpu_custom_call.1} parent=1 // pred_check
      _
    $region11: #{tpu_custom_call.1} parent=1 // pred_check_branch
      %18 = sbr.rel (0) target = $region13
    $region12: #{tpu_custom_call.1} parent=1 // pred_region
      _
    $region13: #{tpu_custom_call.1} parent=1 // pred_fallthru
      _
    // Predicated region
    $region14: #{tpu_custom_call.1} parent=1 // pred_check
      _
    $region15: #{tpu_custom_call.1} parent=1 // pred_check_branch
      %20 = sbr.rel (0) target = $region17
    $region16: #{tpu_custom_call.1} parent=1 // pred_region
      _
    $region17: #{tpu_custom_call.1} parent=1 // pred_fallthru
      _
    // Predicated region
    $region18: #{tpu_custom_call.1} parent=1 // pred_check
      _
    $region19: #{tpu_custom_call.1} parent=1 // pred_check_branch
      %22 = sbr.rel (0) target = $region21
    $region20: #{tpu_custom_call.1} parent=1 // pred_region
      _
    $region21: #{tpu_custom_call.1} parent=1 // pred_fallthru
      _
    // Predicated region
    $region22: #{tpu_custom_call.1} parent=1 // pred_check
      _
    $region23: #{tpu_custom_call.1} parent=1 // pred_check_branch
      %24 = sbr.rel (0) target = $region25
    $region24: #{tpu_custom_call.1} parent=1 // pred_region
      _
    $region25: #{tpu_custom_call.1} parent=1 // pred_fallthru
      _
    // Predicated region
    $region26: #{tpu_custom_call.1} parent=1 // pred_check
      _
    $region27: #{tpu_custom_call.1} parent=1 // pred_check_branch
      %26 = sbr.rel (0) target = $region29
    $region28: #{tpu_custom_call.1} parent=1 // pred_region
      _
    $region29: #{tpu_custom_call.1} parent=1 // pred_fallthru
      _
    %v27 = vld [vmem:[%s0] sm:$0x77]
    %v28 = vld [vmem:[%s0 + $0x8] sm:$0x77]
    %v29 = vmul.f32 %v27, %v27
    %v30 = vmul.f32 %v28, %v28
    %v33 = vrot.slane %v29, 5
    %v34 = vrot.slane %v33, 4
    %v35 = vrot.slane %v30, 5
    %v36 = vrot.slane %v35, 4
    %v39 = vadd.f32 %v29, %v34
    %v40 = vadd.f32 %v30, %v36
    %v41 = vrot.slane %v29, 6
    %v42 = vrot.slane %v41, 4
    %v43 = vrot.slane %v30, 6
    %v44 = vrot.slane %v43, 4
    %v47 = vadd.f32 %v39, %v42
    %v48 = vadd.f32 %v40, %v44
    %v49 = vrsqrt.pop %v47
    %v50 = vrsqrt.pop %v48
    %v53 = vlaneseq
    %v54 = vshrl.u32 %v53, 7
    %v55 = vsub.s32 0, %v54
    %v56 = vrot.slane %v49, %v55
    %v57 = vlaneseq
    %v58 = vshrl.u32 %v57, 7
    %v59 = vsub.s32 4, %v58
    %v60 = vrot.slane %v49, %v59
    %v61 = vlaneseq
    %v62 = vshrl.u32 %v61, 7
    %v63 = vsub.s32 0, %v62
    %v64 = vrot.slane %v50, %v63
    %v65 = vlaneseq
    %v66 = vshrl.u32 %v65, 7
    %v67 = vsub.s32 4, %v66
    %v68 = vrot.slane %v50, %v67
    %v73 = vlaneseq
    %v74 = vshrl.u32 %v73, 7
    %v75 = vsub.s32 0, %v74
    %v76 = vrot.slane %v56, %v75
    %v77 = vlaneseq
    %v78 = vshrl.u32 %v77, 7
    %v79 = vsub.s32 0, %v78
    %v80 = vrot.slane %v60, %v79
    %v81 = vlaneseq
    %v82 = vshrl.u32 %v81, 7
    %v83 = vsub.s32 0, %v82
    %v84 = vrot.slane %v64, %v83
    %v85 = vlaneseq
    %v86 = vshrl.u32 %v85, 7
    %v87 = vsub.s32 0, %v86
    %v88 = vrot.slane %v68, %v87
    %v93 = vcombine.low %v76, %v80
    %v94 = vcombine.low %v84, %v88
    %v97 = vmul.f32 %v27, %v93
    %v98 = vmul.f32 %v28, %v94
    %v101 = vcombine.high %v97, %v97
    %v102 = vcombine.high %v98, %v98
    %vm105 = vcmask 1042432
    %v106 = vsel %vm105, %v97, %v56
    %v107 = vsel %vm105, %v101, %v60
    %v108 = vsel %vm105, %v98, %v64
    %v109 = vsel %vm105, %v102, %v68
    %v110 = vmul.f32 %v106, 3.1415927
    %v111 = vmul.f32 %v107, 3.1415927
    %v112 = vmul.f32 %v108, 3.1415927
    %v113 = vmul.f32 %v109, 3.1415927
    %v114 = vmul.f32 %v106, 12.566371
    %v115 = vmul.f32 %v107, 12.566371
    %v116 = vmul.f32 %v108, 12.566371
    %v117 = vmul.f32 %v109, 12.566371
    %v122 = vrot.slane %v114, 4
    %v123 = vrot.slane %v115, 4
    %v124 = vrot.slane %v116, 4
    %v125 = vrot.slane %v117, 4
    %vm130 = vcmask 1043456
    %v131 = vsel %vm130, %v110, %v122
    %v132 = vsel %vm130, %v111, %v123
    %v133 = vsel %vm130, %v112, %v124
    %v134 = vsel %vm130, %v113, %v125
    %v135 = vand.u32 2147483647, %v131
    %vm136 = vcmp.le.f32.partialorder %v135, 0.7853982
    %vm137 = vcmp.lt.s32.totalorder %v131, 0
    %v138 = vand.u32 %v131, 2139095040
    %v139 = vshrl.u32 %v138, 23
    %v140 = vsub.s32 %v139, 127
    %v141 = vand.u32 2147483647, %v131
    %v142 = vand.u32 %v141, 8388607
    %v143 = vor.u32 %v142, 8388608
    %v144 = vsub.s32 0, %v143
    %v145 = vadd.s32 %v140, 1
    %vm146 = vcmp.gt.s32.totalorder %v145, 0
    %v147 = vsel %vm146, %v145, 0
    %v148 = vshrl.u32 %v147, 5
    %v149 = vand.u32 %v147, 31
    %v150 = vsub.s32 32, %v149
    %v151 = vshrl.u32 683565275, %v150
    %v152 = vshll.u32 683565275, %v149
    %v153 = vshrl.u32 2475754826, %v150
    %v154 = vor.u32 %v152, %v153
    %v155 = vshll.u32 2475754826, %v149
    %v156 = vshrl.u32 2131351028, %v150
    %v157 = vor.u32 %v155, %v156
    %v158 = vshll.u32 2131351028, %v149
    %v159 = vshrl.u32 2102212464, %v150
    %v160 = vor.u32 %v158, %v159
    %v161 = vshll.u32 2102212464, %v149
    %v162 = vshrl.u32 920167782, %v150
    %v163 = vor.u32 %v161, %v162
    %v164 = vshll.u32 920167782, %v149
    %v165 = vshrl.u32 1326507024, %v150
    %v166 = vor.u32 %v164, %v165
    %vm167 = vcmp.lt.s32.totalorder %v148, 1
    %vm168 = vcmp.lt.s32.totalorder %v148, 2
    %vm169 = vcmp.lt.s32.totalorder %v148, 3
    %vm170 = vcmp.lt.s32.totalorder %v148, 4
    %v171 = vsel %vm167, %v151, %v154
    %v172 = vsel %vm170, %v160, 2102212464
    %v173 = vsel %vm169, %v157, %v172
    %v174 = vsel %vm168, %v171, %v173
    %v175 = vsel %vm167, %v154, %v157
    %v176 = vsel %vm170, %v163, 920167782
    %v177 = vsel %vm169, %v160, %v176
    %v178 = vsel %vm168, %v175, %v177
    %v179 = vsel %vm167, %v157, %v160
    %v180 = vsel %vm170, %v166, 1326507024
    %v181 = vsel %vm169, %v163, %v180
    %v182 = vsel %vm168, %v179, %v181
    %v183 = vshll.u32 %v143, 8
    %v184 = vmul.u32.u64.compose %v183, %v182
    %v185 = vextract.low.u32 %v184
    %v186 = vextract.high.u32 %v184
    %v187 = vmul.u32.u64.compose %v183, %v178
    %v188 = vextract.low.u32 %v187
    %v189 = vextract.high.u32 %v187
    %v190 = vmul.u32 %v183, %v174
    %v191 = vadd.s32 %v186, %v188
    %vm192 = vc.u32 %v186, %v188
    %v193 = vadd.s32 %v189, 1
    %v194 = vsel %vm192, %v193, %v189
    %v195 = vadd.s32 %v190, %v194
    %v196 = vadd.s32 %v195, 536870912
    %v197 = vshrl.u32 %v196, 30
    %v198 = vshll.u32 %v197, 30
    %v199 = vsub.s32 %v195, %v198
    %vm200 = vcmp.lt.s32.totalorder %v199, 0
    %v201 = vsub.s32 0, %v199
    %v202 = vsel %vm200, %v201, %v199
    %v203 = vclz %v202
    %v204 = vsub.s32 %v203, 2
    %vm205 = vcmp.gt.s32.totalorder 0, %v204
    %v206 = vsel %vm205, 0, %v204
    %v207 = vsub.s32 32, %v206
    %v208 = vshll.u32 %v199, %v206
    %v209 = vshrl.u32 %v191, %v207
    %v210 = vor.u32 %v208, %v209
    %v211 = vsub.s32 4294967266, %v206
    %v212 = vadd.s32 %v211, 127
    %v213 = vshll.u32 %v212, 23
    %v214 = vor.u32 4788187, %v213
    %v215 = vand.u32 2147483647, %v214
    %v217 = vcvt.s32.f32 %v210
    %v218 = vmul.f32 %v217, %v215
    %v219 = vxor.u32 %v218, 2147483648
    %v220 = vsel %vm137, %v219, %v218
    %v221 = vsub.s32 4, %v197
    %v222 = vsel %vm137, %v221, %v197
    %v223 = vsel %vm136, %v131, %v220
    %v224 = vsel %vm136, 0, %v222
    %v225 = vcosq.f32.pop %v223
    %v226 = vsinq.f32.pop %v223
    %vm227 = vweird.f32 %v131
    %v228 = vadd.s32 %v224, 3
    %v229 = vand.u32 %v228, 3
    %vm230 = vcmp.lt.s32.totalorder %v229, 2
    %vm231 = vcmp.eq.s32.totalorder %v229, 0
    %v232 = vxor.u32 %v226, 2147483648
    %v233 = vsel %vm231, %v225, %v232
    %vm234 = vcmp.eq.s32.totalorder %v229, 2
    %v235 = vxor.u32 %v225, 2147483648
    %v236 = vsel %vm234, %v235, %v226
    %v237 = vsel %vm230, %v233, %v236
    %v238 = vsel %vm227, nan, %v237
    %v239 = vand.u32 2147483647, %v132
    %vm240 = vcmp.le.f32.partialorder %v239, 0.7853982
    %vm241 = vcmp.lt.s32.totalorder %v132, 0
    %v242 = vand.u32 %v132, 2139095040
    %v243 = vshrl.u32 %v242, 23
    %v244 = vsub.s32 %v243, 127
    %v245 = vand.u32 2147483647, %v132
    %v246 = vand.u32 %v245, 8388607
    %v247 = vor.u32 %v246, 8388608
    %v248 = vsub.s32 0, %v247
    %v249 = vadd.s32 %v244, 1
    %vm250 = vcmp.gt.s32.totalorder %v249, 0
    %v251 = vsel %vm250, %v249, 0
    %v252 = vshrl.u32 %v251, 5
    %v253 = vand.u32 %v251, 31
    %v254 = vsub.s32 32, %v253
    %v255 = vshrl.u32 683565275, %v254
    %v256 = vshll.u32 683565275, %v253
    %v257 = vshrl.u32 2475754826, %v254
    %v258 = vor.u32 %v256, %v257
    %v259 = vshll.u32 2475754826, %v253
    %v260 = vshrl.u32 2131351028, %v254
    %v261 = vor.u32 %v259, %v260
    %v262 = vshll.u32 2131351028, %v253
    %v263 = vshrl.u32 2102212464, %v254
    %v264 = vor.u32 %v262, %v263
    %v265 = vshll.u32 2102212464, %v253
    %v266 = vshrl.u32 920167782, %v254
    %v267 = vor.u32 %v265, %v266
    %v268 = vshll.u32 920167782, %v253
    %v269 = vshrl.u32 1326507024, %v254
    %v270 = vor.u32 %v268, %v269
    %vm271 = vcmp.lt.s32.totalorder %v252, 1
    %vm272 = vcmp.lt.s32.totalorder %v252, 2
    %vm273 = vcmp.lt.s32.totalorder %v252, 3
    %vm274 = vcmp.lt.s32.totalorder %v252, 4
    %v275 = vsel %vm271, %v255, %v258
    %v276 = vsel %vm274, %v264, 2102212464
    %v277 = vsel %vm273, %v261, %v276
    %v278 = vsel %vm272, %v275, %v277
    %v279 = vsel %vm271, %v258, %v261
    %v280 = vsel %vm274, %v267, 920167782
    %v281 = vsel %vm273, %v264, %v280
    %v282 = vsel %vm272, %v279, %v281
    %v283 = vsel %vm271, %v261, %v264
    %v284 = vsel %vm274, %v270, 1326507024
    %v285 = vsel %vm273, %v267, %v284
    %v286 = vsel %vm272, %v283, %v285
    %v287 = vshll.u32 %v247, 8
    %v288 = vmul.u32.u64.compose %v287, %v286
    %v289 = vextract.low.u32 %v288
    %v290 = vextract.high.u32 %v288
    %v291 = vmul.u32.u64.compose %v287, %v282
    %v292 = vextract.low.u32 %v291
    %v293 = vextract.high.u32 %v291
    %v294 = vmul.u32 %v287, %v278
    %v295 = vadd.s32 %v290, %v292
    %vm296 = vc.u32 %v290, %v292
    %v297 = vadd.s32 %v293, 1
    %v298 = vsel %vm296, %v297, %v293
    %v299 = vadd.s32 %v294, %v298
    %v300 = vadd.s32 %v299, 536870912
    %v301 = vshrl.u32 %v300, 30
    %v302 = vshll.u32 %v301, 30
    %v303 = vsub.s32 %v299, %v302
    %vm304 = vcmp.lt.s32.totalorder %v303, 0
    %v305 = vsub.s32 0, %v303
    %v306 = vsel %vm304, %v305, %v303
    %v307 = vclz %v306
    %v308 = vsub.s32 %v307, 2
    %vm309 = vcmp.gt.s32.totalorder 0, %v308
    %v310 = vsel %vm309, 0, %v308
    %v311 = vsub.s32 32, %v310
    %v312 = vshll.u32 %v303, %v310
    %v313 = vshrl.u32 %v295, %v311
    %v314 = vor.u32 %v312, %v313
    %v315 = vsub.s32 4294967266, %v310
    %v316 = vadd.s32 %v315, 127
    %v317 = vshll.u32 %v316, 23
    %v318 = vor.u32 4788187, %v317
    %v319 = vand.u32 2147483647, %v318
    %v321 = vcvt.s32.f32 %v314
    %v322 = vmul.f32 %v321, %v319
    %v323 = vxor.u32 %v322, 2147483648
    %v324 = vsel %vm241, %v323, %v322
    %v325 = vsub.s32 4, %v301
    %v326 = vsel %vm241, %v325, %v301
    %v327 = vsel %vm240, %v132, %v324
    %v328 = vsel %vm240, 0, %v326
    %v329 = vcosq.f32.pop %v327
    %v330 = vsinq.f32.pop %v327
    %vm331 = vweird.f32 %v132
    %v332 = vadd.s32 %v328, 3
    %v333 = vand.u32 %v332, 3
    %vm334 = vcmp.lt.s32.totalorder %v333, 2
    %vm335 = vcmp.eq.s32.totalorder %v333, 0
    %v336 = vxor.u32 %v330, 2147483648
    %v337 = vsel %vm335, %v329, %v336
    %vm338 = vcmp.eq.s32.totalorder %v333, 2
    %v339 = vxor.u32 %v329, 2147483648
    %v340 = vsel %vm338, %v339, %v330
    %v341 = vsel %vm334, %v337, %v340
    %v342 = vsel %vm331, nan, %v341
    %v343 = vand.u32 2147483647, %v133
    %vm344 = vcmp.le.f32.partialorder %v343, 0.7853982
    %vm345 = vcmp.lt.s32.totalorder %v133, 0
    %v346 = vand.u32 %v133, 2139095040
    %v347 = vshrl.u32 %v346, 23
    %v348 = vsub.s32 %v347, 127
    %v349 = vand.u32 2147483647, %v133
    %v350 = vand.u32 %v349, 8388607
    %v351 = vor.u32 %v350, 8388608
    %v352 = vsub.s32 0, %v351
    %v353 = vadd.s32 %v348, 1
    %vm354 = vcmp.gt.s32.totalorder %v353, 0
    %v355 = vsel %vm354, %v353, 0
    %v356 = vshrl.u32 %v355, 5
    %v357 = vand.u32 %v355, 31
    %v358 = vsub.s32 32, %v357
    %v359 = vshrl.u32 683565275, %v358
    %v360 = vshll.u32 683565275, %v357
    %v361 = vshrl.u32 2475754826, %v358
    %v362 = vor.u32 %v360, %v361
    %v363 = vshll.u32 2475754826, %v357
    %v364 = vshrl.u32 2131351028, %v358
    %v365 = vor.u32 %v363, %v364
    %v366 = vshll.u32 2131351028, %v357
    %v367 = vshrl.u32 2102212464, %v358
    %v368 = vor.u32 %v366, %v367
    %v369 = vshll.u32 2102212464, %v357
    %v370 = vshrl.u32 920167782, %v358
    %v371 = vor.u32 %v369, %v370
    %v372 = vshll.u32 920167782, %v357
    %v373 = vshrl.u32 1326507024, %v358
    %v374 = vor.u32 %v372, %v373
    %vm375 = vcmp.lt.s32.totalorder %v356, 1
    %vm376 = vcmp.lt.s32.totalorder %v356, 2
    %vm377 = vcmp.lt.s32.totalorder %v356, 3
    %vm378 = vcmp.lt.s32.totalorder %v356, 4
    %v379 = vsel %vm375, %v359, %v362
    %v380 = vsel %vm378, %v368, 2102212464
    %v381 = vsel %vm377, %v365, %v380
    %v382 = vsel %vm376, %v379, %v381
    %v383 = vsel %vm375, %v362, %v365
    %v384 = vsel %vm378, %v371, 920167782
    %v385 = vsel %vm377, %v368, %v384
    %v386 = vsel %vm376, %v383, %v385
    %v387 = vsel %vm375, %v365, %v368
    %v388 = vsel %vm378, %v374, 1326507024
    %v389 = vsel %vm377, %v371, %v388
    %v390 = vsel %vm376, %v387, %v389
    %v391 = vshll.u32 %v351, 8
    %v392 = vmul.u32.u64.compose %v391, %v390
    %v393 = vextract.low.u32 %v392
    %v394 = vextract.high.u32 %v392
    %v395 = vmul.u32.u64.compose %v391, %v386
    %v396 = vextract.low.u32 %v395
    %v397 = vextract.high.u32 %v395
    %v398 = vmul.u32 %v391, %v382
    %v399 = vadd.s32 %v394, %v396
    %vm400 = vc.u32 %v394, %v396
    %v401 = vadd.s32 %v397, 1
    %v402 = vsel %vm400, %v401, %v397
    %v403 = vadd.s32 %v398, %v402
    %v404 = vadd.s32 %v403, 536870912
    %v405 = vshrl.u32 %v404, 30
    %v406 = vshll.u32 %v405, 30
    %v407 = vsub.s32 %v403, %v406
    %vm408 = vcmp.lt.s32.totalorder %v407, 0
    %v409 = vsub.s32 0, %v407
    %v410 = vsel %vm408, %v409, %v407
    %v411 = vclz %v410
    %v412 = vsub.s32 %v411, 2
    %vm413 = vcmp.gt.s32.totalorder 0, %v412
    %v414 = vsel %vm413, 0, %v412
    %v415 = vsub.s32 32, %v414
    %v416 = vshll.u32 %v407, %v414
    %v417 = vshrl.u32 %v399, %v415
    %v418 = vor.u32 %v416, %v417
    %v419 = vsub.s32 4294967266, %v414
    %v420 = vadd.s32 %v419, 127
    %v421 = vshll.u32 %v420, 23
    %v422 = vor.u32 4788187, %v421
    %v423 = vand.u32 2147483647, %v422
    %v425 = vcvt.s32.f32 %v418
    %v426 = vmul.f32 %v425, %v423
    %v427 = vxor.u32 %v426, 2147483648
    %v428 = vsel %vm345, %v427, %v426
    %v429 = vsub.s32 4, %v405
    %v430 = vsel %vm345, %v429, %v405
    %v431 = vsel %vm344, %v133, %v428
    %v432 = vsel %vm344, 0, %v430
    %v433 = vcosq.f32.pop %v431
    %v434 = vsinq.f32.pop %v431
    %vm435 = vweird.f32 %v133
    %v436 = vadd.s32 %v432, 3
    %v437 = vand.u32 %v436, 3
    %vm438 = vcmp.lt.s32.totalorder %v437, 2
    %vm439 = vcmp.eq.s32.totalorder %v437, 0
    %v440 = vxor.u32 %v434, 2147483648
    %v441 = vsel %vm439, %v433, %v440
    %vm442 = vcmp.eq.s32.totalorder %v437, 2
    %v443 = vxor.u32 %v433, 2147483648
    %v444 = vsel %vm442, %v443, %v434
    %v445 = vsel %vm438, %v441, %v444
    %v446 = vsel %vm435, nan, %v445
    %v447 = vand.u32 2147483647, %v134
    %vm448 = vcmp.le.f32.partialorder %v447, 0.7853982
    %vm449 = vcmp.lt.s32.totalorder %v134, 0
    %v450 = vand.u32 %v134, 2139095040
    %v451 = vshrl.u32 %v450, 23
    %v452 = vsub.s32 %v451, 127
    %v453 = vand.u32 2147483647, %v134
    %v454 = vand.u32 %v453, 8388607
    %v455 = vor.u32 %v454, 8388608
    %v456 = vsub.s32 0, %v455
    %v457 = vadd.s32 %v452, 1
    %vm458 = vcmp.gt.s32.totalorder %v457, 0
    %v459 = vsel %vm458, %v457, 0
    %v460 = vshrl.u32 %v459, 5
    %v461 = vand.u32 %v459, 31
    %v462 = vsub.s32 32, %v461
    %v463 = vshrl.u32 683565275, %v462
    %v464 = vshll.u32 683565275, %v461
    %v465 = vshrl.u32 2475754826, %v462
    %v466 = vor.u32 %v464, %v465
    %v467 = vshll.u32 2475754826, %v461
    %v468 = vshrl.u32 2131351028, %v462
    %v469 = vor.u32 %v467, %v468
    %v470 = vshll.u32 2131351028, %v461
    %v471 = vshrl.u32 2102212464, %v462
    %v472 = vor.u32 %v470, %v471
    %v473 = vshll.u32 2102212464, %v461
    %v474 = vshrl.u32 920167782, %v462
    %v475 = vor.u32 %v473, %v474
    %v476 = vshll.u32 920167782, %v461
    %v477 = vshrl.u32 1326507024, %v462
    %v478 = vor.u32 %v476, %v477
    %vm479 = vcmp.lt.s32.totalorder %v460, 1
    %vm480 = vcmp.lt.s32.totalorder %v460, 2
    %vm481 = vcmp.lt.s32.totalorder %v460, 3
    %vm482 = vcmp.lt.s32.totalorder %v460, 4
    %v483 = vsel %vm479, %v463, %v466
    %v484 = vsel %vm482, %v472, 2102212464
    %v485 = vsel %vm481, %v469, %v484
    %v486 = vsel %vm480, %v483, %v485
    %v487 = vsel %vm479, %v466, %v469
    %v488 = vsel %vm482, %v475, 920167782
    %v489 = vsel %vm481, %v472, %v488
    %v490 = vsel %vm480, %v487, %v489
    %v491 = vsel %vm479, %v469, %v472
    %v492 = vsel %vm482, %v478, 1326507024
    %v493 = vsel %vm481, %v475, %v492
    %v494 = vsel %vm480, %v491, %v493
    %v495 = vshll.u32 %v455, 8
    %v496 = vmul.u32.u64.compose %v495, %v494
    %v497 = vextract.low.u32 %v496
    %v498 = vextract.high.u32 %v496
    %v499 = vmul.u32.u64.compose %v495, %v490
    %v500 = vextract.low.u32 %v499
    %v501 = vextract.high.u32 %v499
    %v502 = vmul.u32 %v495, %v486
    %v503 = vadd.s32 %v498, %v500
    %vm504 = vc.u32 %v498, %v500
    %v505 = vadd.s32 %v501, 1
    %v506 = vsel %vm504, %v505, %v501
    %v507 = vadd.s32 %v502, %v506
    %v508 = vadd.s32 %v507, 536870912
    %v509 = vshrl.u32 %v508, 30
    %v510 = vshll.u32 %v509, 30
    %v511 = vsub.s32 %v507, %v510
    %vm512 = vcmp.lt.s32.totalorder %v511, 0
    %v513 = vsub.s32 0, %v511
    %v514 = vsel %vm512, %v513, %v511
    %v515 = vclz %v514
    %v516 = vsub.s32 %v515, 2
    %vm517 = vcmp.gt.s32.totalorder 0, %v516
    %v518 = vsel %vm517, 0, %v516
    %v519 = vsub.s32 32, %v518
    %v520 = vshll.u32 %v511, %v518
    %v521 = vshrl.u32 %v503, %v519
    %v522 = vor.u32 %v520, %v521
    %v523 = vsub.s32 4294967266, %v518
    %v524 = vadd.s32 %v523, 127
    %v525 = vshll.u32 %v524, 23
    %v526 = vor.u32 4788187, %v525
    %v527 = vand.u32 2147483647, %v526
    %v529 = vcvt.s32.f32 %v522
    %v530 = vmul.f32 %v529, %v527
    %v531 = vxor.u32 %v530, 2147483648
    %v532 = vsel %vm449, %v531, %v530
    %v533 = vsub.s32 4, %v509
    %v534 = vsel %vm449, %v533, %v509
    %v535 = vsel %vm448, %v134, %v532
    %v536 = vsel %vm448, 0, %v534
    %v537 = vcosq.f32.pop %v535
    %v538 = vsinq.f32.pop %v535
    %vm539 = vweird.f32 %v134
    %v540 = vadd.s32 %v536, 3
    %v541 = vand.u32 %v540, 3
    %vm542 = vcmp.lt.s32.totalorder %v541, 2
    %vm543 = vcmp.eq.s32.totalorder %v541, 0
    %v544 = vxor.u32 %v538, 2147483648
    %v545 = vsel %vm543, %v537, %v544
    %vm546 = vcmp.eq.s32.totalorder %v541, 2
    %v547 = vxor.u32 %v537, 2147483648
    %v548 = vsel %vm546, %v547, %v538
    %v549 = vsel %vm542, %v545, %v548
    %v550 = vsel %vm539, nan, %v549
    %v551 = vand.u32 2147483647, %v131
    %vm552 = vcmp.le.f32.partialorder %v551, 0.7853982
    %vm553 = vcmp.lt.s32.totalorder %v131, 0
    %v554 = vand.u32 %v131, 2139095040
    %v555 = vshrl.u32 %v554, 23
    %v556 = vsub.s32 %v555, 127
    %v557 = vand.u32 2147483647, %v131
    %v558 = vand.u32 %v557, 8388607
    %v559 = vor.u32 %v558, 8388608
    %v560 = vsub.s32 0, %v559
    %v561 = vadd.s32 %v556, 1
    %vm562 = vcmp.gt.s32.totalorder %v561, 0
    %v563 = vsel %vm562, %v561, 0
    %v564 = vshrl.u32 %v563, 5
    %v565 = vand.u32 %v563, 31
    %v566 = vsub.s32 32, %v565
    %v567 = vshrl.u32 683565275, %v566
    %v568 = vshll.u32 683565275, %v565
    %v569 = vshrl.u32 2475754826, %v566
    %v570 = vor.u32 %v568, %v569
    %v571 = vshll.u32 2475754826, %v565
    %v572 = vshrl.u32 2131351028, %v566
    %v573 = vor.u32 %v571, %v572
    %v574 = vshll.u32 2131351028, %v565
    %v575 = vshrl.u32 2102212464, %v566
    %v576 = vor.u32 %v574, %v575
    %v577 = vshll.u32 2102212464, %v565
    %v578 = vshrl.u32 920167782, %v566
    %v579 = vor.u32 %v577, %v578
    %v580 = vshll.u32 920167782, %v565
    %v581 = vshrl.u32 1326507024, %v566
    %v582 = vor.u32 %v580, %v581
    %vm583 = vcmp.lt.s32.totalorder %v564, 1
    %vm584 = vcmp.lt.s32.totalorder %v564, 2
    %vm585 = vcmp.lt.s32.totalorder %v564, 3
    %vm586 = vcmp.lt.s32.totalorder %v564, 4
    %v587 = vsel %vm583, %v567, %v570
    %v588 = vsel %vm586, %v576, 2102212464
    %v589 = vsel %vm585, %v573, %v588
    %v590 = vsel %vm584, %v587, %v589
    %v591 = vsel %vm583, %v570, %v573
    %v592 = vsel %vm586, %v579, 920167782
    %v593 = vsel %vm585, %v576, %v592
    %v594 = vsel %vm584, %v591, %v593
    %v595 = vsel %vm583, %v573, %v576
    %v596 = vsel %vm586, %v582, 1326507024
    %v597 = vsel %vm585, %v579, %v596
    %v598 = vsel %vm584, %v595, %v597
    %v599 = vshll.u32 %v559, 8
    %v600 = vmul.u32.u64.compose %v599, %v598
    %v601 = vextract.low.u32 %v600
    %v602 = vextract.high.u32 %v600
    %v603 = vmul.u32.u64.compose %v599, %v594
    %v604 = vextract.low.u32 %v603
    %v605 = vextract.high.u32 %v603
    %v606 = vmul.u32 %v599, %v590
    %v607 = vadd.s32 %v602, %v604
    %vm608 = vc.u32 %v602, %v604
    %v609 = vadd.s32 %v605, 1
    %v610 = vsel %vm608, %v609, %v605
    %v611 = vadd.s32 %v606, %v610
    %v612 = vadd.s32 %v611, 536870912
    %v613 = vshrl.u32 %v612, 30
    %v614 = vshll.u32 %v613, 30
    %v615 = vsub.s32 %v611, %v614
    %vm616 = vcmp.lt.s32.totalorder %v615, 0
    %v617 = vsub.s32 0, %v615
    %v618 = vsel %vm616, %v617, %v615
    %v619 = vclz %v618
    %v620 = vsub.s32 %v619, 2
    %vm621 = vcmp.gt.s32.totalorder 0, %v620
    %v622 = vsel %vm621, 0, %v620
    %v623 = vsub.s32 32, %v622
    %v624 = vshll.u32 %v615, %v622
    %v625 = vshrl.u32 %v607, %v623
    %v626 = vor.u32 %v624, %v625
    %v627 = vsub.s32 4294967266, %v622
    %v628 = vadd.s32 %v627, 127
    %v629 = vshll.u32 %v628, 23
    %v630 = vor.u32 4788187, %v629
    %v631 = vand.u32 2147483647, %v630
    %v633 = vcvt.s32.f32 %v626
    %v634 = vmul.f32 %v633, %v631
    %v635 = vxor.u32 %v634, 2147483648
    %v636 = vsel %vm553, %v635, %v634
    %v637 = vsub.s32 4, %v613
    %v638 = vsel %vm553, %v637, %v613
    %v639 = vsel %vm552, %v131, %v636
    %v640 = vsel %vm552, 0, %v638
    %v641 = vcosq.f32.pop %v639
    %v642 = vsinq.f32.pop %v639
    %vm643 = vweird.f32 %v131
    %v644 = vand.u32 %v640, 3
    %vm645 = vcmp.lt.s32.totalorder %v644, 2
    %vm646 = vcmp.eq.s32.totalorder %v644, 0
    %v647 = vxor.u32 %v642, 2147483648
    %v648 = vsel %vm646, %v641, %v647
    %vm649 = vcmp.eq.s32.totalorder %v644, 2
    %v650 = vxor.u32 %v641, 2147483648
    %v651 = vsel %vm649, %v650, %v642
    %v652 = vsel %vm645, %v648, %v651
    %v653 = vsel %vm643, nan, %v652
    %v654 = vand.u32 2147483647, %v132
    %vm655 = vcmp.le.f32.partialorder %v654, 0.7853982
    %vm656 = vcmp.lt.s32.totalorder %v132, 0
    %v657 = vand.u32 %v132, 2139095040
    %v658 = vshrl.u32 %v657, 23
    %v659 = vsub.s32 %v658, 127
    %v660 = vand.u32 2147483647, %v132
    %v661 = vand.u32 %v660, 8388607
    %v662 = vor.u32 %v661, 8388608
    %v663 = vsub.s32 0, %v662
    %v664 = vadd.s32 %v659, 1
    %vm665 = vcmp.gt.s32.totalorder %v664, 0
    %v666 = vsel %vm665, %v664, 0
    %v667 = vshrl.u32 %v666, 5
    %v668 = vand.u32 %v666, 31
    %v669 = vsub.s32 32, %v668
    %v670 = vshrl.u32 683565275, %v669
    %v671 = vshll.u32 683565275, %v668
    %v672 = vshrl.u32 2475754826, %v669
    %v673 = vor.u32 %v671, %v672
    %v674 = vshll.u32 2475754826, %v668
    %v675 = vshrl.u32 2131351028, %v669
    %v676 = vor.u32 %v674, %v675
    %v677 = vshll.u32 2131351028, %v668
    %v678 = vshrl.u32 2102212464, %v669
    %v679 = vor.u32 %v677, %v678
    %v680 = vshll.u32 2102212464, %v668
    %v681 = vshrl.u32 920167782, %v669
    %v682 = vor.u32 %v680, %v681
    %v683 = vshll.u32 920167782, %v668
    %v684 = vshrl.u32 1326507024, %v669
    %v685 = vor.u32 %v683, %v684
    %vm686 = vcmp.lt.s32.totalorder %v667, 1
    %vm687 = vcmp.lt.s32.totalorder %v667, 2
    %vm688 = vcmp.lt.s32.totalorder %v667, 3
    %vm689 = vcmp.lt.s32.totalorder %v667, 4
    %v690 = vsel %vm686, %v670, %v673
    %v691 = vsel %vm689, %v679, 2102212464
    %v692 = vsel %vm688, %v676, %v691
    %v693 = vsel %vm687, %v690, %v692
    %v694 = vsel %vm686, %v673, %v676
    %v695 = vsel %vm689, %v682, 920167782
    %v696 = vsel %vm688, %v679, %v695
    %v697 = vsel %vm687, %v694, %v696
    %v698 = vsel %vm686, %v676, %v679
    %v699 = vsel %vm689, %v685, 1326507024
    %v700 = vsel %vm688, %v682, %v699
    %v701 = vsel %vm687, %v698, %v700
    %v702 = vshll.u32 %v662, 8
    %v703 = vmul.u32.u64.compose %v702, %v701
    %v704 = vextract.low.u32 %v703
    %v705 = vextract.high.u32 %v703
    %v706 = vmul.u32.u64.compose %v702, %v697
    %v707 = vextract.low.u32 %v706
    %v708 = vextract.high.u32 %v706
    %v709 = vmul.u32 %v702, %v693
    %v710 = vadd.s32 %v705, %v707
    %vm711 = vc.u32 %v705, %v707
    %v712 = vadd.s32 %v708, 1
    %v713 = vsel %vm711, %v712, %v708
    %v714 = vadd.s32 %v709, %v713
    %v715 = vadd.s32 %v714, 536870912
    %v716 = vshrl.u32 %v715, 30
    %v717 = vshll.u32 %v716, 30
    %v718 = vsub.s32 %v714, %v717
    %vm719 = vcmp.lt.s32.totalorder %v718, 0
    %v720 = vsub.s32 0, %v718
    %v721 = vsel %vm719, %v720, %v718
    %v722 = vclz %v721
    %v723 = vsub.s32 %v722, 2
    %vm724 = vcmp.gt.s32.totalorder 0, %v723
    %v725 = vsel %vm724, 0, %v723
    %v726 = vsub.s32 32, %v725
    %v727 = vshll.u32 %v718, %v725
    %v728 = vshrl.u32 %v710, %v726
    %v729 = vor.u32 %v727, %v728
    %v730 = vsub.s32 4294967266, %v725
    %v731 = vadd.s32 %v730, 127
    %v732 = vshll.u32 %v731, 23
    %v733 = vor.u32 4788187, %v732
    %v734 = vand.u32 2147483647, %v733
    %v736 = vcvt.s32.f32 %v729
    %v737 = vmul.f32 %v736, %v734
    %v738 = vxor.u32 %v737, 2147483648
    %v739 = vsel %vm656, %v738, %v737
    %v740 = vsub.s32 4, %v716
    %v741 = vsel %vm656, %v740, %v716
    %v742 = vsel %vm655, %v132, %v739
    %v743 = vsel %vm655, 0, %v741
    %v744 = vcosq.f32.pop %v742
    %v745 = vsinq.f32.pop %v742
    %vm746 = vweird.f32 %v132
    %v747 = vand.u32 %v743, 3
    %vm748 = vcmp.lt.s32.totalorder %v747, 2
    %vm749 = vcmp.eq.s32.totalorder %v747, 0
    %v750 = vxor.u32 %v745, 2147483648
    %v751 = vsel %vm749, %v744, %v750
    %vm752 = vcmp.eq.s32.totalorder %v747, 2
    %v753 = vxor.u32 %v744, 2147483648
    %v754 = vsel %vm752, %v753, %v745
    %v755 = vsel %vm748, %v751, %v754
    %v756 = vsel %vm746, nan, %v755
    %v757 = vand.u32 2147483647, %v133
    %vm758 = vcmp.le.f32.partialorder %v757, 0.7853982
    %vm759 = vcmp.lt.s32.totalorder %v133, 0
    %v760 = vand.u32 %v133, 2139095040
    %v761 = vshrl.u32 %v760, 23
    %v762 = vsub.s32 %v761, 127
    %v763 = vand.u32 2147483647, %v133
    %v764 = vand.u32 %v763, 8388607
    %v765 = vor.u32 %v764, 8388608
    %v766 = vsub.s32 0, %v765
    %v767 = vadd.s32 %v762, 1
    %vm768 = vcmp.gt.s32.totalorder %v767, 0
    %v769 = vsel %vm768, %v767, 0
    %v770 = vshrl.u32 %v769, 5
    %v771 = vand.u32 %v769, 31
    %v772 = vsub.s32 32, %v771
    %v773 = vshrl.u32 683565275, %v772
    %v774 = vshll.u32 683565275, %v771
    %v775 = vshrl.u32 2475754826, %v772
    %v776 = vor.u32 %v774, %v775
    %v777 = vshll.u32 2475754826, %v771
    %v778 = vshrl.u32 2131351028, %v772
    %v779 = vor.u32 %v777, %v778
    %v780 = vshll.u32 2131351028, %v771
    %v781 = vshrl.u32 2102212464, %v772
    %v782 = vor.u32 %v780, %v781
    %v783 = vshll.u32 2102212464, %v771
    %v784 = vshrl.u32 920167782, %v772
    %v785 = vor.u32 %v783, %v784
    %v786 = vshll.u32 920167782, %v771
    %v787 = vshrl.u32 1326507024, %v772
    %v788 = vor.u32 %v786, %v787
    %vm789 = vcmp.lt.s32.totalorder %v770, 1
    %vm790 = vcmp.lt.s32.totalorder %v770, 2
    %vm791 = vcmp.lt.s32.totalorder %v770, 3
    %vm792 = vcmp.lt.s32.totalorder %v770, 4
    %v793 = vsel %vm789, %v773, %v776
    %v794 = vsel %vm792, %v782, 2102212464
    %v795 = vsel %vm791, %v779, %v794
    %v796 = vsel %vm790, %v793, %v795
    %v797 = vsel %vm789, %v776, %v779
    %v798 = vsel %vm792, %v785, 920167782
    %v799 = vsel %vm791, %v782, %v798
    %v800 = vsel %vm790, %v797, %v799
    %v801 = vsel %vm789, %v779, %v782
    %v802 = vsel %vm792, %v788, 1326507024
    %v803 = vsel %vm791, %v785, %v802
    %v804 = vsel %vm790, %v801, %v803
    %v805 = vshll.u32 %v765, 8
    %v806 = vmul.u32.u64.compose %v805, %v804
    %v807 = vextract.low.u32 %v806
    %v808 = vextract.high.u32 %v806
    %v809 = vmul.u32.u64.compose %v805, %v800
    %v810 = vextract.low.u32 %v809
    %v811 = vextract.high.u32 %v809
    %v812 = vmul.u32 %v805, %v796
    %v813 = vadd.s32 %v808, %v810
    %vm814 = vc.u32 %v808, %v810
    %v815 = vadd.s32 %v811, 1
    %v816 = vsel %vm814, %v815, %v811
    %v817 = vadd.s32 %v812, %v816
    %v818 = vadd.s32 %v817, 536870912
    %v819 = vshrl.u32 %v818, 30
    %v820 = vshll.u32 %v819, 30
    %v821 = vsub.s32 %v817, %v820
    %vm822 = vcmp.lt.s32.totalorder %v821, 0
    %v823 = vsub.s32 0, %v821
    %v824 = vsel %vm822, %v823, %v821
    %v825 = vclz %v824
    %v826 = vsub.s32 %v825, 2
    %vm827 = vcmp.gt.s32.totalorder 0, %v826
    %v828 = vsel %vm827, 0, %v826
    %v829 = vsub.s32 32, %v828
    %v830 = vshll.u32 %v821, %v828
    %v831 = vshrl.u32 %v813, %v829
    %v832 = vor.u32 %v830, %v831
    %v833 = vsub.s32 4294967266, %v828
    %v834 = vadd.s32 %v833, 127
    %v835 = vshll.u32 %v834, 23
    %v836 = vor.u32 4788187, %v835
    %v837 = vand.u32 2147483647, %v836
    %v839 = vcvt.s32.f32 %v832
    %v840 = vmul.f32 %v839, %v837
    %v841 = vxor.u32 %v840, 2147483648
    %v842 = vsel %vm759, %v841, %v840
    %v843 = vsub.s32 4, %v819
    %v844 = vsel %vm759, %v843, %v819
    %v845 = vsel %vm758, %v133, %v842
    %v846 = vsel %vm758, 0, %v844
    %v847 = vcosq.f32.pop %v845
    %v848 = vsinq.f32.pop %v845
    %vm849 = vweird.f32 %v133
    %v850 = vand.u32 %v846, 3
    %vm851 = vcmp.lt.s32.totalorder %v850, 2
    %vm852 = vcmp.eq.s32.totalorder %v850, 0
    %v853 = vxor.u32 %v848, 2147483648
    %v854 = vsel %vm852, %v847, %v853
    %vm855 = vcmp.eq.s32.totalorder %v850, 2
    %v856 = vxor.u32 %v847, 2147483648
    %v857 = vsel %vm855, %v856, %v848
    %v858 = vsel %vm851, %v854, %v857
    %v859 = vsel %vm849, nan, %v858
    %v860 = vand.u32 2147483647, %v134
    %vm861 = vcmp.le.f32.partialorder %v860, 0.7853982
    %vm862 = vcmp.lt.s32.totalorder %v134, 0
    %v863 = vand.u32 %v134, 2139095040
    %v864 = vshrl.u32 %v863, 23
    %v865 = vsub.s32 %v864, 127
    %v866 = vand.u32 2147483647, %v134
    %v867 = vand.u32 %v866, 8388607
    %v868 = vor.u32 %v867, 8388608
    %v869 = vsub.s32 0, %v868
    %v870 = vadd.s32 %v865, 1
    %vm871 = vcmp.gt.s32.totalorder %v870, 0
    %v872 = vsel %vm871, %v870, 0
    %v873 = vshrl.u32 %v872, 5
    %v874 = vand.u32 %v872, 31
    %v875 = vsub.s32 32, %v874
    %v876 = vshrl.u32 683565275, %v875
    %v877 = vshll.u32 683565275, %v874
    %v878 = vshrl.u32 2475754826, %v875
    %v879 = vor.u32 %v877, %v878
    %v880 = vshll.u32 2475754826, %v874
    %v881 = vshrl.u32 2131351028, %v875
    %v882 = vor.u32 %v880, %v881
    %v883 = vshll.u32 2131351028, %v874
    %v884 = vshrl.u32 2102212464, %v875
    %v885 = vor.u32 %v883, %v884
    %v886 = vshll.u32 2102212464, %v874
    %v887 = vshrl.u32 920167782, %v875
    %v888 = vor.u32 %v886, %v887
    %v889 = vshll.u32 920167782, %v874
    %v890 = vshrl.u32 1326507024, %v875
    %v891 = vor.u32 %v889, %v890
    %vm892 = vcmp.lt.s32.totalorder %v873, 1
    %vm893 = vcmp.lt.s32.totalorder %v873, 2
    %vm894 = vcmp.lt.s32.totalorder %v873, 3
    %vm895 = vcmp.lt.s32.totalorder %v873, 4
    %v896 = vsel %vm892, %v876, %v879
    %v897 = vsel %vm895, %v885, 2102212464
    %v898 = vsel %vm894, %v882, %v897
    %v899 = vsel %vm893, %v896, %v898
    %v900 = vsel %vm892, %v879, %v882
    %v901 = vsel %vm895, %v888, 920167782
    %v902 = vsel %vm894, %v885, %v901
    %v903 = vsel %vm893, %v900, %v902
    %v904 = vsel %vm892, %v882, %v885
    %v905 = vsel %vm895, %v891, 1326507024
    %v906 = vsel %vm894, %v888, %v905
    %v907 = vsel %vm893, %v904, %v906
    %v908 = vshll.u32 %v868, 8
    %v909 = vmul.u32.u64.compose %v908, %v907
    %v910 = vextract.low.u32 %v909
    %v911 = vextract.high.u32 %v909
    %v912 = vmul.u32.u64.compose %v908, %v903
    %v913 = vextract.low.u32 %v912
    %v914 = vextract.high.u32 %v912
    %v915 = vmul.u32 %v908, %v899
    %v916 = vadd.s32 %v911, %v913
    %vm917 = vc.u32 %v911, %v913
    %v918 = vadd.s32 %v914, 1
    %v919 = vsel %vm917, %v918, %v914
    %v920 = vadd.s32 %v915, %v919
    %v921 = vadd.s32 %v920, 536870912
    %v922 = vshrl.u32 %v921, 30
    %v923 = vshll.u32 %v922, 30
    %v924 = vsub.s32 %v920, %v923
    %vm925 = vcmp.lt.s32.totalorder %v924, 0
    %v926 = vsub.s32 0, %v924
    %v927 = vsel %vm925, %v926, %v924
    %v928 = vclz %v927
    %v929 = vsub.s32 %v928, 2
    %vm930 = vcmp.gt.s32.totalorder 0, %v929
    %v931 = vsel %vm930, 0, %v929
    %v932 = vsub.s32 32, %v931
    %v933 = vshll.u32 %v924, %v931
    %v934 = vshrl.u32 %v916, %v932
    %v935 = vor.u32 %v933, %v934
    %v936 = vsub.s32 4294967266, %v931
    %v937 = vadd.s32 %v936, 127
    %v938 = vshll.u32 %v937, 23
    %v939 = vor.u32 4788187, %v938
    %v940 = vand.u32 2147483647, %v939
    %v942 = vcvt.s32.f32 %v935
    %v943 = vmul.f32 %v942, %v940
    %v944 = vxor.u32 %v943, 2147483648
    %v945 = vsel %vm862, %v944, %v943
    %v946 = vsub.s32 4, %v922
    %v947 = vsel %vm862, %v946, %v922
    %v948 = vsel %vm861, %v134, %v945
    %v949 = vsel %vm861, 0, %v947
    %v950 = vcosq.f32.pop %v948
    %v951 = vsinq.f32.pop %v948
    %vm952 = vweird.f32 %v134
    %v953 = vand.u32 %v949, 3
    %vm954 = vcmp.lt.s32.totalorder %v953, 2
    %vm955 = vcmp.eq.s32.totalorder %v953, 0
    %v956 = vxor.u32 %v951, 2147483648
    %v957 = vsel %vm955, %v950, %v956
    %vm958 = vcmp.eq.s32.totalorder %v953, 2
    %v959 = vxor.u32 %v950, 2147483648
    %v960 = vsel %vm958, %v959, %v951
    %v961 = vsel %vm954, %v957, %v960
    %v962 = vsel %vm952, nan, %v961
    %v963 = vmul.f32 %v238, 2.0
    %v964 = vmul.f32 %v342, 2.0
    %v965 = vmul.f32 %v446, 2.0
    %v966 = vmul.f32 %v550, 2.0
    %v967 = vmul.f32 %v963, %v653
    %v968 = vmul.f32 %v964, %v756
    %v969 = vmul.f32 %v965, %v859
    %v970 = vmul.f32 %v966, %v962
    %v971 = vmul.f32 %v963, %v238
    %v972 = vmul.f32 %v964, %v342
    %v973 = vmul.f32 %v965, %v446
    %v974 = vmul.f32 %v966, %v550
    %v975 = vsub.f32 1.0, %v971
    %v976 = vsub.f32 1.0, %v972
    %v977 = vsub.f32 1.0, %v973
    %v978 = vsub.f32 1.0, %v974
    %v979 = vsel %vm130, %v106, 1.0
    %v980 = vsel %vm130, %v107, 1.0
    %v981 = vsel %vm130, %v108, 1.0
    %v982 = vsel %vm130, %v109, 1.0
    %vm983 = vcmask 1044480
    %v984 = vsel %vm983, %v979, 0.0
    %v985 = vsel %vm983, %v980, 0.0
    %v986 = vsel %vm983, %v981, 0.0
    %v987 = vsel %vm983, %v982, 0.0
    %v988 = vld [vmem:[%s3] sm:$0xff]
    %v989 = vld [vmem:[%s3 + $0x8] sm:$0xff]
    %v990 = vld [vmem:[%s3 + $0x10] sm:$0xff]
    %v991 = vld [vmem:[%s3 + $0x18] sm:$0xff]
    %vm992 = vcmask 326656
    %v994 = vsel %vm992, %v988, 0
    %v997 = vsel %vm992, %v989, 0
    %v1000 = vsel %vm992, %v990, 0
    %v1003 = vsel %vm992, %v991, 0
    %1005 = vmatprep.subr.mxu0 0.0
    %1006 = vmatpush1.msra.mxu0 0.0
    %1007 = vmatprep.subr.mxu0 0.0
    %1008 = vmatpush1.msra.mxu0 0.0
    %1009 = vmatprep.subr.mxu0 0.0
    %1010 = vmatpush1.msra.mxu0 0.0
    %1011 = vmatprep.subr.mxu0 0.0
    %1012 = vmatpush1.msra.mxu0 0.0
    %1013 = vmatprep.subr.mxu0 0.0
    %1014 = vmatpush1.msra.mxu0 0.0
    %1015 = vmatprep.subr.mxu0 0.0
    %1016 = vmatpush1.msra.mxu0 0.0
    %1017 = vmatprep.subr.mxu0 0.0
    %1018 = vmatpush1.msra.mxu0 0.0
    %1019 = vmatprep.subr.mxu0 0.0
    %1020 = vmatpush1.msra.mxu0 0.0
    %1021 = vmatprep.subr.mxu0 0.0
    %1022 = vmatpush1.msra.mxu0 0.0
    %1023 = vmatprep.subr.mxu0 0.0
    %1024 = vmatpush1.msra.mxu0 0.0
    %1025 = vmatprep.subr.mxu0 0.0
    %1026 = vmatpush1.msra.mxu0 0.0
    %1027 = vmatprep.subr.mxu0 %v976
    %1028 = vmatpush1.msra.mxu0 %v975
    %1029 = vmatprep.subr.mxu0 %v756
    %1030 = vmatpush1.msra.mxu0 %v653
    %1031 = vmatprep.subr.mxu0 %v968
    %1032 = vmatpush1.msra.mxu0 %v967
    %1033 = vmatprep.subr.mxu0 %v342
    %1034 = vmatpush1.msra.mxu0 %v238
    %1035 = vmatprep.subr.mxu0 %v985
    %1036 = vmatpush1.msra.mxu0 %v984
    %1037 = vmatprep.subr.mxu0 0.0
    %1038 = vmatpush2.msra.mxu0 0.0
    %1039 = vmatprep.subr.mxu0 0.0
    %1040 = vmatpush2.msra.mxu0 0.0
    %1041 = vmatprep.subr.mxu0 0.0
    %1042 = vmatpush2.msra.mxu0 0.0
    %1043 = vmatprep.subr.mxu0 0.0
    %1044 = vmatpush2.msra.mxu0 0.0
    %1045 = vmatprep.subr.mxu0 0.0
    %1046 = vmatpush2.msra.mxu0 0.0
    %1047 = vmatprep.subr.mxu0 0.0
    %1048 = vmatpush2.msra.mxu0 0.0
    %1049 = vmatprep.subr.mxu0 0.0
    %1050 = vmatpush2.msra.mxu0 0.0
    %1051 = vmatprep.subr.mxu0 0.0
    %1052 = vmatpush2.msra.mxu0 0.0
    %1053 = vmatprep.subr.mxu0 0.0
    %1054 = vmatpush2.msra.mxu0 0.0
    %1055 = vmatprep.subr.mxu0 0.0
    %1056 = vmatpush2.msra.mxu0 0.0
    %1057 = vmatprep.subr.mxu0 0.0
    %1058 = vmatpush2.msra.mxu0 0.0
    %1059 = vmatprep.subr.mxu0 0.0
    %1060 = vmatpush2.msra.mxu0 0.0
    %1061 = vmatprep.subr.mxu0 0.0
    %1062 = vmatpush2.msra.mxu0 0.0
    %1063 = vmatprep.subr.mxu0 0.0
    %1064 = vmatpush2.msra.mxu0 0.0
    %1065 = vmatprep.subr.mxu0 0.0
    %1066 = vmatpush2.msra.mxu0 0.0
    %1067 = vmatprep.subr.mxu0 0.0
    %1068 = vmatpush2.msra.mxu0 0.0
    %1069 = vmatprep.mubr.f32.mxu0 0.0
    %1070 = vmatmul.mubr.f32.gmra.mxu0 %v994
    %v1071 = vpop.f32.mrf.mxu0
    %v1072 = vadd.f32 0.0, %v1071
    %v1073 = vpop.f32.mrf.mxu0
    %v1074 = vadd.f32 0.0, %v1073
    %1075 = vmatprep.mubr.f32.mxu0 0.0
    %1076 = vmatmul.mubr.f32.gmra.mxu0 %v997
    %v1077 = vpop.f32.mrf.mxu0
    %v1078 = vadd.f32 0.0, %v1077
    %v1079 = vpop.f32.mrf.mxu0
    %v1080 = vadd.f32 0.0, %v1079
    %1081 = vmatprep.mubr.f32.mxu0 0.0
    %1082 = vmatmul.mubr.f32.gmra.mxu0 %v1000
    %v1083 = vpop.f32.mrf.mxu0
    %v1084 = vadd.f32 0.0, %v1083
    %v1085 = vpop.f32.mrf.mxu0
    %v1086 = vadd.f32 0.0, %v1085
    %1087 = vmatprep.mubr.f32.mxu0 0.0
    %1088 = vmatmul.mubr.f32.gmra.mxu0 %v1003
    %v1089 = vpop.f32.mrf.mxu0
    %v1090 = vadd.f32 0.0, %v1089
    %v1091 = vpop.f32.mrf.mxu0
    %v1092 = vadd.f32 0.0, %v1091
    %1093 = vdwg.mxu0
    %1094 = vmatprep.subr.mxu0 0.0
    %1095 = vmatpush1.msra.mxu0 0.0
    %1096 = vmatprep.subr.mxu0 0.0
    %1097 = vmatpush1.msra.mxu0 0.0
    %1098 = vmatprep.subr.mxu0 0.0
    %1099 = vmatpush1.msra.mxu0 0.0
    %1100 = vmatprep.subr.mxu0 0.0
    %1101 = vmatpush1.msra.mxu0 0.0
    %1102 = vmatprep.subr.mxu0 0.0
    %1103 = vmatpush1.msra.mxu0 0.0
    %1104 = vmatprep.subr.mxu0 0.0
    %1105 = vmatpush1.msra.mxu0 0.0
    %1106 = vmatprep.subr.mxu0 0.0
    %1107 = vmatpush1.msra.mxu0 0.0
    %1108 = vmatprep.subr.mxu0 0.0
    %1109 = vmatpush1.msra.mxu0 0.0
    %1110 = vmatprep.subr.mxu0 0.0
    %1111 = vmatpush1.msra.mxu0 0.0
    %1112 = vmatprep.subr.mxu0 0.0
    %1113 = vmatpush1.msra.mxu0 0.0
    %1114 = vmatprep.subr.mxu0 0.0
    %1115 = vmatpush1.msra.mxu0 0.0
    %1116 = vmatprep.subr.mxu0 %v978
    %1117 = vmatpush1.msra.mxu0 %v977
    %1118 = vmatprep.subr.mxu0 %v962
    %1119 = vmatpush1.msra.mxu0 %v859
    %1120 = vmatprep.subr.mxu0 %v970
    %1121 = vmatpush1.msra.mxu0 %v969
    %1122 = vmatprep.subr.mxu0 %v550
    %1123 = vmatpush1.msra.mxu0 %v446
    %1124 = vmatprep.subr.mxu0 %v987
    %1125 = vmatpush1.msra.mxu0 %v986
    %1126 = vmatprep.subr.mxu0 0.0
    %1127 = vmatpush2.msra.mxu0 0.0
    %1128 = vmatprep.subr.mxu0 0.0
    %1129 = vmatpush2.msra.mxu0 0.0
    %1130 = vmatprep.subr.mxu0 0.0
    %1131 = vmatpush2.msra.mxu0 0.0
    %1132 = vmatprep.subr.mxu0 0.0
    %1133 = vmatpush2.msra.mxu0 0.0
    %1134 = vmatprep.subr.mxu0 0.0
    %1135 = vmatpush2.msra.mxu0 0.0
    %1136 = vmatprep.subr.mxu0 0.0
    %1137 = vmatpush2.msra.mxu0 0.0
    %1138 = vmatprep.subr.mxu0 0.0
    %1139 = vmatpush2.msra.mxu0 0.0
    %1140 = vmatprep.subr.mxu0 0.0
    %1141 = vmatpush2.msra.mxu0 0.0
    %1142 = vmatprep.subr.mxu0 0.0
    %1143 = vmatpush2.msra.mxu0 0.0
    %1144 = vmatprep.subr.mxu0 0.0
    %1145 = vmatpush2.msra.mxu0 0.0
    %1146 = vmatprep.subr.mxu0 0.0
    %1147 = vmatpush2.msra.mxu0 0.0
    %1148 = vmatprep.subr.mxu0 0.0
    %1149 = vmatpush2.msra.mxu0 0.0
    %1150 = vmatprep.subr.mxu0 0.0
    %1151 = vmatpush2.msra.mxu0 0.0
    %1152 = vmatprep.subr.mxu0 0.0
    %1153 = vmatpush2.msra.mxu0 0.0
    %1154 = vmatprep.subr.mxu0 0.0
    %1155 = vmatpush2.msra.mxu0 0.0
    %1156 = vmatprep.subr.mxu0 0.0
    %1157 = vmatpush2.msra.mxu0 0.0
    %1158 = vmatprep.mubr.f32.mxu0 0.0
    %1159 = vmatmul.mubr.f32.gmra.mxu0 %v994
    %v1160 = vpop.f32.mrf.mxu0
    %v1161 = vadd.f32 0.0, %v1160
    %v1162 = vpop.f32.mrf.mxu0
    %v1163 = vadd.f32 0.0, %v1162
    %1164 = vmatprep.mubr.f32.mxu0 0.0
    %1165 = vmatmul.mubr.f32.gmra.mxu0 %v997
    %v1166 = vpop.f32.mrf.mxu0
    %v1167 = vadd.f32 0.0, %v1166
    %v1168 = vpop.f32.mrf.mxu0
    %v1169 = vadd.f32 0.0, %v1168
    %1170 = vmatprep.mubr.f32.mxu0 0.0
    %1171 = vmatmul.mubr.f32.gmra.mxu0 %v1000
    %v1172 = vpop.f32.mrf.mxu0
    %v1173 = vadd.f32 0.0, %v1172
    %v1174 = vpop.f32.mrf.mxu0
    %v1175 = vadd.f32 0.0, %v1174
    %1176 = vmatprep.mubr.f32.mxu0 0.0
    %1177 = vmatmul.mubr.f32.gmra.mxu0 %v1003
    %v1178 = vpop.f32.mrf.mxu0
    %v1179 = vadd.f32 0.0, %v1178
    %v1180 = vpop.f32.mrf.mxu0
    %v1181 = vadd.f32 0.0, %v1180
    %1182 = vdwg.mxu0
    %v1183 = vmax.f32 %v1072, 0.0
    %v1184 = vmax.f32 %v1074, 0.0
    %v1185 = vmax.f32 %v1161, 0.0
    %v1186 = vmax.f32 %v1163, 0.0
    %v1187 = vmax.f32 %v1078, 0.0
    %v1188 = vmax.f32 %v1080, 0.0
    %v1189 = vmax.f32 %v1167, 0.0
    %v1190 = vmax.f32 %v1169, 0.0
    %v1191 = vmax.f32 %v1084, 0.0
    %v1192 = vmax.f32 %v1086, 0.0
    %v1193 = vmax.f32 %v1173, 0.0
    %v1194 = vmax.f32 %v1175, 0.0
    %v1195 = vmax.f32 %v1090, 0.0
    %v1196 = vmax.f32 %v1092, 0.0
    %v1197 = vmax.f32 %v1179, 0.0
    %v1198 = vmax.f32 %v1181, 0.0
    %v1199 = vld [vmem:[%s4] sm:$0xff]
    %v1200 = vld [vmem:[%s4 + $0x8] sm:$0xff]
    %v1201 = vld [vmem:[%s4 + $0x10] sm:$0xff]
    %v1202 = vld [vmem:[%s4 + $0x18] sm:$0xff]
    %v1203 = vld [vmem:[%s6] sm:$0xff]
    %v1204 = vld [vmem:[%s6 + $0x8] sm:$0xff]
    %v1205 = vld [vmem:[%s6 + $0x10] sm:$0xff]
    %v1206 = vld [vmem:[%s6 + $0x18] sm:$0xff]
    %1208 = vset.pattern.permute.xlu0 0
    %1209 = vperm.xlu0 %1208, %v1203
    %v1210 = vpop.permute.xlu0 %1209
    %1213 = vset.pattern.permute.xlu0 0
    %1214 = vperm.xlu0 %1213, %v1204
    %v1215 = vpop.permute.xlu0 %1214
    %1218 = vset.pattern.permute.xlu0 0
    %1219 = vperm.xlu0 %1218, %v1205
    %v1220 = vpop.permute.xlu0 %1219
    %1223 = vset.pattern.permute.xlu0 0
    %1224 = vperm.xlu0 %1223, %v1206
    %v1225 = vpop.permute.xlu0 %1224
    %vm1227 = vcmask 261120
    %v1229 = vsel %vm1227, %v1199, 0
    %v1232 = vsel %vm1227, %v1200, 0
    %v1235 = vsel %vm1227, %v1201, 0
    %v1238 = vsel %vm1227, %v1202, 0
    %1240 = vmatprep.subr.mxu0 0.0
    %1241 = vmatpush1.msra.mxu0 0.0
    %1242 = vmatprep.subr.mxu0 0.0
    %1243 = vmatpush1.msra.mxu0 0.0
    %1244 = vmatprep.subr.mxu0 0.0
    %1245 = vmatpush1.msra.mxu0 0.0
    %1246 = vmatprep.subr.mxu0 0.0
    %1247 = vmatpush1.msra.mxu0 0.0
    %1248 = vmatprep.subr.mxu0 0.0
    %1249 = vmatpush1.msra.mxu0 0.0
    %1250 = vmatprep.subr.mxu0 0.0
    %1251 = vmatpush1.msra.mxu0 0.0
    %1252 = vmatprep.subr.mxu0 0.0
    %1253 = vmatpush1.msra.mxu0 0.0
    %1254 = vmatprep.subr.mxu0 0.0
    %1255 = vmatpush1.msra.mxu0 0.0
    %1256 = vmatprep.subr.mxu0 0.0
    %1257 = vmatpush1.msra.mxu0 0.0
    %1258 = vmatprep.subr.mxu0 0.0
    %1259 = vmatpush1.msra.mxu0 0.0
    %1260 = vmatprep.subr.mxu0 0.0
    %1261 = vmatpush1.msra.mxu0 0.0
    %1262 = vmatprep.subr.mxu0 0.0
    %1263 = vmatpush1.msra.mxu0 0.0
    %1264 = vmatprep.subr.mxu0 %v1196
    %1265 = vmatpush1.msra.mxu0 %v1195
    %1266 = vmatprep.subr.mxu0 %v1192
    %1267 = vmatpush1.msra.mxu0 %v1191
    %1268 = vmatprep.subr.mxu0 %v1188
    %1269 = vmatpush1.msra.mxu0 %v1187
    %1270 = vmatprep.subr.mxu0 %v1184
    %1271 = vmatpush1.msra.mxu0 %v1183
    %1272 = vmatprep.subr.mxu0 0.0
    %1273 = vmatpush2.msra.mxu0 0.0
    %1274 = vmatprep.subr.mxu0 0.0
    %1275 = vmatpush2.msra.mxu0 0.0
    %1276 = vmatprep.subr.mxu0 0.0
    %1277 = vmatpush2.msra.mxu0 0.0
    %1278 = vmatprep.subr.mxu0 0.0
    %1279 = vmatpush2.msra.mxu0 0.0
    %1280 = vmatprep.subr.mxu0 0.0
    %1281 = vmatpush2.msra.mxu0 0.0
    %1282 = vmatprep.subr.mxu0 0.0
    %1283 = vmatpush2.msra.mxu0 0.0
    %1284 = vmatprep.subr.mxu0 0.0
    %1285 = vmatpush2.msra.mxu0 0.0
    %1286 = vmatprep.subr.mxu0 0.0
    %1287 = vmatpush2.msra.mxu0 0.0
    %1288 = vmatprep.subr.mxu0 0.0
    %1289 = vmatpush2.msra.mxu0 0.0
    %1290 = vmatprep.subr.mxu0 0.0
    %1291 = vmatpush2.msra.mxu0 0.0
    %1292 = vmatprep.subr.mxu0 0.0
    %1293 = vmatpush2.msra.mxu0 0.0
    %1294 = vmatprep.subr.mxu0 0.0
    %1295 = vmatpush2.msra.mxu0 0.0
    %1296 = vmatprep.subr.mxu0 0.0
    %1297 = vmatpush2.msra.mxu0 0.0
    %1298 = vmatprep.subr.mxu0 0.0
    %1299 = vmatpush2.msra.mxu0 0.0
    %1300 = vmatprep.subr.mxu0 0.0
    %1301 = vmatpush2.msra.mxu0 0.0
    %1302 = vmatprep.subr.mxu0 0.0
    %1303 = vmatpush2.msra.mxu0 0.0
    %1304 = vmatprep.mubr.f32.mxu0 0.0
    %1305 = vmatmul.mubr.f32.gmra.mxu0 %v1229
    %v1306 = vpop.f32.mrf.mxu0
    %v1307 = vadd.f32 %v1210, %v1306
    %v1308 = vpop.f32.mrf.mxu0
    %v1309 = vadd.f32 %v1210, %v1308
    %1310 = vmatprep.mubr.f32.mxu0 0.0
    %1311 = vmatmul.mubr.f32.gmra.mxu0 %v1232
    %v1312 = vpop.f32.mrf.mxu0
    %v1313 = vadd.f32 %v1215, %v1312
    %v1314 = vpop.f32.mrf.mxu0
    %v1315 = vadd.f32 %v1215, %v1314
    %1316 = vmatprep.mubr.f32.mxu0 0.0
    %1317 = vmatmul.mubr.f32.gmra.mxu0 %v1235
    %v1318 = vpop.f32.mrf.mxu0
    %v1319 = vadd.f32 %v1220, %v1318
    %v1320 = vpop.f32.mrf.mxu0
    %v1321 = vadd.f32 %v1220, %v1320
    %1322 = vmatprep.mubr.f32.mxu0 0.0
    %1323 = vmatmul.mubr.f32.gmra.mxu0 %v1238
    %v1324 = vpop.f32.mrf.mxu0
    %v1325 = vadd.f32 %v1225, %v1324
    %v1326 = vpop.f32.mrf.mxu0
    %v1327 = vadd.f32 %v1225, %v1326
    %1328 = vdwg.mxu0
    %1329 = vmatprep.subr.mxu0 0.0
    %1330 = vmatpush1.msra.mxu0 0.0
    %1331 = vmatprep.subr.mxu0 0.0
    %1332 = vmatpush1.msra.mxu0 0.0
    %1333 = vmatprep.subr.mxu0 0.0
    %1334 = vmatpush1.msra.mxu0 0.0
    %1335 = vmatprep.subr.mxu0 0.0
    %1336 = vmatpush1.msra.mxu0 0.0
    %1337 = vmatprep.subr.mxu0 0.0
    %1338 = vmatpush1.msra.mxu0 0.0
    %1339 = vmatprep.subr.mxu0 0.0
    %1340 = vmatpush1.msra.mxu0 0.0
    %1341 = vmatprep.subr.mxu0 0.0
    %1342 = vmatpush1.msra.mxu0 0.0
    %1343 = vmatprep.subr.mxu0 0.0
    %1344 = vmatpush1.msra.mxu0 0.0
    %1345 = vmatprep.subr.mxu0 0.0
    %1346 = vmatpush1.msra.mxu0 0.0
    %1347 = vmatprep.subr.mxu0 0.0
    %1348 = vmatpush1.msra.mxu0 0.0
    %1349 = vmatprep.subr.mxu0 0.0
    %1350 = vmatpush1.msra.mxu0 0.0
    %1351 = vmatprep.subr.mxu0 0.0
    %1352 = vmatpush1.msra.mxu0 0.0
    %1353 = vmatprep.subr.mxu0 %v1198
    %1354 = vmatpush1.msra.mxu0 %v1197
    %1355 = vmatprep.subr.mxu0 %v1194
    %1356 = vmatpush1.msra.mxu0 %v1193
    %1357 = vmatprep.subr.mxu0 %v1190
    %1358 = vmatpush1.msra.mxu0 %v1189
    %1359 = vmatprep.subr.mxu0 %v1186
    %1360 = vmatpush1.msra.mxu0 %v1185
    %1361 = vmatprep.subr.mxu0 0.0
    %1362 = vmatpush2.msra.mxu0 0.0
    %1363 = vmatprep.subr.mxu0 0.0
    %1364 = vmatpush2.msra.mxu0 0.0
    %1365 = vmatprep.subr.mxu0 0.0
    %1366 = vmatpush2.msra.mxu0 0.0
    %1367 = vmatprep.subr.mxu0 0.0
    %1368 = vmatpush2.msra.mxu0 0.0
    %1369 = vmatprep.subr.mxu0 0.0
    %1370 = vmatpush2.msra.mxu0 0.0
    %1371 = vmatprep.subr.mxu0 0.0
    %1372 = vmatpush2.msra.mxu0 0.0
    %1373 = vmatprep.subr.mxu0 0.0
    %1374 = vmatpush2.msra.mxu0 0.0
    %1375 = vmatprep.subr.mxu0 0.0
    %1376 = vmatpush2.msra.mxu0 0.0
    %1377 = vmatprep.subr.mxu0 0.0
    %1378 = vmatpush2.msra.mxu0 0.0
    %1379 = vmatprep.subr.mxu0 0.0
    %1380 = vmatpush2.msra.mxu0 0.0
    %1381 = vmatprep.subr.mxu0 0.0
    %1382 = vmatpush2.msra.mxu0 0.0
    %1383 = vmatprep.subr.mxu0 0.0
    %1384 = vmatpush2.msra.mxu0 0.0
    %1385 = vmatprep.subr.mxu0 0.0
    %1386 = vmatpush2.msra.mxu0 0.0
    %1387 = vmatprep.subr.mxu0 0.0
    %1388 = vmatpush2.msra.mxu0 0.0
    %1389 = vmatprep.subr.mxu0 0.0
    %1390 = vmatpush2.msra.mxu0 0.0
    %1391 = vmatprep.subr.mxu0 0.0
    %1392 = vmatpush2.msra.mxu0 0.0
    %1393 = vmatprep.mubr.f32.mxu0 0.0
    %1394 = vmatmul.mubr.f32.gmra.mxu0 %v1229
    %v1395 = vpop.f32.mrf.mxu0
    %v1396 = vadd.f32 %v1210, %v1395
    %v1397 = vpop.f32.mrf.mxu0
    %v1398 = vadd.f32 %v1210, %v1397
    %1399 = vmatprep.mubr.f32.mxu0 0.0
    %1400 = vmatmul.mubr.f32.gmra.mxu0 %v1232
    %v1401 = vpop.f32.mrf.mxu0
    %v1402 = vadd.f32 %v1215, %v1401
    %v1403 = vpop.f32.mrf.mxu0
    %v1404 = vadd.f32 %v1215, %v1403
    %1405 = vmatprep.mubr.f32.mxu0 0.0
    %1406 = vmatmul.mubr.f32.gmra.mxu0 %v1235
    %v1407 = vpop.f32.mrf.mxu0
    %v1408 = vadd.f32 %v1220, %v1407
    %v1409 = vpop.f32.mrf.mxu0
    %v1410 = vadd.f32 %v1220, %v1409
    %1411 = vmatprep.mubr.f32.mxu0 0.0
    %1412 = vmatmul.mubr.f32.gmra.mxu0 %v1238
    %v1413 = vpop.f32.mrf.mxu0
    %v1414 = vadd.f32 %v1225, %v1413
    %v1415 = vpop.f32.mrf.mxu0
    %v1416 = vadd.f32 %v1225, %v1415
    %1417 = vdwg.mxu0
    %v1418 = vmax.f32 %v1307, 0.0
    %v1419 = vmax.f32 %v1309, 0.0
    %v1420 = vmax.f32 %v1396, 0.0
    %v1421 = vmax.f32 %v1398, 0.0
    %v1422 = vmax.f32 %v1313, 0.0
    %v1423 = vmax.f32 %v1315, 0.0
    %v1424 = vmax.f32 %v1402, 0.0
    %v1425 = vmax.f32 %v1404, 0.0
    %v1426 = vmax.f32 %v1319, 0.0
    %v1427 = vmax.f32 %v1321, 0.0
    %v1428 = vmax.f32 %v1408, 0.0
    %v1429 = vmax.f32 %v1410, 0.0
    %v1430 = vmax.f32 %v1325, 0.0
    %v1431 = vmax.f32 %v1327, 0.0
    %v1432 = vmax.f32 %v1414, 0.0
    %v1433 = vmax.f32 %v1416, 0.0
    %v1434 = vld [vmem:[%s4 + $0x20] sm:$0xff]
    %v1435 = vld [vmem:[%s4 + $0x28] sm:$0xff]
    %v1436 = vld [vmem:[%s4 + $0x30] sm:$0xff]
    %v1437 = vld [vmem:[%s4 + $0x38] sm:$0xff]
    %v1438 = vld [vmem:[%s3 + $0x20] sm:$0xff]
    %v1439 = vld [vmem:[%s3 + $0x28] sm:$0xff]
    %v1440 = vld [vmem:[%s3 + $0x30] sm:$0xff]
    %v1441 = vld [vmem:[%s3 + $0x38] sm:$0xff]
    %v1443 = vsel %vm992, %v1438, 0
    %v1446 = vsel %vm992, %v1439, 0
    %v1449 = vsel %vm992, %v1440, 0
    %v1452 = vsel %vm992, %v1441, 0
    %1454 = vmatprep.subr.mxu0 0.0
    %1455 = vmatpush1.msra.mxu0 0.0
    %1456 = vmatprep.subr.mxu0 0.0
    %1457 = vmatpush1.msra.mxu0 0.0
    %1458 = vmatprep.subr.mxu0 0.0
    %1459 = vmatpush1.msra.mxu0 0.0
    %1460 = vmatprep.subr.mxu0 0.0
    %1461 = vmatpush1.msra.mxu0 0.0
    %1462 = vmatprep.subr.mxu0 0.0
    %1463 = vmatpush1.msra.mxu0 0.0
    %1464 = vmatprep.subr.mxu0 0.0
    %1465 = vmatpush1.msra.mxu0 0.0
    %1466 = vmatprep.subr.mxu0 0.0
    %1467 = vmatpush1.msra.mxu0 0.0
    %1468 = vmatprep.subr.mxu0 0.0
    %1469 = vmatpush1.msra.mxu0 0.0
    %1470 = vmatprep.subr.mxu0 0.0
    %1471 = vmatpush1.msra.mxu0 0.0
    %1472 = vmatprep.subr.mxu0 0.0
    %1473 = vmatpush1.msra.mxu0 0.0
    %1474 = vmatprep.subr.mxu0 0.0
    %1475 = vmatpush1.msra.mxu0 0.0
    %1476 = vmatprep.subr.mxu0 %v976
    %1477 = vmatpush1.msra.mxu0 %v975
    %1478 = vmatprep.subr.mxu0 %v756
    %1479 = vmatpush1.msra.mxu0 %v653
    %1480 = vmatprep.subr.mxu0 %v968
    %1481 = vmatpush1.msra.mxu0 %v967
    %1482 = vmatprep.subr.mxu0 %v342
    %1483 = vmatpush1.msra.mxu0 %v238
    %1484 = vmatprep.subr.mxu0 %v985
    %1485 = vmatpush1.msra.mxu0 %v984
    %1486 = vmatprep.subr.mxu0 0.0
    %1487 = vmatpush2.msra.mxu0 0.0
    %1488 = vmatprep.subr.mxu0 0.0
    %1489 = vmatpush2.msra.mxu0 0.0
    %1490 = vmatprep.subr.mxu0 0.0
    %1491 = vmatpush2.msra.mxu0 0.0
    %1492 = vmatprep.subr.mxu0 0.0
    %1493 = vmatpush2.msra.mxu0 0.0
    %1494 = vmatprep.subr.mxu0 0.0
    %1495 = vmatpush2.msra.mxu0 0.0
    %1496 = vmatprep.subr.mxu0 0.0
    %1497 = vmatpush2.msra.mxu0 0.0
    %1498 = vmatprep.subr.mxu0 0.0
    %1499 = vmatpush2.msra.mxu0 0.0
    %1500 = vmatprep.subr.mxu0 0.0
    %1501 = vmatpush2.msra.mxu0 0.0
    %1502 = vmatprep.subr.mxu0 0.0
    %1503 = vmatpush2.msra.mxu0 0.0
    %1504 = vmatprep.subr.mxu0 0.0
    %1505 = vmatpush2.msra.mxu0 0.0
    %1506 = vmatprep.subr.mxu0 0.0
    %1507 = vmatpush2.msra.mxu0 0.0
    %1508 = vmatprep.subr.mxu0 0.0
    %1509 = vmatpush2.msra.mxu0 0.0
    %1510 = vmatprep.subr.mxu0 0.0
    %1511 = vmatpush2.msra.mxu0 0.0
    %1512 = vmatprep.subr.mxu0 0.0
    %1513 = vmatpush2.msra.mxu0 0.0
    %1514 = vmatprep.subr.mxu0 0.0
    %1515 = vmatpush2.msra.mxu0 0.0
    %1516 = vmatprep.subr.mxu0 0.0
    %1517 = vmatpush2.msra.mxu0 0.0
    %1518 = vmatprep.mubr.f32.mxu0 0.0
    %1519 = vmatmul.mubr.f32.gmra.mxu0 %v1443
    %v1520 = vpop.f32.mrf.mxu0
    %v1521 = vadd.f32 0.0, %v1520
    %v1522 = vpop.f32.mrf.mxu0
    %v1523 = vadd.f32 0.0, %v1522
    %1524 = vmatprep.mubr.f32.mxu0 0.0
    %1525 = vmatmul.mubr.f32.gmra.mxu0 %v1446
    %v1526 = vpop.f32.mrf.mxu0
    %v1527 = vadd.f32 0.0, %v1526
    %v1528 = vpop.f32.mrf.mxu0
    %v1529 = vadd.f32 0.0, %v1528
    %1530 = vmatprep.mubr.f32.mxu0 0.0
    %1531 = vmatmul.mubr.f32.gmra.mxu0 %v1449
    %v1532 = vpop.f32.mrf.mxu0
    %v1533 = vadd.f32 0.0, %v1532
    %v1534 = vpop.f32.mrf.mxu0
    %v1535 = vadd.f32 0.0, %v1534
    %1536 = vmatprep.mubr.f32.mxu0 0.0
    %1537 = vmatmul.mubr.f32.gmra.mxu0 %v1452
    %v1538 = vpop.f32.mrf.mxu0
    %v1539 = vadd.f32 0.0, %v1538
    %v1540 = vpop.f32.mrf.mxu0
    %v1541 = vadd.f32 0.0, %v1540
    %1542 = vdwg.mxu0
    %1543 = vmatprep.subr.mxu0 0.0
    %1544 = vmatpush1.msra.mxu0 0.0
    %1545 = vmatprep.subr.mxu0 0.0
    %1546 = vmatpush1.msra.mxu0 0.0
    %1547 = vmatprep.subr.mxu0 0.0
    %1548 = vmatpush1.msra.mxu0 0.0
    %1549 = vmatprep.subr.mxu0 0.0
    %1550 = vmatpush1.msra.mxu0 0.0
    %1551 = vmatprep.subr.mxu0 0.0
    %1552 = vmatpush1.msra.mxu0 0.0
    %1553 = vmatprep.subr.mxu0 0.0
    %1554 = vmatpush1.msra.mxu0 0.0
    %1555 = vmatprep.subr.mxu0 0.0
    %1556 = vmatpush1.msra.mxu0 0.0
    %1557 = vmatprep.subr.mxu0 0.0
    %1558 = vmatpush1.msra.mxu0 0.0
    %1559 = vmatprep.subr.mxu0 0.0
    %1560 = vmatpush1.msra.mxu0 0.0
    %1561 = vmatprep.subr.mxu0 0.0
    %1562 = vmatpush1.msra.mxu0 0.0
    %1563 = vmatprep.subr.mxu0 0.0
    %1564 = vmatpush1.msra.mxu0 0.0
    %1565 = vmatprep.subr.mxu0 %v978
    %1566 = vmatpush1.msra.mxu0 %v977
    %1567 = vmatprep.subr.mxu0 %v962
    %1568 = vmatpush1.msra.mxu0 %v859
    %1569 = vmatprep.subr.mxu0 %v970
    %1570 = vmatpush1.msra.mxu0 %v969
    %1571 = vmatprep.subr.mxu0 %v550
    %1572 = vmatpush1.msra.mxu0 %v446
    %1573 = vmatprep.subr.mxu0 %v987
    %1574 = vmatpush1.msra.mxu0 %v986
    %1575 = vmatprep.subr.mxu0 0.0
    %1576 = vmatpush2.msra.mxu0 0.0
    %1577 = vmatprep.subr.mxu0 0.0
    %1578 = vmatpush2.msra.mxu0 0.0
    %1579 = vmatprep.subr.mxu0 0.0
    %1580 = vmatpush2.msra.mxu0 0.0
    %1581 = vmatprep.subr.mxu0 0.0
    %1582 = vmatpush2.msra.mxu0 0.0
    %1583 = vmatprep.subr.mxu0 0.0
    %1584 = vmatpush2.msra.mxu0 0.0
    %1585 = vmatprep.subr.mxu0 0.0
    %1586 = vmatpush2.msra.mxu0 0.0
    %1587 = vmatprep.subr.mxu0 0.0
    %1588 = vmatpush2.msra.mxu0 0.0
    %1589 = vmatprep.subr.mxu0 0.0
    %1590 = vmatpush2.msra.mxu0 0.0
    %1591 = vmatprep.subr.mxu0 0.0
    %1592 = vmatpush2.msra.mxu0 0.0
    %1593 = vmatprep.subr.mxu0 0.0
    %1594 = vmatpush2.msra.mxu0 0.0
    %1595 = vmatprep.subr.mxu0 0.0
    %1596 = vmatpush2.msra.mxu0 0.0
    %1597 = vmatprep.subr.mxu0 0.0
    %1598 = vmatpush2.msra.mxu0 0.0
    %1599 = vmatprep.subr.mxu0 0.0
    %1600 = vmatpush2.msra.mxu0 0.0
    %1601 = vmatprep.subr.mxu0 0.0
    %1602 = vmatpush2.msra.mxu0 0.0
    %1603 = vmatprep.subr.mxu0 0.0
    %1604 = vmatpush2.msra.mxu0 0.0
    %1605 = vmatprep.subr.mxu0 0.0
    %1606 = vmatpush2.msra.mxu0 0.0
    %1607 = vmatprep.mubr.f32.mxu0 0.0
    %1608 = vmatmul.mubr.f32.gmra.mxu0 %v1443
    %v1609 = vpop.f32.mrf.mxu0
    %v1610 = vadd.f32 0.0, %v1609
    %v1611 = vpop.f32.mrf.mxu0
    %v1612 = vadd.f32 0.0, %v1611
    %1613 = vmatprep.mubr.f32.mxu0 0.0
    %1614 = vmatmul.mubr.f32.gmra.mxu0 %v1446
    %v1615 = vpop.f32.mrf.mxu0
    %v1616 = vadd.f32 0.0, %v1615
    %v1617 = vpop.f32.mrf.mxu0
    %v1618 = vadd.f32 0.0, %v1617
    %1619 = vmatprep.mubr.f32.mxu0 0.0
    %1620 = vmatmul.mubr.f32.gmra.mxu0 %v1449
    %v1621 = vpop.f32.mrf.mxu0
    %v1622 = vadd.f32 0.0, %v1621
    %v1623 = vpop.f32.mrf.mxu0
    %v1624 = vadd.f32 0.0, %v1623
    %1625 = vmatprep.mubr.f32.mxu0 0.0
    %1626 = vmatmul.mubr.f32.gmra.mxu0 %v1452
    %v1627 = vpop.f32.mrf.mxu0
    %v1628 = vadd.f32 0.0, %v1627
    %v1629 = vpop.f32.mrf.mxu0
    %v1630 = vadd.f32 0.0, %v1629
    %1631 = vdwg.mxu0
    %v1633 = vsel %vm1227, %v1434, 0
    %v1636 = vsel %vm1227, %v1435, 0
    %v1639 = vsel %vm1227, %v1436, 0
    %v1642 = vsel %vm1227, %v1437, 0
    %1644 = vmatprep.subr.mxu0 0.0
    %1645 = vmatpush1.msra.mxu0 0.0
    %1646 = vmatprep.subr.mxu0 0.0
    %1647 = vmatpush1.msra.mxu0 0.0
    %1648 = vmatprep.subr.mxu0 0.0
    %1649 = vmatpush1.msra.mxu0 0.0
    %1650 = vmatprep.subr.mxu0 0.0
    %1651 = vmatpush1.msra.mxu0 0.0
    %1652 = vmatprep.subr.mxu0 0.0
    %1653 = vmatpush1.msra.mxu0 0.0
    %1654 = vmatprep.subr.mxu0 0.0
    %1655 = vmatpush1.msra.mxu0 0.0
    %1656 = vmatprep.subr.mxu0 0.0
    %1657 = vmatpush1.msra.mxu0 0.0
    %1658 = vmatprep.subr.mxu0 0.0
    %1659 = vmatpush1.msra.mxu0 0.0
    %1660 = vmatprep.subr.mxu0 0.0
    %1661 = vmatpush1.msra.mxu0 0.0
    %1662 = vmatprep.subr.mxu0 0.0
    %1663 = vmatpush1.msra.mxu0 0.0
    %1664 = vmatprep.subr.mxu0 0.0
    %1665 = vmatpush1.msra.mxu0 0.0
    %1666 = vmatprep.subr.mxu0 0.0
    %1667 = vmatpush1.msra.mxu0 0.0
    %1668 = vmatprep.subr.mxu0 %v1431
    %1669 = vmatpush1.msra.mxu0 %v1430
    %1670 = vmatprep.subr.mxu0 %v1427
    %1671 = vmatpush1.msra.mxu0 %v1426
    %1672 = vmatprep.subr.mxu0 %v1423
    %1673 = vmatpush1.msra.mxu0 %v1422
    %1674 = vmatprep.subr.mxu0 %v1419
    %1675 = vmatpush1.msra.mxu0 %v1418
    %1676 = vmatprep.subr.mxu0 0.0
    %1677 = vmatpush2.msra.mxu0 0.0
    %1678 = vmatprep.subr.mxu0 0.0
    %1679 = vmatpush2.msra.mxu0 0.0
    %1680 = vmatprep.subr.mxu0 0.0
    %1681 = vmatpush2.msra.mxu0 0.0
    %1682 = vmatprep.subr.mxu0 0.0
    %1683 = vmatpush2.msra.mxu0 0.0
    %1684 = vmatprep.subr.mxu0 0.0
    %1685 = vmatpush2.msra.mxu0 0.0
    %1686 = vmatprep.subr.mxu0 0.0
    %1687 = vmatpush2.msra.mxu0 0.0
    %1688 = vmatprep.subr.mxu0 0.0
    %1689 = vmatpush2.msra.mxu0 0.0
    %1690 = vmatprep.subr.mxu0 0.0
    %1691 = vmatpush2.msra.mxu0 0.0
    %1692 = vmatprep.subr.mxu0 0.0
    %1693 = vmatpush2.msra.mxu0 0.0
    %1694 = vmatprep.subr.mxu0 0.0
    %1695 = vmatpush2.msra.mxu0 0.0
    %1696 = vmatprep.subr.mxu0 0.0
    %1697 = vmatpush2.msra.mxu0 0.0
    %1698 = vmatprep.subr.mxu0 0.0
    %1699 = vmatpush2.msra.mxu0 0.0
    %1700 = vmatprep.subr.mxu0 0.0
    %1701 = vmatpush2.msra.mxu0 0.0
    %1702 = vmatprep.subr.mxu0 0.0
    %1703 = vmatpush2.msra.mxu0 0.0
    %1704 = vmatprep.subr.mxu0 0.0
    %1705 = vmatpush2.msra.mxu0 0.0
    %1706 = vmatprep.subr.mxu0 0.0
    %1707 = vmatpush2.msra.mxu0 0.0
    %1708 = vmatprep.mubr.f32.mxu0 0.0
    %1709 = vmatmul.mubr.f32.gmra.mxu0 %v1633
    %v1710 = vpop.f32.mrf.mxu0
    %v1711 = vadd.f32 %v1521, %v1710
    %v1712 = vpop.f32.mrf.mxu0
    %v1713 = vadd.f32 %v1523, %v1712
    %1714 = vmatprep.mubr.f32.mxu0 0.0
    %1715 = vmatmul.mubr.f32.gmra.mxu0 %v1636
    %v1716 = vpop.f32.mrf.mxu0
    %v1717 = vadd.f32 %v1527, %v1716
    %v1718 = vpop.f32.mrf.mxu0
    %v1719 = vadd.f32 %v1529, %v1718
    %1720 = vmatprep.mubr.f32.mxu0 0.0
    %1721 = vmatmul.mubr.f32.gmra.mxu0 %v1639
    %v1722 = vpop.f32.mrf.mxu0
    %v1723 = vadd.f32 %v1533, %v1722
    %v1724 = vpop.f32.mrf.mxu0
    %v1725 = vadd.f32 %v1535, %v1724
    %1726 = vmatprep.mubr.f32.mxu0 0.0
    %1727 = vmatmul.mubr.f32.gmra.mxu0 %v1642
    %v1728 = vpop.f32.mrf.mxu0
    %v1729 = vadd.f32 %v1539, %v1728
    %v1730 = vpop.f32.mrf.mxu0
    %v1731 = vadd.f32 %v1541, %v1730
    %1732 = vdwg.mxu0
    %1733 = vmatprep.subr.mxu0 0.0
    %1734 = vmatpush1.msra.mxu0 0.0
    %1735 = vmatprep.subr.mxu0 0.0
    %1736 = vmatpush1.msra.mxu0 0.0
    %1737 = vmatprep.subr.mxu0 0.0
    %1738 = vmatpush1.msra.mxu0 0.0
    %1739 = vmatprep.subr.mxu0 0.0
    %1740 = vmatpush1.msra.mxu0 0.0
    %1741 = vmatprep.subr.mxu0 0.0
    %1742 = vmatpush1.msra.mxu0 0.0
    %1743 = vmatprep.subr.mxu0 0.0
    %1744 = vmatpush1.msra.mxu0 0.0
    %1745 = vmatprep.subr.mxu0 0.0
    %1746 = vmatpush1.msra.mxu0 0.0
    %1747 = vmatprep.subr.mxu0 0.0
    %1748 = vmatpush1.msra.mxu0 0.0
    %1749 = vmatprep.subr.mxu0 0.0
    %1750 = vmatpush1.msra.mxu0 0.0
    %1751 = vmatprep.subr.mxu0 0.0
    %1752 = vmatpush1.msra.mxu0 0.0
    %1753 = vmatprep.subr.mxu0 0.0
    %1754 = vmatpush1.msra.mxu0 0.0
    %1755 = vmatprep.subr.mxu0 0.0
    %1756 = vmatpush1.msra.mxu0 0.0
    %1757 = vmatprep.subr.mxu0 %v1433
    %1758 = vmatpush1.msra.mxu0 %v1432
    %1759 = vmatprep.subr.mxu0 %v1429
    %1760 = vmatpush1.msra.mxu0 %v1428
    %1761 = vmatprep.subr.mxu0 %v1425
    %1762 = vmatpush1.msra.mxu0 %v1424
    %1763 = vmatprep.subr.mxu0 %v1421
    %1764 = vmatpush1.msra.mxu0 %v1420
    %1765 = vmatprep.subr.mxu0 0.0
    %1766 = vmatpush2.msra.mxu0 0.0
    %1767 = vmatprep.subr.mxu0 0.0
    %1768 = vmatpush2.msra.mxu0 0.0
    %1769 = vmatprep.subr.mxu0 0.0
    %1770 = vmatpush2.msra.mxu0 0.0
    %1771 = vmatprep.subr.mxu0 0.0
    %1772 = vmatpush2.msra.mxu0 0.0
    %1773 = vmatprep.subr.mxu0 0.0
    %1774 = vmatpush2.msra.mxu0 0.0
    %1775 = vmatprep.subr.mxu0 0.0
    %1776 = vmatpush2.msra.mxu0 0.0
    %1777 = vmatprep.subr.mxu0 0.0
    %1778 = vmatpush2.msra.mxu0 0.0
    %1779 = vmatprep.subr.mxu0 0.0
    %1780 = vmatpush2.msra.mxu0 0.0
    %1781 = vmatprep.subr.mxu0 0.0
    %1782 = vmatpush2.msra.mxu0 0.0
    %1783 = vmatprep.subr.mxu0 0.0
    %1784 = vmatpush2.msra.mxu0 0.0
    %1785 = vmatprep.subr.mxu0 0.0
    %1786 = vmatpush2.msra.mxu0 0.0
    %1787 = vmatprep.subr.mxu0 0.0
    %1788 = vmatpush2.msra.mxu0 0.0
    %1789 = vmatprep.subr.mxu0 0.0
    %1790 = vmatpush2.msra.mxu0 0.0
    %1791 = vmatprep.subr.mxu0 0.0
    %1792 = vmatpush2.msra.mxu0 0.0
    %1793 = vmatprep.subr.mxu0 0.0
    %1794 = vmatpush2.msra.mxu0 0.0
    %1795 = vmatprep.subr.mxu0 0.0
    %1796 = vmatpush2.msra.mxu0 0.0
    %1797 = vmatprep.mubr.f32.mxu0 0.0
    %1798 = vmatmul.mubr.f32.gmra.mxu0 %v1633
    %v1799 = vpop.f32.mrf.mxu0
    %v1800 = vadd.f32 %v1610, %v1799
    %v1801 = vpop.f32.mrf.mxu0
    %v1802 = vadd.f32 %v1612, %v1801
    %1803 = vmatprep.mubr.f32.mxu0 0.0
    %1804 = vmatmul.mubr.f32.gmra.mxu0 %v1636
    %v1805 = vpop.f32.mrf.mxu0
    %v1806 = vadd.f32 %v1616, %v1805
    %v1807 = vpop.f32.mrf.mxu0
    %v1808 = vadd.f32 %v1618, %v1807
    %1809 = vmatprep.mubr.f32.mxu0 0.0
    %1810 = vmatmul.mubr.f32.gmra.mxu0 %v1639
    %v1811 = vpop.f32.mrf.mxu0
    %v1812 = vadd.f32 %v1622, %v1811
    %v1813 = vpop.f32.mrf.mxu0
    %v1814 = vadd.f32 %v1624, %v1813
    %1815 = vmatprep.mubr.f32.mxu0 0.0
    %1816 = vmatmul.mubr.f32.gmra.mxu0 %v1642
    %v1817 = vpop.f32.mrf.mxu0
    %v1818 = vadd.f32 %v1628, %v1817
    %v1819 = vpop.f32.mrf.mxu0
    %v1820 = vadd.f32 %v1630, %v1819
    %1821 = vdwg.mxu0
    %v1822 = vmax.f32 %v1711, 0.0
    %v1823 = vmax.f32 %v1713, 0.0
    %v1824 = vmax.f32 %v1800, 0.0
    %v1825 = vmax.f32 %v1802, 0.0
    %v1826 = vmax.f32 %v1717, 0.0
    %v1827 = vmax.f32 %v1719, 0.0
    %v1828 = vmax.f32 %v1806, 0.0
    %v1829 = vmax.f32 %v1808, 0.0
    %v1830 = vmax.f32 %v1723, 0.0
    %v1831 = vmax.f32 %v1725, 0.0
    %v1832 = vmax.f32 %v1812, 0.0
    %v1833 = vmax.f32 %v1814, 0.0
    %v1834 = vmax.f32 %v1729, 0.0
    %v1835 = vmax.f32 %v1731, 0.0
    %v1836 = vmax.f32 %v1818, 0.0
    %v1837 = vmax.f32 %v1820, 0.0
    %v1838 = vld [vmem:[%s4 + $0x40] sm:$0xff]
    %v1839 = vld [vmem:[%s4 + $0x48] sm:$0xff]
    %v1840 = vld [vmem:[%s4 + $0x50] sm:$0xff]
    %v1841 = vld [vmem:[%s4 + $0x58] sm:$0xff]
    %v1842 = vld [vmem:[%s4 + $0x60] sm:$0x1]
    %v1843 = vld [vmem:[%s6 + $0x20] sm:$0xff]
    %v1844 = vld [vmem:[%s6 + $0x28] sm:$0xff]
    %v1845 = vld [vmem:[%s6 + $0x30] sm:$0xff]
    %v1846 = vld [vmem:[%s6 + $0x38] sm:$0xff]
    %v1847 = vld [vmem:[%s6 + $0x40] sm:$0x1]
    %1849 = vset.pattern.permute.xlu0 0
    %1850 = vperm.xlu0 %1849, %v1843
    %v1851 = vpop.permute.xlu0 %1850
    %1854 = vset.pattern.permute.xlu0 0
    %1855 = vperm.xlu0 %1854, %v1844
    %v1856 = vpop.permute.xlu0 %1855
    %1859 = vset.pattern.permute.xlu0 0
    %1860 = vperm.xlu0 %1859, %v1845
    %v1861 = vpop.permute.xlu0 %1860
    %1864 = vset.pattern.permute.xlu0 0
    %1865 = vperm.xlu0 %1864, %v1846
    %v1866 = vpop.permute.xlu0 %1865
    %1869 = vset.pattern.permute.xlu0 0
    %1870 = vperm.xlu0 %1869, %v1847
    %v1871 = vpop.permute.xlu0 %1870
    %v1874 = vsel %vm1227, %v1838, 0
    %v1877 = vsel %vm1227, %v1839, 0
    %v1880 = vsel %vm1227, %v1840, 0
    %v1883 = vsel %vm1227, %v1841, 0
    %v1886 = vsel %vm1227, %v1842, 0
    %1888 = vmatprep.subr.mxu0 0.0
    %1889 = vmatpush1.msra.mxu0 0.0
    %1890 = vmatprep.subr.mxu0 0.0
    %1891 = vmatpush1.msra.mxu0 0.0
    %1892 = vmatprep.subr.mxu0 0.0
    %1893 = vmatpush1.msra.mxu0 0.0
    %1894 = vmatprep.subr.mxu0 0.0
    %1895 = vmatpush1.msra.mxu0 0.0
    %1896 = vmatprep.subr.mxu0 0.0
    %1897 = vmatpush1.msra.mxu0 0.0
    %1898 = vmatprep.subr.mxu0 0.0
    %1899 = vmatpush1.msra.mxu0 0.0
    %1900 = vmatprep.subr.mxu0 0.0
    %1901 = vmatpush1.msra.mxu0 0.0
    %1902 = vmatprep.subr.mxu0 0.0
    %1903 = vmatpush1.msra.mxu0 0.0
    %1904 = vmatprep.subr.mxu0 0.0
    %1905 = vmatpush1.msra.mxu0 0.0
    %1906 = vmatprep.subr.mxu0 0.0
    %1907 = vmatpush1.msra.mxu0 0.0
    %1908 = vmatprep.subr.mxu0 0.0
    %1909 = vmatpush1.msra.mxu0 0.0
    %1910 = vmatprep.subr.mxu0 0.0
    %1911 = vmatpush1.msra.mxu0 0.0
    %1912 = vmatprep.subr.mxu0 %v1835
    %1913 = vmatpush1.msra.mxu0 %v1834
    %1914 = vmatprep.subr.mxu0 %v1831
    %1915 = vmatpush1.msra.mxu0 %v1830
    %1916 = vmatprep.subr.mxu0 %v1827
    %1917 = vmatpush1.msra.mxu0 %v1826
    %1918 = vmatprep.subr.mxu0 %v1823
    %1919 = vmatpush1.msra.mxu0 %v1822
    %1920 = vmatprep.subr.mxu0 0.0
    %1921 = vmatpush2.msra.mxu0 0.0
    %1922 = vmatprep.subr.mxu0 0.0
    %1923 = vmatpush2.msra.mxu0 0.0
    %1924 = vmatprep.subr.mxu0 0.0
    %1925 = vmatpush2.msra.mxu0 0.0
    %1926 = vmatprep.subr.mxu0 0.0
    %1927 = vmatpush2.msra.mxu0 0.0
    %1928 = vmatprep.subr.mxu0 0.0
    %1929 = vmatpush2.msra.mxu0 0.0
    %1930 = vmatprep.subr.mxu0 0.0
    %1931 = vmatpush2.msra.mxu0 0.0
    %1932 = vmatprep.subr.mxu0 0.0
    %1933 = vmatpush2.msra.mxu0 0.0
    %1934 = vmatprep.subr.mxu0 0.0
    %1935 = vmatpush2.msra.mxu0 0.0
    %1936 = vmatprep.subr.mxu0 0.0
    %1937 = vmatpush2.msra.mxu0 0.0
    %1938 = vmatprep.subr.mxu0 0.0
    %1939 = vmatpush2.msra.mxu0 0.0
    %1940 = vmatprep.subr.mxu0 0.0
    %1941 = vmatpush2.msra.mxu0 0.0
    %1942 = vmatprep.subr.mxu0 0.0
    %1943 = vmatpush2.msra.mxu0 0.0
    %1944 = vmatprep.subr.mxu0 0.0
    %1945 = vmatpush2.msra.mxu0 0.0
    %1946 = vmatprep.subr.mxu0 0.0
    %1947 = vmatpush2.msra.mxu0 0.0
    %1948 = vmatprep.subr.mxu0 0.0
    %1949 = vmatpush2.msra.mxu0 0.0
    %1950 = vmatprep.subr.mxu0 0.0
    %1951 = vmatpush2.msra.mxu0 0.0
    %1952 = vmatprep.mubr.f32.mxu0 0.0
    %1953 = vmatmul.mubr.f32.gmra.mxu0 %v1874
    %v1954 = vpop.f32.mrf.mxu0
    %v1955 = vadd.f32 %v1851, %v1954
    %v1956 = vpop.f32.mrf.mxu0
    %v1957 = vadd.f32 %v1851, %v1956
    %1958 = vmatprep.mubr.f32.mxu0 0.0
    %1959 = vmatmul.mubr.f32.gmra.mxu0 %v1877
    %v1960 = vpop.f32.mrf.mxu0
    %v1961 = vadd.f32 %v1856, %v1960
    %v1962 = vpop.f32.mrf.mxu0
    %v1963 = vadd.f32 %v1856, %v1962
    %1964 = vmatprep.mubr.f32.mxu0 0.0
    %1965 = vmatmul.mubr.f32.gmra.mxu0 %v1880
    %v1966 = vpop.f32.mrf.mxu0
    %v1967 = vadd.f32 %v1861, %v1966
    %v1968 = vpop.f32.mrf.mxu0
    %v1969 = vadd.f32 %v1861, %v1968
    %1970 = vmatprep.mubr.f32.mxu0 0.0
    %1971 = vmatmul.mubr.f32.gmra.mxu0 %v1883
    %v1972 = vpop.f32.mrf.mxu0
    %v1973 = vadd.f32 %v1866, %v1972
    %v1974 = vpop.f32.mrf.mxu0
    %v1975 = vadd.f32 %v1866, %v1974
    %1976 = vmatprep.mubr.f32.mxu0 0.0
    %1977 = vmatmul.mubr.f32.gmra.mxu0 %v1886
    %v1978 = vpop.f32.mrf.mxu0
    %v1979 = vadd.f32 %v1871, %v1978
    %v1980 = vpop.f32.mrf.mxu0
    %v1981 = vadd.f32 %v1871, %v1980
    %1982 = vdwg.mxu0
    %1983 = vmatprep.subr.mxu0 0.0
    %1984 = vmatpush1.msra.mxu0 0.0
    %1985 = vmatprep.subr.mxu0 0.0
    %1986 = vmatpush1.msra.mxu0 0.0
    %1987 = vmatprep.subr.mxu0 0.0
    %1988 = vmatpush1.msra.mxu0 0.0
    %1989 = vmatprep.subr.mxu0 0.0
    %1990 = vmatpush1.msra.mxu0 0.0
    %1991 = vmatprep.subr.mxu0 0.0
    %1992 = vmatpush1.msra.mxu0 0.0
    %1993 = vmatprep.subr.mxu0 0.0
    %1994 = vmatpush1.msra.mxu0 0.0
    %1995 = vmatprep.subr.mxu0 0.0
    %1996 = vmatpush1.msra.mxu0 0.0
    %1997 = vmatprep.subr.mxu0 0.0
    %1998 = vmatpush1.msra.mxu0 0.0
    %1999 = vmatprep.subr.mxu0 0.0
    %2000 = vmatpush1.msra.mxu0 0.0
    %2001 = vmatprep.subr.mxu0 0.0
    %2002 = vmatpush1.msra.mxu0 0.0
    %2003 = vmatprep.subr.mxu0 0.0
    %2004 = vmatpush1.msra.mxu0 0.0
    %2005 = vmatprep.subr.mxu0 0.0
    %2006 = vmatpush1.msra.mxu0 0.0
    %2007 = vmatprep.subr.mxu0 %v1837
    %2008 = vmatpush1.msra.mxu0 %v1836
    %2009 = vmatprep.subr.mxu0 %v1833
    %2010 = vmatpush1.msra.mxu0 %v1832
    %2011 = vmatprep.subr.mxu0 %v1829
    %2012 = vmatpush1.msra.mxu0 %v1828
    %2013 = vmatprep.subr.mxu0 %v1825
    %2014 = vmatpush1.msra.mxu0 %v1824
    %2015 = vmatprep.subr.mxu0 0.0
    %2016 = vmatpush2.msra.mxu0 0.0
    %2017 = vmatprep.subr.mxu0 0.0
    %2018 = vmatpush2.msra.mxu0 0.0
    %2019 = vmatprep.subr.mxu0 0.0
    %2020 = vmatpush2.msra.mxu0 0.0
    %2021 = vmatprep.subr.mxu0 0.0
    %2022 = vmatpush2.msra.mxu0 0.0
    %2023 = vmatprep.subr.mxu0 0.0
    %2024 = vmatpush2.msra.mxu0 0.0
    %2025 = vmatprep.subr.mxu0 0.0
    %2026 = vmatpush2.msra.mxu0 0.0
    %2027 = vmatprep.subr.mxu0 0.0
    %2028 = vmatpush2.msra.mxu0 0.0
    %2029 = vmatprep.subr.mxu0 0.0
    %2030 = vmatpush2.msra.mxu0 0.0
    %2031 = vmatprep.subr.mxu0 0.0
    %2032 = vmatpush2.msra.mxu0 0.0
    %2033 = vmatprep.subr.mxu0 0.0
    %2034 = vmatpush2.msra.mxu0 0.0
    %2035 = vmatprep.subr.mxu0 0.0
    %2036 = vmatpush2.msra.mxu0 0.0
    %2037 = vmatprep.subr.mxu0 0.0
    %2038 = vmatpush2.msra.mxu0 0.0
    %2039 = vmatprep.subr.mxu0 0.0
    %2040 = vmatpush2.msra.mxu0 0.0
    %2041 = vmatprep.subr.mxu0 0.0
    %2042 = vmatpush2.msra.mxu0 0.0
    %2043 = vmatprep.subr.mxu0 0.0
    %2044 = vmatpush2.msra.mxu0 0.0
    %2045 = vmatprep.subr.mxu0 0.0
    %2046 = vmatpush2.msra.mxu0 0.0
    %2047 = vmatprep.mubr.f32.mxu0 0.0
    %2048 = vmatmul.mubr.f32.gmra.mxu0 %v1874
    %v2049 = vpop.f32.mrf.mxu0
    %v2050 = vadd.f32 %v1851, %v2049
    %v2051 = vpop.f32.mrf.mxu0
    %v2052 = vadd.f32 %v1851, %v2051
    %2053 = vmatprep.mubr.f32.mxu0 0.0
    %2054 = vmatmul.mubr.f32.gmra.mxu0 %v1877
    %v2055 = vpop.f32.mrf.mxu0
    %v2056 = vadd.f32 %v1856, %v2055
    %v2057 = vpop.f32.mrf.mxu0
    %v2058 = vadd.f32 %v1856, %v2057
    %2059 = vmatprep.mubr.f32.mxu0 0.0
    %2060 = vmatmul.mubr.f32.gmra.mxu0 %v1880
    %v2061 = vpop.f32.mrf.mxu0
    %v2062 = vadd.f32 %v1861, %v2061
    %v2063 = vpop.f32.mrf.mxu0
    %v2064 = vadd.f32 %v1861, %v2063
    %2065 = vmatprep.mubr.f32.mxu0 0.0
    %2066 = vmatmul.mubr.f32.gmra.mxu0 %v1883
    %v2067 = vpop.f32.mrf.mxu0
    %v2068 = vadd.f32 %v1866, %v2067
    %v2069 = vpop.f32.mrf.mxu0
    %v2070 = vadd.f32 %v1866, %v2069
    %2071 = vmatprep.mubr.f32.mxu0 0.0
    %2072 = vmatmul.mubr.f32.gmra.mxu0 %v1886
    %v2073 = vpop.f32.mrf.mxu0
    %v2074 = vadd.f32 %v1871, %v2073
    %v2075 = vpop.f32.mrf.mxu0
    %v2076 = vadd.f32 %v1871, %v2075
    %2077 = vdwg.mxu0
    %v2078 = vmax.f32 %v1955, 0.0
    %v2079 = vmax.f32 %v1957, 0.0
    %v2080 = vmax.f32 %v2050, 0.0
    %v2081 = vmax.f32 %v2052, 0.0
    %v2082 = vmax.f32 %v1961, 0.0
    %v2083 = vmax.f32 %v1963, 0.0
    %v2084 = vmax.f32 %v2056, 0.0
    %v2085 = vmax.f32 %v2058, 0.0
    %v2086 = vmax.f32 %v1967, 0.0
    %v2087 = vmax.f32 %v1969, 0.0
    %v2088 = vmax.f32 %v2062, 0.0
    %v2089 = vmax.f32 %v2064, 0.0
    %v2090 = vmax.f32 %v1973, 0.0
    %v2091 = vmax.f32 %v1975, 0.0
    %v2092 = vmax.f32 %v2068, 0.0
    %v2093 = vmax.f32 %v2070, 0.0
    %v2094 = vmax.f32 %v1979, 0.0
    %v2095 = vmax.f32 %v1981, 0.0
    %v2096 = vmax.f32 %v2074, 0.0
    %v2097 = vmax.f32 %v2076, 0.0
    %v2098 = vand.u32 2147483647, %v1979
    %v2099 = vand.u32 2147483647, %v1981
    %v2100 = vand.u32 2147483647, %v2074
    %v2101 = vand.u32 2147483647, %v2076
    %v2102 = vsub.f32 0.0, %v2098
    %v2103 = vsub.f32 0.0, %v2099
    %v2104 = vsub.f32 0.0, %v2100
    %v2105 = vsub.f32 0.0, %v2101
    %v2106 = vmul.f32 %v2102, 1.442695
    %v2107 = vpow.pop %v2106
    %v2108 = vmul.f32 %v2103, 1.442695
    %v2109 = vpow.pop %v2108
    %v2110 = vmul.f32 %v2104, 1.442695
    %v2111 = vpow.pop %v2110
    %v2112 = vmul.f32 %v2105, 1.442695
    %v2113 = vpow.pop %v2112
    %v2114 = vadd.f32 %v2107, 1.0
    %v2115 = vlog2.pop %v2114
    %v2116 = vmul.f32 %v2115, 0.6931472
    %v2117 = vmul.f32 -0.5, %v2107
    %v2118 = vadd.f32 %v2117, 1.0
    %v2119 = vmul.f32 %v2118, %v2107
    %v2120 = vand.u32 2147483647, %v2107
    %vm2121 = vcmp.lt.f32.partialorder %v2120, 0.0004427343
    %v2122 = vsel %vm2121, %v2119, %v2116
    %v2123 = vadd.f32 %v2109, 1.0
    %v2124 = vlog2.pop %v2123
    %v2125 = vmul.f32 %v2124, 0.6931472
    %v2126 = vmul.f32 -0.5, %v2109
    %v2127 = vadd.f32 %v2126, 1.0
    %v2128 = vmul.f32 %v2127, %v2109
    %v2129 = vand.u32 2147483647, %v2109
    %vm2130 = vcmp.lt.f32.partialorder %v2129, 0.0004427343
    %v2131 = vsel %vm2130, %v2128, %v2125
    %v2132 = vadd.f32 %v2111, 1.0
    %v2133 = vlog2.pop %v2132
    %v2134 = vmul.f32 %v2133, 0.6931472
    %v2135 = vmul.f32 -0.5, %v2111
    %v2136 = vadd.f32 %v2135, 1.0
    %v2137 = vmul.f32 %v2136, %v2111
    %v2138 = vand.u32 2147483647, %v2111
    %vm2139 = vcmp.lt.f32.partialorder %v2138, 0.0004427343
    %v2140 = vsel %vm2139, %v2137, %v2134
    %v2141 = vadd.f32 %v2113, 1.0
    %v2142 = vlog2.pop %v2141
    %v2143 = vmul.f32 %v2142, 0.6931472
    %v2144 = vmul.f32 -0.5, %v2113
    %v2145 = vadd.f32 %v2144, 1.0
    %v2146 = vmul.f32 %v2145, %v2113
    %v2147 = vand.u32 2147483647, %v2113
    %vm2148 = vcmp.lt.f32.partialorder %v2147, 0.0004427343
    %v2149 = vsel %vm2148, %v2146, %v2143
    %v2150 = vadd.f32 %v2094, %v2122
    %v2151 = vadd.f32 %v2095, %v2131
    %v2152 = vadd.f32 %v2096, %v2140
    %v2153 = vadd.f32 %v2097, %v2149
    %v2154 = vld [vmem:[%s1] sm:$0x77]
    %v2155 = vld [vmem:[%s1 + $0x8] sm:$0x77]
    %v2156 = vmul.f32 %v2154, 3.1415927
    %v2157 = vmul.f32 %v2155, 3.1415927
    %v2160 = vcombine.high %v2156, %v2156
    %v2161 = vcombine.high %v2157, %v2157
    %v2164 = vsel %vm105, %v2156, 0.0
    %v2165 = vsel %vm105, %v2160, 0.0
    %v2166 = vsel %vm105, %v2157, 0.0
    %v2167 = vsel %vm105, %v2161, 0.0
    %v2168 = vand.u32 2147483647, %v2164
    %vm2169 = vcmp.le.f32.partialorder %v2168, 0.7853982
    %vm2170 = vcmp.lt.s32.totalorder %v2164, 0
    %v2171 = vand.u32 %v2164, 2139095040
    %v2172 = vshrl.u32 %v2171, 23
    %v2173 = vsub.s32 %v2172, 127
    %v2174 = vand.u32 2147483647, %v2164
    %v2175 = vand.u32 %v2174, 8388607
    %v2176 = vor.u32 %v2175, 8388608
    %v2177 = vsub.s32 0, %v2176
    %v2178 = vadd.s32 %v2173, 1
    %vm2179 = vcmp.gt.s32.totalorder %v2178, 0
    %v2180 = vsel %vm2179, %v2178, 0
    %v2181 = vshrl.u32 %v2180, 5
    %v2182 = vand.u32 %v2180, 31
    %v2183 = vsub.s32 32, %v2182
    %v2184 = vshrl.u32 683565275, %v2183
    %v2185 = vshll.u32 683565275, %v2182
    %v2186 = vshrl.u32 2475754826, %v2183
    %v2187 = vor.u32 %v2185, %v2186
    %v2188 = vshll.u32 2475754826, %v2182
    %v2189 = vshrl.u32 2131351028, %v2183
    %v2190 = vor.u32 %v2188, %v2189
    %v2191 = vshll.u32 2131351028, %v2182
    %v2192 = vshrl.u32 2102212464, %v2183
    %v2193 = vor.u32 %v2191, %v2192
    %v2194 = vshll.u32 2102212464, %v2182
    %v2195 = vshrl.u32 920167782, %v2183
    %v2196 = vor.u32 %v2194, %v2195
    %v2197 = vshll.u32 920167782, %v2182
    %v2198 = vshrl.u32 1326507024, %v2183
    %v2199 = vor.u32 %v2197, %v2198
    %vm2200 = vcmp.lt.s32.totalorder %v2181, 1
    %vm2201 = vcmp.lt.s32.totalorder %v2181, 2
    %vm2202 = vcmp.lt.s32.totalorder %v2181, 3
    %vm2203 = vcmp.lt.s32.totalorder %v2181, 4
    %v2204 = vsel %vm2200, %v2184, %v2187
    %v2205 = vsel %vm2203, %v2193, 2102212464
    %v2206 = vsel %vm2202, %v2190, %v2205
    %v2207 = vsel %vm2201, %v2204, %v2206
    %v2208 = vsel %vm2200, %v2187, %v2190
    %v2209 = vsel %vm2203, %v2196, 920167782
    %v2210 = vsel %vm2202, %v2193, %v2209
    %v2211 = vsel %vm2201, %v2208, %v2210
    %v2212 = vsel %vm2200, %v2190, %v2193
    %v2213 = vsel %vm2203, %v2199, 1326507024
    %v2214 = vsel %vm2202, %v2196, %v2213
    %v2215 = vsel %vm2201, %v2212, %v2214
    %v2216 = vshll.u32 %v2176, 8
    %v2217 = vmul.u32.u64.compose %v2216, %v2215
    %v2218 = vextract.low.u32 %v2217
    %v2219 = vextract.high.u32 %v2217
    %v2220 = vmul.u32.u64.compose %v2216, %v2211
    %v2221 = vextract.low.u32 %v2220
    %v2222 = vextract.high.u32 %v2220
    %v2223 = vmul.u32 %v2216, %v2207
    %v2224 = vadd.s32 %v2219, %v2221
    %vm2225 = vc.u32 %v2219, %v2221
    %v2226 = vadd.s32 %v2222, 1
    %v2227 = vsel %vm2225, %v2226, %v2222
    %v2228 = vadd.s32 %v2223, %v2227
    %v2229 = vadd.s32 %v2228, 536870912
    %v2230 = vshrl.u32 %v2229, 30
    %v2231 = vshll.u32 %v2230, 30
    %v2232 = vsub.s32 %v2228, %v2231
    %vm2233 = vcmp.lt.s32.totalorder %v2232, 0
    %v2234 = vsub.s32 0, %v2232
    %v2235 = vsel %vm2233, %v2234, %v2232
    %v2236 = vclz %v2235
    %v2237 = vsub.s32 %v2236, 2
    %vm2238 = vcmp.gt.s32.totalorder 0, %v2237
    %v2239 = vsel %vm2238, 0, %v2237
    %v2240 = vsub.s32 32, %v2239
    %v2241 = vshll.u32 %v2232, %v2239
    %v2242 = vshrl.u32 %v2224, %v2240
    %v2243 = vor.u32 %v2241, %v2242
    %v2244 = vsub.s32 4294967266, %v2239
    %v2245 = vadd.s32 %v2244, 127
    %v2246 = vshll.u32 %v2245, 23
    %v2247 = vor.u32 4788187, %v2246
    %v2248 = vand.u32 2147483647, %v2247
    %v2250 = vcvt.s32.f32 %v2243
    %v2251 = vmul.f32 %v2250, %v2248
    %v2252 = vxor.u32 %v2251, 2147483648
    %v2253 = vsel %vm2170, %v2252, %v2251
    %v2254 = vsub.s32 4, %v2230
    %v2255 = vsel %vm2170, %v2254, %v2230
    %v2256 = vsel %vm2169, %v2164, %v2253
    %v2257 = vsel %vm2169, 0, %v2255
    %v2258 = vcosq.f32.pop %v2256
    %v2259 = vsinq.f32.pop %v2256
    %vm2260 = vweird.f32 %v2164
    %v2261 = vadd.s32 %v2257, 3
    %v2262 = vand.u32 %v2261, 3
    %vm2263 = vcmp.lt.s32.totalorder %v2262, 2
    %vm2264 = vcmp.eq.s32.totalorder %v2262, 0
    %v2265 = vxor.u32 %v2259, 2147483648
    %v2266 = vsel %vm2264, %v2258, %v2265
    %vm2267 = vcmp.eq.s32.totalorder %v2262, 2
    %v2268 = vxor.u32 %v2258, 2147483648
    %v2269 = vsel %vm2267, %v2268, %v2259
    %v2270 = vsel %vm2263, %v2266, %v2269
    %v2271 = vsel %vm2260, nan, %v2270
    %v2272 = vand.u32 2147483647, %v2165
    %vm2273 = vcmp.le.f32.partialorder %v2272, 0.7853982
    %vm2274 = vcmp.lt.s32.totalorder %v2165, 0
    %v2275 = vand.u32 %v2165, 2139095040
    %v2276 = vshrl.u32 %v2275, 23
    %v2277 = vsub.s32 %v2276, 127
    %v2278 = vand.u32 2147483647, %v2165
    %v2279 = vand.u32 %v2278, 8388607
    %v2280 = vor.u32 %v2279, 8388608
    %v2281 = vsub.s32 0, %v2280
    %v2282 = vadd.s32 %v2277, 1
    %vm2283 = vcmp.gt.s32.totalorder %v2282, 0
    %v2284 = vsel %vm2283, %v2282, 0
    %v2285 = vshrl.u32 %v2284, 5
    %v2286 = vand.u32 %v2284, 31
    %v2287 = vsub.s32 32, %v2286
    %v2288 = vshrl.u32 683565275, %v2287
    %v2289 = vshll.u32 683565275, %v2286
    %v2290 = vshrl.u32 2475754826, %v2287
    %v2291 = vor.u32 %v2289, %v2290
    %v2292 = vshll.u32 2475754826, %v2286
    %v2293 = vshrl.u32 2131351028, %v2287
    %v2294 = vor.u32 %v2292, %v2293
    %v2295 = vshll.u32 2131351028, %v2286
    %v2296 = vshrl.u32 2102212464, %v2287
    %v2297 = vor.u32 %v2295, %v2296
    %v2298 = vshll.u32 2102212464, %v2286
    %v2299 = vshrl.u32 920167782, %v2287
    %v2300 = vor.u32 %v2298, %v2299
    %v2301 = vshll.u32 920167782, %v2286
    %v2302 = vshrl.u32 1326507024, %v2287
    %v2303 = vor.u32 %v2301, %v2302
    %vm2304 = vcmp.lt.s32.totalorder %v2285, 1
    %vm2305 = vcmp.lt.s32.totalorder %v2285, 2
    %vm2306 = vcmp.lt.s32.totalorder %v2285, 3
    %vm2307 = vcmp.lt.s32.totalorder %v2285, 4
    %v2308 = vsel %vm2304, %v2288, %v2291
    %v2309 = vsel %vm2307, %v2297, 2102212464
    %v2310 = vsel %vm2306, %v2294, %v2309
    %v2311 = vsel %vm2305, %v2308, %v2310
    %v2312 = vsel %vm2304, %v2291, %v2294
    %v2313 = vsel %vm2307, %v2300, 920167782
    %v2314 = vsel %vm2306, %v2297, %v2313
    %v2315 = vsel %vm2305, %v2312, %v2314
    %v2316 = vsel %vm2304, %v2294, %v2297
    %v2317 = vsel %vm2307, %v2303, 1326507024
    %v2318 = vsel %vm2306, %v2300, %v2317
    %v2319 = vsel %vm2305, %v2316, %v2318
    %v2320 = vshll.u32 %v2280, 8
    %v2321 = vmul.u32.u64.compose %v2320, %v2319
    %v2322 = vextract.low.u32 %v2321
    %v2323 = vextract.high.u32 %v2321
    %v2324 = vmul.u32.u64.compose %v2320, %v2315
    %v2325 = vextract.low.u32 %v2324
    %v2326 = vextract.high.u32 %v2324
    %v2327 = vmul.u32 %v2320, %v2311
    %v2328 = vadd.s32 %v2323, %v2325
    %vm2329 = vc.u32 %v2323, %v2325
    %v2330 = vadd.s32 %v2326, 1
    %v2331 = vsel %vm2329, %v2330, %v2326
    %v2332 = vadd.s32 %v2327, %v2331
    %v2333 = vadd.s32 %v2332, 536870912
    %v2334 = vshrl.u32 %v2333, 30
    %v2335 = vshll.u32 %v2334, 30
    %v2336 = vsub.s32 %v2332, %v2335
    %vm2337 = vcmp.lt.s32.totalorder %v2336, 0
    %v2338 = vsub.s32 0, %v2336
    %v2339 = vsel %vm2337, %v2338, %v2336
    %v2340 = vclz %v2339
    %v2341 = vsub.s32 %v2340, 2
    %vm2342 = vcmp.gt.s32.totalorder 0, %v2341
    %v2343 = vsel %vm2342, 0, %v2341
    %v2344 = vsub.s32 32, %v2343
    %v2345 = vshll.u32 %v2336, %v2343
    %v2346 = vshrl.u32 %v2328, %v2344
    %v2347 = vor.u32 %v2345, %v2346
    %v2348 = vsub.s32 4294967266, %v2343
    %v2349 = vadd.s32 %v2348, 127
    %v2350 = vshll.u32 %v2349, 23
    %v2351 = vor.u32 4788187, %v2350
    %v2352 = vand.u32 2147483647, %v2351
    %v2354 = vcvt.s32.f32 %v2347
    %v2355 = vmul.f32 %v2354, %v2352
    %v2356 = vxor.u32 %v2355, 2147483648
    %v2357 = vsel %vm2274, %v2356, %v2355
    %v2358 = vsub.s32 4, %v2334
    %v2359 = vsel %vm2274, %v2358, %v2334
    %v2360 = vsel %vm2273, %v2165, %v2357
    %v2361 = vsel %vm2273, 0, %v2359
    %v2362 = vcosq.f32.pop %v2360
    %v2363 = vsinq.f32.pop %v2360
    %vm2364 = vweird.f32 %v2165
    %v2365 = vadd.s32 %v2361, 3
    %v2366 = vand.u32 %v2365, 3
    %vm2367 = vcmp.lt.s32.totalorder %v2366, 2
    %vm2368 = vcmp.eq.s32.totalorder %v2366, 0
    %v2369 = vxor.u32 %v2363, 2147483648
    %v2370 = vsel %vm2368, %v2362, %v2369
    %vm2371 = vcmp.eq.s32.totalorder %v2366, 2
    %v2372 = vxor.u32 %v2362, 2147483648
    %v2373 = vsel %vm2371, %v2372, %v2363
    %v2374 = vsel %vm2367, %v2370, %v2373
    %v2375 = vsel %vm2364, nan, %v2374
    %v2376 = vand.u32 2147483647, %v2166
    %vm2377 = vcmp.le.f32.partialorder %v2376, 0.7853982
    %vm2378 = vcmp.lt.s32.totalorder %v2166, 0
    %v2379 = vand.u32 %v2166, 2139095040
    %v2380 = vshrl.u32 %v2379, 23
    %v2381 = vsub.s32 %v2380, 127
    %v2382 = vand.u32 2147483647, %v2166
    %v2383 = vand.u32 %v2382, 8388607
    %v2384 = vor.u32 %v2383, 8388608
    %v2385 = vsub.s32 0, %v2384
    %v2386 = vadd.s32 %v2381, 1
    %vm2387 = vcmp.gt.s32.totalorder %v2386, 0
    %v2388 = vsel %vm2387, %v2386, 0
    %v2389 = vshrl.u32 %v2388, 5
    %v2390 = vand.u32 %v2388, 31
    %v2391 = vsub.s32 32, %v2390
    %v2392 = vshrl.u32 683565275, %v2391
    %v2393 = vshll.u32 683565275, %v2390
    %v2394 = vshrl.u32 2475754826, %v2391
    %v2395 = vor.u32 %v2393, %v2394
    %v2396 = vshll.u32 2475754826, %v2390
    %v2397 = vshrl.u32 2131351028, %v2391
    %v2398 = vor.u32 %v2396, %v2397
    %v2399 = vshll.u32 2131351028, %v2390
    %v2400 = vshrl.u32 2102212464, %v2391
    %v2401 = vor.u32 %v2399, %v2400
    %v2402 = vshll.u32 2102212464, %v2390
    %v2403 = vshrl.u32 920167782, %v2391
    %v2404 = vor.u32 %v2402, %v2403
    %v2405 = vshll.u32 920167782, %v2390
    %v2406 = vshrl.u32 1326507024, %v2391
    %v2407 = vor.u32 %v2405, %v2406
    %vm2408 = vcmp.lt.s32.totalorder %v2389, 1
    %vm2409 = vcmp.lt.s32.totalorder %v2389, 2
    %vm2410 = vcmp.lt.s32.totalorder %v2389, 3
    %vm2411 = vcmp.lt.s32.totalorder %v2389, 4
    %v2412 = vsel %vm2408, %v2392, %v2395
    %v2413 = vsel %vm2411, %v2401, 2102212464
    %v2414 = vsel %vm2410, %v2398, %v2413
    %v2415 = vsel %vm2409, %v2412, %v2414
    %v2416 = vsel %vm2408, %v2395, %v2398
    %v2417 = vsel %vm2411, %v2404, 920167782
    %v2418 = vsel %vm2410, %v2401, %v2417
    %v2419 = vsel %vm2409, %v2416, %v2418
    %v2420 = vsel %vm2408, %v2398, %v2401
    %v2421 = vsel %vm2411, %v2407, 1326507024
    %v2422 = vsel %vm2410, %v2404, %v2421
    %v2423 = vsel %vm2409, %v2420, %v2422
    %v2424 = vshll.u32 %v2384, 8
    %v2425 = vmul.u32.u64.compose %v2424, %v2423
    %v2426 = vextract.low.u32 %v2425
    %v2427 = vextract.high.u32 %v2425
    %v2428 = vmul.u32.u64.compose %v2424, %v2419
    %v2429 = vextract.low.u32 %v2428
    %v2430 = vextract.high.u32 %v2428
    %v2431 = vmul.u32 %v2424, %v2415
    %v2432 = vadd.s32 %v2427, %v2429
    %vm2433 = vc.u32 %v2427, %v2429
    %v2434 = vadd.s32 %v2430, 1
    %v2435 = vsel %vm2433, %v2434, %v2430
    %v2436 = vadd.s32 %v2431, %v2435
    %v2437 = vadd.s32 %v2436, 536870912
    %v2438 = vshrl.u32 %v2437, 30
    %v2439 = vshll.u32 %v2438, 30
    %v2440 = vsub.s32 %v2436, %v2439
    %vm2441 = vcmp.lt.s32.totalorder %v2440, 0
    %v2442 = vsub.s32 0, %v2440
    %v2443 = vsel %vm2441, %v2442, %v2440
    %v2444 = vclz %v2443
    %v2445 = vsub.s32 %v2444, 2
    %vm2446 = vcmp.gt.s32.totalorder 0, %v2445
    %v2447 = vsel %vm2446, 0, %v2445
    %v2448 = vsub.s32 32, %v2447
    %v2449 = vshll.u32 %v2440, %v2447
    %v2450 = vshrl.u32 %v2432, %v2448
    %v2451 = vor.u32 %v2449, %v2450
    %v2452 = vsub.s32 4294967266, %v2447
    %v2453 = vadd.s32 %v2452, 127
    %v2454 = vshll.u32 %v2453, 23
    %v2455 = vor.u32 4788187, %v2454
    %v2456 = vand.u32 2147483647, %v2455
    %v2458 = vcvt.s32.f32 %v2451
    %v2459 = vmul.f32 %v2458, %v2456
    %v2460 = vxor.u32 %v2459, 2147483648
    %v2461 = vsel %vm2378, %v2460, %v2459
    %v2462 = vsub.s32 4, %v2438
    %v2463 = vsel %vm2378, %v2462, %v2438
    %v2464 = vsel %vm2377, %v2166, %v2461
    %v2465 = vsel %vm2377, 0, %v2463
    %v2466 = vcosq.f32.pop %v2464
    %v2467 = vsinq.f32.pop %v2464
    %vm2468 = vweird.f32 %v2166
    %v2469 = vadd.s32 %v2465, 3
    %v2470 = vand.u32 %v2469, 3
    %vm2471 = vcmp.lt.s32.totalorder %v2470, 2
    %vm2472 = vcmp.eq.s32.totalorder %v2470, 0
    %v2473 = vxor.u32 %v2467, 2147483648
    %v2474 = vsel %vm2472, %v2466, %v2473
    %vm2475 = vcmp.eq.s32.totalorder %v2470, 2
    %v2476 = vxor.u32 %v2466, 2147483648
    %v2477 = vsel %vm2475, %v2476, %v2467
    %v2478 = vsel %vm2471, %v2474, %v2477
    %v2479 = vsel %vm2468, nan, %v2478
    %v2480 = vand.u32 2147483647, %v2167
    %vm2481 = vcmp.le.f32.partialorder %v2480, 0.7853982
    %vm2482 = vcmp.lt.s32.totalorder %v2167, 0
    %v2483 = vand.u32 %v2167, 2139095040
    %v2484 = vshrl.u32 %v2483, 23
    %v2485 = vsub.s32 %v2484, 127
    %v2486 = vand.u32 2147483647, %v2167
    %v2487 = vand.u32 %v2486, 8388607
    %v2488 = vor.u32 %v2487, 8388608
    %v2489 = vsub.s32 0, %v2488
    %v2490 = vadd.s32 %v2485, 1
    %vm2491 = vcmp.gt.s32.totalorder %v2490, 0
    %v2492 = vsel %vm2491, %v2490, 0
    %v2493 = vshrl.u32 %v2492, 5
    %v2494 = vand.u32 %v2492, 31
    %v2495 = vsub.s32 32, %v2494
    %v2496 = vshrl.u32 683565275, %v2495
    %v2497 = vshll.u32 683565275, %v2494
    %v2498 = vshrl.u32 2475754826, %v2495
    %v2499 = vor.u32 %v2497, %v2498
    %v2500 = vshll.u32 2475754826, %v2494
    %v2501 = vshrl.u32 2131351028, %v2495
    %v2502 = vor.u32 %v2500, %v2501
    %v2503 = vshll.u32 2131351028, %v2494
    %v2504 = vshrl.u32 2102212464, %v2495
    %v2505 = vor.u32 %v2503, %v2504
    %v2506 = vshll.u32 2102212464, %v2494
    %v2507 = vshrl.u32 920167782, %v2495
    %v2508 = vor.u32 %v2506, %v2507
    %v2509 = vshll.u32 920167782, %v2494
    %v2510 = vshrl.u32 1326507024, %v2495
    %v2511 = vor.u32 %v2509, %v2510
    %vm2512 = vcmp.lt.s32.totalorder %v2493, 1
    %vm2513 = vcmp.lt.s32.totalorder %v2493, 2
    %vm2514 = vcmp.lt.s32.totalorder %v2493, 3
    %vm2515 = vcmp.lt.s32.totalorder %v2493, 4
    %v2516 = vsel %vm2512, %v2496, %v2499
    %v2517 = vsel %vm2515, %v2505, 2102212464
    %v2518 = vsel %vm2514, %v2502, %v2517
    %v2519 = vsel %vm2513, %v2516, %v2518
    %v2520 = vsel %vm2512, %v2499, %v2502
    %v2521 = vsel %vm2515, %v2508, 920167782
    %v2522 = vsel %vm2514, %v2505, %v2521
    %v2523 = vsel %vm2513, %v2520, %v2522
    %v2524 = vsel %vm2512, %v2502, %v2505
    %v2525 = vsel %vm2515, %v2511, 1326507024
    %v2526 = vsel %vm2514, %v2508, %v2525
    %v2527 = vsel %vm2513, %v2524, %v2526
    %v2528 = vshll.u32 %v2488, 8
    %v2529 = vmul.u32.u64.compose %v2528, %v2527
    %v2530 = vextract.low.u32 %v2529
    %v2531 = vextract.high.u32 %v2529
    %v2532 = vmul.u32.u64.compose %v2528, %v2523
    %v2533 = vextract.low.u32 %v2532
    %v2534 = vextract.high.u32 %v2532
    %v2535 = vmul.u32 %v2528, %v2519
    %v2536 = vadd.s32 %v2531, %v2533
    %vm2537 = vc.u32 %v2531, %v2533
    %v2538 = vadd.s32 %v2534, 1
    %v2539 = vsel %vm2537, %v2538, %v2534
    %v2540 = vadd.s32 %v2535, %v2539
    %v2541 = vadd.s32 %v2540, 536870912
    %v2542 = vshrl.u32 %v2541, 30
    %v2543 = vshll.u32 %v2542, 30
    %v2544 = vsub.s32 %v2540, %v2543
    %vm2545 = vcmp.lt.s32.totalorder %v2544, 0
    %v2546 = vsub.s32 0, %v2544
    %v2547 = vsel %vm2545, %v2546, %v2544
    %v2548 = vclz %v2547
    %v2549 = vsub.s32 %v2548, 2
    %vm2550 = vcmp.gt.s32.totalorder 0, %v2549
    %v2551 = vsel %vm2550, 0, %v2549
    %v2552 = vsub.s32 32, %v2551
    %v2553 = vshll.u32 %v2544, %v2551
    %v2554 = vshrl.u32 %v2536, %v2552
    %v2555 = vor.u32 %v2553, %v2554
    %v2556 = vsub.s32 4294967266, %v2551
    %v2557 = vadd.s32 %v2556, 127
    %v2558 = vshll.u32 %v2557, 23
    %v2559 = vor.u32 4788187, %v2558
    %v2560 = vand.u32 2147483647, %v2559
    %v2562 = vcvt.s32.f32 %v2555
    %v2563 = vmul.f32 %v2562, %v2560
    %v2564 = vxor.u32 %v2563, 2147483648
    %v2565 = vsel %vm2482, %v2564, %v2563
    %v2566 = vsub.s32 4, %v2542
    %v2567 = vsel %vm2482, %v2566, %v2542
    %v2568 = vsel %vm2481, %v2167, %v2565
    %v2569 = vsel %vm2481, 0, %v2567
    %v2570 = vcosq.f32.pop %v2568
    %v2571 = vsinq.f32.pop %v2568
    %vm2572 = vweird.f32 %v2167
    %v2573 = vadd.s32 %v2569, 3
    %v2574 = vand.u32 %v2573, 3
    %vm2575 = vcmp.lt.s32.totalorder %v2574, 2
    %vm2576 = vcmp.eq.s32.totalorder %v2574, 0
    %v2577 = vxor.u32 %v2571, 2147483648
    %v2578 = vsel %vm2576, %v2570, %v2577
    %vm2579 = vcmp.eq.s32.totalorder %v2574, 2
    %v2580 = vxor.u32 %v2570, 2147483648
    %v2581 = vsel %vm2579, %v2580, %v2571
    %v2582 = vsel %vm2575, %v2578, %v2581
    %v2583 = vsel %vm2572, nan, %v2582
    %v2584 = vand.u32 2147483647, %v2164
    %vm2585 = vcmp.le.f32.partialorder %v2584, 0.7853982
    %vm2586 = vcmp.lt.s32.totalorder %v2164, 0
    %v2587 = vand.u32 %v2164, 2139095040
    %v2588 = vshrl.u32 %v2587, 23
    %v2589 = vsub.s32 %v2588, 127
    %v2590 = vand.u32 2147483647, %v2164
    %v2591 = vand.u32 %v2590, 8388607
    %v2592 = vor.u32 %v2591, 8388608
    %v2593 = vsub.s32 0, %v2592
    %v2594 = vadd.s32 %v2589, 1
    %vm2595 = vcmp.gt.s32.totalorder %v2594, 0
    %v2596 = vsel %vm2595, %v2594, 0
    %v2597 = vshrl.u32 %v2596, 5
    %v2598 = vand.u32 %v2596, 31
    %v2599 = vsub.s32 32, %v2598
    %v2600 = vshrl.u32 683565275, %v2599
    %v2601 = vshll.u32 683565275, %v2598
    %v2602 = vshrl.u32 2475754826, %v2599
    %v2603 = vor.u32 %v2601, %v2602
    %v2604 = vshll.u32 2475754826, %v2598
    %v2605 = vshrl.u32 2131351028, %v2599
    %v2606 = vor.u32 %v2604, %v2605
    %v2607 = vshll.u32 2131351028, %v2598
    %v2608 = vshrl.u32 2102212464, %v2599
    %v2609 = vor.u32 %v2607, %v2608
    %v2610 = vshll.u32 2102212464, %v2598
    %v2611 = vshrl.u32 920167782, %v2599
    %v2612 = vor.u32 %v2610, %v2611
    %v2613 = vshll.u32 920167782, %v2598
    %v2614 = vshrl.u32 1326507024, %v2599
    %v2615 = vor.u32 %v2613, %v2614
    %vm2616 = vcmp.lt.s32.totalorder %v2597, 1
    %vm2617 = vcmp.lt.s32.totalorder %v2597, 2
    %vm2618 = vcmp.lt.s32.totalorder %v2597, 3
    %vm2619 = vcmp.lt.s32.totalorder %v2597, 4
    %v2620 = vsel %vm2616, %v2600, %v2603
    %v2621 = vsel %vm2619, %v2609, 2102212464
    %v2622 = vsel %vm2618, %v2606, %v2621
    %v2623 = vsel %vm2617, %v2620, %v2622
    %v2624 = vsel %vm2616, %v2603, %v2606
    %v2625 = vsel %vm2619, %v2612, 920167782
    %v2626 = vsel %vm2618, %v2609, %v2625
    %v2627 = vsel %vm2617, %v2624, %v2626
    %v2628 = vsel %vm2616, %v2606, %v2609
    %v2629 = vsel %vm2619, %v2615, 1326507024
    %v2630 = vsel %vm2618, %v2612, %v2629
    %v2631 = vsel %vm2617, %v2628, %v2630
    %v2632 = vshll.u32 %v2592, 8
    %v2633 = vmul.u32.u64.compose %v2632, %v2631
    %v2634 = vextract.low.u32 %v2633
    %v2635 = vextract.high.u32 %v2633
    %v2636 = vmul.u32.u64.compose %v2632, %v2627
    %v2637 = vextract.low.u32 %v2636
    %v2638 = vextract.high.u32 %v2636
    %v2639 = vmul.u32 %v2632, %v2623
    %v2640 = vadd.s32 %v2635, %v2637
    %vm2641 = vc.u32 %v2635, %v2637
    %v2642 = vadd.s32 %v2638, 1
    %v2643 = vsel %vm2641, %v2642, %v2638
    %v2644 = vadd.s32 %v2639, %v2643
    %v2645 = vadd.s32 %v2644, 536870912
    %v2646 = vshrl.u32 %v2645, 30
    %v2647 = vshll.u32 %v2646, 30
    %v2648 = vsub.s32 %v2644, %v2647
    %vm2649 = vcmp.lt.s32.totalorder %v2648, 0
    %v2650 = vsub.s32 0, %v2648
    %v2651 = vsel %vm2649, %v2650, %v2648
    %v2652 = vclz %v2651
    %v2653 = vsub.s32 %v2652, 2
    %vm2654 = vcmp.gt.s32.totalorder 0, %v2653
    %v2655 = vsel %vm2654, 0, %v2653
    %v2656 = vsub.s32 32, %v2655
    %v2657 = vshll.u32 %v2648, %v2655
    %v2658 = vshrl.u32 %v2640, %v2656
    %v2659 = vor.u32 %v2657, %v2658
    %v2660 = vsub.s32 4294967266, %v2655
    %v2661 = vadd.s32 %v2660, 127
    %v2662 = vshll.u32 %v2661, 23
    %v2663 = vor.u32 4788187, %v2662
    %v2664 = vand.u32 2147483647, %v2663
    %v2666 = vcvt.s32.f32 %v2659
    %v2667 = vmul.f32 %v2666, %v2664
    %v2668 = vxor.u32 %v2667, 2147483648
    %v2669 = vsel %vm2586, %v2668, %v2667
    %v2670 = vsub.s32 4, %v2646
    %v2671 = vsel %vm2586, %v2670, %v2646
    %v2672 = vsel %vm2585, %v2164, %v2669
    %v2673 = vsel %vm2585, 0, %v2671
    %v2674 = vcosq.f32.pop %v2672
    %v2675 = vsinq.f32.pop %v2672
    %vm2676 = vweird.f32 %v2164
    %v2677 = vand.u32 %v2673, 3
    %vm2678 = vcmp.lt.s32.totalorder %v2677, 2
    %vm2679 = vcmp.eq.s32.totalorder %v2677, 0
    %v2680 = vxor.u32 %v2675, 2147483648
    %v2681 = vsel %vm2679, %v2674, %v2680
    %vm2682 = vcmp.eq.s32.totalorder %v2677, 2
    %v2683 = vxor.u32 %v2674, 2147483648
    %v2684 = vsel %vm2682, %v2683, %v2675
    %v2685 = vsel %vm2678, %v2681, %v2684
    %v2686 = vsel %vm2676, nan, %v2685
    %v2687 = vand.u32 2147483647, %v2165
    %vm2688 = vcmp.le.f32.partialorder %v2687, 0.7853982
    %vm2689 = vcmp.lt.s32.totalorder %v2165, 0
    %v2690 = vand.u32 %v2165, 2139095040
    %v2691 = vshrl.u32 %v2690, 23
    %v2692 = vsub.s32 %v2691, 127
    %v2693 = vand.u32 2147483647, %v2165
    %v2694 = vand.u32 %v2693, 8388607
    %v2695 = vor.u32 %v2694, 8388608
    %v2696 = vsub.s32 0, %v2695
    %v2697 = vadd.s32 %v2692, 1
    %vm2698 = vcmp.gt.s32.totalorder %v2697, 0
    %v2699 = vsel %vm2698, %v2697, 0
    %v2700 = vshrl.u32 %v2699, 5
    %v2701 = vand.u32 %v2699, 31
    %v2702 = vsub.s32 32, %v2701
    %v2703 = vshrl.u32 683565275, %v2702
    %v2704 = vshll.u32 683565275, %v2701
    %v2705 = vshrl.u32 2475754826, %v2702
    %v2706 = vor.u32 %v2704, %v2705
    %v2707 = vshll.u32 2475754826, %v2701
    %v2708 = vshrl.u32 2131351028, %v2702
    %v2709 = vor.u32 %v2707, %v2708
    %v2710 = vshll.u32 2131351028, %v2701
    %v2711 = vshrl.u32 2102212464, %v2702
    %v2712 = vor.u32 %v2710, %v2711
    %v2713 = vshll.u32 2102212464, %v2701
    %v2714 = vshrl.u32 920167782, %v2702
    %v2715 = vor.u32 %v2713, %v2714
    %v2716 = vshll.u32 920167782, %v2701
    %v2717 = vshrl.u32 1326507024, %v2702
    %v2718 = vor.u32 %v2716, %v2717
    %vm2719 = vcmp.lt.s32.totalorder %v2700, 1
    %vm2720 = vcmp.lt.s32.totalorder %v2700, 2
    %vm2721 = vcmp.lt.s32.totalorder %v2700, 3
    %vm2722 = vcmp.lt.s32.totalorder %v2700, 4
    %v2723 = vsel %vm2719, %v2703, %v2706
    %v2724 = vsel %vm2722, %v2712, 2102212464
    %v2725 = vsel %vm2721, %v2709, %v2724
    %v2726 = vsel %vm2720, %v2723, %v2725
    %v2727 = vsel %vm2719, %v2706, %v2709
    %v2728 = vsel %vm2722, %v2715, 920167782
    %v2729 = vsel %vm2721, %v2712, %v2728
    %v2730 = vsel %vm2720, %v2727, %v2729
    %v2731 = vsel %vm2719, %v2709, %v2712
    %v2732 = vsel %vm2722, %v2718, 1326507024
    %v2733 = vsel %vm2721, %v2715, %v2732
    %v2734 = vsel %vm2720, %v2731, %v2733
    %v2735 = vshll.u32 %v2695, 8
    %v2736 = vmul.u32.u64.compose %v2735, %v2734
    %v2737 = vextract.low.u32 %v2736
    %v2738 = vextract.high.u32 %v2736
    %v2739 = vmul.u32.u64.compose %v2735, %v2730
    %v2740 = vextract.low.u32 %v2739
    %v2741 = vextract.high.u32 %v2739
    %v2742 = vmul.u32 %v2735, %v2726
    %v2743 = vadd.s32 %v2738, %v2740
    %vm2744 = vc.u32 %v2738, %v2740
    %v2745 = vadd.s32 %v2741, 1
    %v2746 = vsel %vm2744, %v2745, %v2741
    %v2747 = vadd.s32 %v2742, %v2746
    %v2748 = vadd.s32 %v2747, 536870912
    %v2749 = vshrl.u32 %v2748, 30
    %v2750 = vshll.u32 %v2749, 30
    %v2751 = vsub.s32 %v2747, %v2750
    %vm2752 = vcmp.lt.s32.totalorder %v2751, 0
    %v2753 = vsub.s32 0, %v2751
    %v2754 = vsel %vm2752, %v2753, %v2751
    %v2755 = vclz %v2754
    %v2756 = vsub.s32 %v2755, 2
    %vm2757 = vcmp.gt.s32.totalorder 0, %v2756
    %v2758 = vsel %vm2757, 0, %v2756
    %v2759 = vsub.s32 32, %v2758
    %v2760 = vshll.u32 %v2751, %v2758
    %v2761 = vshrl.u32 %v2743, %v2759
    %v2762 = vor.u32 %v2760, %v2761
    %v2763 = vsub.s32 4294967266, %v2758
    %v2764 = vadd.s32 %v2763, 127
    %v2765 = vshll.u32 %v2764, 23
    %v2766 = vor.u32 4788187, %v2765
    %v2767 = vand.u32 2147483647, %v2766
    %v2769 = vcvt.s32.f32 %v2762
    %v2770 = vmul.f32 %v2769, %v2767
    %v2771 = vxor.u32 %v2770, 2147483648
    %v2772 = vsel %vm2689, %v2771, %v2770
    %v2773 = vsub.s32 4, %v2749
    %v2774 = vsel %vm2689, %v2773, %v2749
    %v2775 = vsel %vm2688, %v2165, %v2772
    %v2776 = vsel %vm2688, 0, %v2774
    %v2777 = vcosq.f32.pop %v2775
    %v2778 = vsinq.f32.pop %v2775
    %vm2779 = vweird.f32 %v2165
    %v2780 = vand.u32 %v2776, 3
    %vm2781 = vcmp.lt.s32.totalorder %v2780, 2
    %vm2782 = vcmp.eq.s32.totalorder %v2780, 0
    %v2783 = vxor.u32 %v2778, 2147483648
    %v2784 = vsel %vm2782, %v2777, %v2783
    %vm2785 = vcmp.eq.s32.totalorder %v2780, 2
    %v2786 = vxor.u32 %v2777, 2147483648
    %v2787 = vsel %vm2785, %v2786, %v2778
    %v2788 = vsel %vm2781, %v2784, %v2787
    %v2789 = vsel %vm2779, nan, %v2788
    %v2790 = vand.u32 2147483647, %v2166
    %vm2791 = vcmp.le.f32.partialorder %v2790, 0.7853982
    %vm2792 = vcmp.lt.s32.totalorder %v2166, 0
    %v2793 = vand.u32 %v2166, 2139095040
    %v2794 = vshrl.u32 %v2793, 23
    %v2795 = vsub.s32 %v2794, 127
    %v2796 = vand.u32 2147483647, %v2166
    %v2797 = vand.u32 %v2796, 8388607
    %v2798 = vor.u32 %v2797, 8388608
    %v2799 = vsub.s32 0, %v2798
    %v2800 = vadd.s32 %v2795, 1
    %vm2801 = vcmp.gt.s32.totalorder %v2800, 0
    %v2802 = vsel %vm2801, %v2800, 0
    %v2803 = vshrl.u32 %v2802, 5
    %v2804 = vand.u32 %v2802, 31
    %v2805 = vsub.s32 32, %v2804
    %v2806 = vshrl.u32 683565275, %v2805
    %v2807 = vshll.u32 683565275, %v2804
    %v2808 = vshrl.u32 2475754826, %v2805
    %v2809 = vor.u32 %v2807, %v2808
    %v2810 = vshll.u32 2475754826, %v2804
    %v2811 = vshrl.u32 2131351028, %v2805
    %v2812 = vor.u32 %v2810, %v2811
    %v2813 = vshll.u32 2131351028, %v2804
    %v2814 = vshrl.u32 2102212464, %v2805
    %v2815 = vor.u32 %v2813, %v2814
    %v2816 = vshll.u32 2102212464, %v2804
    %v2817 = vshrl.u32 920167782, %v2805
    %v2818 = vor.u32 %v2816, %v2817
    %v2819 = vshll.u32 920167782, %v2804
    %v2820 = vshrl.u32 1326507024, %v2805
    %v2821 = vor.u32 %v2819, %v2820
    %vm2822 = vcmp.lt.s32.totalorder %v2803, 1
    %vm2823 = vcmp.lt.s32.totalorder %v2803, 2
    %vm2824 = vcmp.lt.s32.totalorder %v2803, 3
    %vm2825 = vcmp.lt.s32.totalorder %v2803, 4
    %v2826 = vsel %vm2822, %v2806, %v2809
    %v2827 = vsel %vm2825, %v2815, 2102212464
    %v2828 = vsel %vm2824, %v2812, %v2827
    %v2829 = vsel %vm2823, %v2826, %v2828
    %v2830 = vsel %vm2822, %v2809, %v2812
    %v2831 = vsel %vm2825, %v2818, 920167782
    %v2832 = vsel %vm2824, %v2815, %v2831
    %v2833 = vsel %vm2823, %v2830, %v2832
    %v2834 = vsel %vm2822, %v2812, %v2815
    %v2835 = vsel %vm2825, %v2821, 1326507024
    %v2836 = vsel %vm2824, %v2818, %v2835
    %v2837 = vsel %vm2823, %v2834, %v2836
    %v2838 = vshll.u32 %v2798, 8
    %v2839 = vmul.u32.u64.compose %v2838, %v2837
    %v2840 = vextract.low.u32 %v2839
    %v2841 = vextract.high.u32 %v2839
    %v2842 = vmul.u32.u64.compose %v2838, %v2833
    %v2843 = vextract.low.u32 %v2842
    %v2844 = vextract.high.u32 %v2842
    %v2845 = vmul.u32 %v2838, %v2829
    %v2846 = vadd.s32 %v2841, %v2843
    %vm2847 = vc.u32 %v2841, %v2843
    %v2848 = vadd.s32 %v2844, 1
    %v2849 = vsel %vm2847, %v2848, %v2844
    %v2850 = vadd.s32 %v2845, %v2849
    %v2851 = vadd.s32 %v2850, 536870912
    %v2852 = vshrl.u32 %v2851, 30
    %v2853 = vshll.u32 %v2852, 30
    %v2854 = vsub.s32 %v2850, %v2853
    %vm2855 = vcmp.lt.s32.totalorder %v2854, 0
    %v2856 = vsub.s32 0, %v2854
    %v2857 = vsel %vm2855, %v2856, %v2854
    %v2858 = vclz %v2857
    %v2859 = vsub.s32 %v2858, 2
    %vm2860 = vcmp.gt.s32.totalorder 0, %v2859
    %v2861 = vsel %vm2860, 0, %v2859
    %v2862 = vsub.s32 32, %v2861
    %v2863 = vshll.u32 %v2854, %v2861
    %v2864 = vshrl.u32 %v2846, %v2862
    %v2865 = vor.u32 %v2863, %v2864
    %v2866 = vsub.s32 4294967266, %v2861
    %v2867 = vadd.s32 %v2866, 127
    %v2868 = vshll.u32 %v2867, 23
    %v2869 = vor.u32 4788187, %v2868
    %v2870 = vand.u32 2147483647, %v2869
    %v2872 = vcvt.s32.f32 %v2865
    %v2873 = vmul.f32 %v2872, %v2870
    %v2874 = vxor.u32 %v2873, 2147483648
    %v2875 = vsel %vm2792, %v2874, %v2873
    %v2876 = vsub.s32 4, %v2852
    %v2877 = vsel %vm2792, %v2876, %v2852
    %v2878 = vsel %vm2791, %v2166, %v2875
    %v2879 = vsel %vm2791, 0, %v2877
    %v2880 = vcosq.f32.pop %v2878
    %v2881 = vsinq.f32.pop %v2878
    %vm2882 = vweird.f32 %v2166
    %v2883 = vand.u32 %v2879, 3
    %vm2884 = vcmp.lt.s32.totalorder %v2883, 2
    %vm2885 = vcmp.eq.s32.totalorder %v2883, 0
    %v2886 = vxor.u32 %v2881, 2147483648
    %v2887 = vsel %vm2885, %v2880, %v2886
    %vm2888 = vcmp.eq.s32.totalorder %v2883, 2
    %v2889 = vxor.u32 %v2880, 2147483648
    %v2890 = vsel %vm2888, %v2889, %v2881
    %v2891 = vsel %vm2884, %v2887, %v2890
    %v2892 = vsel %vm2882, nan, %v2891
    %v2893 = vand.u32 2147483647, %v2167
    %vm2894 = vcmp.le.f32.partialorder %v2893, 0.7853982
    %vm2895 = vcmp.lt.s32.totalorder %v2167, 0
    %v2896 = vand.u32 %v2167, 2139095040
    %v2897 = vshrl.u32 %v2896, 23
    %v2898 = vsub.s32 %v2897, 127
    %v2899 = vand.u32 2147483647, %v2167
    %v2900 = vand.u32 %v2899, 8388607
    %v2901 = vor.u32 %v2900, 8388608
    %v2902 = vsub.s32 0, %v2901
    %v2903 = vadd.s32 %v2898, 1
    %vm2904 = vcmp.gt.s32.totalorder %v2903, 0
    %v2905 = vsel %vm2904, %v2903, 0
    %v2906 = vshrl.u32 %v2905, 5
    %v2907 = vand.u32 %v2905, 31
    %v2908 = vsub.s32 32, %v2907
    %v2909 = vshrl.u32 683565275, %v2908
    %v2910 = vshll.u32 683565275, %v2907
    %v2911 = vshrl.u32 2475754826, %v2908
    %v2912 = vor.u32 %v2910, %v2911
    %v2913 = vshll.u32 2475754826, %v2907
    %v2914 = vshrl.u32 2131351028, %v2908
    %v2915 = vor.u32 %v2913, %v2914
    %v2916 = vshll.u32 2131351028, %v2907
    %v2917 = vshrl.u32 2102212464, %v2908
    %v2918 = vor.u32 %v2916, %v2917
    %v2919 = vshll.u32 2102212464, %v2907
    %v2920 = vshrl.u32 920167782, %v2908
    %v2921 = vor.u32 %v2919, %v2920
    %v2922 = vshll.u32 920167782, %v2907
    %v2923 = vshrl.u32 1326507024, %v2908
    %v2924 = vor.u32 %v2922, %v2923
    %vm2925 = vcmp.lt.s32.totalorder %v2906, 1
    %vm2926 = vcmp.lt.s32.totalorder %v2906, 2
    %vm2927 = vcmp.lt.s32.totalorder %v2906, 3
    %vm2928 = vcmp.lt.s32.totalorder %v2906, 4
    %v2929 = vsel %vm2925, %v2909, %v2912
    %v2930 = vsel %vm2928, %v2918, 2102212464
    %v2931 = vsel %vm2927, %v2915, %v2930
    %v2932 = vsel %vm2926, %v2929, %v2931
    %v2933 = vsel %vm2925, %v2912, %v2915
    %v2934 = vsel %vm2928, %v2921, 920167782
    %v2935 = vsel %vm2927, %v2918, %v2934
    %v2936 = vsel %vm2926, %v2933, %v2935
    %v2937 = vsel %vm2925, %v2915, %v2918
    %v2938 = vsel %vm2928, %v2924, 1326507024
    %v2939 = vsel %vm2927, %v2921, %v2938
    %v2940 = vsel %vm2926, %v2937, %v2939
    %v2941 = vshll.u32 %v2901, 8
    %v2942 = vmul.u32.u64.compose %v2941, %v2940
    %v2943 = vextract.low.u32 %v2942
    %v2944 = vextract.high.u32 %v2942
    %v2945 = vmul.u32.u64.compose %v2941, %v2936
    %v2946 = vextract.low.u32 %v2945
    %v2947 = vextract.high.u32 %v2945
    %v2948 = vmul.u32 %v2941, %v2932
    %v2949 = vadd.s32 %v2944, %v2946
    %vm2950 = vc.u32 %v2944, %v2946
    %v2951 = vadd.s32 %v2947, 1
    %v2952 = vsel %vm2950, %v2951, %v2947
    %v2953 = vadd.s32 %v2948, %v2952
    %v2954 = vadd.s32 %v2953, 536870912
    %v2955 = vshrl.u32 %v2954, 30
    %v2956 = vshll.u32 %v2955, 30
    %v2957 = vsub.s32 %v2953, %v2956
    %vm2958 = vcmp.lt.s32.totalorder %v2957, 0
    %v2959 = vsub.s32 0, %v2957
    %v2960 = vsel %vm2958, %v2959, %v2957
    %v2961 = vclz %v2960
    %v2962 = vsub.s32 %v2961, 2
    %vm2963 = vcmp.gt.s32.totalorder 0, %v2962
    %v2964 = vsel %vm2963, 0, %v2962
    %v2965 = vsub.s32 32, %v2964
    %v2966 = vshll.u32 %v2957, %v2964
    %v2967 = vshrl.u32 %v2949, %v2965
    %v2968 = vor.u32 %v2966, %v2967
    %v2969 = vsub.s32 4294967266, %v2964
    %v2970 = vadd.s32 %v2969, 127
    %v2971 = vshll.u32 %v2970, 23
    %v2972 = vor.u32 4788187, %v2971
    %v2973 = vand.u32 2147483647, %v2972
    %v2975 = vcvt.s32.f32 %v2968
    %v2976 = vmul.f32 %v2975, %v2973
    %v2977 = vxor.u32 %v2976, 2147483648
    %v2978 = vsel %vm2895, %v2977, %v2976
    %v2979 = vsub.s32 4, %v2955
    %v2980 = vsel %vm2895, %v2979, %v2955
    %v2981 = vsel %vm2894, %v2167, %v2978
    %v2982 = vsel %vm2894, 0, %v2980
    %v2983 = vcosq.f32.pop %v2981
    %v2984 = vsinq.f32.pop %v2981
    %vm2985 = vweird.f32 %v2167
    %v2986 = vand.u32 %v2982, 3
    %vm2987 = vcmp.lt.s32.totalorder %v2986, 2
    %vm2988 = vcmp.eq.s32.totalorder %v2986, 0
    %v2989 = vxor.u32 %v2984, 2147483648
    %v2990 = vsel %vm2988, %v2983, %v2989
    %vm2991 = vcmp.eq.s32.totalorder %v2986, 2
    %v2992 = vxor.u32 %v2983, 2147483648
    %v2993 = vsel %vm2991, %v2992, %v2984
    %v2994 = vsel %vm2987, %v2990, %v2993
    %v2995 = vsel %vm2985, nan, %v2994
    %v2996 = vmul.f32 %v2271, 2.0
    %v2997 = vmul.f32 %v2375, 2.0
    %v2998 = vmul.f32 %v2479, 2.0
    %v2999 = vmul.f32 %v2583, 2.0
    %v3000 = vmul.f32 %v2996, %v2686
    %v3001 = vmul.f32 %v2997, %v2789
    %v3002 = vmul.f32 %v2998, %v2892
    %v3003 = vmul.f32 %v2999, %v2995
    %v3004 = vmul.f32 %v2996, %v2271
    %v3005 = vmul.f32 %v2997, %v2375
    %v3006 = vmul.f32 %v2998, %v2479
    %v3007 = vmul.f32 %v2999, %v2583
    %v3008 = vsub.f32 1.0, %v3004
    %v3009 = vsub.f32 1.0, %v3005
    %v3010 = vsub.f32 1.0, %v3006
    %v3011 = vsub.f32 1.0, %v3007
    %v3012 = vld [vmem:[%s2] sm:$0xff]
    %v3013 = vld [vmem:[%s2 + $0x8] sm:$0xff]
    %v3014 = vld [vmem:[%s2 + $0x10] sm:$0xff]
    %v3015 = vld [vmem:[%s2 + $0x18] sm:$0xff]
    %v3020 = vrot.slane %v3000, 4
    %v3021 = vrot.slane %v3001, 4
    %v3022 = vrot.slane %v3002, 4
    %v3023 = vrot.slane %v3003, 4
    %v3032 = vrot.slane %v3008, 4
    %v3033 = vrot.slane %v3009, 4
    %v3034 = vrot.slane %v3010, 4
    %v3035 = vrot.slane %v3011, 4
    %v3040 = vsel %vm130, %v2271, %v3020
    %v3041 = vsel %vm130, %v2375, %v3021
    %v3042 = vsel %vm130, %v2479, %v3022
    %v3043 = vsel %vm130, %v2583, %v3023
    %v3044 = vsel %vm130, %v2686, %v3032
    %v3045 = vsel %vm130, %v2789, %v3033
    %v3046 = vsel %vm130, %v2892, %v3034
    %v3047 = vsel %vm130, %v2995, %v3035
    %v3048 = vld [vmem:[%s4 + $0x68] sm:$0xff]
    %v3049 = vld [vmem:[%s4 + $0x70] sm:$0xff]
    %v3050 = vld [vmem:[%s4 + $0x78] sm:$0xff]
    %v3051 = vld [vmem:[%s4 + $0x80] sm:$0xff]
    %v3052 = vld [vmem:[%s5] sm:$0xff]
    %v3053 = vld [vmem:[%s5 + $0x8] sm:$0xff]
    %v3054 = vld [vmem:[%s5 + $0x10] sm:$0xff]
    %v3055 = vld [vmem:[%s5 + $0x18] sm:$0xff]
    %vm3056 = vcmask 195584
    %v3058 = vsel %vm3056, %v3052, 0
    %v3061 = vsel %vm3056, %v3053, 0
    %v3064 = vsel %vm3056, %v3054, 0
    %v3067 = vsel %vm3056, %v3055, 0
    %3069 = vmatprep.subr.mxu0 0.0
    %3070 = vmatpush1.msra.mxu0 0.0
    %3071 = vmatprep.subr.mxu0 0.0
    %3072 = vmatpush1.msra.mxu0 0.0
    %3073 = vmatprep.subr.mxu0 0.0
    %3074 = vmatpush1.msra.mxu0 0.0
    %3075 = vmatprep.subr.mxu0 0.0
    %3076 = vmatpush1.msra.mxu0 0.0
    %3077 = vmatprep.subr.mxu0 0.0
    %3078 = vmatpush1.msra.mxu0 0.0
    %3079 = vmatprep.subr.mxu0 0.0
    %3080 = vmatpush1.msra.mxu0 0.0
    %3081 = vmatprep.subr.mxu0 0.0
    %3082 = vmatpush1.msra.mxu0 0.0
    %3083 = vmatprep.subr.mxu0 0.0
    %3084 = vmatpush1.msra.mxu0 0.0
    %3085 = vmatprep.subr.mxu0 0.0
    %3086 = vmatpush1.msra.mxu0 0.0
    %3087 = vmatprep.subr.mxu0 0.0
    %3088 = vmatpush1.msra.mxu0 0.0
    %3089 = vmatprep.subr.mxu0 0.0
    %3090 = vmatpush1.msra.mxu0 0.0
    %3091 = vmatprep.subr.mxu0 0.0
    %3092 = vmatpush1.msra.mxu0 0.0
    %3093 = vmatprep.subr.mxu0 0.0
    %3094 = vmatpush1.msra.mxu0 0.0
    %3095 = vmatprep.subr.mxu0 %v3013
    %3096 = vmatpush1.msra.mxu0 %v3012
    %3097 = vmatprep.subr.mxu0 %v3045
    %3098 = vmatpush1.msra.mxu0 %v3044
    %3099 = vmatprep.subr.mxu0 %v3041
    %3100 = vmatpush1.msra.mxu0 %v3040
    %3101 = vmatprep.subr.mxu0 0.0
    %3102 = vmatpush2.msra.mxu0 0.0
    %3103 = vmatprep.subr.mxu0 0.0
    %3104 = vmatpush2.msra.mxu0 0.0
    %3105 = vmatprep.subr.mxu0 0.0
    %3106 = vmatpush2.msra.mxu0 0.0
    %3107 = vmatprep.subr.mxu0 0.0
    %3108 = vmatpush2.msra.mxu0 0.0
    %3109 = vmatprep.subr.mxu0 0.0
    %3110 = vmatpush2.msra.mxu0 0.0
    %3111 = vmatprep.subr.mxu0 0.0
    %3112 = vmatpush2.msra.mxu0 0.0
    %3113 = vmatprep.subr.mxu0 0.0
    %3114 = vmatpush2.msra.mxu0 0.0
    %3115 = vmatprep.subr.mxu0 0.0
    %3116 = vmatpush2.msra.mxu0 0.0
    %3117 = vmatprep.subr.mxu0 0.0
    %3118 = vmatpush2.msra.mxu0 0.0
    %3119 = vmatprep.subr.mxu0 0.0
    %3120 = vmatpush2.msra.mxu0 0.0
    %3121 = vmatprep.subr.mxu0 0.0
    %3122 = vmatpush2.msra.mxu0 0.0
    %3123 = vmatprep.subr.mxu0 0.0
    %3124 = vmatpush2.msra.mxu0 0.0
    %3125 = vmatprep.subr.mxu0 0.0
    %3126 = vmatpush2.msra.mxu0 0.0
    %3127 = vmatprep.subr.mxu0 0.0
    %3128 = vmatpush2.msra.mxu0 0.0
    %3129 = vmatprep.subr.mxu0 0.0
    %3130 = vmatpush2.msra.mxu0 0.0
    %3131 = vmatprep.subr.mxu0 0.0
    %3132 = vmatpush2.msra.mxu0 0.0
    %3133 = vmatprep.mubr.f32.mxu0 0.0
    %3134 = vmatmul.mubr.f32.gmra.mxu0 %v3058
    %v3135 = vpop.f32.mrf.mxu0
    %v3136 = vadd.f32 0.0, %v3135
    %v3137 = vpop.f32.mrf.mxu0
    %v3138 = vadd.f32 0.0, %v3137
    %3139 = vmatprep.mubr.f32.mxu0 0.0
    %3140 = vmatmul.mubr.f32.gmra.mxu0 %v3061
    %v3141 = vpop.f32.mrf.mxu0
    %v3142 = vadd.f32 0.0, %v3141
    %v3143 = vpop.f32.mrf.mxu0
    %v3144 = vadd.f32 0.0, %v3143
    %3145 = vmatprep.mubr.f32.mxu0 0.0
    %3146 = vmatmul.mubr.f32.gmra.mxu0 %v3064
    %v3147 = vpop.f32.mrf.mxu0
    %v3148 = vadd.f32 0.0, %v3147
    %v3149 = vpop.f32.mrf.mxu0
    %v3150 = vadd.f32 0.0, %v3149
    %3151 = vmatprep.mubr.f32.mxu0 0.0
    %3152 = vmatmul.mubr.f32.gmra.mxu0 %v3067
    %v3153 = vpop.f32.mrf.mxu0
    %v3154 = vadd.f32 0.0, %v3153
    %v3155 = vpop.f32.mrf.mxu0
    %v3156 = vadd.f32 0.0, %v3155
    %3157 = vdwg.mxu0
    %3158 = vmatprep.subr.mxu0 0.0
    %3159 = vmatpush1.msra.mxu0 0.0
    %3160 = vmatprep.subr.mxu0 0.0
    %3161 = vmatpush1.msra.mxu0 0.0
    %3162 = vmatprep.subr.mxu0 0.0
    %3163 = vmatpush1.msra.mxu0 0.0
    %3164 = vmatprep.subr.mxu0 0.0
    %3165 = vmatpush1.msra.mxu0 0.0
    %3166 = vmatprep.subr.mxu0 0.0
    %3167 = vmatpush1.msra.mxu0 0.0
    %3168 = vmatprep.subr.mxu0 0.0
    %3169 = vmatpush1.msra.mxu0 0.0
    %3170 = vmatprep.subr.mxu0 0.0
    %3171 = vmatpush1.msra.mxu0 0.0
    %3172 = vmatprep.subr.mxu0 0.0
    %3173 = vmatpush1.msra.mxu0 0.0
    %3174 = vmatprep.subr.mxu0 0.0
    %3175 = vmatpush1.msra.mxu0 0.0
    %3176 = vmatprep.subr.mxu0 0.0
    %3177 = vmatpush1.msra.mxu0 0.0
    %3178 = vmatprep.subr.mxu0 0.0
    %3179 = vmatpush1.msra.mxu0 0.0
    %3180 = vmatprep.subr.mxu0 0.0
    %3181 = vmatpush1.msra.mxu0 0.0
    %3182 = vmatprep.subr.mxu0 0.0
    %3183 = vmatpush1.msra.mxu0 0.0
    %3184 = vmatprep.subr.mxu0 %v3015
    %3185 = vmatpush1.msra.mxu0 %v3014
    %3186 = vmatprep.subr.mxu0 %v3047
    %3187 = vmatpush1.msra.mxu0 %v3046
    %3188 = vmatprep.subr.mxu0 %v3043
    %3189 = vmatpush1.msra.mxu0 %v3042
    %3190 = vmatprep.subr.mxu0 0.0
    %3191 = vmatpush2.msra.mxu0 0.0
    %3192 = vmatprep.subr.mxu0 0.0
    %3193 = vmatpush2.msra.mxu0 0.0
    %3194 = vmatprep.subr.mxu0 0.0
    %3195 = vmatpush2.msra.mxu0 0.0
    %3196 = vmatprep.subr.mxu0 0.0
    %3197 = vmatpush2.msra.mxu0 0.0
    %3198 = vmatprep.subr.mxu0 0.0
    %3199 = vmatpush2.msra.mxu0 0.0
    %3200 = vmatprep.subr.mxu0 0.0
    %3201 = vmatpush2.msra.mxu0 0.0
    %3202 = vmatprep.subr.mxu0 0.0
    %3203 = vmatpush2.msra.mxu0 0.0
    %3204 = vmatprep.subr.mxu0 0.0
    %3205 = vmatpush2.msra.mxu0 0.0
    %3206 = vmatprep.subr.mxu0 0.0
    %3207 = vmatpush2.msra.mxu0 0.0
    %3208 = vmatprep.subr.mxu0 0.0
    %3209 = vmatpush2.msra.mxu0 0.0
    %3210 = vmatprep.subr.mxu0 0.0
    %3211 = vmatpush2.msra.mxu0 0.0
    %3212 = vmatprep.subr.mxu0 0.0
    %3213 = vmatpush2.msra.mxu0 0.0
    %3214 = vmatprep.subr.mxu0 0.0
    %3215 = vmatpush2.msra.mxu0 0.0
    %3216 = vmatprep.subr.mxu0 0.0
    %3217 = vmatpush2.msra.mxu0 0.0
    %3218 = vmatprep.subr.mxu0 0.0
    %3219 = vmatpush2.msra.mxu0 0.0
    %3220 = vmatprep.subr.mxu0 0.0
    %3221 = vmatpush2.msra.mxu0 0.0
    %3222 = vmatprep.mubr.f32.mxu0 0.0
    %3223 = vmatmul.mubr.f32.gmra.mxu0 %v3058
    %v3224 = vpop.f32.mrf.mxu0
    %v3225 = vadd.f32 0.0, %v3224
    %v3226 = vpop.f32.mrf.mxu0
    %v3227 = vadd.f32 0.0, %v3226
    %3228 = vmatprep.mubr.f32.mxu0 0.0
    %3229 = vmatmul.mubr.f32.gmra.mxu0 %v3061
    %v3230 = vpop.f32.mrf.mxu0
    %v3231 = vadd.f32 0.0, %v3230
    %v3232 = vpop.f32.mrf.mxu0
    %v3233 = vadd.f32 0.0, %v3232
    %3234 = vmatprep.mubr.f32.mxu0 0.0
    %3235 = vmatmul.mubr.f32.gmra.mxu0 %v3064
    %v3236 = vpop.f32.mrf.mxu0
    %v3237 = vadd.f32 0.0, %v3236
    %v3238 = vpop.f32.mrf.mxu0
    %v3239 = vadd.f32 0.0, %v3238
    %3240 = vmatprep.mubr.f32.mxu0 0.0
    %3241 = vmatmul.mubr.f32.gmra.mxu0 %v3067
    %v3242 = vpop.f32.mrf.mxu0
    %v3243 = vadd.f32 0.0, %v3242
    %v3244 = vpop.f32.mrf.mxu0
    %v3245 = vadd.f32 0.0, %v3244
    %3246 = vdwg.mxu0
    %v3248 = vsel %vm1227, %v3048, 0
    %v3251 = vsel %vm1227, %v3049, 0
    %v3254 = vsel %vm1227, %v3050, 0
    %v3257 = vsel %vm1227, %v3051, 0
    %3259 = vmatprep.subr.mxu0 0.0
    %3260 = vmatpush1.msra.mxu0 0.0
    %3261 = vmatprep.subr.mxu0 0.0
    %3262 = vmatpush1.msra.mxu0 0.0
    %3263 = vmatprep.subr.mxu0 0.0
    %3264 = vmatpush1.msra.mxu0 0.0
    %3265 = vmatprep.subr.mxu0 0.0
    %3266 = vmatpush1.msra.mxu0 0.0
    %3267 = vmatprep.subr.mxu0 0.0
    %3268 = vmatpush1.msra.mxu0 0.0
    %3269 = vmatprep.subr.mxu0 0.0
    %3270 = vmatpush1.msra.mxu0 0.0
    %3271 = vmatprep.subr.mxu0 0.0
    %3272 = vmatpush1.msra.mxu0 0.0
    %3273 = vmatprep.subr.mxu0 0.0
    %3274 = vmatpush1.msra.mxu0 0.0
    %3275 = vmatprep.subr.mxu0 0.0
    %3276 = vmatpush1.msra.mxu0 0.0
    %3277 = vmatprep.subr.mxu0 0.0
    %3278 = vmatpush1.msra.mxu0 0.0
    %3279 = vmatprep.subr.mxu0 0.0
    %3280 = vmatpush1.msra.mxu0 0.0
    %3281 = vmatprep.subr.mxu0 0.0
    %3282 = vmatpush1.msra.mxu0 0.0
    %3283 = vmatprep.subr.mxu0 %v2091
    %3284 = vmatpush1.msra.mxu0 %v2090
    %3285 = vmatprep.subr.mxu0 %v2087
    %3286 = vmatpush1.msra.mxu0 %v2086
    %3287 = vmatprep.subr.mxu0 %v2083
    %3288 = vmatpush1.msra.mxu0 %v2082
    %3289 = vmatprep.subr.mxu0 %v2079
    %3290 = vmatpush1.msra.mxu0 %v2078
    %3291 = vmatprep.subr.mxu0 0.0
    %3292 = vmatpush2.msra.mxu0 0.0
    %3293 = vmatprep.subr.mxu0 0.0
    %3294 = vmatpush2.msra.mxu0 0.0
    %3295 = vmatprep.subr.mxu0 0.0
    %3296 = vmatpush2.msra.mxu0 0.0
    %3297 = vmatprep.subr.mxu0 0.0
    %3298 = vmatpush2.msra.mxu0 0.0
    %3299 = vmatprep.subr.mxu0 0.0
    %3300 = vmatpush2.msra.mxu0 0.0
    %3301 = vmatprep.subr.mxu0 0.0
    %3302 = vmatpush2.msra.mxu0 0.0
    %3303 = vmatprep.subr.mxu0 0.0
    %3304 = vmatpush2.msra.mxu0 0.0
    %3305 = vmatprep.subr.mxu0 0.0
    %3306 = vmatpush2.msra.mxu0 0.0
    %3307 = vmatprep.subr.mxu0 0.0
    %3308 = vmatpush2.msra.mxu0 0.0
    %3309 = vmatprep.subr.mxu0 0.0
    %3310 = vmatpush2.msra.mxu0 0.0
    %3311 = vmatprep.subr.mxu0 0.0
    %3312 = vmatpush2.msra.mxu0 0.0
    %3313 = vmatprep.subr.mxu0 0.0
    %3314 = vmatpush2.msra.mxu0 0.0
    %3315 = vmatprep.subr.mxu0 0.0
    %3316 = vmatpush2.msra.mxu0 0.0
    %3317 = vmatprep.subr.mxu0 0.0
    %3318 = vmatpush2.msra.mxu0 0.0
    %3319 = vmatprep.subr.mxu0 0.0
    %3320 = vmatpush2.msra.mxu0 0.0
    %3321 = vmatprep.subr.mxu0 0.0
    %3322 = vmatpush2.msra.mxu0 0.0
    %3323 = vmatprep.mubr.f32.mxu0 0.0
    %3324 = vmatmul.mubr.f32.gmra.mxu0 %v3248
    %v3325 = vpop.f32.mrf.mxu0
    %v3326 = vadd.f32 %v3136, %v3325
    %v3327 = vpop.f32.mrf.mxu0
    %v3328 = vadd.f32 %v3138, %v3327
    %3329 = vmatprep.mubr.f32.mxu0 0.0
    %3330 = vmatmul.mubr.f32.gmra.mxu0 %v3251
    %v3331 = vpop.f32.mrf.mxu0
    %v3332 = vadd.f32 %v3142, %v3331
    %v3333 = vpop.f32.mrf.mxu0
    %v3334 = vadd.f32 %v3144, %v3333
    %3335 = vmatprep.mubr.f32.mxu0 0.0
    %3336 = vmatmul.mubr.f32.gmra.mxu0 %v3254
    %v3337 = vpop.f32.mrf.mxu0
    %v3338 = vadd.f32 %v3148, %v3337
    %v3339 = vpop.f32.mrf.mxu0
    %v3340 = vadd.f32 %v3150, %v3339
    %3341 = vmatprep.mubr.f32.mxu0 0.0
    %3342 = vmatmul.mubr.f32.gmra.mxu0 %v3257
    %v3343 = vpop.f32.mrf.mxu0
    %v3344 = vadd.f32 %v3154, %v3343
    %v3345 = vpop.f32.mrf.mxu0
    %v3346 = vadd.f32 %v3156, %v3345
    %3347 = vdwg.mxu0
    %3348 = vmatprep.subr.mxu0 0.0
    %3349 = vmatpush1.msra.mxu0 0.0
    %3350 = vmatprep.subr.mxu0 0.0
    %3351 = vmatpush1.msra.mxu0 0.0
    %3352 = vmatprep.subr.mxu0 0.0
    %3353 = vmatpush1.msra.mxu0 0.0
    %3354 = vmatprep.subr.mxu0 0.0
    %3355 = vmatpush1.msra.mxu0 0.0
    %3356 = vmatprep.subr.mxu0 0.0
    %3357 = vmatpush1.msra.mxu0 0.0
    %3358 = vmatprep.subr.mxu0 0.0
    %3359 = vmatpush1.msra.mxu0 0.0
    %3360 = vmatprep.subr.mxu0 0.0
    %3361 = vmatpush1.msra.mxu0 0.0
    %3362 = vmatprep.subr.mxu0 0.0
    %3363 = vmatpush1.msra.mxu0 0.0
    %3364 = vmatprep.subr.mxu0 0.0
    %3365 = vmatpush1.msra.mxu0 0.0
    %3366 = vmatprep.subr.mxu0 0.0
    %3367 = vmatpush1.msra.mxu0 0.0
    %3368 = vmatprep.subr.mxu0 0.0
    %3369 = vmatpush1.msra.mxu0 0.0
    %3370 = vmatprep.subr.mxu0 0.0
    %3371 = vmatpush1.msra.mxu0 0.0
    %3372 = vmatprep.subr.mxu0 %v2093
    %3373 = vmatpush1.msra.mxu0 %v2092
    %3374 = vmatprep.subr.mxu0 %v2089
    %3375 = vmatpush1.msra.mxu0 %v2088
    %3376 = vmatprep.subr.mxu0 %v2085
    %3377 = vmatpush1.msra.mxu0 %v2084
    %3378 = vmatprep.subr.mxu0 %v2081
    %3379 = vmatpush1.msra.mxu0 %v2080
    %3380 = vmatprep.subr.mxu0 0.0
    %3381 = vmatpush2.msra.mxu0 0.0
    %3382 = vmatprep.subr.mxu0 0.0
    %3383 = vmatpush2.msra.mxu0 0.0
    %3384 = vmatprep.subr.mxu0 0.0
    %3385 = vmatpush2.msra.mxu0 0.0
    %3386 = vmatprep.subr.mxu0 0.0
    %3387 = vmatpush2.msra.mxu0 0.0
    %3388 = vmatprep.subr.mxu0 0.0
    %3389 = vmatpush2.msra.mxu0 0.0
    %3390 = vmatprep.subr.mxu0 0.0
    %3391 = vmatpush2.msra.mxu0 0.0
    %3392 = vmatprep.subr.mxu0 0.0
    %3393 = vmatpush2.msra.mxu0 0.0
    %3394 = vmatprep.subr.mxu0 0.0
    %3395 = vmatpush2.msra.mxu0 0.0
    %3396 = vmatprep.subr.mxu0 0.0
    %3397 = vmatpush2.msra.mxu0 0.0
    %3398 = vmatprep.subr.mxu0 0.0
    %3399 = vmatpush2.msra.mxu0 0.0
    %3400 = vmatprep.subr.mxu0 0.0
    %3401 = vmatpush2.msra.mxu0 0.0
    %3402 = vmatprep.subr.mxu0 0.0
    %3403 = vmatpush2.msra.mxu0 0.0
    %3404 = vmatprep.subr.mxu0 0.0
    %3405 = vmatpush2.msra.mxu0 0.0
    %3406 = vmatprep.subr.mxu0 0.0
    %3407 = vmatpush2.msra.mxu0 0.0
    %3408 = vmatprep.subr.mxu0 0.0
    %3409 = vmatpush2.msra.mxu0 0.0
    %3410 = vmatprep.subr.mxu0 0.0
    %3411 = vmatpush2.msra.mxu0 0.0
    %3412 = vmatprep.mubr.f32.mxu0 0.0
    %3413 = vmatmul.mubr.f32.gmra.mxu0 %v3248
    %v3414 = vpop.f32.mrf.mxu0
    %v3415 = vadd.f32 %v3225, %v3414
    %v3416 = vpop.f32.mrf.mxu0
    %v3417 = vadd.f32 %v3227, %v3416
    %3418 = vmatprep.mubr.f32.mxu0 0.0
    %3419 = vmatmul.mubr.f32.gmra.mxu0 %v3251
    %v3420 = vpop.f32.mrf.mxu0
    %v3421 = vadd.f32 %v3231, %v3420
    %v3422 = vpop.f32.mrf.mxu0
    %v3423 = vadd.f32 %v3233, %v3422
    %3424 = vmatprep.mubr.f32.mxu0 0.0
    %3425 = vmatmul.mubr.f32.gmra.mxu0 %v3254
    %v3426 = vpop.f32.mrf.mxu0
    %v3427 = vadd.f32 %v3237, %v3426
    %v3428 = vpop.f32.mrf.mxu0
    %v3429 = vadd.f32 %v3239, %v3428
    %3430 = vmatprep.mubr.f32.mxu0 0.0
    %3431 = vmatmul.mubr.f32.gmra.mxu0 %v3257
    %v3432 = vpop.f32.mrf.mxu0
    %v3433 = vadd.f32 %v3243, %v3432
    %v3434 = vpop.f32.mrf.mxu0
    %v3435 = vadd.f32 %v3245, %v3434
    %3436 = vdwg.mxu0
    %v3437 = vmax.f32 %v3326, 0.0
    %v3438 = vmax.f32 %v3328, 0.0
    %v3439 = vmax.f32 %v3415, 0.0
    %v3440 = vmax.f32 %v3417, 0.0
    %v3441 = vmax.f32 %v3332, 0.0
    %v3442 = vmax.f32 %v3334, 0.0
    %v3443 = vmax.f32 %v3421, 0.0
    %v3444 = vmax.f32 %v3423, 0.0
    %v3445 = vmax.f32 %v3338, 0.0
    %v3446 = vmax.f32 %v3340, 0.0
    %v3447 = vmax.f32 %v3427, 0.0
    %v3448 = vmax.f32 %v3429, 0.0
    %v3449 = vmax.f32 %v3344, 0.0
    %v3450 = vmax.f32 %v3346, 0.0
    %v3451 = vmax.f32 %v3433, 0.0
    %v3452 = vmax.f32 %v3435, 0.0
    %v3453 = vld [vmem:[%s4 + $0x88] sm:$0x7]
    %v3454 = vld [vmem:[%s6 + $0x48] sm:$0x7]
    %3456 = vset.pattern.permute.xlu0 0
    %3457 = vperm.xlu0 %3456, %v3454
    %v3458 = vpop.permute.xlu0 %3457
    %v3461 = vsel %vm1227, %v3453, 0
    %3463 = vmatprep.subr.mxu0 0.0
    %3464 = vmatpush1.msra.mxu0 0.0
    %3465 = vmatprep.subr.mxu0 0.0
    %3466 = vmatpush1.msra.mxu0 0.0
    %3467 = vmatprep.subr.mxu0 0.0
    %3468 = vmatpush1.msra.mxu0 0.0
    %3469 = vmatprep.subr.mxu0 0.0
    %3470 = vmatpush1.msra.mxu0 0.0
    %3471 = vmatprep.subr.mxu0 0.0
    %3472 = vmatpush1.msra.mxu0 0.0
    %3473 = vmatprep.subr.mxu0 0.0
    %3474 = vmatpush1.msra.mxu0 0.0
    %3475 = vmatprep.subr.mxu0 0.0
    %3476 = vmatpush1.msra.mxu0 0.0
    %3477 = vmatprep.subr.mxu0 0.0
    %3478 = vmatpush1.msra.mxu0 0.0
    %3479 = vmatprep.subr.mxu0 0.0
    %3480 = vmatpush1.msra.mxu0 0.0
    %3481 = vmatprep.subr.mxu0 0.0
    %3482 = vmatpush1.msra.mxu0 0.0
    %3483 = vmatprep.subr.mxu0 0.0
    %3484 = vmatpush1.msra.mxu0 0.0
    %3485 = vmatprep.subr.mxu0 0.0
    %3486 = vmatpush1.msra.mxu0 0.0
    %3487 = vmatprep.subr.mxu0 %v3450
    %3488 = vmatpush1.msra.mxu0 %v3449
    %3489 = vmatprep.subr.mxu0 %v3446
    %3490 = vmatpush1.msra.mxu0 %v3445
    %3491 = vmatprep.subr.mxu0 %v3442
    %3492 = vmatpush1.msra.mxu0 %v3441
    %3493 = vmatprep.subr.mxu0 %v3438
    %3494 = vmatpush1.msra.mxu0 %v3437
    %3495 = vmatprep.subr.mxu0 0.0
    %3496 = vmatpush2.msra.mxu0 0.0
    %3497 = vmatprep.subr.mxu0 0.0
    %3498 = vmatpush2.msra.mxu0 0.0
    %3499 = vmatprep.subr.mxu0 0.0
    %3500 = vmatpush2.msra.mxu0 0.0
    %3501 = vmatprep.subr.mxu0 0.0
    %3502 = vmatpush2.msra.mxu0 0.0
    %3503 = vmatprep.subr.mxu0 0.0
    %3504 = vmatpush2.msra.mxu0 0.0
    %3505 = vmatprep.subr.mxu0 0.0
    %3506 = vmatpush2.msra.mxu0 0.0
    %3507 = vmatprep.subr.mxu0 0.0
    %3508 = vmatpush2.msra.mxu0 0.0
    %3509 = vmatprep.subr.mxu0 0.0
    %3510 = vmatpush2.msra.mxu0 0.0
    %3511 = vmatprep.subr.mxu0 0.0
    %3512 = vmatpush2.msra.mxu0 0.0
    %3513 = vmatprep.subr.mxu0 0.0
    %3514 = vmatpush2.msra.mxu0 0.0
    %3515 = vmatprep.subr.mxu0 0.0
    %3516 = vmatpush2.msra.mxu0 0.0
    %3517 = vmatprep.subr.mxu0 0.0
    %3518 = vmatpush2.msra.mxu0 0.0
    %3519 = vmatprep.subr.mxu0 0.0
    %3520 = vmatpush2.msra.mxu0 0.0
    %3521 = vmatprep.subr.mxu0 0.0
    %3522 = vmatpush2.msra.mxu0 0.0
    %3523 = vmatprep.subr.mxu0 0.0
    %3524 = vmatpush2.msra.mxu0 0.0
    %3525 = vmatprep.subr.mxu0 0.0
    %3526 = vmatpush2.msra.mxu0 0.0
    %3527 = vmatprep.mubr.f32.mxu0 0.0
    %3528 = vmatmul.mubr.f32.gmra.mxu0 %v3461
    %v3529 = vpop.f32.mrf.mxu0
    %v3530 = vadd.f32 %v3458, %v3529
    %v3531 = vpop.f32.mrf.mxu0
    %v3532 = vadd.f32 %v3458, %v3531
    %3533 = vdwg.mxu0
    %3534 = vmatprep.subr.mxu0 0.0
    %3535 = vmatpush1.msra.mxu0 0.0
    %3536 = vmatprep.subr.mxu0 0.0
    %3537 = vmatpush1.msra.mxu0 0.0
    %3538 = vmatprep.subr.mxu0 0.0
    %3539 = vmatpush1.msra.mxu0 0.0
    %3540 = vmatprep.subr.mxu0 0.0
    %3541 = vmatpush1.msra.mxu0 0.0
    %3542 = vmatprep.subr.mxu0 0.0
    %3543 = vmatpush1.msra.mxu0 0.0
    %3544 = vmatprep.subr.mxu0 0.0
    %3545 = vmatpush1.msra.mxu0 0.0
    %3546 = vmatprep.subr.mxu0 0.0
    %3547 = vmatpush1.msra.mxu0 0.0
    %3548 = vmatprep.subr.mxu0 0.0
    %3549 = vmatpush1.msra.mxu0 0.0
    %3550 = vmatprep.subr.mxu0 0.0
    %3551 = vmatpush1.msra.mxu0 0.0
    %3552 = vmatprep.subr.mxu0 0.0
    %3553 = vmatpush1.msra.mxu0 0.0
    %3554 = vmatprep.subr.mxu0 0.0
    %3555 = vmatpush1.msra.mxu0 0.0
    %3556 = vmatprep.subr.mxu0 0.0
    %3557 = vmatpush1.msra.mxu0 0.0
    %3558 = vmatprep.subr.mxu0 %v3452
    %3559 = vmatpush1.msra.mxu0 %v3451
    %3560 = vmatprep.subr.mxu0 %v3448
    %3561 = vmatpush1.msra.mxu0 %v3447
    %3562 = vmatprep.subr.mxu0 %v3444
    %3563 = vmatpush1.msra.mxu0 %v3443
    %3564 = vmatprep.subr.mxu0 %v3440
    %3565 = vmatpush1.msra.mxu0 %v3439
    %3566 = vmatprep.subr.mxu0 0.0
    %3567 = vmatpush2.msra.mxu0 0.0
    %3568 = vmatprep.subr.mxu0 0.0
    %3569 = vmatpush2.msra.mxu0 0.0
    %3570 = vmatprep.subr.mxu0 0.0
    %3571 = vmatpush2.msra.mxu0 0.0
    %3572 = vmatprep.subr.mxu0 0.0
    %3573 = vmatpush2.msra.mxu0 0.0
    %3574 = vmatprep.subr.mxu0 0.0
    %3575 = vmatpush2.msra.mxu0 0.0
    %3576 = vmatprep.subr.mxu0 0.0
    %3577 = vmatpush2.msra.mxu0 0.0
    %3578 = vmatprep.subr.mxu0 0.0
    %3579 = vmatpush2.msra.mxu0 0.0
    %3580 = vmatprep.subr.mxu0 0.0
    %3581 = vmatpush2.msra.mxu0 0.0
    %3582 = vmatprep.subr.mxu0 0.0
    %3583 = vmatpush2.msra.mxu0 0.0
    %3584 = vmatprep.subr.mxu0 0.0
    %3585 = vmatpush2.msra.mxu0 0.0
    %3586 = vmatprep.subr.mxu0 0.0
    %3587 = vmatpush2.msra.mxu0 0.0
    %3588 = vmatprep.subr.mxu0 0.0
    %3589 = vmatpush2.msra.mxu0 0.0
    %3590 = vmatprep.subr.mxu0 0.0
    %3591 = vmatpush2.msra.mxu0 0.0
    %3592 = vmatprep.subr.mxu0 0.0
    %3593 = vmatpush2.msra.mxu0 0.0
    %3594 = vmatprep.subr.mxu0 0.0
    %3595 = vmatpush2.msra.mxu0 0.0
    %3596 = vmatprep.subr.mxu0 0.0
    %3597 = vmatpush2.msra.mxu0 0.0
    %3598 = vmatprep.mubr.f32.mxu0 0.0
    %3599 = vmatmul.mubr.f32.gmra.mxu0 %v3461
    %v3600 = vpop.f32.mrf.mxu0
    %v3601 = vadd.f32 %v3458, %v3600
    %v3602 = vpop.f32.mrf.mxu0
    %v3603 = vadd.f32 %v3458, %v3602
    %3604 = vdwg.mxu0
    %v3605 = vsub.f32 0.0, %v3530
    %v3606 = vsub.f32 0.0, %v3532
    %v3607 = vsub.f32 0.0, %v3601
    %v3608 = vsub.f32 0.0, %v3603
    %v3609 = vmul.f32 %v3605, 1.442695
    %v3610 = vpow.pop %v3609
    %v3611 = vmul.f32 %v3606, 1.442695
    %v3612 = vpow.pop %v3611
    %v3613 = vmul.f32 %v3607, 1.442695
    %v3614 = vpow.pop %v3613
    %v3615 = vmul.f32 %v3608, 1.442695
    %v3616 = vpow.pop %v3615
    %v3617 = vadd.f32 %v3610, 1.0
    %v3618 = vadd.f32 %v3612, 1.0
    %v3619 = vadd.f32 %v3614, 1.0
    %v3620 = vadd.f32 %v3616, 1.0
    %v3621 = vrcp.pop %v3617
    %v3622 = vmul.f32 1.0, %v3621
    %v3623 = vrcp.pop %v3618
    %v3624 = vmul.f32 1.0, %v3623
    %v3625 = vrcp.pop %v3619
    %v3626 = vmul.f32 1.0, %v3625
    %v3627 = vrcp.pop %v3620
    %v3628 = vmul.f32 1.0, %v3627
    %v3633 = vrot.slane %v2150, 5
    %v3634 = vrot.slane %v2151, 5
    %v3635 = vrot.slane %v2152, 5
    %v3636 = vrot.slane %v2153, 5
    %v3641 = vsel %vm105, %v3622, %v3633
    %v3642 = vsel %vm105, %v3624, %v3634
    %v3643 = vsel %vm105, %v3626, %v3635
    %v3644 = vsel %vm105, %v3628, %v3636
    %v3649 = vcombine.low %v3641, %v3642
    %v3650 = vcombine.low %v3643, %v3644
    %3653 = vst [vmem:[#allocation2] sm:$0xff] %v3649
    %3654 = vst [vmem:[#allocation2 + $0x8] sm:$0xff] %v3650
    %v3655 = vld [vmem:[%s0 + $0x10] sm:$0x77]
    %v3656 = vld [vmem:[%s0 + $0x18] sm:$0x77]
    %v3657 = vmul.f32 %v3655, %v3655
    %v3658 = vmul.f32 %v3656, %v3656
    %v3661 = vrot.slane %v3657, 5
    %v3662 = vrot.slane %v3661, 4
    %v3663 = vrot.slane %v3658, 5
    %v3664 = vrot.slane %v3663, 4
    %v3667 = vadd.f32 %v3657, %v3662
    %v3668 = vadd.f32 %v3658, %v3664
    %v3669 = vrot.slane %v3657, 6
    %v3670 = vrot.slane %v3669, 4
    %v3671 = vrot.slane %v3658, 6
    %v3672 = vrot.slane %v3671, 4
    %v3675 = vadd.f32 %v3667, %v3670
    %v3676 = vadd.f32 %v3668, %v3672
    %v3677 = vrsqrt.pop %v3675
    %v3678 = vrsqrt.pop %v3676
    %v3681 = vlaneseq
    %v3682 = vshrl.u32 %v3681, 7
    %v3683 = vsub.s32 0, %v3682
    %v3684 = vrot.slane %v3677, %v3683
    %v3685 = vlaneseq
    %v3686 = vshrl.u32 %v3685, 7
    %v3687 = vsub.s32 4, %v3686
    %v3688 = vrot.slane %v3677, %v3687
    %v3689 = vlaneseq
    %v3690 = vshrl.u32 %v3689, 7
    %v3691 = vsub.s32 0, %v3690
    %v3692 = vrot.slane %v3678, %v3691
    %v3693 = vlaneseq
    %v3694 = vshrl.u32 %v3693, 7
    %v3695 = vsub.s32 4, %v3694
    %v3696 = vrot.slane %v3678, %v3695
    %v3701 = vlaneseq
    %v3702 = vshrl.u32 %v3701, 7
    %v3703 = vsub.s32 0, %v3702
    %v3704 = vrot.slane %v3684, %v3703
    %v3705 = vlaneseq
    %v3706 = vshrl.u32 %v3705, 7
    %v3707 = vsub.s32 0, %v3706
    %v3708 = vrot.slane %v3688, %v3707
    %v3709 = vlaneseq
    %v3710 = vshrl.u32 %v3709, 7
    %v3711 = vsub.s32 0, %v3710
    %v3712 = vrot.slane %v3692, %v3711
    %v3713 = vlaneseq
    %v3714 = vshrl.u32 %v3713, 7
    %v3715 = vsub.s32 0, %v3714
    %v3716 = vrot.slane %v3696, %v3715
    %v3721 = vcombine.low %v3704, %v3708
    %v3722 = vcombine.low %v3712, %v3716
    %v3725 = vmul.f32 %v3655, %v3721
    %v3726 = vmul.f32 %v3656, %v3722
    %v3729 = vcombine.high %v3725, %v3725
    %v3730 = vcombine.high %v3726, %v3726
    %v3733 = vsel %vm105, %v3725, %v3684
    %v3734 = vsel %vm105, %v3729, %v3688
    %v3735 = vsel %vm105, %v3726, %v3692
    %v3736 = vsel %vm105, %v3730, %v3696
    %v3737 = vmul.f32 %v3733, 3.1415927
    %v3738 = vmul.f32 %v3734, 3.1415927
    %v3739 = vmul.f32 %v3735, 3.1415927
    %v3740 = vmul.f32 %v3736, 3.1415927
    %v3741 = vmul.f32 %v3733, 12.566371
    %v3742 = vmul.f32 %v3734, 12.566371
    %v3743 = vmul.f32 %v3735, 12.566371
    %v3744 = vmul.f32 %v3736, 12.566371
    %v3749 = vrot.slane %v3741, 4
    %v3750 = vrot.slane %v3742, 4
    %v3751 = vrot.slane %v3743, 4
    %v3752 = vrot.slane %v3744, 4
    %v3757 = vsel %vm130, %v3737, %v3749
    %v3758 = vsel %vm130, %v3738, %v3750
    %v3759 = vsel %vm130, %v3739, %v3751
    %v3760 = vsel %vm130, %v3740, %v3752
    %v3761 = vand.u32 2147483647, %v3757
    %vm3762 = vcmp.le.f32.partialorder %v3761, 0.7853982
    %vm3763 = vcmp.lt.s32.totalorder %v3757, 0
    %v3764 = vand.u32 %v3757, 2139095040
    %v3765 = vshrl.u32 %v3764, 23
    %v3766 = vsub.s32 %v3765, 127
    %v3767 = vand.u32 2147483647, %v3757
    %v3768 = vand.u32 %v3767, 8388607
    %v3769 = vor.u32 %v3768, 8388608
    %v3770 = vsub.s32 0, %v3769
    %v3771 = vadd.s32 %v3766, 1
    %vm3772 = vcmp.gt.s32.totalorder %v3771, 0
    %v3773 = vsel %vm3772, %v3771, 0
    %v3774 = vshrl.u32 %v3773, 5
    %v3775 = vand.u32 %v3773, 31
    %v3776 = vsub.s32 32, %v3775
    %v3777 = vshrl.u32 683565275, %v3776
    %v3778 = vshll.u32 683565275, %v3775
    %v3779 = vshrl.u32 2475754826, %v3776
    %v3780 = vor.u32 %v3778, %v3779
    %v3781 = vshll.u32 2475754826, %v3775
    %v3782 = vshrl.u32 2131351028, %v3776
    %v3783 = vor.u32 %v3781, %v3782
    %v3784 = vshll.u32 2131351028, %v3775
    %v3785 = vshrl.u32 2102212464, %v3776
    %v3786 = vor.u32 %v3784, %v3785
    %v3787 = vshll.u32 2102212464, %v3775
    %v3788 = vshrl.u32 920167782, %v3776
    %v3789 = vor.u32 %v3787, %v3788
    %v3790 = vshll.u32 920167782, %v3775
    %v3791 = vshrl.u32 1326507024, %v3776
    %v3792 = vor.u32 %v3790, %v3791
    %vm3793 = vcmp.lt.s32.totalorder %v3774, 1
    %vm3794 = vcmp.lt.s32.totalorder %v3774, 2
    %vm3795 = vcmp.lt.s32.totalorder %v3774, 3
    %vm3796 = vcmp.lt.s32.totalorder %v3774, 4
    %v3797 = vsel %vm3793, %v3777, %v3780
    %v3798 = vsel %vm3796, %v3786, 2102212464
    %v3799 = vsel %vm3795, %v3783, %v3798
    %v3800 = vsel %vm3794, %v3797, %v3799
    %v3801 = vsel %vm3793, %v3780, %v3783
    %v3802 = vsel %vm3796, %v3789, 920167782
    %v3803 = vsel %vm3795, %v3786, %v3802
    %v3804 = vsel %vm3794, %v3801, %v3803
    %v3805 = vsel %vm3793, %v3783, %v3786
    %v3806 = vsel %vm3796, %v3792, 1326507024
    %v3807 = vsel %vm3795, %v3789, %v3806
    %v3808 = vsel %vm3794, %v3805, %v3807
    %v3809 = vshll.u32 %v3769, 8
    %v3810 = vmul.u32.u64.compose %v3809, %v3808
    %v3811 = vextract.low.u32 %v3810
    %v3812 = vextract.high.u32 %v3810
    %v3813 = vmul.u32.u64.compose %v3809, %v3804
    %v3814 = vextract.low.u32 %v3813
    %v3815 = vextract.high.u32 %v3813
    %v3816 = vmul.u32 %v3809, %v3800
    %v3817 = vadd.s32 %v3812, %v3814
    %vm3818 = vc.u32 %v3812, %v3814
    %v3819 = vadd.s32 %v3815, 1
    %v3820 = vsel %vm3818, %v3819, %v3815
    %v3821 = vadd.s32 %v3816, %v3820
    %v3822 = vadd.s32 %v3821, 536870912
    %v3823 = vshrl.u32 %v3822, 30
    %v3824 = vshll.u32 %v3823, 30
    %v3825 = vsub.s32 %v3821, %v3824
    %vm3826 = vcmp.lt.s32.totalorder %v3825, 0
    %v3827 = vsub.s32 0, %v3825
    %v3828 = vsel %vm3826, %v3827, %v3825
    %v3829 = vclz %v3828
    %v3830 = vsub.s32 %v3829, 2
    %vm3831 = vcmp.gt.s32.totalorder 0, %v3830
    %v3832 = vsel %vm3831, 0, %v3830
    %v3833 = vsub.s32 32, %v3832
    %v3834 = vshll.u32 %v3825, %v3832
    %v3835 = vshrl.u32 %v3817, %v3833
    %v3836 = vor.u32 %v3834, %v3835
    %v3837 = vsub.s32 4294967266, %v3832
    %v3838 = vadd.s32 %v3837, 127
    %v3839 = vshll.u32 %v3838, 23
    %v3840 = vor.u32 4788187, %v3839
    %v3841 = vand.u32 2147483647, %v3840
    %v3843 = vcvt.s32.f32 %v3836
    %v3844 = vmul.f32 %v3843, %v3841
    %v3845 = vxor.u32 %v3844, 2147483648
    %v3846 = vsel %vm3763, %v3845, %v3844
    %v3847 = vsub.s32 4, %v3823
    %v3848 = vsel %vm3763, %v3847, %v3823
    %v3849 = vsel %vm3762, %v3757, %v3846
    %v3850 = vsel %vm3762, 0, %v3848
    %v3851 = vcosq.f32.pop %v3849
    %v3852 = vsinq.f32.pop %v3849
    %vm3853 = vweird.f32 %v3757
    %v3854 = vadd.s32 %v3850, 3
    %v3855 = vand.u32 %v3854, 3
    %vm3856 = vcmp.lt.s32.totalorder %v3855, 2
    %vm3857 = vcmp.eq.s32.totalorder %v3855, 0
    %v3858 = vxor.u32 %v3852, 2147483648
    %v3859 = vsel %vm3857, %v3851, %v3858
    %vm3860 = vcmp.eq.s32.totalorder %v3855, 2
    %v3861 = vxor.u32 %v3851, 2147483648
    %v3862 = vsel %vm3860, %v3861, %v3852
    %v3863 = vsel %vm3856, %v3859, %v3862
    %v3864 = vsel %vm3853, nan, %v3863
    %v3865 = vand.u32 2147483647, %v3758
    %vm3866 = vcmp.le.f32.partialorder %v3865, 0.7853982
    %vm3867 = vcmp.lt.s32.totalorder %v3758, 0
    %v3868 = vand.u32 %v3758, 2139095040
    %v3869 = vshrl.u32 %v3868, 23
    %v3870 = vsub.s32 %v3869, 127
    %v3871 = vand.u32 2147483647, %v3758
    %v3872 = vand.u32 %v3871, 8388607
    %v3873 = vor.u32 %v3872, 8388608
    %v3874 = vsub.s32 0, %v3873
    %v3875 = vadd.s32 %v3870, 1
    %vm3876 = vcmp.gt.s32.totalorder %v3875, 0
    %v3877 = vsel %vm3876, %v3875, 0
    %v3878 = vshrl.u32 %v3877, 5
    %v3879 = vand.u32 %v3877, 31
    %v3880 = vsub.s32 32, %v3879
    %v3881 = vshrl.u32 683565275, %v3880
    %v3882 = vshll.u32 683565275, %v3879
    %v3883 = vshrl.u32 2475754826, %v3880
    %v3884 = vor.u32 %v3882, %v3883
    %v3885 = vshll.u32 2475754826, %v3879
    %v3886 = vshrl.u32 2131351028, %v3880
    %v3887 = vor.u32 %v3885, %v3886
    %v3888 = vshll.u32 2131351028, %v3879
    %v3889 = vshrl.u32 2102212464, %v3880
    %v3890 = vor.u32 %v3888, %v3889
    %v3891 = vshll.u32 2102212464, %v3879
    %v3892 = vshrl.u32 920167782, %v3880
    %v3893 = vor.u32 %v3891, %v3892
    %v3894 = vshll.u32 920167782, %v3879
    %v3895 = vshrl.u32 1326507024, %v3880
    %v3896 = vor.u32 %v3894, %v3895
    %vm3897 = vcmp.lt.s32.totalorder %v3878, 1
    %vm3898 = vcmp.lt.s32.totalorder %v3878, 2
    %vm3899 = vcmp.lt.s32.totalorder %v3878, 3
    %vm3900 = vcmp.lt.s32.totalorder %v3878, 4
    %v3901 = vsel %vm3897, %v3881, %v3884
    %v3902 = vsel %vm3900, %v3890, 2102212464
    %v3903 = vsel %vm3899, %v3887, %v3902
    %v3904 = vsel %vm3898, %v3901, %v3903
    %v3905 = vsel %vm3897, %v3884, %v3887
    %v3906 = vsel %vm3900, %v3893, 920167782
    %v3907 = vsel %vm3899, %v3890, %v3906
    %v3908 = vsel %vm3898, %v3905, %v3907
    %v3909 = vsel %vm3897, %v3887, %v3890
    %v3910 = vsel %vm3900, %v3896, 1326507024
    %v3911 = vsel %vm3899, %v3893, %v3910
    %v3912 = vsel %vm3898, %v3909, %v3911
    %v3913 = vshll.u32 %v3873, 8
    %v3914 = vmul.u32.u64.compose %v3913, %v3912
    %v3915 = vextract.low.u32 %v3914
    %v3916 = vextract.high.u32 %v3914
    %v3917 = vmul.u32.u64.compose %v3913, %v3908
    %v3918 = vextract.low.u32 %v3917
    %v3919 = vextract.high.u32 %v3917
    %v3920 = vmul.u32 %v3913, %v3904
    %v3921 = vadd.s32 %v3916, %v3918
    %vm3922 = vc.u32 %v3916, %v3918
    %v3923 = vadd.s32 %v3919, 1
    %v3924 = vsel %vm3922, %v3923, %v3919
    %v3925 = vadd.s32 %v3920, %v3924
    %v3926 = vadd.s32 %v3925, 536870912
    %v3927 = vshrl.u32 %v3926, 30
    %v3928 = vshll.u32 %v3927, 30
    %v3929 = vsub.s32 %v3925, %v3928
    %vm3930 = vcmp.lt.s32.totalorder %v3929, 0
    %v3931 = vsub.s32 0, %v3929
    %v3932 = vsel %vm3930, %v3931, %v3929
    %v3933 = vclz %v3932
    %v3934 = vsub.s32 %v3933, 2
    %vm3935 = vcmp.gt.s32.totalorder 0, %v3934
    %v3936 = vsel %vm3935, 0, %v3934
    %v3937 = vsub.s32 32, %v3936
    %v3938 = vshll.u32 %v3929, %v3936
    %v3939 = vshrl.u32 %v3921, %v3937
    %v3940 = vor.u32 %v3938, %v3939
    %v3941 = vsub.s32 4294967266, %v3936
    %v3942 = vadd.s32 %v3941, 127
    %v3943 = vshll.u32 %v3942, 23
    %v3944 = vor.u32 4788187, %v3943
    %v3945 = vand.u32 2147483647, %v3944
    %v3947 = vcvt.s32.f32 %v3940
    %v3948 = vmul.f32 %v3947, %v3945
    %v3949 = vxor.u32 %v3948, 2147483648
    %v3950 = vsel %vm3867, %v3949, %v3948
    %v3951 = vsub.s32 4, %v3927
    %v3952 = vsel %vm3867, %v3951, %v3927
    %v3953 = vsel %vm3866, %v3758, %v3950
    %v3954 = vsel %vm3866, 0, %v3952
    %v3955 = vcosq.f32.pop %v3953
    %v3956 = vsinq.f32.pop %v3953
    %vm3957 = vweird.f32 %v3758
    %v3958 = vadd.s32 %v3954, 3
    %v3959 = vand.u32 %v3958, 3
    %vm3960 = vcmp.lt.s32.totalorder %v3959, 2
    %vm3961 = vcmp.eq.s32.totalorder %v3959, 0
    %v3962 = vxor.u32 %v3956, 2147483648
    %v3963 = vsel %vm3961, %v3955, %v3962
    %vm3964 = vcmp.eq.s32.totalorder %v3959, 2
    %v3965 = vxor.u32 %v3955, 2147483648
    %v3966 = vsel %vm3964, %v3965, %v3956
    %v3967 = vsel %vm3960, %v3963, %v3966
    %v3968 = vsel %vm3957, nan, %v3967
    %v3969 = vand.u32 2147483647, %v3759
    %vm3970 = vcmp.le.f32.partialorder %v3969, 0.7853982
    %vm3971 = vcmp.lt.s32.totalorder %v3759, 0
    %v3972 = vand.u32 %v3759, 2139095040
    %v3973 = vshrl.u32 %v3972, 23
    %v3974 = vsub.s32 %v3973, 127
    %v3975 = vand.u32 2147483647, %v3759
    %v3976 = vand.u32 %v3975, 8388607
    %v3977 = vor.u32 %v3976, 8388608
    %v3978 = vsub.s32 0, %v3977
    %v3979 = vadd.s32 %v3974, 1
    %vm3980 = vcmp.gt.s32.totalorder %v3979, 0
    %v3981 = vsel %vm3980, %v3979, 0
    %v3982 = vshrl.u32 %v3981, 5
    %v3983 = vand.u32 %v3981, 31
    %v3984 = vsub.s32 32, %v3983
    %v3985 = vshrl.u32 683565275, %v3984
    %v3986 = vshll.u32 683565275, %v3983
    %v3987 = vshrl.u32 2475754826, %v3984
    %v3988 = vor.u32 %v3986, %v3987
    %v3989 = vshll.u32 2475754826, %v3983
    %v3990 = vshrl.u32 2131351028, %v3984
    %v3991 = vor.u32 %v3989, %v3990
    %v3992 = vshll.u32 2131351028, %v3983
    %v3993 = vshrl.u32 2102212464, %v3984
    %v3994 = vor.u32 %v3992, %v3993
    %v3995 = vshll.u32 2102212464, %v3983
    %v3996 = vshrl.u32 920167782, %v3984
    %v3997 = vor.u32 %v3995, %v3996
    %v3998 = vshll.u32 920167782, %v3983
    %v3999 = vshrl.u32 1326507024, %v3984
    %v4000 = vor.u32 %v3998, %v3999
    %vm4001 = vcmp.lt.s32.totalorder %v3982, 1
    %vm4002 = vcmp.lt.s32.totalorder %v3982, 2
    %vm4003 = vcmp.lt.s32.totalorder %v3982, 3
    %vm4004 = vcmp.lt.s32.totalorder %v3982, 4
    %v4005 = vsel %vm4001, %v3985, %v3988
    %v4006 = vsel %vm4004, %v3994, 2102212464
    %v4007 = vsel %vm4003, %v3991, %v4006
    %v4008 = vsel %vm4002, %v4005, %v4007
    %v4009 = vsel %vm4001, %v3988, %v3991
    %v4010 = vsel %vm4004, %v3997, 920167782
    %v4011 = vsel %vm4003, %v3994, %v4010
    %v4012 = vsel %vm4002, %v4009, %v4011
    %v4013 = vsel %vm4001, %v3991, %v3994
    %v4014 = vsel %vm4004, %v4000, 1326507024
    %v4015 = vsel %vm4003, %v3997, %v4014
    %v4016 = vsel %vm4002, %v4013, %v4015
    %v4017 = vshll.u32 %v3977, 8
    %v4018 = vmul.u32.u64.compose %v4017, %v4016
    %v4019 = vextract.low.u32 %v4018
    %v4020 = vextract.high.u32 %v4018
    %v4021 = vmul.u32.u64.compose %v4017, %v4012
    %v4022 = vextract.low.u32 %v4021
    %v4023 = vextract.high.u32 %v4021
    %v4024 = vmul.u32 %v4017, %v4008
    %v4025 = vadd.s32 %v4020, %v4022
    %vm4026 = vc.u32 %v4020, %v4022
    %v4027 = vadd.s32 %v4023, 1
    %v4028 = vsel %vm4026, %v4027, %v4023
    %v4029 = vadd.s32 %v4024, %v4028
    %v4030 = vadd.s32 %v4029, 536870912
    %v4031 = vshrl.u32 %v4030, 30
    %v4032 = vshll.u32 %v4031, 30
    %v4033 = vsub.s32 %v4029, %v4032
    %vm4034 = vcmp.lt.s32.totalorder %v4033, 0
    %v4035 = vsub.s32 0, %v4033
    %v4036 = vsel %vm4034, %v4035, %v4033
    %v4037 = vclz %v4036
    %v4038 = vsub.s32 %v4037, 2
    %vm4039 = vcmp.gt.s32.totalorder 0, %v4038
    %v4040 = vsel %vm4039, 0, %v4038
    %v4041 = vsub.s32 32, %v4040
    %v4042 = vshll.u32 %v4033, %v4040
    %v4043 = vshrl.u32 %v4025, %v4041
    %v4044 = vor.u32 %v4042, %v4043
    %v4045 = vsub.s32 4294967266, %v4040
    %v4046 = vadd.s32 %v4045, 127
    %v4047 = vshll.u32 %v4046, 23
    %v4048 = vor.u32 4788187, %v4047
    %v4049 = vand.u32 2147483647, %v4048
    %v4051 = vcvt.s32.f32 %v4044
    %v4052 = vmul.f32 %v4051, %v4049
    %v4053 = vxor.u32 %v4052, 2147483648
    %v4054 = vsel %vm3971, %v4053, %v4052
    %v4055 = vsub.s32 4, %v4031
    %v4056 = vsel %vm3971, %v4055, %v4031
    %v4057 = vsel %vm3970, %v3759, %v4054
    %v4058 = vsel %vm3970, 0, %v4056
    %v4059 = vcosq.f32.pop %v4057
    %v4060 = vsinq.f32.pop %v4057
    %vm4061 = vweird.f32 %v3759
    %v4062 = vadd.s32 %v4058, 3
    %v4063 = vand.u32 %v4062, 3
    %vm4064 = vcmp.lt.s32.totalorder %v4063, 2
    %vm4065 = vcmp.eq.s32.totalorder %v4063, 0
    %v4066 = vxor.u32 %v4060, 2147483648
    %v4067 = vsel %vm4065, %v4059, %v4066
    %vm4068 = vcmp.eq.s32.totalorder %v4063, 2
    %v4069 = vxor.u32 %v4059, 2147483648
    %v4070 = vsel %vm4068, %v4069, %v4060
    %v4071 = vsel %vm4064, %v4067, %v4070
    %v4072 = vsel %vm4061, nan, %v4071
    %v4073 = vand.u32 2147483647, %v3760
    %vm4074 = vcmp.le.f32.partialorder %v4073, 0.7853982
    %vm4075 = vcmp.lt.s32.totalorder %v3760, 0
    %v4076 = vand.u32 %v3760, 2139095040
    %v4077 = vshrl.u32 %v4076, 23
    %v4078 = vsub.s32 %v4077, 127
    %v4079 = vand.u32 2147483647, %v3760
    %v4080 = vand.u32 %v4079, 8388607
    %v4081 = vor.u32 %v4080, 8388608
    %v4082 = vsub.s32 0, %v4081
    %v4083 = vadd.s32 %v4078, 1
    %vm4084 = vcmp.gt.s32.totalorder %v4083, 0
    %v4085 = vsel %vm4084, %v4083, 0
    %v4086 = vshrl.u32 %v4085, 5
    %v4087 = vand.u32 %v4085, 31
    %v4088 = vsub.s32 32, %v4087
    %v4089 = vshrl.u32 683565275, %v4088
    %v4090 = vshll.u32 683565275, %v4087
    %v4091 = vshrl.u32 2475754826, %v4088
    %v4092 = vor.u32 %v4090, %v4091
    %v4093 = vshll.u32 2475754826, %v4087
    %v4094 = vshrl.u32 2131351028, %v4088
    %v4095 = vor.u32 %v4093, %v4094
    %v4096 = vshll.u32 2131351028, %v4087
    %v4097 = vshrl.u32 2102212464, %v4088
    %v4098 = vor.u32 %v4096, %v4097
    %v4099 = vshll.u32 2102212464, %v4087
    %v4100 = vshrl.u32 920167782, %v4088
    %v4101 = vor.u32 %v4099, %v4100
    %v4102 = vshll.u32 920167782, %v4087
    %v4103 = vshrl.u32 1326507024, %v4088
    %v4104 = vor.u32 %v4102, %v4103
    %vm4105 = vcmp.lt.s32.totalorder %v4086, 1
    %vm4106 = vcmp.lt.s32.totalorder %v4086, 2
    %vm4107 = vcmp.lt.s32.totalorder %v4086, 3
    %vm4108 = vcmp.lt.s32.totalorder %v4086, 4
    %v4109 = vsel %vm4105, %v4089, %v4092
    %v4110 = vsel %vm4108, %v4098, 2102212464
    %v4111 = vsel %vm4107, %v4095, %v4110
    %v4112 = vsel %vm4106, %v4109, %v4111
    %v4113 = vsel %vm4105, %v4092, %v4095
    %v4114 = vsel %vm4108, %v4101, 920167782
    %v4115 = vsel %vm4107, %v4098, %v4114
    %v4116 = vsel %vm4106, %v4113, %v4115
    %v4117 = vsel %vm4105, %v4095, %v4098
    %v4118 = vsel %vm4108, %v4104, 1326507024
    %v4119 = vsel %vm4107, %v4101, %v4118
    %v4120 = vsel %vm4106, %v4117, %v4119
    %v4121 = vshll.u32 %v4081, 8
    %v4122 = vmul.u32.u64.compose %v4121, %v4120
    %v4123 = vextract.low.u32 %v4122
    %v4124 = vextract.high.u32 %v4122
    %v4125 = vmul.u32.u64.compose %v4121, %v4116
    %v4126 = vextract.low.u32 %v4125
    %v4127 = vextract.high.u32 %v4125
    %v4128 = vmul.u32 %v4121, %v4112
    %v4129 = vadd.s32 %v4124, %v4126
    %vm4130 = vc.u32 %v4124, %v4126
    %v4131 = vadd.s32 %v4127, 1
    %v4132 = vsel %vm4130, %v4131, %v4127
    %v4133 = vadd.s32 %v4128, %v4132
    %v4134 = vadd.s32 %v4133, 536870912
    %v4135 = vshrl.u32 %v4134, 30
    %v4136 = vshll.u32 %v4135, 30
    %v4137 = vsub.s32 %v4133, %v4136
    %vm4138 = vcmp.lt.s32.totalorder %v4137, 0
    %v4139 = vsub.s32 0, %v4137
    %v4140 = vsel %vm4138, %v4139, %v4137
    %v4141 = vclz %v4140
    %v4142 = vsub.s32 %v4141, 2
    %vm4143 = vcmp.gt.s32.totalorder 0, %v4142
    %v4144 = vsel %vm4143, 0, %v4142
    %v4145 = vsub.s32 32, %v4144
    %v4146 = vshll.u32 %v4137, %v4144
    %v4147 = vshrl.u32 %v4129, %v4145
    %v4148 = vor.u32 %v4146, %v4147
    %v4149 = vsub.s32 4294967266, %v4144
    %v4150 = vadd.s32 %v4149, 127
    %v4151 = vshll.u32 %v4150, 23
    %v4152 = vor.u32 4788187, %v4151
    %v4153 = vand.u32 2147483647, %v4152
    %v4155 = vcvt.s32.f32 %v4148
    %v4156 = vmul.f32 %v4155, %v4153
    %v4157 = vxor.u32 %v4156, 2147483648
    %v4158 = vsel %vm4075, %v4157, %v4156
    %v4159 = vsub.s32 4, %v4135
    %v4160 = vsel %vm4075, %v4159, %v4135
    %v4161 = vsel %vm4074, %v3760, %v4158
    %v4162 = vsel %vm4074, 0, %v4160
    %v4163 = vcosq.f32.pop %v4161
    %v4164 = vsinq.f32.pop %v4161
    %vm4165 = vweird.f32 %v3760
    %v4166 = vadd.s32 %v4162, 3
    %v4167 = vand.u32 %v4166, 3
    %vm4168 = vcmp.lt.s32.totalorder %v4167, 2
    %vm4169 = vcmp.eq.s32.totalorder %v4167, 0
    %v4170 = vxor.u32 %v4164, 2147483648
    %v4171 = vsel %vm4169, %v4163, %v4170
    %vm4172 = vcmp.eq.s32.totalorder %v4167, 2
    %v4173 = vxor.u32 %v4163, 2147483648
    %v4174 = vsel %vm4172, %v4173, %v4164
    %v4175 = vsel %vm4168, %v4171, %v4174
    %v4176 = vsel %vm4165, nan, %v4175
    %v4177 = vand.u32 2147483647, %v3757
    %vm4178 = vcmp.le.f32.partialorder %v4177, 0.7853982
    %vm4179 = vcmp.lt.s32.totalorder %v3757, 0
    %v4180 = vand.u32 %v3757, 2139095040
    %v4181 = vshrl.u32 %v4180, 23
    %v4182 = vsub.s32 %v4181, 127
    %v4183 = vand.u32 2147483647, %v3757
    %v4184 = vand.u32 %v4183, 8388607
    %v4185 = vor.u32 %v4184, 8388608
    %v4186 = vsub.s32 0, %v4185
    %v4187 = vadd.s32 %v4182, 1
    %vm4188 = vcmp.gt.s32.totalorder %v4187, 0
    %v4189 = vsel %vm4188, %v4187, 0
    %v4190 = vshrl.u32 %v4189, 5
    %v4191 = vand.u32 %v4189, 31
    %v4192 = vsub.s32 32, %v4191
    %v4193 = vshrl.u32 683565275, %v4192
    %v4194 = vshll.u32 683565275, %v4191
    %v4195 = vshrl.u32 2475754826, %v4192
    %v4196 = vor.u32 %v4194, %v4195
    %v4197 = vshll.u32 2475754826, %v4191
    %v4198 = vshrl.u32 2131351028, %v4192
    %v4199 = vor.u32 %v4197, %v4198
    %v4200 = vshll.u32 2131351028, %v4191
    %v4201 = vshrl.u32 2102212464, %v4192
    %v4202 = vor.u32 %v4200, %v4201
    %v4203 = vshll.u32 2102212464, %v4191
    %v4204 = vshrl.u32 920167782, %v4192
    %v4205 = vor.u32 %v4203, %v4204
    %v4206 = vshll.u32 920167782, %v4191
    %v4207 = vshrl.u32 1326507024, %v4192
    %v4208 = vor.u32 %v4206, %v4207
    %vm4209 = vcmp.lt.s32.totalorder %v4190, 1
    %vm4210 = vcmp.lt.s32.totalorder %v4190, 2
    %vm4211 = vcmp.lt.s32.totalorder %v4190, 3
    %vm4212 = vcmp.lt.s32.totalorder %v4190, 4
    %v4213 = vsel %vm4209, %v4193, %v4196
    %v4214 = vsel %vm4212, %v4202, 2102212464
    %v4215 = vsel %vm4211, %v4199, %v4214
    %v4216 = vsel %vm4210, %v4213, %v4215
    %v4217 = vsel %vm4209, %v4196, %v4199
    %v4218 = vsel %vm4212, %v4205, 920167782
    %v4219 = vsel %vm4211, %v4202, %v4218
    %v4220 = vsel %vm4210, %v4217, %v4219
    %v4221 = vsel %vm4209, %v4199, %v4202
    %v4222 = vsel %vm4212, %v4208, 1326507024
    %v4223 = vsel %vm4211, %v4205, %v4222
    %v4224 = vsel %vm4210, %v4221, %v4223
    %v4225 = vshll.u32 %v4185, 8
    %v4226 = vmul.u32.u64.compose %v4225, %v4224
    %v4227 = vextract.low.u32 %v4226
    %v4228 = vextract.high.u32 %v4226
    %v4229 = vmul.u32.u64.compose %v4225, %v4220
    %v4230 = vextract.low.u32 %v4229
    %v4231 = vextract.high.u32 %v4229
    %v4232 = vmul.u32 %v4225, %v4216
    %v4233 = vadd.s32 %v4228, %v4230
    %vm4234 = vc.u32 %v4228, %v4230
    %v4235 = vadd.s32 %v4231, 1
    %v4236 = vsel %vm4234, %v4235, %v4231
    %v4237 = vadd.s32 %v4232, %v4236
    %v4238 = vadd.s32 %v4237, 536870912
    %v4239 = vshrl.u32 %v4238, 30
    %v4240 = vshll.u32 %v4239, 30
    %v4241 = vsub.s32 %v4237, %v4240
    %vm4242 = vcmp.lt.s32.totalorder %v4241, 0
    %v4243 = vsub.s32 0, %v4241
    %v4244 = vsel %vm4242, %v4243, %v4241
    %v4245 = vclz %v4244
    %v4246 = vsub.s32 %v4245, 2
    %vm4247 = vcmp.gt.s32.totalorder 0, %v4246
    %v4248 = vsel %vm4247, 0, %v4246
    %v4249 = vsub.s32 32, %v4248
    %v4250 = vshll.u32 %v4241, %v4248
    %v4251 = vshrl.u32 %v4233, %v4249
    %v4252 = vor.u32 %v4250, %v4251
    %v4253 = vsub.s32 4294967266, %v4248
    %v4254 = vadd.s32 %v4253, 127
    %v4255 = vshll.u32 %v4254, 23
    %v4256 = vor.u32 4788187, %v4255
    %v4257 = vand.u32 2147483647, %v4256
    %v4259 = vcvt.s32.f32 %v4252
    %v4260 = vmul.f32 %v4259, %v4257
    %v4261 = vxor.u32 %v4260, 2147483648
    %v4262 = vsel %vm4179, %v4261, %v4260
    %v4263 = vsub.s32 4, %v4239
    %v4264 = vsel %vm4179, %v4263, %v4239
    %v4265 = vsel %vm4178, %v3757, %v4262
    %v4266 = vsel %vm4178, 0, %v4264
    %v4267 = vcosq.f32.pop %v4265
    %v4268 = vsinq.f32.pop %v4265
    %vm4269 = vweird.f32 %v3757
    %v4270 = vand.u32 %v4266, 3
    %vm4271 = vcmp.lt.s32.totalorder %v4270, 2
    %vm4272 = vcmp.eq.s32.totalorder %v4270, 0
    %v4273 = vxor.u32 %v4268, 2147483648
    %v4274 = vsel %vm4272, %v4267, %v4273
    %vm4275 = vcmp.eq.s32.totalorder %v4270, 2
    %v4276 = vxor.u32 %v4267, 2147483648
    %v4277 = vsel %vm4275, %v4276, %v4268
    %v4278 = vsel %vm4271, %v4274, %v4277
    %v4279 = vsel %vm4269, nan, %v4278
    %v4280 = vand.u32 2147483647, %v3758
    %vm4281 = vcmp.le.f32.partialorder %v4280, 0.7853982
    %vm4282 = vcmp.lt.s32.totalorder %v3758, 0
    %v4283 = vand.u32 %v3758, 2139095040
    %v4284 = vshrl.u32 %v4283, 23
    %v4285 = vsub.s32 %v4284, 127
    %v4286 = vand.u32 2147483647, %v3758
    %v4287 = vand.u32 %v4286, 8388607
    %v4288 = vor.u32 %v4287, 8388608
    %v4289 = vsub.s32 0, %v4288
    %v4290 = vadd.s32 %v4285, 1
    %vm4291 = vcmp.gt.s32.totalorder %v4290, 0
    %v4292 = vsel %vm4291, %v4290, 0
    %v4293 = vshrl.u32 %v4292, 5
    %v4294 = vand.u32 %v4292, 31
    %v4295 = vsub.s32 32, %v4294
    %v4296 = vshrl.u32 683565275, %v4295
    %v4297 = vshll.u32 683565275, %v4294
    %v4298 = vshrl.u32 2475754826, %v4295
    %v4299 = vor.u32 %v4297, %v4298
    %v4300 = vshll.u32 2475754826, %v4294
    %v4301 = vshrl.u32 2131351028, %v4295
    %v4302 = vor.u32 %v4300, %v4301
    %v4303 = vshll.u32 2131351028, %v4294
    %v4304 = vshrl.u32 2102212464, %v4295
    %v4305 = vor.u32 %v4303, %v4304
    %v4306 = vshll.u32 2102212464, %v4294
    %v4307 = vshrl.u32 920167782, %v4295
    %v4308 = vor.u32 %v4306, %v4307
    %v4309 = vshll.u32 920167782, %v4294
    %v4310 = vshrl.u32 1326507024, %v4295
    %v4311 = vor.u32 %v4309, %v4310
    %vm4312 = vcmp.lt.s32.totalorder %v4293, 1
    %vm4313 = vcmp.lt.s32.totalorder %v4293, 2
    %vm4314 = vcmp.lt.s32.totalorder %v4293, 3
    %vm4315 = vcmp.lt.s32.totalorder %v4293, 4
    %v4316 = vsel %vm4312, %v4296, %v4299
    %v4317 = vsel %vm4315, %v4305, 2102212464
    %v4318 = vsel %vm4314, %v4302, %v4317
    %v4319 = vsel %vm4313, %v4316, %v4318
    %v4320 = vsel %vm4312, %v4299, %v4302
    %v4321 = vsel %vm4315, %v4308, 920167782
    %v4322 = vsel %vm4314, %v4305, %v4321
    %v4323 = vsel %vm4313, %v4320, %v4322
    %v4324 = vsel %vm4312, %v4302, %v4305
    %v4325 = vsel %vm4315, %v4311, 1326507024
    %v4326 = vsel %vm4314, %v4308, %v4325
    %v4327 = vsel %vm4313, %v4324, %v4326
    %v4328 = vshll.u32 %v4288, 8
    %v4329 = vmul.u32.u64.compose %v4328, %v4327
    %v4330 = vextract.low.u32 %v4329
    %v4331 = vextract.high.u32 %v4329
    %v4332 = vmul.u32.u64.compose %v4328, %v4323
    %v4333 = vextract.low.u32 %v4332
    %v4334 = vextract.high.u32 %v4332
    %v4335 = vmul.u32 %v4328, %v4319
    %v4336 = vadd.s32 %v4331, %v4333
    %vm4337 = vc.u32 %v4331, %v4333
    %v4338 = vadd.s32 %v4334, 1
    %v4339 = vsel %vm4337, %v4338, %v4334
    %v4340 = vadd.s32 %v4335, %v4339
    %v4341 = vadd.s32 %v4340, 536870912
    %v4342 = vshrl.u32 %v4341, 30
    %v4343 = vshll.u32 %v4342, 30
    %v4344 = vsub.s32 %v4340, %v4343
    %vm4345 = vcmp.lt.s32.totalorder %v4344, 0
    %v4346 = vsub.s32 0, %v4344
    %v4347 = vsel %vm4345, %v4346, %v4344
    %v4348 = vclz %v4347
    %v4349 = vsub.s32 %v4348, 2
    %vm4350 = vcmp.gt.s32.totalorder 0, %v4349
    %v4351 = vsel %vm4350, 0, %v4349
    %v4352 = vsub.s32 32, %v4351
    %v4353 = vshll.u32 %v4344, %v4351
    %v4354 = vshrl.u32 %v4336, %v4352
    %v4355 = vor.u32 %v4353, %v4354
    %v4356 = vsub.s32 4294967266, %v4351
    %v4357 = vadd.s32 %v4356, 127
    %v4358 = vshll.u32 %v4357, 23
    %v4359 = vor.u32 4788187, %v4358
    %v4360 = vand.u32 2147483647, %v4359
    %v4362 = vcvt.s32.f32 %v4355
    %v4363 = vmul.f32 %v4362, %v4360
    %v4364 = vxor.u32 %v4363, 2147483648
    %v4365 = vsel %vm4282, %v4364, %v4363
    %v4366 = vsub.s32 4, %v4342
    %v4367 = vsel %vm4282, %v4366, %v4342
    %v4368 = vsel %vm4281, %v3758, %v4365
    %v4369 = vsel %vm4281, 0, %v4367
    %v4370 = vcosq.f32.pop %v4368
    %v4371 = vsinq.f32.pop %v4368
    %vm4372 = vweird.f32 %v3758
    %v4373 = vand.u32 %v4369, 3
    %vm4374 = vcmp.lt.s32.totalorder %v4373, 2
    %vm4375 = vcmp.eq.s32.totalorder %v4373, 0
    %v4376 = vxor.u32 %v4371, 2147483648
    %v4377 = vsel %vm4375, %v4370, %v4376
    %vm4378 = vcmp.eq.s32.totalorder %v4373, 2
    %v4379 = vxor.u32 %v4370, 2147483648
    %v4380 = vsel %vm4378, %v4379, %v4371
    %v4381 = vsel %vm4374, %v4377, %v4380
    %v4382 = vsel %vm4372, nan, %v4381
    %v4383 = vand.u32 2147483647, %v3759
    %vm4384 = vcmp.le.f32.partialorder %v4383, 0.7853982
    %vm4385 = vcmp.lt.s32.totalorder %v3759, 0
    %v4386 = vand.u32 %v3759, 2139095040
    %v4387 = vshrl.u32 %v4386, 23
    %v4388 = vsub.s32 %v4387, 127
    %v4389 = vand.u32 2147483647, %v3759
    %v4390 = vand.u32 %v4389, 8388607
    %v4391 = vor.u32 %v4390, 8388608
    %v4392 = vsub.s32 0, %v4391
    %v4393 = vadd.s32 %v4388, 1
    %vm4394 = vcmp.gt.s32.totalorder %v4393, 0
    %v4395 = vsel %vm4394, %v4393, 0
    %v4396 = vshrl.u32 %v4395, 5
    %v4397 = vand.u32 %v4395, 31
    %v4398 = vsub.s32 32, %v4397
    %v4399 = vshrl.u32 683565275, %v4398
    %v4400 = vshll.u32 683565275, %v4397
    %v4401 = vshrl.u32 2475754826, %v4398
    %v4402 = vor.u32 %v4400, %v4401
    %v4403 = vshll.u32 2475754826, %v4397
    %v4404 = vshrl.u32 2131351028, %v4398
    %v4405 = vor.u32 %v4403, %v4404
    %v4406 = vshll.u32 2131351028, %v4397
    %v4407 = vshrl.u32 2102212464, %v4398
    %v4408 = vor.u32 %v4406, %v4407
    %v4409 = vshll.u32 2102212464, %v4397
    %v4410 = vshrl.u32 920167782, %v4398
    %v4411 = vor.u32 %v4409, %v4410
    %v4412 = vshll.u32 920167782, %v4397
    %v4413 = vshrl.u32 1326507024, %v4398
    %v4414 = vor.u32 %v4412, %v4413
    %vm4415 = vcmp.lt.s32.totalorder %v4396, 1
    %vm4416 = vcmp.lt.s32.totalorder %v4396, 2
    %vm4417 = vcmp.lt.s32.totalorder %v4396, 3
    %vm4418 = vcmp.lt.s32.totalorder %v4396, 4
    %v4419 = vsel %vm4415, %v4399, %v4402
    %v4420 = vsel %vm4418, %v4408, 2102212464
    %v4421 = vsel %vm4417, %v4405, %v4420
    %v4422 = vsel %vm4416, %v4419, %v4421
    %v4423 = vsel %vm4415, %v4402, %v4405
    %v4424 = vsel %vm4418, %v4411, 920167782
    %v4425 = vsel %vm4417, %v4408, %v4424
    %v4426 = vsel %vm4416, %v4423, %v4425
    %v4427 = vsel %vm4415, %v4405, %v4408
    %v4428 = vsel %vm4418, %v4414, 1326507024
    %v4429 = vsel %vm4417, %v4411, %v4428
    %v4430 = vsel %vm4416, %v4427, %v4429
    %v4431 = vshll.u32 %v4391, 8
    %v4432 = vmul.u32.u64.compose %v4431, %v4430
    %v4433 = vextract.low.u32 %v4432
    %v4434 = vextract.high.u32 %v4432
    %v4435 = vmul.u32.u64.compose %v4431, %v4426
    %v4436 = vextract.low.u32 %v4435
    %v4437 = vextract.high.u32 %v4435
    %v4438 = vmul.u32 %v4431, %v4422
    %v4439 = vadd.s32 %v4434, %v4436
    %vm4440 = vc.u32 %v4434, %v4436
    %v4441 = vadd.s32 %v4437, 1
    %v4442 = vsel %vm4440, %v4441, %v4437
    %v4443 = vadd.s32 %v4438, %v4442
    %v4444 = vadd.s32 %v4443, 536870912
    %v4445 = vshrl.u32 %v4444, 30
    %v4446 = vshll.u32 %v4445, 30
    %v4447 = vsub.s32 %v4443, %v4446
    %vm4448 = vcmp.lt.s32.totalorder %v4447, 0
    %v4449 = vsub.s32 0, %v4447
    %v4450 = vsel %vm4448, %v4449, %v4447
    %v4451 = vclz %v4450
    %v4452 = vsub.s32 %v4451, 2
    %vm4453 = vcmp.gt.s32.totalorder 0, %v4452
    %v4454 = vsel %vm4453, 0, %v4452
    %v4455 = vsub.s32 32, %v4454
    %v4456 = vshll.u32 %v4447, %v4454
    %v4457 = vshrl.u32 %v4439, %v4455
    %v4458 = vor.u32 %v4456, %v4457
    %v4459 = vsub.s32 4294967266, %v4454
    %v4460 = vadd.s32 %v4459, 127
    %v4461 = vshll.u32 %v4460, 23
    %v4462 = vor.u32 4788187, %v4461
    %v4463 = vand.u32 2147483647, %v4462
    %v4465 = vcvt.s32.f32 %v4458
    %v4466 = vmul.f32 %v4465, %v4463
    %v4467 = vxor.u32 %v4466, 2147483648
    %v4468 = vsel %vm4385, %v4467, %v4466
    %v4469 = vsub.s32 4, %v4445
    %v4470 = vsel %vm4385, %v4469, %v4445
    %v4471 = vsel %vm4384, %v3759, %v4468
    %v4472 = vsel %vm4384, 0, %v4470
    %v4473 = vcosq.f32.pop %v4471
    %v4474 = vsinq.f32.pop %v4471
    %vm4475 = vweird.f32 %v3759
    %v4476 = vand.u32 %v4472, 3
    %vm4477 = vcmp.lt.s32.totalorder %v4476, 2
    %vm4478 = vcmp.eq.s32.totalorder %v4476, 0
    %v4479 = vxor.u32 %v4474, 2147483648
    %v4480 = vsel %vm4478, %v4473, %v4479
    %vm4481 = vcmp.eq.s32.totalorder %v4476, 2
    %v4482 = vxor.u32 %v4473, 2147483648
    %v4483 = vsel %vm4481, %v4482, %v4474
    %v4484 = vsel %vm4477, %v4480, %v4483
    %v4485 = vsel %vm4475, nan, %v4484
    %v4486 = vand.u32 2147483647, %v3760
    %vm4487 = vcmp.le.f32.partialorder %v4486, 0.7853982
    %vm4488 = vcmp.lt.s32.totalorder %v3760, 0
    %v4489 = vand.u32 %v3760, 2139095040
    %v4490 = vshrl.u32 %v4489, 23
    %v4491 = vsub.s32 %v4490, 127
    %v4492 = vand.u32 2147483647, %v3760
    %v4493 = vand.u32 %v4492, 8388607
    %v4494 = vor.u32 %v4493, 8388608
    %v4495 = vsub.s32 0, %v4494
    %v4496 = vadd.s32 %v4491, 1
    %vm4497 = vcmp.gt.s32.totalorder %v4496, 0
    %v4498 = vsel %vm4497, %v4496, 0
    %v4499 = vshrl.u32 %v4498, 5
    %v4500 = vand.u32 %v4498, 31
    %v4501 = vsub.s32 32, %v4500
    %v4502 = vshrl.u32 683565275, %v4501
    %v4503 = vshll.u32 683565275, %v4500
    %v4504 = vshrl.u32 2475754826, %v4501
    %v4505 = vor.u32 %v4503, %v4504
    %v4506 = vshll.u32 2475754826, %v4500
    %v4507 = vshrl.u32 2131351028, %v4501
    %v4508 = vor.u32 %v4506, %v4507
    %v4509 = vshll.u32 2131351028, %v4500
    %v4510 = vshrl.u32 2102212464, %v4501
    %v4511 = vor.u32 %v4509, %v4510
    %v4512 = vshll.u32 2102212464, %v4500
    %v4513 = vshrl.u32 920167782, %v4501
    %v4514 = vor.u32 %v4512, %v4513
    %v4515 = vshll.u32 920167782, %v4500
    %v4516 = vshrl.u32 1326507024, %v4501
    %v4517 = vor.u32 %v4515, %v4516
    %vm4518 = vcmp.lt.s32.totalorder %v4499, 1
    %vm4519 = vcmp.lt.s32.totalorder %v4499, 2
    %vm4520 = vcmp.lt.s32.totalorder %v4499, 3
    %vm4521 = vcmp.lt.s32.totalorder %v4499, 4
    %v4522 = vsel %vm4518, %v4502, %v4505
    %v4523 = vsel %vm4521, %v4511, 2102212464
    %v4524 = vsel %vm4520, %v4508, %v4523
    %v4525 = vsel %vm4519, %v4522, %v4524
    %v4526 = vsel %vm4518, %v4505, %v4508
    %v4527 = vsel %vm4521, %v4514, 920167782
    %v4528 = vsel %vm4520, %v4511, %v4527
    %v4529 = vsel %vm4519, %v4526, %v4528
    %v4530 = vsel %vm4518, %v4508, %v4511
    %v4531 = vsel %vm4521, %v4517, 1326507024
    %v4532 = vsel %vm4520, %v4514, %v4531
    %v4533 = vsel %vm4519, %v4530, %v4532
    %v4534 = vshll.u32 %v4494, 8
    %v4535 = vmul.u32.u64.compose %v4534, %v4533
    %v4536 = vextract.low.u32 %v4535
    %v4537 = vextract.high.u32 %v4535
    %v4538 = vmul.u32.u64.compose %v4534, %v4529
    %v4539 = vextract.low.u32 %v4538
    %v4540 = vextract.high.u32 %v4538
    %v4541 = vmul.u32 %v4534, %v4525
    %v4542 = vadd.s32 %v4537, %v4539
    %vm4543 = vc.u32 %v4537, %v4539
    %v4544 = vadd.s32 %v4540, 1
    %v4545 = vsel %vm4543, %v4544, %v4540
    %v4546 = vadd.s32 %v4541, %v4545
    %v4547 = vadd.s32 %v4546, 536870912
    %v4548 = vshrl.u32 %v4547, 30
    %v4549 = vshll.u32 %v4548, 30
    %v4550 = vsub.s32 %v4546, %v4549
    %vm4551 = vcmp.lt.s32.totalorder %v4550, 0
    %v4552 = vsub.s32 0, %v4550
    %v4553 = vsel %vm4551, %v4552, %v4550
    %v4554 = vclz %v4553
    %v4555 = vsub.s32 %v4554, 2
    %vm4556 = vcmp.gt.s32.totalorder 0, %v4555
    %v4557 = vsel %vm4556, 0, %v4555
    %v4558 = vsub.s32 32, %v4557
    %v4559 = vshll.u32 %v4550, %v4557
    %v4560 = vshrl.u32 %v4542, %v4558
    %v4561 = vor.u32 %v4559, %v4560
    %v4562 = vsub.s32 4294967266, %v4557
    %v4563 = vadd.s32 %v4562, 127
    %v4564 = vshll.u32 %v4563, 23
    %v4565 = vor.u32 4788187, %v4564
    %v4566 = vand.u32 2147483647, %v4565
    %v4568 = vcvt.s32.f32 %v4561
    %v4569 = vmul.f32 %v4568, %v4566
    %v4570 = vxor.u32 %v4569, 2147483648
    %v4571 = vsel %vm4488, %v4570, %v4569
    %v4572 = vsub.s32 4, %v4548
    %v4573 = vsel %vm4488, %v4572, %v4548
    %v4574 = vsel %vm4487, %v3760, %v4571
    %v4575 = vsel %vm4487, 0, %v4573
    %v4576 = vcosq.f32.pop %v4574
    %v4577 = vsinq.f32.pop %v4574
    %vm4578 = vweird.f32 %v3760
    %v4579 = vand.u32 %v4575, 3
    %vm4580 = vcmp.lt.s32.totalorder %v4579, 2
    %vm4581 = vcmp.eq.s32.totalorder %v4579, 0
    %v4582 = vxor.u32 %v4577, 2147483648
    %v4583 = vsel %vm4581, %v4576, %v4582
    %vm4584 = vcmp.eq.s32.totalorder %v4579, 2
    %v4585 = vxor.u32 %v4576, 2147483648
    %v4586 = vsel %vm4584, %v4585, %v4577
    %v4587 = vsel %vm4580, %v4583, %v4586
    %v4588 = vsel %vm4578, nan, %v4587
    %v4589 = vmul.f32 %v3864, 2.0
    %v4590 = vmul.f32 %v3968, 2.0
    %v4591 = vmul.f32 %v4072, 2.0
    %v4592 = vmul.f32 %v4176, 2.0
    %v4593 = vmul.f32 %v4589, %v4279
    %v4594 = vmul.f32 %v4590, %v4382
    %v4595 = vmul.f32 %v4591, %v4485
    %v4596 = vmul.f32 %v4592, %v4588
    %v4597 = vmul.f32 %v4589, %v3864
    %v4598 = vmul.f32 %v4590, %v3968
    %v4599 = vmul.f32 %v4591, %v4072
    %v4600 = vmul.f32 %v4592, %v4176
    %v4601 = vsub.f32 1.0, %v4597
    %v4602 = vsub.f32 1.0, %v4598
    %v4603 = vsub.f32 1.0, %v4599
    %v4604 = vsub.f32 1.0, %v4600
    %v4605 = vsel %vm130, %v3733, 1.0
    %v4606 = vsel %vm130, %v3734, 1.0
    %v4607 = vsel %vm130, %v3735, 1.0
    %v4608 = vsel %vm130, %v3736, 1.0
    %v4609 = vsel %vm983, %v4605, 0.0
    %v4610 = vsel %vm983, %v4606, 0.0
    %v4611 = vsel %vm983, %v4607, 0.0
    %v4612 = vsel %vm983, %v4608, 0.0
    %v4613 = vld [vmem:[%s3] sm:$0xff]
    %v4614 = vld [vmem:[%s3 + $0x8] sm:$0xff]
    %v4615 = vld [vmem:[%s3 + $0x10] sm:$0xff]
    %v4616 = vld [vmem:[%s3 + $0x18] sm:$0xff]
    %v4618 = vsel %vm992, %v4613, 0
    %v4621 = vsel %vm992, %v4614, 0
    %v4624 = vsel %vm992, %v4615, 0
    %v4627 = vsel %vm992, %v4616, 0
    %4629 = vmatprep.subr.mxu0 0.0
    %4630 = vmatpush1.msra.mxu0 0.0
    %4631 = vmatprep.subr.mxu0 0.0
    %4632 = vmatpush1.msra.mxu0 0.0
    %4633 = vmatprep.subr.mxu0 0.0
    %4634 = vmatpush1.msra.mxu0 0.0
    %4635 = vmatprep.subr.mxu0 0.0
    %4636 = vmatpush1.msra.mxu0 0.0
    %4637 = vmatprep.subr.mxu0 0.0
    %4638 = vmatpush1.msra.mxu0 0.0
    %4639 = vmatprep.subr.mxu0 0.0
    %4640 = vmatpush1.msra.mxu0 0.0
    %4641 = vmatprep.subr.mxu0 0.0
    %4642 = vmatpush1.msra.mxu0 0.0
    %4643 = vmatprep.subr.mxu0 0.0
    %4644 = vmatpush1.msra.mxu0 0.0
    %4645 = vmatprep.subr.mxu0 0.0
    %4646 = vmatpush1.msra.mxu0 0.0
    %4647 = vmatprep.subr.mxu0 0.0
    %4648 = vmatpush1.msra.mxu0 0.0
    %4649 = vmatprep.subr.mxu0 0.0
    %4650 = vmatpush1.msra.mxu0 0.0
    %4651 = vmatprep.subr.mxu0 %v4602
    %4652 = vmatpush1.msra.mxu0 %v4601
    %4653 = vmatprep.subr.mxu0 %v4382
    %4654 = vmatpush1.msra.mxu0 %v4279
    %4655 = vmatprep.subr.mxu0 %v4594
    %4656 = vmatpush1.msra.mxu0 %v4593
    %4657 = vmatprep.subr.mxu0 %v3968
    %4658 = vmatpush1.msra.mxu0 %v3864
    %4659 = vmatprep.subr.mxu0 %v4610
    %4660 = vmatpush1.msra.mxu0 %v4609
    %4661 = vmatprep.subr.mxu0 0.0
    %4662 = vmatpush2.msra.mxu0 0.0
    %4663 = vmatprep.subr.mxu0 0.0
    %4664 = vmatpush2.msra.mxu0 0.0
    %4665 = vmatprep.subr.mxu0 0.0
    %4666 = vmatpush2.msra.mxu0 0.0
    %4667 = vmatprep.subr.mxu0 0.0
    %4668 = vmatpush2.msra.mxu0 0.0
    %4669 = vmatprep.subr.mxu0 0.0
    %4670 = vmatpush2.msra.mxu0 0.0
    %4671 = vmatprep.subr.mxu0 0.0
    %4672 = vmatpush2.msra.mxu0 0.0
    %4673 = vmatprep.subr.mxu0 0.0
    %4674 = vmatpush2.msra.mxu0 0.0
    %4675 = vmatprep.subr.mxu0 0.0
    %4676 = vmatpush2.msra.mxu0 0.0
    %4677 = vmatprep.subr.mxu0 0.0
    %4678 = vmatpush2.msra.mxu0 0.0
    %4679 = vmatprep.subr.mxu0 0.0
    %4680 = vmatpush2.msra.mxu0 0.0
    %4681 = vmatprep.subr.mxu0 0.0
    %4682 = vmatpush2.msra.mxu0 0.0
    %4683 = vmatprep.subr.mxu0 0.0
    %4684 = vmatpush2.msra.mxu0 0.0
    %4685 = vmatprep.subr.mxu0 0.0
    %4686 = vmatpush2.msra.mxu0 0.0
    %4687 = vmatprep.subr.mxu0 0.0
    %4688 = vmatpush2.msra.mxu0 0.0
    %4689 = vmatprep.subr.mxu0 0.0
    %4690 = vmatpush2.msra.mxu0 0.0
    %4691 = vmatprep.subr.mxu0 0.0
    %4692 = vmatpush2.msra.mxu0 0.0
    %4693 = vmatprep.mubr.f32.mxu0 0.0
    %4694 = vmatmul.mubr.f32.gmra.mxu0 %v4618
    %v4695 = vpop.f32.mrf.mxu0
    %v4696 = vadd.f32 0.0, %v4695
    %v4697 = vpop.f32.mrf.mxu0
    %v4698 = vadd.f32 0.0, %v4697
    %4699 = vmatprep.mubr.f32.mxu0 0.0
    %4700 = vmatmul.mubr.f32.gmra.mxu0 %v4621
    %v4701 = vpop.f32.mrf.mxu0
    %v4702 = vadd.f32 0.0, %v4701
    %v4703 = vpop.f32.mrf.mxu0
    %v4704 = vadd.f32 0.0, %v4703
    %4705 = vmatprep.mubr.f32.mxu0 0.0
    %4706 = vmatmul.mubr.f32.gmra.mxu0 %v4624
    %v4707 = vpop.f32.mrf.mxu0
    %v4708 = vadd.f32 0.0, %v4707
    %v4709 = vpop.f32.mrf.mxu0
    %v4710 = vadd.f32 0.0, %v4709
    %4711 = vmatprep.mubr.f32.mxu0 0.0
    %4712 = vmatmul.mubr.f32.gmra.mxu0 %v4627
    %v4713 = vpop.f32.mrf.mxu0
    %v4714 = vadd.f32 0.0, %v4713
    %v4715 = vpop.f32.mrf.mxu0
    %v4716 = vadd.f32 0.0, %v4715
    %4717 = vdwg.mxu0
    %4718 = vmatprep.subr.mxu0 0.0
    %4719 = vmatpush1.msra.mxu0 0.0
    %4720 = vmatprep.subr.mxu0 0.0
    %4721 = vmatpush1.msra.mxu0 0.0
    %4722 = vmatprep.subr.mxu0 0.0
    %4723 = vmatpush1.msra.mxu0 0.0
    %4724 = vmatprep.subr.mxu0 0.0
    %4725 = vmatpush1.msra.mxu0 0.0
    %4726 = vmatprep.subr.mxu0 0.0
    %4727 = vmatpush1.msra.mxu0 0.0
    %4728 = vmatprep.subr.mxu0 0.0
    %4729 = vmatpush1.msra.mxu0 0.0
    %4730 = vmatprep.subr.mxu0 0.0
    %4731 = vmatpush1.msra.mxu0 0.0
    %4732 = vmatprep.subr.mxu0 0.0
    %4733 = vmatpush1.msra.mxu0 0.0
    %4734 = vmatprep.subr.mxu0 0.0
    %4735 = vmatpush1.msra.mxu0 0.0
    %4736 = vmatprep.subr.mxu0 0.0
    %4737 = vmatpush1.msra.mxu0 0.0
    %4738 = vmatprep.subr.mxu0 0.0
    %4739 = vmatpush1.msra.mxu0 0.0
    %4740 = vmatprep.subr.mxu0 %v4604
    %4741 = vmatpush1.msra.mxu0 %v4603
    %4742 = vmatprep.subr.mxu0 %v4588
    %4743 = vmatpush1.msra.mxu0 %v4485
    %4744 = vmatprep.subr.mxu0 %v4596
    %4745 = vmatpush1.msra.mxu0 %v4595
    %4746 = vmatprep.subr.mxu0 %v4176
    %4747 = vmatpush1.msra.mxu0 %v4072
    %4748 = vmatprep.subr.mxu0 %v4612
    %4749 = vmatpush1.msra.mxu0 %v4611
    %4750 = vmatprep.subr.mxu0 0.0
    %4751 = vmatpush2.msra.mxu0 0.0
    %4752 = vmatprep.subr.mxu0 0.0
    %4753 = vmatpush2.msra.mxu0 0.0
    %4754 = vmatprep.subr.mxu0 0.0
    %4755 = vmatpush2.msra.mxu0 0.0
    %4756 = vmatprep.subr.mxu0 0.0
    %4757 = vmatpush2.msra.mxu0 0.0
    %4758 = vmatprep.subr.mxu0 0.0
    %4759 = vmatpush2.msra.mxu0 0.0
    %4760 = vmatprep.subr.mxu0 0.0
    %4761 = vmatpush2.msra.mxu0 0.0
    %4762 = vmatprep.subr.mxu0 0.0
    %4763 = vmatpush2.msra.mxu0 0.0
    %4764 = vmatprep.subr.mxu0 0.0
    %4765 = vmatpush2.msra.mxu0 0.0
    %4766 = vmatprep.subr.mxu0 0.0
    %4767 = vmatpush2.msra.mxu0 0.0
    %4768 = vmatprep.subr.mxu0 0.0
    %4769 = vmatpush2.msra.mxu0 0.0
    %4770 = vmatprep.subr.mxu0 0.0
    %4771 = vmatpush2.msra.mxu0 0.0
    %4772 = vmatprep.subr.mxu0 0.0
    %4773 = vmatpush2.msra.mxu0 0.0
    %4774 = vmatprep.subr.mxu0 0.0
    %4775 = vmatpush2.msra.mxu0 0.0
    %4776 = vmatprep.subr.mxu0 0.0
    %4777 = vmatpush2.msra.mxu0 0.0
    %4778 = vmatprep.subr.mxu0 0.0
    %4779 = vmatpush2.msra.mxu0 0.0
    %4780 = vmatprep.subr.mxu0 0.0
    %4781 = vmatpush2.msra.mxu0 0.0
    %4782 = vmatprep.mubr.f32.mxu0 0.0
    %4783 = vmatmul.mubr.f32.gmra.mxu0 %v4618
    %v4784 = vpop.f32.mrf.mxu0
    %v4785 = vadd.f32 0.0, %v4784
    %v4786 = vpop.f32.mrf.mxu0
    %v4787 = vadd.f32 0.0, %v4786
    %4788 = vmatprep.mubr.f32.mxu0 0.0
    %4789 = vmatmul.mubr.f32.gmra.mxu0 %v4621
    %v4790 = vpop.f32.mrf.mxu0
    %v4791 = vadd.f32 0.0, %v4790
    %v4792 = vpop.f32.mrf.mxu0
    %v4793 = vadd.f32 0.0, %v4792
    %4794 = vmatprep.mubr.f32.mxu0 0.0
    %4795 = vmatmul.mubr.f32.gmra.mxu0 %v4624
    %v4796 = vpop.f32.mrf.mxu0
    %v4797 = vadd.f32 0.0, %v4796
    %v4798 = vpop.f32.mrf.mxu0
    %v4799 = vadd.f32 0.0, %v4798
    %4800 = vmatprep.mubr.f32.mxu0 0.0
    %4801 = vmatmul.mubr.f32.gmra.mxu0 %v4627
    %v4802 = vpop.f32.mrf.mxu0
    %v4803 = vadd.f32 0.0, %v4802
    %v4804 = vpop.f32.mrf.mxu0
    %v4805 = vadd.f32 0.0, %v4804
    %4806 = vdwg.mxu0
    %v4807 = vmax.f32 %v4696, 0.0
    %v4808 = vmax.f32 %v4698, 0.0
    %v4809 = vmax.f32 %v4785, 0.0
    %v4810 = vmax.f32 %v4787, 0.0
    %v4811 = vmax.f32 %v4702, 0.0
    %v4812 = vmax.f32 %v4704, 0.0
    %v4813 = vmax.f32 %v4791, 0.0
    %v4814 = vmax.f32 %v4793, 0.0
    %v4815 = vmax.f32 %v4708, 0.0
    %v4816 = vmax.f32 %v4710, 0.0
    %v4817 = vmax.f32 %v4797, 0.0
    %v4818 = vmax.f32 %v4799, 0.0
    %v4819 = vmax.f32 %v4714, 0.0
    %v4820 = vmax.f32 %v4716, 0.0
    %v4821 = vmax.f32 %v4803, 0.0
    %v4822 = vmax.f32 %v4805, 0.0
    %v4823 = vld [vmem:[%s4] sm:$0xff]
    %v4824 = vld [vmem:[%s4 + $0x8] sm:$0xff]
    %v4825 = vld [vmem:[%s4 + $0x10] sm:$0xff]
    %v4826 = vld [vmem:[%s4 + $0x18] sm:$0xff]
    %v4827 = vld [vmem:[%s6] sm:$0xff]
    %v4828 = vld [vmem:[%s6 + $0x8] sm:$0xff]
    %v4829 = vld [vmem:[%s6 + $0x10] sm:$0xff]
    %v4830 = vld [vmem:[%s6 + $0x18] sm:$0xff]
    %4832 = vset.pattern.permute.xlu0 0
    %4833 = vperm.xlu0 %4832, %v4827
    %v4834 = vpop.permute.xlu0 %4833
    %4837 = vset.pattern.permute.xlu0 0
    %4838 = vperm.xlu0 %4837, %v4828
    %v4839 = vpop.permute.xlu0 %4838
    %4842 = vset.pattern.permute.xlu0 0
    %4843 = vperm.xlu0 %4842, %v4829
    %v4844 = vpop.permute.xlu0 %4843
    %4847 = vset.pattern.permute.xlu0 0
    %4848 = vperm.xlu0 %4847, %v4830
    %v4849 = vpop.permute.xlu0 %4848
    %v4852 = vsel %vm1227, %v4823, 0
    %v4855 = vsel %vm1227, %v4824, 0
    %v4858 = vsel %vm1227, %v4825, 0
    %v4861 = vsel %vm1227, %v4826, 0
    %4863 = vmatprep.subr.mxu0 0.0
    %4864 = vmatpush1.msra.mxu0 0.0
    %4865 = vmatprep.subr.mxu0 0.0
    %4866 = vmatpush1.msra.mxu0 0.0
    %4867 = vmatprep.subr.mxu0 0.0
    %4868 = vmatpush1.msra.mxu0 0.0
    %4869 = vmatprep.subr.mxu0 0.0
    %4870 = vmatpush1.msra.mxu0 0.0
    %4871 = vmatprep.subr.mxu0 0.0
    %4872 = vmatpush1.msra.mxu0 0.0
    %4873 = vmatprep.subr.mxu0 0.0
    %4874 = vmatpush1.msra.mxu0 0.0
    %4875 = vmatprep.subr.mxu0 0.0
    %4876 = vmatpush1.msra.mxu0 0.0
    %4877 = vmatprep.subr.mxu0 0.0
    %4878 = vmatpush1.msra.mxu0 0.0
    %4879 = vmatprep.subr.mxu0 0.0
    %4880 = vmatpush1.msra.mxu0 0.0
    %4881 = vmatprep.subr.mxu0 0.0
    %4882 = vmatpush1.msra.mxu0 0.0
    %4883 = vmatprep.subr.mxu0 0.0
    %4884 = vmatpush1.msra.mxu0 0.0
    %4885 = vmatprep.subr.mxu0 0.0
    %4886 = vmatpush1.msra.mxu0 0.0
    %4887 = vmatprep.subr.mxu0 %v4820
    %4888 = vmatpush1.msra.mxu0 %v4819
    %4889 = vmatprep.subr.mxu0 %v4816
    %4890 = vmatpush1.msra.mxu0 %v4815
    %4891 = vmatprep.subr.mxu0 %v4812
    %4892 = vmatpush1.msra.mxu0 %v4811
    %4893 = vmatprep.subr.mxu0 %v4808
    %4894 = vmatpush1.msra.mxu0 %v4807
    %4895 = vmatprep.subr.mxu0 0.0
    %4896 = vmatpush2.msra.mxu0 0.0
    %4897 = vmatprep.subr.mxu0 0.0
    %4898 = vmatpush2.msra.mxu0 0.0
    %4899 = vmatprep.subr.mxu0 0.0
    %4900 = vmatpush2.msra.mxu0 0.0
    %4901 = vmatprep.subr.mxu0 0.0
    %4902 = vmatpush2.msra.mxu0 0.0
    %4903 = vmatprep.subr.mxu0 0.0
    %4904 = vmatpush2.msra.mxu0 0.0
    %4905 = vmatprep.subr.mxu0 0.0
    %4906 = vmatpush2.msra.mxu0 0.0
    %4907 = vmatprep.subr.mxu0 0.0
    %4908 = vmatpush2.msra.mxu0 0.0
    %4909 = vmatprep.subr.mxu0 0.0
    %4910 = vmatpush2.msra.mxu0 0.0
    %4911 = vmatprep.subr.mxu0 0.0
    %4912 = vmatpush2.msra.mxu0 0.0
    %4913 = vmatprep.subr.mxu0 0.0
    %4914 = vmatpush2.msra.mxu0 0.0
    %4915 = vmatprep.subr.mxu0 0.0
    %4916 = vmatpush2.msra.mxu0 0.0
    %4917 = vmatprep.subr.mxu0 0.0
    %4918 = vmatpush2.msra.mxu0 0.0
    %4919 = vmatprep.subr.mxu0 0.0
    %4920 = vmatpush2.msra.mxu0 0.0
    %4921 = vmatprep.subr.mxu0 0.0
    %4922 = vmatpush2.msra.mxu0 0.0
    %4923 = vmatprep.subr.mxu0 0.0
    %4924 = vmatpush2.msra.mxu0 0.0
    %4925 = vmatprep.subr.mxu0 0.0
    %4926 = vmatpush2.msra.mxu0 0.0
    %4927 = vmatprep.mubr.f32.mxu0 0.0
    %4928 = vmatmul.mubr.f32.gmra.mxu0 %v4852
    %v4929 = vpop.f32.mrf.mxu0
    %v4930 = vadd.f32 %v4834, %v4929
    %v4931 = vpop.f32.mrf.mxu0
    %v4932 = vadd.f32 %v4834, %v4931
    %4933 = vmatprep.mubr.f32.mxu0 0.0
    %4934 = vmatmul.mubr.f32.gmra.mxu0 %v4855
    %v4935 = vpop.f32.mrf.mxu0
    %v4936 = vadd.f32 %v4839, %v4935
    %v4937 = vpop.f32.mrf.mxu0
    %v4938 = vadd.f32 %v4839, %v4937
    %4939 = vmatprep.mubr.f32.mxu0 0.0
    %4940 = vmatmul.mubr.f32.gmra.mxu0 %v4858
    %v4941 = vpop.f32.mrf.mxu0
    %v4942 = vadd.f32 %v4844, %v4941
    %v4943 = vpop.f32.mrf.mxu0
    %v4944 = vadd.f32 %v4844, %v4943
    %4945 = vmatprep.mubr.f32.mxu0 0.0
    %4946 = vmatmul.mubr.f32.gmra.mxu0 %v4861
    %v4947 = vpop.f32.mrf.mxu0
    %v4948 = vadd.f32 %v4849, %v4947
    %v4949 = vpop.f32.mrf.mxu0
    %v4950 = vadd.f32 %v4849, %v4949
    %4951 = vdwg.mxu0
    %4952 = vmatprep.subr.mxu0 0.0
    %4953 = vmatpush1.msra.mxu0 0.0
    %4954 = vmatprep.subr.mxu0 0.0
    %4955 = vmatpush1.msra.mxu0 0.0
    %4956 = vmatprep.subr.mxu0 0.0
    %4957 = vmatpush1.msra.mxu0 0.0
    %4958 = vmatprep.subr.mxu0 0.0
    %4959 = vmatpush1.msra.mxu0 0.0
    %4960 = vmatprep.subr.mxu0 0.0
    %4961 = vmatpush1.msra.mxu0 0.0
    %4962 = vmatprep.subr.mxu0 0.0
    %4963 = vmatpush1.msra.mxu0 0.0
    %4964 = vmatprep.subr.mxu0 0.0
    %4965 = vmatpush1.msra.mxu0 0.0
    %4966 = vmatprep.subr.mxu0 0.0
    %4967 = vmatpush1.msra.mxu0 0.0
    %4968 = vmatprep.subr.mxu0 0.0
    %4969 = vmatpush1.msra.mxu0 0.0
    %4970 = vmatprep.subr.mxu0 0.0
    %4971 = vmatpush1.msra.mxu0 0.0
    %4972 = vmatprep.subr.mxu0 0.0
    %4973 = vmatpush1.msra.mxu0 0.0
    %4974 = vmatprep.subr.mxu0 0.0
    %4975 = vmatpush1.msra.mxu0 0.0
    %4976 = vmatprep.subr.mxu0 %v4822
    %4977 = vmatpush1.msra.mxu0 %v4821
    %4978 = vmatprep.subr.mxu0 %v4818
    %4979 = vmatpush1.msra.mxu0 %v4817
    %4980 = vmatprep.subr.mxu0 %v4814
    %4981 = vmatpush1.msra.mxu0 %v4813
    %4982 = vmatprep.subr.mxu0 %v4810
    %4983 = vmatpush1.msra.mxu0 %v4809
    %4984 = vmatprep.subr.mxu0 0.0
    %4985 = vmatpush2.msra.mxu0 0.0
    %4986 = vmatprep.subr.mxu0 0.0
    %4987 = vmatpush2.msra.mxu0 0.0
    %4988 = vmatprep.subr.mxu0 0.0
    %4989 = vmatpush2.msra.mxu0 0.0
    %4990 = vmatprep.subr.mxu0 0.0
    %4991 = vmatpush2.msra.mxu0 0.0
    %4992 = vmatprep.subr.mxu0 0.0
    %4993 = vmatpush2.msra.mxu0 0.0
    %4994 = vmatprep.subr.mxu0 0.0
    %4995 = vmatpush2.msra.mxu0 0.0
    %4996 = vmatprep.subr.mxu0 0.0
    %4997 = vmatpush2.msra.mxu0 0.0
    %4998 = vmatprep.subr.mxu0 0.0
    %4999 = vmatpush2.msra.mxu0 0.0
    %5000 = vmatprep.subr.mxu0 0.0
    %5001 = vmatpush2.msra.mxu0 0.0
    %5002 = vmatprep.subr.mxu0 0.0
    %5003 = vmatpush2.msra.mxu0 0.0
    %5004 = vmatprep.subr.mxu0 0.0
    %5005 = vmatpush2.msra.mxu0 0.0
    %5006 = vmatprep.subr.mxu0 0.0
    %5007 = vmatpush2.msra.mxu0 0.0
    %5008 = vmatprep.subr.mxu0 0.0
    %5009 = vmatpush2.msra.mxu0 0.0
    %5010 = vmatprep.subr.mxu0 0.0
    %5011 = vmatpush2.msra.mxu0 0.0
    %5012 = vmatprep.subr.mxu0 0.0
    %5013 = vmatpush2.msra.mxu0 0.0
    %5014 = vmatprep.subr.mxu0 0.0
    %5015 = vmatpush2.msra.mxu0 0.0
    %5016 = vmatprep.mubr.f32.mxu0 0.0
    %5017 = vmatmul.mubr.f32.gmra.mxu0 %v4852
    %v5018 = vpop.f32.mrf.mxu0
    %v5019 = vadd.f32 %v4834, %v5018
    %v5020 = vpop.f32.mrf.mxu0
    %v5021 = vadd.f32 %v4834, %v5020
    %5022 = vmatprep.mubr.f32.mxu0 0.0
    %5023 = vmatmul.mubr.f32.gmra.mxu0 %v4855
    %v5024 = vpop.f32.mrf.mxu0
    %v5025 = vadd.f32 %v4839, %v5024
    %v5026 = vpop.f32.mrf.mxu0
    %v5027 = vadd.f32 %v4839, %v5026
    %5028 = vmatprep.mubr.f32.mxu0 0.0
    %5029 = vmatmul.mubr.f32.gmra.mxu0 %v4858
    %v5030 = vpop.f32.mrf.mxu0
    %v5031 = vadd.f32 %v4844, %v5030
    %v5032 = vpop.f32.mrf.mxu0
    %v5033 = vadd.f32 %v4844, %v5032
    %5034 = vmatprep.mubr.f32.mxu0 0.0
    %5035 = vmatmul.mubr.f32.gmra.mxu0 %v4861
    %v5036 = vpop.f32.mrf.mxu0
    %v5037 = vadd.f32 %v4849, %v5036
    %v5038 = vpop.f32.mrf.mxu0
    %v5039 = vadd.f32 %v4849, %v5038
    %5040 = vdwg.mxu0
    %v5041 = vmax.f32 %v4930, 0.0
    %v5042 = vmax.f32 %v4932, 0.0
    %v5043 = vmax.f32 %v5019, 0.0
    %v5044 = vmax.f32 %v5021, 0.0
    %v5045 = vmax.f32 %v4936, 0.0
    %v5046 = vmax.f32 %v4938, 0.0
    %v5047 = vmax.f32 %v5025, 0.0
    %v5048 = vmax.f32 %v5027, 0.0
    %v5049 = vmax.f32 %v4942, 0.0
    %v5050 = vmax.f32 %v4944, 0.0
    %v5051 = vmax.f32 %v5031, 0.0
    %v5052 = vmax.f32 %v5033, 0.0
    %v5053 = vmax.f32 %v4948, 0.0
    %v5054 = vmax.f32 %v4950, 0.0
    %v5055 = vmax.f32 %v5037, 0.0
    %v5056 = vmax.f32 %v5039, 0.0
    %v5057 = vld [vmem:[%s4 + $0x20] sm:$0xff]
    %v5058 = vld [vmem:[%s4 + $0x28] sm:$0xff]
    %v5059 = vld [vmem:[%s4 + $0x30] sm:$0xff]
    %v5060 = vld [vmem:[%s4 + $0x38] sm:$0xff]
    %v5061 = vld [vmem:[%s3 + $0x20] sm:$0xff]
    %v5062 = vld [vmem:[%s3 + $0x28] sm:$0xff]
    %v5063 = vld [vmem:[%s3 + $0x30] sm:$0xff]
    %v5064 = vld [vmem:[%s3 + $0x38] sm:$0xff]
    %v5066 = vsel %vm992, %v5061, 0
    %v5069 = vsel %vm992, %v5062, 0
    %v5072 = vsel %vm992, %v5063, 0
    %v5075 = vsel %vm992, %v5064, 0
    %5077 = vmatprep.subr.mxu0 0.0
    %5078 = vmatpush1.msra.mxu0 0.0
    %5079 = vmatprep.subr.mxu0 0.0
    %5080 = vmatpush1.msra.mxu0 0.0
    %5081 = vmatprep.subr.mxu0 0.0
    %5082 = vmatpush1.msra.mxu0 0.0
    %5083 = vmatprep.subr.mxu0 0.0
    %5084 = vmatpush1.msra.mxu0 0.0
    %5085 = vmatprep.subr.mxu0 0.0
    %5086 = vmatpush1.msra.mxu0 0.0
    %5087 = vmatprep.subr.mxu0 0.0
    %5088 = vmatpush1.msra.mxu0 0.0
    %5089 = vmatprep.subr.mxu0 0.0
    %5090 = vmatpush1.msra.mxu0 0.0
    %5091 = vmatprep.subr.mxu0 0.0
    %5092 = vmatpush1.msra.mxu0 0.0
    %5093 = vmatprep.subr.mxu0 0.0
    %5094 = vmatpush1.msra.mxu0 0.0
    %5095 = vmatprep.subr.mxu0 0.0
    %5096 = vmatpush1.msra.mxu0 0.0
    %5097 = vmatprep.subr.mxu0 0.0
    %5098 = vmatpush1.msra.mxu0 0.0
    %5099 = vmatprep.subr.mxu0 %v4602
    %5100 = vmatpush1.msra.mxu0 %v4601
    %5101 = vmatprep.subr.mxu0 %v4382
    %5102 = vmatpush1.msra.mxu0 %v4279
    %5103 = vmatprep.subr.mxu0 %v4594
    %5104 = vmatpush1.msra.mxu0 %v4593
    %5105 = vmatprep.subr.mxu0 %v3968
    %5106 = vmatpush1.msra.mxu0 %v3864
    %5107 = vmatprep.subr.mxu0 %v4610
    %5108 = vmatpush1.msra.mxu0 %v4609
    %5109 = vmatprep.subr.mxu0 0.0
    %5110 = vmatpush2.msra.mxu0 0.0
    %5111 = vmatprep.subr.mxu0 0.0
    %5112 = vmatpush2.msra.mxu0 0.0
    %5113 = vmatprep.subr.mxu0 0.0
    %5114 = vmatpush2.msra.mxu0 0.0
    %5115 = vmatprep.subr.mxu0 0.0
    %5116 = vmatpush2.msra.mxu0 0.0
    %5117 = vmatprep.subr.mxu0 0.0
    %5118 = vmatpush2.msra.mxu0 0.0
    %5119 = vmatprep.subr.mxu0 0.0
    %5120 = vmatpush2.msra.mxu0 0.0
    %5121 = vmatprep.subr.mxu0 0.0
    %5122 = vmatpush2.msra.mxu0 0.0
    %5123 = vmatprep.subr.mxu0 0.0
    %5124 = vmatpush2.msra.mxu0 0.0
    %5125 = vmatprep.subr.mxu0 0.0
    %5126 = vmatpush2.msra.mxu0 0.0
    %5127 = vmatprep.subr.mxu0 0.0
    %5128 = vmatpush2.msra.mxu0 0.0
    %5129 = vmatprep.subr.mxu0 0.0
    %5130 = vmatpush2.msra.mxu0 0.0
    %5131 = vmatprep.subr.mxu0 0.0
    %5132 = vmatpush2.msra.mxu0 0.0
    %5133 = vmatprep.subr.mxu0 0.0
    %5134 = vmatpush2.msra.mxu0 0.0
    %5135 = vmatprep.subr.mxu0 0.0
    %5136 = vmatpush2.msra.mxu0 0.0
    %5137 = vmatprep.subr.mxu0 0.0
    %5138 = vmatpush2.msra.mxu0 0.0
    %5139 = vmatprep.subr.mxu0 0.0
    %5140 = vmatpush2.msra.mxu0 0.0
    %5141 = vmatprep.mubr.f32.mxu0 0.0
    %5142 = vmatmul.mubr.f32.gmra.mxu0 %v5066
    %v5143 = vpop.f32.mrf.mxu0
    %v5144 = vadd.f32 0.0, %v5143
    %v5145 = vpop.f32.mrf.mxu0
    %v5146 = vadd.f32 0.0, %v5145
    %5147 = vmatprep.mubr.f32.mxu0 0.0
    %5148 = vmatmul.mubr.f32.gmra.mxu0 %v5069
    %v5149 = vpop.f32.mrf.mxu0
    %v5150 = vadd.f32 0.0, %v5149
    %v5151 = vpop.f32.mrf.mxu0
    %v5152 = vadd.f32 0.0, %v5151
    %5153 = vmatprep.mubr.f32.mxu0 0.0
    %5154 = vmatmul.mubr.f32.gmra.mxu0 %v5072
    %v5155 = vpop.f32.mrf.mxu0
    %v5156 = vadd.f32 0.0, %v5155
    %v5157 = vpop.f32.mrf.mxu0
    %v5158 = vadd.f32 0.0, %v5157
    %5159 = vmatprep.mubr.f32.mxu0 0.0
    %5160 = vmatmul.mubr.f32.gmra.mxu0 %v5075
    %v5161 = vpop.f32.mrf.mxu0
    %v5162 = vadd.f32 0.0, %v5161
    %v5163 = vpop.f32.mrf.mxu0
    %v5164 = vadd.f32 0.0, %v5163
    %5165 = vdwg.mxu0
    %5166 = vmatprep.subr.mxu0 0.0
    %5167 = vmatpush1.msra.mxu0 0.0
    %5168 = vmatprep.subr.mxu0 0.0
    %5169 = vmatpush1.msra.mxu0 0.0
    %5170 = vmatprep.subr.mxu0 0.0
    %5171 = vmatpush1.msra.mxu0 0.0
    %5172 = vmatprep.subr.mxu0 0.0
    %5173 = vmatpush1.msra.mxu0 0.0
    %5174 = vmatprep.subr.mxu0 0.0
    %5175 = vmatpush1.msra.mxu0 0.0
    %5176 = vmatprep.subr.mxu0 0.0
    %5177 = vmatpush1.msra.mxu0 0.0
    %5178 = vmatprep.subr.mxu0 0.0
    %5179 = vmatpush1.msra.mxu0 0.0
    %5180 = vmatprep.subr.mxu0 0.0
    %5181 = vmatpush1.msra.mxu0 0.0
    %5182 = vmatprep.subr.mxu0 0.0
    %5183 = vmatpush1.msra.mxu0 0.0
    %5184 = vmatprep.subr.mxu0 0.0
    %5185 = vmatpush1.msra.mxu0 0.0
    %5186 = vmatprep.subr.mxu0 0.0
    %5187 = vmatpush1.msra.mxu0 0.0
    %5188 = vmatprep.subr.mxu0 %v4604
    %5189 = vmatpush1.msra.mxu0 %v4603
    %5190 = vmatprep.subr.mxu0 %v4588
    %5191 = vmatpush1.msra.mxu0 %v4485
    %5192 = vmatprep.subr.mxu0 %v4596
    %5193 = vmatpush1.msra.mxu0 %v4595
    %5194 = vmatprep.subr.mxu0 %v4176
    %5195 = vmatpush1.msra.mxu0 %v4072
    %5196 = vmatprep.subr.mxu0 %v4612
    %5197 = vmatpush1.msra.mxu0 %v4611
    %5198 = vmatprep.subr.mxu0 0.0
    %5199 = vmatpush2.msra.mxu0 0.0
    %5200 = vmatprep.subr.mxu0 0.0
    %5201 = vmatpush2.msra.mxu0 0.0
    %5202 = vmatprep.subr.mxu0 0.0
    %5203 = vmatpush2.msra.mxu0 0.0
    %5204 = vmatprep.subr.mxu0 0.0
    %5205 = vmatpush2.msra.mxu0 0.0
    %5206 = vmatprep.subr.mxu0 0.0
    %5207 = vmatpush2.msra.mxu0 0.0
    %5208 = vmatprep.subr.mxu0 0.0
    %5209 = vmatpush2.msra.mxu0 0.0
    %5210 = vmatprep.subr.mxu0 0.0
    %5211 = vmatpush2.msra.mxu0 0.0
    %5212 = vmatprep.subr.mxu0 0.0
    %5213 = vmatpush2.msra.mxu0 0.0
    %5214 = vmatprep.subr.mxu0 0.0
    %5215 = vmatpush2.msra.mxu0 0.0
    %5216 = vmatprep.subr.mxu0 0.0
    %5217 = vmatpush2.msra.mxu0 0.0
    %5218 = vmatprep.subr.mxu0 0.0
    %5219 = vmatpush2.msra.mxu0 0.0
    %5220 = vmatprep.subr.mxu0 0.0
    %5221 = vmatpush2.msra.mxu0 0.0
    %5222 = vmatprep.subr.mxu0 0.0
    %5223 = vmatpush2.msra.mxu0 0.0
    %5224 = vmatprep.subr.mxu0 0.0
    %5225 = vmatpush2.msra.mxu0 0.0
    %5226 = vmatprep.subr.mxu0 0.0
    %5227 = vmatpush2.msra.mxu0 0.0
    %5228 = vmatprep.subr.mxu0 0.0
    %5229 = vmatpush2.msra.mxu0 0.0
    %5230 = vmatprep.mubr.f32.mxu0 0.0
    %5231 = vmatmul.mubr.f32.gmra.mxu0 %v5066
    %v5232 = vpop.f32.mrf.mxu0
    %v5233 = vadd.f32 0.0, %v5232
    %v5234 = vpop.f32.mrf.mxu0
    %v5235 = vadd.f32 0.0, %v5234
    %5236 = vmatprep.mubr.f32.mxu0 0.0
    %5237 = vmatmul.mubr.f32.gmra.mxu0 %v5069
    %v5238 = vpop.f32.mrf.mxu0
    %v5239 = vadd.f32 0.0, %v5238
    %v5240 = vpop.f32.mrf.mxu0
    %v5241 = vadd.f32 0.0, %v5240
    %5242 = vmatprep.mubr.f32.mxu0 0.0
    %5243 = vmatmul.mubr.f32.gmra.mxu0 %v5072
    %v5244 = vpop.f32.mrf.mxu0
    %v5245 = vadd.f32 0.0, %v5244
    %v5246 = vpop.f32.mrf.mxu0
    %v5247 = vadd.f32 0.0, %v5246
    %5248 = vmatprep.mubr.f32.mxu0 0.0
    %5249 = vmatmul.mubr.f32.gmra.mxu0 %v5075
    %v5250 = vpop.f32.mrf.mxu0
    %v5251 = vadd.f32 0.0, %v5250
    %v5252 = vpop.f32.mrf.mxu0
    %v5253 = vadd.f32 0.0, %v5252
    %5254 = vdwg.mxu0
    %v5256 = vsel %vm1227, %v5057, 0
    %v5259 = vsel %vm1227, %v5058, 0
    %v5262 = vsel %vm1227, %v5059, 0
    %v5265 = vsel %vm1227, %v5060, 0
    %5267 = vmatprep.subr.mxu0 0.0
    %5268 = vmatpush1.msra.mxu0 0.0
    %5269 = vmatprep.subr.mxu0 0.0
    %5270 = vmatpush1.msra.mxu0 0.0
    %5271 = vmatprep.subr.mxu0 0.0
    %5272 = vmatpush1.msra.mxu0 0.0
    %5273 = vmatprep.subr.mxu0 0.0
    %5274 = vmatpush1.msra.mxu0 0.0
    %5275 = vmatprep.subr.mxu0 0.0
    %5276 = vmatpush1.msra.mxu0 0.0
    %5277 = vmatprep.subr.mxu0 0.0
    %5278 = vmatpush1.msra.mxu0 0.0
    %5279 = vmatprep.subr.mxu0 0.0
    %5280 = vmatpush1.msra.mxu0 0.0
    %5281 = vmatprep.subr.mxu0 0.0
    %5282 = vmatpush1.msra.mxu0 0.0
    %5283 = vmatprep.subr.mxu0 0.0
    %5284 = vmatpush1.msra.mxu0 0.0
    %5285 = vmatprep.subr.mxu0 0.0
    %5286 = vmatpush1.msra.mxu0 0.0
    %5287 = vmatprep.subr.mxu0 0.0
    %5288 = vmatpush1.msra.mxu0 0.0
    %5289 = vmatprep.subr.mxu0 0.0
    %5290 = vmatpush1.msra.mxu0 0.0
    %5291 = vmatprep.subr.mxu0 %v5054
    %5292 = vmatpush1.msra.mxu0 %v5053
    %5293 = vmatprep.subr.mxu0 %v5050
    %5294 = vmatpush1.msra.mxu0 %v5049
    %5295 = vmatprep.subr.mxu0 %v5046
    %5296 = vmatpush1.msra.mxu0 %v5045
    %5297 = vmatprep.subr.mxu0 %v5042
    %5298 = vmatpush1.msra.mxu0 %v5041
    %5299 = vmatprep.subr.mxu0 0.0
    %5300 = vmatpush2.msra.mxu0 0.0
    %5301 = vmatprep.subr.mxu0 0.0
    %5302 = vmatpush2.msra.mxu0 0.0
    %5303 = vmatprep.subr.mxu0 0.0
    %5304 = vmatpush2.msra.mxu0 0.0
    %5305 = vmatprep.subr.mxu0 0.0
    %5306 = vmatpush2.msra.mxu0 0.0
    %5307 = vmatprep.subr.mxu0 0.0
    %5308 = vmatpush2.msra.mxu0 0.0
    %5309 = vmatprep.subr.mxu0 0.0
    %5310 = vmatpush2.msra.mxu0 0.0
    %5311 = vmatprep.subr.mxu0 0.0
    %5312 = vmatpush2.msra.mxu0 0.0
    %5313 = vmatprep.subr.mxu0 0.0
    %5314 = vmatpush2.msra.mxu0 0.0
    %5315 = vmatprep.subr.mxu0 0.0
    %5316 = vmatpush2.msra.mxu0 0.0
    %5317 = vmatprep.subr.mxu0 0.0
    %5318 = vmatpush2.msra.mxu0 0.0
    %5319 = vmatprep.subr.mxu0 0.0
    %5320 = vmatpush2.msra.mxu0 0.0
    %5321 = vmatprep.subr.mxu0 0.0
    %5322 = vmatpush2.msra.mxu0 0.0
    %5323 = vmatprep.subr.mxu0 0.0
    %5324 = vmatpush2.msra.mxu0 0.0
    %5325 = vmatprep.subr.mxu0 0.0
    %5326 = vmatpush2.msra.mxu0 0.0
    %5327 = vmatprep.subr.mxu0 0.0
    %5328 = vmatpush2.msra.mxu0 0.0
    %5329 = vmatprep.subr.mxu0 0.0
    %5330 = vmatpush2.msra.mxu0 0.0
    %5331 = vmatprep.mubr.f32.mxu0 0.0
    %5332 = vmatmul.mubr.f32.gmra.mxu0 %v5256
    %v5333 = vpop.f32.mrf.mxu0
    %v5334 = vadd.f32 %v5144, %v5333
    %v5335 = vpop.f32.mrf.mxu0
    %v5336 = vadd.f32 %v5146, %v5335
    %5337 = vmatprep.mubr.f32.mxu0 0.0
    %5338 = vmatmul.mubr.f32.gmra.mxu0 %v5259
    %v5339 = vpop.f32.mrf.mxu0
    %v5340 = vadd.f32 %v5150, %v5339
    %v5341 = vpop.f32.mrf.mxu0
    %v5342 = vadd.f32 %v5152, %v5341
    %5343 = vmatprep.mubr.f32.mxu0 0.0
    %5344 = vmatmul.mubr.f32.gmra.mxu0 %v5262
    %v5345 = vpop.f32.mrf.mxu0
    %v5346 = vadd.f32 %v5156, %v5345
    %v5347 = vpop.f32.mrf.mxu0
    %v5348 = vadd.f32 %v5158, %v5347
    %5349 = vmatprep.mubr.f32.mxu0 0.0
    %5350 = vmatmul.mubr.f32.gmra.mxu0 %v5265
    %v5351 = vpop.f32.mrf.mxu0
    %v5352 = vadd.f32 %v5162, %v5351
    %v5353 = vpop.f32.mrf.mxu0
    %v5354 = vadd.f32 %v5164, %v5353
    %5355 = vdwg.mxu0
    %5356 = vmatprep.subr.mxu0 0.0
    %5357 = vmatpush1.msra.mxu0 0.0
    %5358 = vmatprep.subr.mxu0 0.0
    %5359 = vmatpush1.msra.mxu0 0.0
    %5360 = vmatprep.subr.mxu0 0.0
    %5361 = vmatpush1.msra.mxu0 0.0
    %5362 = vmatprep.subr.mxu0 0.0
    %5363 = vmatpush1.msra.mxu0 0.0
    %5364 = vmatprep.subr.mxu0 0.0
    %5365 = vmatpush1.msra.mxu0 0.0
    %5366 = vmatprep.subr.mxu0 0.0
    %5367 = vmatpush1.msra.mxu0 0.0
    %5368 = vmatprep.subr.mxu0 0.0
    %5369 = vmatpush1.msra.mxu0 0.0
    %5370 = vmatprep.subr.mxu0 0.0
    %5371 = vmatpush1.msra.mxu0 0.0
    %5372 = vmatprep.subr.mxu0 0.0
    %5373 = vmatpush1.msra.mxu0 0.0
    %5374 = vmatprep.subr.mxu0 0.0
    %5375 = vmatpush1.msra.mxu0 0.0
    %5376 = vmatprep.subr.mxu0 0.0
    %5377 = vmatpush1.msra.mxu0 0.0
    %5378 = vmatprep.subr.mxu0 0.0
    %5379 = vmatpush1.msra.mxu0 0.0
    %5380 = vmatprep.subr.mxu0 %v5056
    %5381 = vmatpush1.msra.mxu0 %v5055
    %5382 = vmatprep.subr.mxu0 %v5052
    %5383 = vmatpush1.msra.mxu0 %v5051
    %5384 = vmatprep.subr.mxu0 %v5048
    %5385 = vmatpush1.msra.mxu0 %v5047
    %5386 = vmatprep.subr.mxu0 %v5044
    %5387 = vmatpush1.msra.mxu0 %v5043
    %5388 = vmatprep.subr.mxu0 0.0
    %5389 = vmatpush2.msra.mxu0 0.0
    %5390 = vmatprep.subr.mxu0 0.0
    %5391 = vmatpush2.msra.mxu0 0.0
    %5392 = vmatprep.subr.mxu0 0.0
    %5393 = vmatpush2.msra.mxu0 0.0
    %5394 = vmatprep.subr.mxu0 0.0
    %5395 = vmatpush2.msra.mxu0 0.0
    %5396 = vmatprep.subr.mxu0 0.0
    %5397 = vmatpush2.msra.mxu0 0.0
    %5398 = vmatprep.subr.mxu0 0.0
    %5399 = vmatpush2.msra.mxu0 0.0
    %5400 = vmatprep.subr.mxu0 0.0
    %5401 = vmatpush2.msra.mxu0 0.0
    %5402 = vmatprep.subr.mxu0 0.0
    %5403 = vmatpush2.msra.mxu0 0.0
    %5404 = vmatprep.subr.mxu0 0.0
    %5405 = vmatpush2.msra.mxu0 0.0
    %5406 = vmatprep.subr.mxu0 0.0
    %5407 = vmatpush2.msra.mxu0 0.0
    %5408 = vmatprep.subr.mxu0 0.0
    %5409 = vmatpush2.msra.mxu0 0.0
    %5410 = vmatprep.subr.mxu0 0.0
    %5411 = vmatpush2.msra.mxu0 0.0
    %5412 = vmatprep.subr.mxu0 0.0
    %5413 = vmatpush2.msra.mxu0 0.0
    %5414 = vmatprep.subr.mxu0 0.0
    %5415 = vmatpush2.msra.mxu0 0.0
    %5416 = vmatprep.subr.mxu0 0.0
    %5417 = vmatpush2.msra.mxu0 0.0
    %5418 = vmatprep.subr.mxu0 0.0
    %5419 = vmatpush2.msra.mxu0 0.0
    %5420 = vmatprep.mubr.f32.mxu0 0.0
    %5421 = vmatmul.mubr.f32.gmra.mxu0 %v5256
    %v5422 = vpop.f32.mrf.mxu0
    %v5423 = vadd.f32 %v5233, %v5422
    %v5424 = vpop.f32.mrf.mxu0
    %v5425 = vadd.f32 %v5235, %v5424
    %5426 = vmatprep.mubr.f32.mxu0 0.0
    %5427 = vmatmul.mubr.f32.gmra.mxu0 %v5259
    %v5428 = vpop.f32.mrf.mxu0
    %v5429 = vadd.f32 %v5239, %v5428
    %v5430 = vpop.f32.mrf.mxu0
    %v5431 = vadd.f32 %v5241, %v5430
    %5432 = vmatprep.mubr.f32.mxu0 0.0
    %5433 = vmatmul.mubr.f32.gmra.mxu0 %v5262
    %v5434 = vpop.f32.mrf.mxu0
    %v5435 = vadd.f32 %v5245, %v5434
    %v5436 = vpop.f32.mrf.mxu0
    %v5437 = vadd.f32 %v5247, %v5436
    %5438 = vmatprep.mubr.f32.mxu0 0.0
    %5439 = vmatmul.mubr.f32.gmra.mxu0 %v5265
    %v5440 = vpop.f32.mrf.mxu0
    %v5441 = vadd.f32 %v5251, %v5440
    %v5442 = vpop.f32.mrf.mxu0
    %v5443 = vadd.f32 %v5253, %v5442
    %5444 = vdwg.mxu0
    %v5445 = vmax.f32 %v5334, 0.0
    %v5446 = vmax.f32 %v5336, 0.0
    %v5447 = vmax.f32 %v5423, 0.0
    %v5448 = vmax.f32 %v5425, 0.0
    %v5449 = vmax.f32 %v5340, 0.0
    %v5450 = vmax.f32 %v5342, 0.0
    %v5451 = vmax.f32 %v5429, 0.0
    %v5452 = vmax.f32 %v5431, 0.0
    %v5453 = vmax.f32 %v5346, 0.0
    %v5454 = vmax.f32 %v5348, 0.0
    %v5455 = vmax.f32 %v5435, 0.0
    %v5456 = vmax.f32 %v5437, 0.0
    %v5457 = vmax.f32 %v5352, 0.0
    %v5458 = vmax.f32 %v5354, 0.0
    %v5459 = vmax.f32 %v5441, 0.0
    %v5460 = vmax.f32 %v5443, 0.0
    %v5461 = vld [vmem:[%s4 + $0x40] sm:$0xff]
    %v5462 = vld [vmem:[%s4 + $0x48] sm:$0xff]
    %v5463 = vld [vmem:[%s4 + $0x50] sm:$0xff]
    %v5464 = vld [vmem:[%s4 + $0x58] sm:$0xff]
    %v5465 = vld [vmem:[%s4 + $0x60] sm:$0x1]
    %v5466 = vld [vmem:[%s6 + $0x20] sm:$0xff]
    %v5467 = vld [vmem:[%s6 + $0x28] sm:$0xff]
    %v5468 = vld [vmem:[%s6 + $0x30] sm:$0xff]
    %v5469 = vld [vmem:[%s6 + $0x38] sm:$0xff]
    %v5470 = vld [vmem:[%s6 + $0x40] sm:$0x1]
    %5472 = vset.pattern.permute.xlu0 0
    %5473 = vperm.xlu0 %5472, %v5466
    %v5474 = vpop.permute.xlu0 %5473
    %5477 = vset.pattern.permute.xlu0 0
    %5478 = vperm.xlu0 %5477, %v5467
    %v5479 = vpop.permute.xlu0 %5478
    %5482 = vset.pattern.permute.xlu0 0
    %5483 = vperm.xlu0 %5482, %v5468
    %v5484 = vpop.permute.xlu0 %5483
    %5487 = vset.pattern.permute.xlu0 0
    %5488 = vperm.xlu0 %5487, %v5469
    %v5489 = vpop.permute.xlu0 %5488
    %5492 = vset.pattern.permute.xlu0 0
    %5493 = vperm.xlu0 %5492, %v5470
    %v5494 = vpop.permute.xlu0 %5493
    %v5497 = vsel %vm1227, %v5461, 0
    %v5500 = vsel %vm1227, %v5462, 0
    %v5503 = vsel %vm1227, %v5463, 0
    %v5506 = vsel %vm1227, %v5464, 0
    %v5509 = vsel %vm1227, %v5465, 0
    %5511 = vmatprep.subr.mxu0 0.0
    %5512 = vmatpush1.msra.mxu0 0.0
    %5513 = vmatprep.subr.mxu0 0.0
    %5514 = vmatpush1.msra.mxu0 0.0
    %5515 = vmatprep.subr.mxu0 0.0
    %5516 = vmatpush1.msra.mxu0 0.0
    %5517 = vmatprep.subr.mxu0 0.0
    %5518 = vmatpush1.msra.mxu0 0.0
    %5519 = vmatprep.subr.mxu0 0.0
    %5520 = vmatpush1.msra.mxu0 0.0
    %5521 = vmatprep.subr.mxu0 0.0
    %5522 = vmatpush1.msra.mxu0 0.0
    %5523 = vmatprep.subr.mxu0 0.0
    %5524 = vmatpush1.msra.mxu0 0.0
    %5525 = vmatprep.subr.mxu0 0.0
    %5526 = vmatpush1.msra.mxu0 0.0
    %5527 = vmatprep.subr.mxu0 0.0
    %5528 = vmatpush1.msra.mxu0 0.0
    %5529 = vmatprep.subr.mxu0 0.0
    %5530 = vmatpush1.msra.mxu0 0.0
    %5531 = vmatprep.subr.mxu0 0.0
    %5532 = vmatpush1.msra.mxu0 0.0
    %5533 = vmatprep.subr.mxu0 0.0
    %5534 = vmatpush1.msra.mxu0 0.0
    %5535 = vmatprep.subr.mxu0 %v5458
    %5536 = vmatpush1.msra.mxu0 %v5457
    %5537 = vmatprep.subr.mxu0 %v5454
    %5538 = vmatpush1.msra.mxu0 %v5453
    %5539 = vmatprep.subr.mxu0 %v5450
    %5540 = vmatpush1.msra.mxu0 %v5449
    %5541 = vmatprep.subr.mxu0 %v5446
    %5542 = vmatpush1.msra.mxu0 %v5445
    %5543 = vmatprep.subr.mxu0 0.0
    %5544 = vmatpush2.msra.mxu0 0.0
    %5545 = vmatprep.subr.mxu0 0.0
    %5546 = vmatpush2.msra.mxu0 0.0
    %5547 = vmatprep.subr.mxu0 0.0
    %5548 = vmatpush2.msra.mxu0 0.0
    %5549 = vmatprep.subr.mxu0 0.0
    %5550 = vmatpush2.msra.mxu0 0.0
    %5551 = vmatprep.subr.mxu0 0.0
    %5552 = vmatpush2.msra.mxu0 0.0
    %5553 = vmatprep.subr.mxu0 0.0
    %5554 = vmatpush2.msra.mxu0 0.0
    %5555 = vmatprep.subr.mxu0 0.0
    %5556 = vmatpush2.msra.mxu0 0.0
    %5557 = vmatprep.subr.mxu0 0.0
    %5558 = vmatpush2.msra.mxu0 0.0
    %5559 = vmatprep.subr.mxu0 0.0
    %5560 = vmatpush2.msra.mxu0 0.0
    %5561 = vmatprep.subr.mxu0 0.0
    %5562 = vmatpush2.msra.mxu0 0.0
    %5563 = vmatprep.subr.mxu0 0.0
    %5564 = vmatpush2.msra.mxu0 0.0
    %5565 = vmatprep.subr.mxu0 0.0
    %5566 = vmatpush2.msra.mxu0 0.0
    %5567 = vmatprep.subr.mxu0 0.0
    %5568 = vmatpush2.msra.mxu0 0.0
    %5569 = vmatprep.subr.mxu0 0.0
    %5570 = vmatpush2.msra.mxu0 0.0
    %5571 = vmatprep.subr.mxu0 0.0
    %5572 = vmatpush2.msra.mxu0 0.0
    %5573 = vmatprep.subr.mxu0 0.0
    %5574 = vmatpush2.msra.mxu0 0.0
    %5575 = vmatprep.mubr.f32.mxu0 0.0
    %5576 = vmatmul.mubr.f32.gmra.mxu0 %v5497
    %v5577 = vpop.f32.mrf.mxu0
    %v5578 = vadd.f32 %v5474, %v5577
    %v5579 = vpop.f32.mrf.mxu0
    %v5580 = vadd.f32 %v5474, %v5579
    %5581 = vmatprep.mubr.f32.mxu0 0.0
    %5582 = vmatmul.mubr.f32.gmra.mxu0 %v5500
    %v5583 = vpop.f32.mrf.mxu0
    %v5584 = vadd.f32 %v5479, %v5583
    %v5585 = vpop.f32.mrf.mxu0
    %v5586 = vadd.f32 %v5479, %v5585
    %5587 = vmatprep.mubr.f32.mxu0 0.0
    %5588 = vmatmul.mubr.f32.gmra.mxu0 %v5503
    %v5589 = vpop.f32.mrf.mxu0
    %v5590 = vadd.f32 %v5484, %v5589
    %v5591 = vpop.f32.mrf.mxu0
    %v5592 = vadd.f32 %v5484, %v5591
    %5593 = vmatprep.mubr.f32.mxu0 0.0
    %5594 = vmatmul.mubr.f32.gmra.mxu0 %v5506
    %v5595 = vpop.f32.mrf.mxu0
    %v5596 = vadd.f32 %v5489, %v5595
    %v5597 = vpop.f32.mrf.mxu0
    %v5598 = vadd.f32 %v5489, %v5597
    %5599 = vmatprep.mubr.f32.mxu0 0.0
    %5600 = vmatmul.mubr.f32.gmra.mxu0 %v5509
    %v5601 = vpop.f32.mrf.mxu0
    %v5602 = vadd.f32 %v5494, %v5601
    %v5603 = vpop.f32.mrf.mxu0
    %v5604 = vadd.f32 %v5494, %v5603
    %5605 = vdwg.mxu0
    %5606 = vmatprep.subr.mxu0 0.0
    %5607 = vmatpush1.msra.mxu0 0.0
    %5608 = vmatprep.subr.mxu0 0.0
    %5609 = vmatpush1.msra.mxu0 0.0
    %5610 = vmatprep.subr.mxu0 0.0
    %5611 = vmatpush1.msra.mxu0 0.0
    %5612 = vmatprep.subr.mxu0 0.0
    %5613 = vmatpush1.msra.mxu0 0.0
    %5614 = vmatprep.subr.mxu0 0.0
    %5615 = vmatpush1.msra.mxu0 0.0
    %5616 = vmatprep.subr.mxu0 0.0
    %5617 = vmatpush1.msra.mxu0 0.0
    %5618 = vmatprep.subr.mxu0 0.0
    %5619 = vmatpush1.msra.mxu0 0.0
    %5620 = vmatprep.subr.mxu0 0.0
    %5621 = vmatpush1.msra.mxu0 0.0
    %5622 = vmatprep.subr.mxu0 0.0
    %5623 = vmatpush1.msra.mxu0 0.0
    %5624 = vmatprep.subr.mxu0 0.0
    %5625 = vmatpush1.msra.mxu0 0.0
    %5626 = vmatprep.subr.mxu0 0.0
    %5627 = vmatpush1.msra.mxu0 0.0
    %5628 = vmatprep.subr.mxu0 0.0
    %5629 = vmatpush1.msra.mxu0 0.0
    %5630 = vmatprep.subr.mxu0 %v5460
    %5631 = vmatpush1.msra.mxu0 %v5459
    %5632 = vmatprep.subr.mxu0 %v5456
    %5633 = vmatpush1.msra.mxu0 %v5455
    %5634 = vmatprep.subr.mxu0 %v5452
    %5635 = vmatpush1.msra.mxu0 %v5451
    %5636 = vmatprep.subr.mxu0 %v5448
    %5637 = vmatpush1.msra.mxu0 %v5447
    %5638 = vmatprep.subr.mxu0 0.0
    %5639 = vmatpush2.msra.mxu0 0.0
    %5640 = vmatprep.subr.mxu0 0.0
    %5641 = vmatpush2.msra.mxu0 0.0
    %5642 = vmatprep.subr.mxu0 0.0
    %5643 = vmatpush2.msra.mxu0 0.0
    %5644 = vmatprep.subr.mxu0 0.0
    %5645 = vmatpush2.msra.mxu0 0.0
    %5646 = vmatprep.subr.mxu0 0.0
    %5647 = vmatpush2.msra.mxu0 0.0
    %5648 = vmatprep.subr.mxu0 0.0
    %5649 = vmatpush2.msra.mxu0 0.0
    %5650 = vmatprep.subr.mxu0 0.0
    %5651 = vmatpush2.msra.mxu0 0.0
    %5652 = vmatprep.subr.mxu0 0.0
    %5653 = vmatpush2.msra.mxu0 0.0
    %5654 = vmatprep.subr.mxu0 0.0
    %5655 = vmatpush2.msra.mxu0 0.0
    %5656 = vmatprep.subr.mxu0 0.0
    %5657 = vmatpush2.msra.mxu0 0.0
    %5658 = vmatprep.subr.mxu0 0.0
    %5659 = vmatpush2.msra.mxu0 0.0
    %5660 = vmatprep.subr.mxu0 0.0
    %5661 = vmatpush2.msra.mxu0 0.0
    %5662 = vmatprep.subr.mxu0 0.0
    %5663 = vmatpush2.msra.mxu0 0.0
    %5664 = vmatprep.subr.mxu0 0.0
    %5665 = vmatpush2.msra.mxu0 0.0
    %5666 = vmatprep.subr.mxu0 0.0
    %5667 = vmatpush2.msra.mxu0 0.0
    %5668 = vmatprep.subr.mxu0 0.0
    %5669 = vmatpush2.msra.mxu0 0.0
    %5670 = vmatprep.mubr.f32.mxu0 0.0
    %5671 = vmatmul.mubr.f32.gmra.mxu0 %v5497
    %v5672 = vpop.f32.mrf.mxu0
    %v5673 = vadd.f32 %v5474, %v5672
    %v5674 = vpop.f32.mrf.mxu0
    %v5675 = vadd.f32 %v5474, %v5674
    %5676 = vmatprep.mubr.f32.mxu0 0.0
    %5677 = vmatmul.mubr.f32.gmra.mxu0 %v5500
    %v5678 = vpop.f32.mrf.mxu0
    %v5679 = vadd.f32 %v5479, %v5678
    %v5680 = vpop.f32.mrf.mxu0
    %v5681 = vadd.f32 %v5479, %v5680
    %5682 = vmatprep.mubr.f32.mxu0 0.0
    %5683 = vmatmul.mubr.f32.gmra.mxu0 %v5503
    %v5684 = vpop.f32.mrf.mxu0
    %v5685 = vadd.f32 %v5484, %v5684
    %v5686 = vpop.f32.mrf.mxu0
    %v5687 = vadd.f32 %v5484, %v5686
    %5688 = vmatprep.mubr.f32.mxu0 0.0
    %5689 = vmatmul.mubr.f32.gmra.mxu0 %v5506
    %v5690 = vpop.f32.mrf.mxu0
    %v5691 = vadd.f32 %v5489, %v5690
    %v5692 = vpop.f32.mrf.mxu0
    %v5693 = vadd.f32 %v5489, %v5692
    %5694 = vmatprep.mubr.f32.mxu0 0.0
    %5695 = vmatmul.mubr.f32.gmra.mxu0 %v5509
    %v5696 = vpop.f32.mrf.mxu0
    %v5697 = vadd.f32 %v5494, %v5696
    %v5698 = vpop.f32.mrf.mxu0
    %v5699 = vadd.f32 %v5494, %v5698
    %5700 = vdwg.mxu0
    %v5701 = vmax.f32 %v5578, 0.0
    %v5702 = vmax.f32 %v5580, 0.0
    %v5703 = vmax.f32 %v5673, 0.0
    %v5704 = vmax.f32 %v5675, 0.0
    %v5705 = vmax.f32 %v5584, 0.0
    %v5706 = vmax.f32 %v5586, 0.0
    %v5707 = vmax.f32 %v5679, 0.0
    %v5708 = vmax.f32 %v5681, 0.0
    %v5709 = vmax.f32 %v5590, 0.0
    %v5710 = vmax.f32 %v5592, 0.0
    %v5711 = vmax.f32 %v5685, 0.0
    %v5712 = vmax.f32 %v5687, 0.0
    %v5713 = vmax.f32 %v5596, 0.0
    %v5714 = vmax.f32 %v5598, 0.0
    %v5715 = vmax.f32 %v5691, 0.0
    %v5716 = vmax.f32 %v5693, 0.0
    %v5717 = vmax.f32 %v5602, 0.0
    %v5718 = vmax.f32 %v5604, 0.0
    %v5719 = vmax.f32 %v5697, 0.0
    %v5720 = vmax.f32 %v5699, 0.0
    %v5721 = vand.u32 2147483647, %v5602
    %v5722 = vand.u32 2147483647, %v5604
    %v5723 = vand.u32 2147483647, %v5697
    %v5724 = vand.u32 2147483647, %v5699
    %v5725 = vsub.f32 0.0, %v5721
    %v5726 = vsub.f32 0.0, %v5722
    %v5727 = vsub.f32 0.0, %v5723
    %v5728 = vsub.f32 0.0, %v5724
    %v5729 = vmul.f32 %v5725, 1.442695
    %v5730 = vpow.pop %v5729
    %v5731 = vmul.f32 %v5726, 1.442695
    %v5732 = vpow.pop %v5731
    %v5733 = vmul.f32 %v5727, 1.442695
    %v5734 = vpow.pop %v5733
    %v5735 = vmul.f32 %v5728, 1.442695
    %v5736 = vpow.pop %v5735
    %v5737 = vadd.f32 %v5730, 1.0
    %v5738 = vlog2.pop %v5737
    %v5739 = vmul.f32 %v5738, 0.6931472
    %v5740 = vmul.f32 -0.5, %v5730
    %v5741 = vadd.f32 %v5740, 1.0
    %v5742 = vmul.f32 %v5741, %v5730
    %v5743 = vand.u32 2147483647, %v5730
    %vm5744 = vcmp.lt.f32.partialorder %v5743, 0.0004427343
    %v5745 = vsel %vm5744, %v5742, %v5739
    %v5746 = vadd.f32 %v5732, 1.0
    %v5747 = vlog2.pop %v5746
    %v5748 = vmul.f32 %v5747, 0.6931472
    %v5749 = vmul.f32 -0.5, %v5732
    %v5750 = vadd.f32 %v5749, 1.0
    %v5751 = vmul.f32 %v5750, %v5732
    %v5752 = vand.u32 2147483647, %v5732
    %vm5753 = vcmp.lt.f32.partialorder %v5752, 0.0004427343
    %v5754 = vsel %vm5753, %v5751, %v5748
    %v5755 = vadd.f32 %v5734, 1.0
    %v5756 = vlog2.pop %v5755
    %v5757 = vmul.f32 %v5756, 0.6931472
    %v5758 = vmul.f32 -0.5, %v5734
    %v5759 = vadd.f32 %v5758, 1.0
    %v5760 = vmul.f32 %v5759, %v5734
    %v5761 = vand.u32 2147483647, %v5734
    %vm5762 = vcmp.lt.f32.partialorder %v5761, 0.0004427343
    %v5763 = vsel %vm5762, %v5760, %v5757
    %v5764 = vadd.f32 %v5736, 1.0
    %v5765 = vlog2.pop %v5764
    %v5766 = vmul.f32 %v5765, 0.6931472
    %v5767 = vmul.f32 -0.5, %v5736
    %v5768 = vadd.f32 %v5767, 1.0
    %v5769 = vmul.f32 %v5768, %v5736
    %v5770 = vand.u32 2147483647, %v5736
    %vm5771 = vcmp.lt.f32.partialorder %v5770, 0.0004427343
    %v5772 = vsel %vm5771, %v5769, %v5766
    %v5773 = vadd.f32 %v5717, %v5745
    %v5774 = vadd.f32 %v5718, %v5754
    %v5775 = vadd.f32 %v5719, %v5763
    %v5776 = vadd.f32 %v5720, %v5772
    %v5777 = vld [vmem:[%s1 + $0x10] sm:$0x77]
    %v5778 = vld [vmem:[%s1 + $0x18] sm:$0x77]
    %v5779 = vmul.f32 %v5777, 3.1415927
    %v5780 = vmul.f32 %v5778, 3.1415927
    %v5783 = vcombine.high %v5779, %v5779
    %v5784 = vcombine.high %v5780, %v5780
    %v5787 = vsel %vm105, %v5779, 0.0
    %v5788 = vsel %vm105, %v5783, 0.0
    %v5789 = vsel %vm105, %v5780, 0.0
    %v5790 = vsel %vm105, %v5784, 0.0
    %v5791 = vand.u32 2147483647, %v5787
    %vm5792 = vcmp.le.f32.partialorder %v5791, 0.7853982
    %vm5793 = vcmp.lt.s32.totalorder %v5787, 0
    %v5794 = vand.u32 %v5787, 2139095040
    %v5795 = vshrl.u32 %v5794, 23
    %v5796 = vsub.s32 %v5795, 127
    %v5797 = vand.u32 2147483647, %v5787
    %v5798 = vand.u32 %v5797, 8388607
    %v5799 = vor.u32 %v5798, 8388608
    %v5800 = vsub.s32 0, %v5799
    %v5801 = vadd.s32 %v5796, 1
    %vm5802 = vcmp.gt.s32.totalorder %v5801, 0
    %v5803 = vsel %vm5802, %v5801, 0
    %v5804 = vshrl.u32 %v5803, 5
    %v5805 = vand.u32 %v5803, 31
    %v5806 = vsub.s32 32, %v5805
    %v5807 = vshrl.u32 683565275, %v5806
    %v5808 = vshll.u32 683565275, %v5805
    %v5809 = vshrl.u32 2475754826, %v5806
    %v5810 = vor.u32 %v5808, %v5809
    %v5811 = vshll.u32 2475754826, %v5805
    %v5812 = vshrl.u32 2131351028, %v5806
    %v5813 = vor.u32 %v5811, %v5812
    %v5814 = vshll.u32 2131351028, %v5805
    %v5815 = vshrl.u32 2102212464, %v5806
    %v5816 = vor.u32 %v5814, %v5815
    %v5817 = vshll.u32 2102212464, %v5805
    %v5818 = vshrl.u32 920167782, %v5806
    %v5819 = vor.u32 %v5817, %v5818
    %v5820 = vshll.u32 920167782, %v5805
    %v5821 = vshrl.u32 1326507024, %v5806
    %v5822 = vor.u32 %v5820, %v5821
    %vm5823 = vcmp.lt.s32.totalorder %v5804, 1
    %vm5824 = vcmp.lt.s32.totalorder %v5804, 2
    %vm5825 = vcmp.lt.s32.totalorder %v5804, 3
    %vm5826 = vcmp.lt.s32.totalorder %v5804, 4
    %v5827 = vsel %vm5823, %v5807, %v5810
    %v5828 = vsel %vm5826, %v5816, 2102212464
    %v5829 = vsel %vm5825, %v5813, %v5828
    %v5830 = vsel %vm5824, %v5827, %v5829
    %v5831 = vsel %vm5823, %v5810, %v5813
    %v5832 = vsel %vm5826, %v5819, 920167782
    %v5833 = vsel %vm5825, %v5816, %v5832
    %v5834 = vsel %vm5824, %v5831, %v5833
    %v5835 = vsel %vm5823, %v5813, %v5816
    %v5836 = vsel %vm5826, %v5822, 1326507024
    %v5837 = vsel %vm5825, %v5819, %v5836
    %v5838 = vsel %vm5824, %v5835, %v5837
    %v5839 = vshll.u32 %v5799, 8
    %v5840 = vmul.u32.u64.compose %v5839, %v5838
    %v5841 = vextract.low.u32 %v5840
    %v5842 = vextract.high.u32 %v5840
    %v5843 = vmul.u32.u64.compose %v5839, %v5834
    %v5844 = vextract.low.u32 %v5843
    %v5845 = vextract.high.u32 %v5843
    %v5846 = vmul.u32 %v5839, %v5830
    %v5847 = vadd.s32 %v5842, %v5844
    %vm5848 = vc.u32 %v5842, %v5844
    %v5849 = vadd.s32 %v5845, 1
    %v5850 = vsel %vm5848, %v5849, %v5845
    %v5851 = vadd.s32 %v5846, %v5850
    %v5852 = vadd.s32 %v5851, 536870912
    %v5853 = vshrl.u32 %v5852, 30
    %v5854 = vshll.u32 %v5853, 30
    %v5855 = vsub.s32 %v5851, %v5854
    %vm5856 = vcmp.lt.s32.totalorder %v5855, 0
    %v5857 = vsub.s32 0, %v5855
    %v5858 = vsel %vm5856, %v5857, %v5855
    %v5859 = vclz %v5858
    %v5860 = vsub.s32 %v5859, 2
    %vm5861 = vcmp.gt.s32.totalorder 0, %v5860
    %v5862 = vsel %vm5861, 0, %v5860
    %v5863 = vsub.s32 32, %v5862
    %v5864 = vshll.u32 %v5855, %v5862
    %v5865 = vshrl.u32 %v5847, %v5863
    %v5866 = vor.u32 %v5864, %v5865
    %v5867 = vsub.s32 4294967266, %v5862
    %v5868 = vadd.s32 %v5867, 127
    %v5869 = vshll.u32 %v5868, 23
    %v5870 = vor.u32 4788187, %v5869
    %v5871 = vand.u32 2147483647, %v5870
    %v5873 = vcvt.s32.f32 %v5866
    %v5874 = vmul.f32 %v5873, %v5871
    %v5875 = vxor.u32 %v5874, 2147483648
    %v5876 = vsel %vm5793, %v5875, %v5874
    %v5877 = vsub.s32 4, %v5853
    %v5878 = vsel %vm5793, %v5877, %v5853
    %v5879 = vsel %vm5792, %v5787, %v5876
    %v5880 = vsel %vm5792, 0, %v5878
    %v5881 = vcosq.f32.pop %v5879
    %v5882 = vsinq.f32.pop %v5879
    %vm5883 = vweird.f32 %v5787
    %v5884 = vadd.s32 %v5880, 3
    %v5885 = vand.u32 %v5884, 3
    %vm5886 = vcmp.lt.s32.totalorder %v5885, 2
    %vm5887 = vcmp.eq.s32.totalorder %v5885, 0
    %v5888 = vxor.u32 %v5882, 2147483648
    %v5889 = vsel %vm5887, %v5881, %v5888
    %vm5890 = vcmp.eq.s32.totalorder %v5885, 2
    %v5891 = vxor.u32 %v5881, 2147483648
    %v5892 = vsel %vm5890, %v5891, %v5882
    %v5893 = vsel %vm5886, %v5889, %v5892
    %v5894 = vsel %vm5883, nan, %v5893
    %v5895 = vand.u32 2147483647, %v5788
    %vm5896 = vcmp.le.f32.partialorder %v5895, 0.7853982
    %vm5897 = vcmp.lt.s32.totalorder %v5788, 0
    %v5898 = vand.u32 %v5788, 2139095040
    %v5899 = vshrl.u32 %v5898, 23
    %v5900 = vsub.s32 %v5899, 127
    %v5901 = vand.u32 2147483647, %v5788
    %v5902 = vand.u32 %v5901, 8388607
    %v5903 = vor.u32 %v5902, 8388608
    %v5904 = vsub.s32 0, %v5903
    %v5905 = vadd.s32 %v5900, 1
    %vm5906 = vcmp.gt.s32.totalorder %v5905, 0
    %v5907 = vsel %vm5906, %v5905, 0
    %v5908 = vshrl.u32 %v5907, 5
    %v5909 = vand.u32 %v5907, 31
    %v5910 = vsub.s32 32, %v5909
    %v5911 = vshrl.u32 683565275, %v5910
    %v5912 = vshll.u32 683565275, %v5909
    %v5913 = vshrl.u32 2475754826, %v5910
    %v5914 = vor.u32 %v5912, %v5913
    %v5915 = vshll.u32 2475754826, %v5909
    %v5916 = vshrl.u32 2131351028, %v5910
    %v5917 = vor.u32 %v5915, %v5916
    %v5918 = vshll.u32 2131351028, %v5909
    %v5919 = vshrl.u32 2102212464, %v5910
    %v5920 = vor.u32 %v5918, %v5919
    %v5921 = vshll.u32 2102212464, %v5909
    %v5922 = vshrl.u32 920167782, %v5910
    %v5923 = vor.u32 %v5921, %v5922
    %v5924 = vshll.u32 920167782, %v5909
    %v5925 = vshrl.u32 1326507024, %v5910
    %v5926 = vor.u32 %v5924, %v5925
    %vm5927 = vcmp.lt.s32.totalorder %v5908, 1
    %vm5928 = vcmp.lt.s32.totalorder %v5908, 2
    %vm5929 = vcmp.lt.s32.totalorder %v5908, 3
    %vm5930 = vcmp.lt.s32.totalorder %v5908, 4
    %v5931 = vsel %vm5927, %v5911, %v5914
    %v5932 = vsel %vm5930, %v5920, 2102212464
    %v5933 = vsel %vm5929, %v5917, %v5932
    %v5934 = vsel %vm5928, %v5931, %v5933
    %v5935 = vsel %vm5927, %v5914, %v5917
    %v5936 = vsel %vm5930, %v5923, 920167782
    %v5937 = vsel %vm5929, %v5920, %v5936
    %v5938 = vsel %vm5928, %v5935, %v5937
    %v5939 = vsel %vm5927, %v5917, %v5920
    %v5940 = vsel %vm5930, %v5926, 1326507024
    %v5941 = vsel %vm5929, %v5923, %v5940
    %v5942 = vsel %vm5928, %v5939, %v5941
    %v5943 = vshll.u32 %v5903, 8
    %v5944 = vmul.u32.u64.compose %v5943, %v5942
    %v5945 = vextract.low.u32 %v5944
    %v5946 = vextract.high.u32 %v5944
    %v5947 = vmul.u32.u64.compose %v5943, %v5938
    %v5948 = vextract.low.u32 %v5947
    %v5949 = vextract.high.u32 %v5947
    %v5950 = vmul.u32 %v5943, %v5934
    %v5951 = vadd.s32 %v5946, %v5948
    %vm5952 = vc.u32 %v5946, %v5948
    %v5953 = vadd.s32 %v5949, 1
    %v5954 = vsel %vm5952, %v5953, %v5949
    %v5955 = vadd.s32 %v5950, %v5954
    %v5956 = vadd.s32 %v5955, 536870912
    %v5957 = vshrl.u32 %v5956, 30
    %v5958 = vshll.u32 %v5957, 30
    %v5959 = vsub.s32 %v5955, %v5958
    %vm5960 = vcmp.lt.s32.totalorder %v5959, 0
    %v5961 = vsub.s32 0, %v5959
    %v5962 = vsel %vm5960, %v5961, %v5959
    %v5963 = vclz %v5962
    %v5964 = vsub.s32 %v5963, 2
    %vm5965 = vcmp.gt.s32.totalorder 0, %v5964
    %v5966 = vsel %vm5965, 0, %v5964
    %v5967 = vsub.s32 32, %v5966
    %v5968 = vshll.u32 %v5959, %v5966
    %v5969 = vshrl.u32 %v5951, %v5967
    %v5970 = vor.u32 %v5968, %v5969
    %v5971 = vsub.s32 4294967266, %v5966
    %v5972 = vadd.s32 %v5971, 127
    %v5973 = vshll.u32 %v5972, 23
    %v5974 = vor.u32 4788187, %v5973
    %v5975 = vand.u32 2147483647, %v5974
    %v5977 = vcvt.s32.f32 %v5970
    %v5978 = vmul.f32 %v5977, %v5975
    %v5979 = vxor.u32 %v5978, 2147483648
    %v5980 = vsel %vm5897, %v5979, %v5978
    %v5981 = vsub.s32 4, %v5957
    %v5982 = vsel %vm5897, %v5981, %v5957
    %v5983 = vsel %vm5896, %v5788, %v5980
    %v5984 = vsel %vm5896, 0, %v5982
    %v5985 = vcosq.f32.pop %v5983
    %v5986 = vsinq.f32.pop %v5983
    %vm5987 = vweird.f32 %v5788
    %v5988 = vadd.s32 %v5984, 3
    %v5989 = vand.u32 %v5988, 3
    %vm5990 = vcmp.lt.s32.totalorder %v5989, 2
    %vm5991 = vcmp.eq.s32.totalorder %v5989, 0
    %v5992 = vxor.u32 %v5986, 2147483648
    %v5993 = vsel %vm5991, %v5985, %v5992
    %vm5994 = vcmp.eq.s32.totalorder %v5989, 2
    %v5995 = vxor.u32 %v5985, 2147483648
    %v5996 = vsel %vm5994, %v5995, %v5986
    %v5997 = vsel %vm5990, %v5993, %v5996
    %v5998 = vsel %vm5987, nan, %v5997
    %v5999 = vand.u32 2147483647, %v5789
    %vm6000 = vcmp.le.f32.partialorder %v5999, 0.7853982
    %vm6001 = vcmp.lt.s32.totalorder %v5789, 0
    %v6002 = vand.u32 %v5789, 2139095040
    %v6003 = vshrl.u32 %v6002, 23
    %v6004 = vsub.s32 %v6003, 127
    %v6005 = vand.u32 2147483647, %v5789
    %v6006 = vand.u32 %v6005, 8388607
    %v6007 = vor.u32 %v6006, 8388608
    %v6008 = vsub.s32 0, %v6007
    %v6009 = vadd.s32 %v6004, 1
    %vm6010 = vcmp.gt.s32.totalorder %v6009, 0
    %v6011 = vsel %vm6010, %v6009, 0
    %v6012 = vshrl.u32 %v6011, 5
    %v6013 = vand.u32 %v6011, 31
    %v6014 = vsub.s32 32, %v6013
    %v6015 = vshrl.u32 683565275, %v6014
    %v6016 = vshll.u32 683565275, %v6013
    %v6017 = vshrl.u32 2475754826, %v6014
    %v6018 = vor.u32 %v6016, %v6017
    %v6019 = vshll.u32 2475754826, %v6013
    %v6020 = vshrl.u32 2131351028, %v6014
    %v6021 = vor.u32 %v6019, %v6020
    %v6022 = vshll.u32 2131351028, %v6013
    %v6023 = vshrl.u32 2102212464, %v6014
    %v6024 = vor.u32 %v6022, %v6023
    %v6025 = vshll.u32 2102212464, %v6013
    %v6026 = vshrl.u32 920167782, %v6014
    %v6027 = vor.u32 %v6025, %v6026
    %v6028 = vshll.u32 920167782, %v6013
    %v6029 = vshrl.u32 1326507024, %v6014
    %v6030 = vor.u32 %v6028, %v6029
    %vm6031 = vcmp.lt.s32.totalorder %v6012, 1
    %vm6032 = vcmp.lt.s32.totalorder %v6012, 2
    %vm6033 = vcmp.lt.s32.totalorder %v6012, 3
    %vm6034 = vcmp.lt.s32.totalorder %v6012, 4
    %v6035 = vsel %vm6031, %v6015, %v6018
    %v6036 = vsel %vm6034, %v6024, 2102212464
    %v6037 = vsel %vm6033, %v6021, %v6036
    %v6038 = vsel %vm6032, %v6035, %v6037
    %v6039 = vsel %vm6031, %v6018, %v6021
    %v6040 = vsel %vm6034, %v6027, 920167782
    %v6041 = vsel %vm6033, %v6024, %v6040
    %v6042 = vsel %vm6032, %v6039, %v6041
    %v6043 = vsel %vm6031, %v6021, %v6024
    %v6044 = vsel %vm6034, %v6030, 1326507024
    %v6045 = vsel %vm6033, %v6027, %v6044
    %v6046 = vsel %vm6032, %v6043, %v6045
    %v6047 = vshll.u32 %v6007, 8
    %v6048 = vmul.u32.u64.compose %v6047, %v6046
    %v6049 = vextract.low.u32 %v6048
    %v6050 = vextract.high.u32 %v6048
    %v6051 = vmul.u32.u64.compose %v6047, %v6042
    %v6052 = vextract.low.u32 %v6051
    %v6053 = vextract.high.u32 %v6051
    %v6054 = vmul.u32 %v6047, %v6038
    %v6055 = vadd.s32 %v6050, %v6052
    %vm6056 = vc.u32 %v6050, %v6052
    %v6057 = vadd.s32 %v6053, 1
    %v6058 = vsel %vm6056, %v6057, %v6053
    %v6059 = vadd.s32 %v6054, %v6058
    %v6060 = vadd.s32 %v6059, 536870912
    %v6061 = vshrl.u32 %v6060, 30
    %v6062 = vshll.u32 %v6061, 30
    %v6063 = vsub.s32 %v6059, %v6062
    %vm6064 = vcmp.lt.s32.totalorder %v6063, 0
    %v6065 = vsub.s32 0, %v6063
    %v6066 = vsel %vm6064, %v6065, %v6063
    %v6067 = vclz %v6066
    %v6068 = vsub.s32 %v6067, 2
    %vm6069 = vcmp.gt.s32.totalorder 0, %v6068
    %v6070 = vsel %vm6069, 0, %v6068
    %v6071 = vsub.s32 32, %v6070
    %v6072 = vshll.u32 %v6063, %v6070
    %v6073 = vshrl.u32 %v6055, %v6071
    %v6074 = vor.u32 %v6072, %v6073
    %v6075 = vsub.s32 4294967266, %v6070
    %v6076 = vadd.s32 %v6075, 127
    %v6077 = vshll.u32 %v6076, 23
    %v6078 = vor.u32 4788187, %v6077
    %v6079 = vand.u32 2147483647, %v6078
    %v6081 = vcvt.s32.f32 %v6074
    %v6082 = vmul.f32 %v6081, %v6079
    %v6083 = vxor.u32 %v6082, 2147483648
    %v6084 = vsel %vm6001, %v6083, %v6082
    %v6085 = vsub.s32 4, %v6061
    %v6086 = vsel %vm6001, %v6085, %v6061
    %v6087 = vsel %vm6000, %v5789, %v6084
    %v6088 = vsel %vm6000, 0, %v6086
    %v6089 = vcosq.f32.pop %v6087
    %v6090 = vsinq.f32.pop %v6087
    %vm6091 = vweird.f32 %v5789
    %v6092 = vadd.s32 %v6088, 3
    %v6093 = vand.u32 %v6092, 3
    %vm6094 = vcmp.lt.s32.totalorder %v6093, 2
    %vm6095 = vcmp.eq.s32.totalorder %v6093, 0
    %v6096 = vxor.u32 %v6090, 2147483648
    %v6097 = vsel %vm6095, %v6089, %v6096
    %vm6098 = vcmp.eq.s32.totalorder %v6093, 2
    %v6099 = vxor.u32 %v6089, 2147483648
    %v6100 = vsel %vm6098, %v6099, %v6090
    %v6101 = vsel %vm6094, %v6097, %v6100
    %v6102 = vsel %vm6091, nan, %v6101
    %v6103 = vand.u32 2147483647, %v5790
    %vm6104 = vcmp.le.f32.partialorder %v6103, 0.7853982
    %vm6105 = vcmp.lt.s32.totalorder %v5790, 0
    %v6106 = vand.u32 %v5790, 2139095040
    %v6107 = vshrl.u32 %v6106, 23
    %v6108 = vsub.s32 %v6107, 127
    %v6109 = vand.u32 2147483647, %v5790
    %v6110 = vand.u32 %v6109, 8388607
    %v6111 = vor.u32 %v6110, 8388608
    %v6112 = vsub.s32 0, %v6111
    %v6113 = vadd.s32 %v6108, 1
    %vm6114 = vcmp.gt.s32.totalorder %v6113, 0
    %v6115 = vsel %vm6114, %v6113, 0
    %v6116 = vshrl.u32 %v6115, 5
    %v6117 = vand.u32 %v6115, 31
    %v6118 = vsub.s32 32, %v6117
    %v6119 = vshrl.u32 683565275, %v6118
    %v6120 = vshll.u32 683565275, %v6117
    %v6121 = vshrl.u32 2475754826, %v6118
    %v6122 = vor.u32 %v6120, %v6121
    %v6123 = vshll.u32 2475754826, %v6117
    %v6124 = vshrl.u32 2131351028, %v6118
    %v6125 = vor.u32 %v6123, %v6124
    %v6126 = vshll.u32 2131351028, %v6117
    %v6127 = vshrl.u32 2102212464, %v6118
    %v6128 = vor.u32 %v6126, %v6127
    %v6129 = vshll.u32 2102212464, %v6117
    %v6130 = vshrl.u32 920167782, %v6118
    %v6131 = vor.u32 %v6129, %v6130
    %v6132 = vshll.u32 920167782, %v6117
    %v6133 = vshrl.u32 1326507024, %v6118
    %v6134 = vor.u32 %v6132, %v6133
    %vm6135 = vcmp.lt.s32.totalorder %v6116, 1
    %vm6136 = vcmp.lt.s32.totalorder %v6116, 2
    %vm6137 = vcmp.lt.s32.totalorder %v6116, 3
    %vm6138 = vcmp.lt.s32.totalorder %v6116, 4
    %v6139 = vsel %vm6135, %v6119, %v6122
    %v6140 = vsel %vm6138, %v6128, 2102212464
    %v6141 = vsel %vm6137, %v6125, %v6140
    %v6142 = vsel %vm6136, %v6139, %v6141
    %v6143 = vsel %vm6135, %v6122, %v6125
    %v6144 = vsel %vm6138, %v6131, 920167782
    %v6145 = vsel %vm6137, %v6128, %v6144
    %v6146 = vsel %vm6136, %v6143, %v6145
    %v6147 = vsel %vm6135, %v6125, %v6128
    %v6148 = vsel %vm6138, %v6134, 1326507024
    %v6149 = vsel %vm6137, %v6131, %v6148
    %v6150 = vsel %vm6136, %v6147, %v6149
    %v6151 = vshll.u32 %v6111, 8
    %v6152 = vmul.u32.u64.compose %v6151, %v6150
    %v6153 = vextract.low.u32 %v6152
    %v6154 = vextract.high.u32 %v6152
    %v6155 = vmul.u32.u64.compose %v6151, %v6146
    %v6156 = vextract.low.u32 %v6155
    %v6157 = vextract.high.u32 %v6155
    %v6158 = vmul.u32 %v6151, %v6142
    %v6159 = vadd.s32 %v6154, %v6156
    %vm6160 = vc.u32 %v6154, %v6156
    %v6161 = vadd.s32 %v6157, 1
    %v6162 = vsel %vm6160, %v6161, %v6157
    %v6163 = vadd.s32 %v6158, %v6162
    %v6164 = vadd.s32 %v6163, 536870912
    %v6165 = vshrl.u32 %v6164, 30
    %v6166 = vshll.u32 %v6165, 30
    %v6167 = vsub.s32 %v6163, %v6166
    %vm6168 = vcmp.lt.s32.totalorder %v6167, 0
    %v6169 = vsub.s32 0, %v6167
    %v6170 = vsel %vm6168, %v6169, %v6167
    %v6171 = vclz %v6170
    %v6172 = vsub.s32 %v6171, 2
    %vm6173 = vcmp.gt.s32.totalorder 0, %v6172
    %v6174 = vsel %vm6173, 0, %v6172
    %v6175 = vsub.s32 32, %v6174
    %v6176 = vshll.u32 %v6167, %v6174
    %v6177 = vshrl.u32 %v6159, %v6175
    %v6178 = vor.u32 %v6176, %v6177
    %v6179 = vsub.s32 4294967266, %v6174
    %v6180 = vadd.s32 %v6179, 127
    %v6181 = vshll.u32 %v6180, 23
    %v6182 = vor.u32 4788187, %v6181
    %v6183 = vand.u32 2147483647, %v6182
    %v6185 = vcvt.s32.f32 %v6178
    %v6186 = vmul.f32 %v6185, %v6183
    %v6187 = vxor.u32 %v6186, 2147483648
    %v6188 = vsel %vm6105, %v6187, %v6186
    %v6189 = vsub.s32 4, %v6165
    %v6190 = vsel %vm6105, %v6189, %v6165
    %v6191 = vsel %vm6104, %v5790, %v6188
    %v6192 = vsel %vm6104, 0, %v6190
    %v6193 = vcosq.f32.pop %v6191
    %v6194 = vsinq.f32.pop %v6191
    %vm6195 = vweird.f32 %v5790
    %v6196 = vadd.s32 %v6192, 3
    %v6197 = vand.u32 %v6196, 3
    %vm6198 = vcmp.lt.s32.totalorder %v6197, 2
    %vm6199 = vcmp.eq.s32.totalorder %v6197, 0
    %v6200 = vxor.u32 %v6194, 2147483648
    %v6201 = vsel %vm6199, %v6193, %v6200
    %vm6202 = vcmp.eq.s32.totalorder %v6197, 2
    %v6203 = vxor.u32 %v6193, 2147483648
    %v6204 = vsel %vm6202, %v6203, %v6194
    %v6205 = vsel %vm6198, %v6201, %v6204
    %v6206 = vsel %vm6195, nan, %v6205
    %v6207 = vand.u32 2147483647, %v5787
    %vm6208 = vcmp.le.f32.partialorder %v6207, 0.7853982
    %vm6209 = vcmp.lt.s32.totalorder %v5787, 0
    %v6210 = vand.u32 %v5787, 2139095040
    %v6211 = vshrl.u32 %v6210, 23
    %v6212 = vsub.s32 %v6211, 127
    %v6213 = vand.u32 2147483647, %v5787
    %v6214 = vand.u32 %v6213, 8388607
    %v6215 = vor.u32 %v6214, 8388608
    %v6216 = vsub.s32 0, %v6215
    %v6217 = vadd.s32 %v6212, 1
    %vm6218 = vcmp.gt.s32.totalorder %v6217, 0
    %v6219 = vsel %vm6218, %v6217, 0
    %v6220 = vshrl.u32 %v6219, 5
    %v6221 = vand.u32 %v6219, 31
    %v6222 = vsub.s32 32, %v6221
    %v6223 = vshrl.u32 683565275, %v6222
    %v6224 = vshll.u32 683565275, %v6221
    %v6225 = vshrl.u32 2475754826, %v6222
    %v6226 = vor.u32 %v6224, %v6225
    %v6227 = vshll.u32 2475754826, %v6221
    %v6228 = vshrl.u32 2131351028, %v6222
    %v6229 = vor.u32 %v6227, %v6228
    %v6230 = vshll.u32 2131351028, %v6221
    %v6231 = vshrl.u32 2102212464, %v6222
    %v6232 = vor.u32 %v6230, %v6231
    %v6233 = vshll.u32 2102212464, %v6221
    %v6234 = vshrl.u32 920167782, %v6222
    %v6235 = vor.u32 %v6233, %v6234
    %v6236 = vshll.u32 920167782, %v6221
    %v6237 = vshrl.u32 1326507024, %v6222
    %v6238 = vor.u32 %v6236, %v6237
    %vm6239 = vcmp.lt.s32.totalorder %v6220, 1
    %vm6240 = vcmp.lt.s32.totalorder %v6220, 2
    %vm6241 = vcmp.lt.s32.totalorder %v6220, 3
    %vm6242 = vcmp.lt.s32.totalorder %v6220, 4
    %v6243 = vsel %vm6239, %v6223, %v6226
    %v6244 = vsel %vm6242, %v6232, 2102212464
    %v6245 = vsel %vm6241, %v6229, %v6244
    %v6246 = vsel %vm6240, %v6243, %v6245
    %v6247 = vsel %vm6239, %v6226, %v6229
    %v6248 = vsel %vm6242, %v6235, 920167782
    %v6249 = vsel %vm6241, %v6232, %v6248
    %v6250 = vsel %vm6240, %v6247, %v6249
    %v6251 = vsel %vm6239, %v6229, %v6232
    %v6252 = vsel %vm6242, %v6238, 1326507024
    %v6253 = vsel %vm6241, %v6235, %v6252
    %v6254 = vsel %vm6240, %v6251, %v6253
    %v6255 = vshll.u32 %v6215, 8
    %v6256 = vmul.u32.u64.compose %v6255, %v6254
    %v6257 = vextract.low.u32 %v6256
    %v6258 = vextract.high.u32 %v6256
    %v6259 = vmul.u32.u64.compose %v6255, %v6250
    %v6260 = vextract.low.u32 %v6259
    %v6261 = vextract.high.u32 %v6259
    %v6262 = vmul.u32 %v6255, %v6246
    %v6263 = vadd.s32 %v6258, %v6260
    %vm6264 = vc.u32 %v6258, %v6260
    %v6265 = vadd.s32 %v6261, 1
    %v6266 = vsel %vm6264, %v6265, %v6261
    %v6267 = vadd.s32 %v6262, %v6266
    %v6268 = vadd.s32 %v6267, 536870912
    %v6269 = vshrl.u32 %v6268, 30
    %v6270 = vshll.u32 %v6269, 30
    %v6271 = vsub.s32 %v6267, %v6270
    %vm6272 = vcmp.lt.s32.totalorder %v6271, 0
    %v6273 = vsub.s32 0, %v6271
    %v6274 = vsel %vm6272, %v6273, %v6271
    %v6275 = vclz %v6274
    %v6276 = vsub.s32 %v6275, 2
    %vm6277 = vcmp.gt.s32.totalorder 0, %v6276
    %v6278 = vsel %vm6277, 0, %v6276
    %v6279 = vsub.s32 32, %v6278
    %v6280 = vshll.u32 %v6271, %v6278
    %v6281 = vshrl.u32 %v6263, %v6279
    %v6282 = vor.u32 %v6280, %v6281
    %v6283 = vsub.s32 4294967266, %v6278
    %v6284 = vadd.s32 %v6283, 127
    %v6285 = vshll.u32 %v6284, 23
    %v6286 = vor.u32 4788187, %v6285
    %v6287 = vand.u32 2147483647, %v6286
    %v6289 = vcvt.s32.f32 %v6282
    %v6290 = vmul.f32 %v6289, %v6287
    %v6291 = vxor.u32 %v6290, 2147483648
    %v6292 = vsel %vm6209, %v6291, %v6290
    %v6293 = vsub.s32 4, %v6269
    %v6294 = vsel %vm6209, %v6293, %v6269
    %v6295 = vsel %vm6208, %v5787, %v6292
    %v6296 = vsel %vm6208, 0, %v6294
    %v6297 = vcosq.f32.pop %v6295
    %v6298 = vsinq.f32.pop %v6295
    %vm6299 = vweird.f32 %v5787
    %v6300 = vand.u32 %v6296, 3
    %vm6301 = vcmp.lt.s32.totalorder %v6300, 2
    %vm6302 = vcmp.eq.s32.totalorder %v6300, 0
    %v6303 = vxor.u32 %v6298, 2147483648
    %v6304 = vsel %vm6302, %v6297, %v6303
    %vm6305 = vcmp.eq.s32.totalorder %v6300, 2
    %v6306 = vxor.u32 %v6297, 2147483648
    %v6307 = vsel %vm6305, %v6306, %v6298
    %v6308 = vsel %vm6301, %v6304, %v6307
    %v6309 = vsel %vm6299, nan, %v6308
    %v6310 = vand.u32 2147483647, %v5788
    %vm6311 = vcmp.le.f32.partialorder %v6310, 0.7853982
    %vm6312 = vcmp.lt.s32.totalorder %v5788, 0
    %v6313 = vand.u32 %v5788, 2139095040
    %v6314 = vshrl.u32 %v6313, 23
    %v6315 = vsub.s32 %v6314, 127
    %v6316 = vand.u32 2147483647, %v5788
    %v6317 = vand.u32 %v6316, 8388607
    %v6318 = vor.u32 %v6317, 8388608
    %v6319 = vsub.s32 0, %v6318
    %v6320 = vadd.s32 %v6315, 1
    %vm6321 = vcmp.gt.s32.totalorder %v6320, 0
    %v6322 = vsel %vm6321, %v6320, 0
    %v6323 = vshrl.u32 %v6322, 5
    %v6324 = vand.u32 %v6322, 31
    %v6325 = vsub.s32 32, %v6324
    %v6326 = vshrl.u32 683565275, %v6325
    %v6327 = vshll.u32 683565275, %v6324
    %v6328 = vshrl.u32 2475754826, %v6325
    %v6329 = vor.u32 %v6327, %v6328
    %v6330 = vshll.u32 2475754826, %v6324
    %v6331 = vshrl.u32 2131351028, %v6325
    %v6332 = vor.u32 %v6330, %v6331
    %v6333 = vshll.u32 2131351028, %v6324
    %v6334 = vshrl.u32 2102212464, %v6325
    %v6335 = vor.u32 %v6333, %v6334
    %v6336 = vshll.u32 2102212464, %v6324
    %v6337 = vshrl.u32 920167782, %v6325
    %v6338 = vor.u32 %v6336, %v6337
    %v6339 = vshll.u32 920167782, %v6324
    %v6340 = vshrl.u32 1326507024, %v6325
    %v6341 = vor.u32 %v6339, %v6340
    %vm6342 = vcmp.lt.s32.totalorder %v6323, 1
    %vm6343 = vcmp.lt.s32.totalorder %v6323, 2
    %vm6344 = vcmp.lt.s32.totalorder %v6323, 3
    %vm6345 = vcmp.lt.s32.totalorder %v6323, 4
    %v6346 = vsel %vm6342, %v6326, %v6329
    %v6347 = vsel %vm6345, %v6335, 2102212464
    %v6348 = vsel %vm6344, %v6332, %v6347
    %v6349 = vsel %vm6343, %v6346, %v6348
    %v6350 = vsel %vm6342, %v6329, %v6332
    %v6351 = vsel %vm6345, %v6338, 920167782
    %v6352 = vsel %vm6344, %v6335, %v6351
    %v6353 = vsel %vm6343, %v6350, %v6352
    %v6354 = vsel %vm6342, %v6332, %v6335
    %v6355 = vsel %vm6345, %v6341, 1326507024
    %v6356 = vsel %vm6344, %v6338, %v6355
    %v6357 = vsel %vm6343, %v6354, %v6356
    %v6358 = vshll.u32 %v6318, 8
    %v6359 = vmul.u32.u64.compose %v6358, %v6357
    %v6360 = vextract.low.u32 %v6359
    %v6361 = vextract.high.u32 %v6359
    %v6362 = vmul.u32.u64.compose %v6358, %v6353
    %v6363 = vextract.low.u32 %v6362
    %v6364 = vextract.high.u32 %v6362
    %v6365 = vmul.u32 %v6358, %v6349
    %v6366 = vadd.s32 %v6361, %v6363
    %vm6367 = vc.u32 %v6361, %v6363
    %v6368 = vadd.s32 %v6364, 1
    %v6369 = vsel %vm6367, %v6368, %v6364
    %v6370 = vadd.s32 %v6365, %v6369
    %v6371 = vadd.s32 %v6370, 536870912
    %v6372 = vshrl.u32 %v6371, 30
    %v6373 = vshll.u32 %v6372, 30
    %v6374 = vsub.s32 %v6370, %v6373
    %vm6375 = vcmp.lt.s32.totalorder %v6374, 0
    %v6376 = vsub.s32 0, %v6374
    %v6377 = vsel %vm6375, %v6376, %v6374
    %v6378 = vclz %v6377
    %v6379 = vsub.s32 %v6378, 2
    %vm6380 = vcmp.gt.s32.totalorder 0, %v6379
    %v6381 = vsel %vm6380, 0, %v6379
    %v6382 = vsub.s32 32, %v6381
    %v6383 = vshll.u32 %v6374, %v6381
    %v6384 = vshrl.u32 %v6366, %v6382
    %v6385 = vor.u32 %v6383, %v6384
    %v6386 = vsub.s32 4294967266, %v6381
    %v6387 = vadd.s32 %v6386, 127
    %v6388 = vshll.u32 %v6387, 23
    %v6389 = vor.u32 4788187, %v6388
    %v6390 = vand.u32 2147483647, %v6389
    %v6392 = vcvt.s32.f32 %v6385
    %v6393 = vmul.f32 %v6392, %v6390
    %v6394 = vxor.u32 %v6393, 2147483648
    %v6395 = vsel %vm6312, %v6394, %v6393
    %v6396 = vsub.s32 4, %v6372
    %v6397 = vsel %vm6312, %v6396, %v6372
    %v6398 = vsel %vm6311, %v5788, %v6395
    %v6399 = vsel %vm6311, 0, %v6397
    %v6400 = vcosq.f32.pop %v6398
    %v6401 = vsinq.f32.pop %v6398
    %vm6402 = vweird.f32 %v5788
    %v6403 = vand.u32 %v6399, 3
    %vm6404 = vcmp.lt.s32.totalorder %v6403, 2
    %vm6405 = vcmp.eq.s32.totalorder %v6403, 0
    %v6406 = vxor.u32 %v6401, 2147483648
    %v6407 = vsel %vm6405, %v6400, %v6406
    %vm6408 = vcmp.eq.s32.totalorder %v6403, 2
    %v6409 = vxor.u32 %v6400, 2147483648
    %v6410 = vsel %vm6408, %v6409, %v6401
    %v6411 = vsel %vm6404, %v6407, %v6410
    %v6412 = vsel %vm6402, nan, %v6411
    %v6413 = vand.u32 2147483647, %v5789
    %vm6414 = vcmp.le.f32.partialorder %v6413, 0.7853982
    %vm6415 = vcmp.lt.s32.totalorder %v5789, 0
    %v6416 = vand.u32 %v5789, 2139095040
    %v6417 = vshrl.u32 %v6416, 23
    %v6418 = vsub.s32 %v6417, 127
    %v6419 = vand.u32 2147483647, %v5789
    %v6420 = vand.u32 %v6419, 8388607
    %v6421 = vor.u32 %v6420, 8388608
    %v6422 = vsub.s32 0, %v6421
    %v6423 = vadd.s32 %v6418, 1
    %vm6424 = vcmp.gt.s32.totalorder %v6423, 0
    %v6425 = vsel %vm6424, %v6423, 0
    %v6426 = vshrl.u32 %v6425, 5
    %v6427 = vand.u32 %v6425, 31
    %v6428 = vsub.s32 32, %v6427
    %v6429 = vshrl.u32 683565275, %v6428
    %v6430 = vshll.u32 683565275, %v6427
    %v6431 = vshrl.u32 2475754826, %v6428
    %v6432 = vor.u32 %v6430, %v6431
    %v6433 = vshll.u32 2475754826, %v6427
    %v6434 = vshrl.u32 2131351028, %v6428
    %v6435 = vor.u32 %v6433, %v6434
    %v6436 = vshll.u32 2131351028, %v6427
    %v6437 = vshrl.u32 2102212464, %v6428
    %v6438 = vor.u32 %v6436, %v6437
    %v6439 = vshll.u32 2102212464, %v6427
    %v6440 = vshrl.u32 920167782, %v6428
    %v6441 = vor.u32 %v6439, %v6440
    %v6442 = vshll.u32 920167782, %v6427
    %v6443 = vshrl.u32 1326507024, %v6428
    %v6444 = vor.u32 %v6442, %v6443
    %vm6445 = vcmp.lt.s32.totalorder %v6426, 1
    %vm6446 = vcmp.lt.s32.totalorder %v6426, 2
    %vm6447 = vcmp.lt.s32.totalorder %v6426, 3
    %vm6448 = vcmp.lt.s32.totalorder %v6426, 4
    %v6449 = vsel %vm6445, %v6429, %v6432
    %v6450 = vsel %vm6448, %v6438, 2102212464
    %v6451 = vsel %vm6447, %v6435, %v6450
    %v6452 = vsel %vm6446, %v6449, %v6451
    %v6453 = vsel %vm6445, %v6432, %v6435
    %v6454 = vsel %vm6448, %v6441, 920167782
    %v6455 = vsel %vm6447, %v6438, %v6454
    %v6456 = vsel %vm6446, %v6453, %v6455
    %v6457 = vsel %vm6445, %v6435, %v6438
    %v6458 = vsel %vm6448, %v6444, 1326507024
    %v6459 = vsel %vm6447, %v6441, %v6458
    %v6460 = vsel %vm6446, %v6457, %v6459
    %v6461 = vshll.u32 %v6421, 8
    %v6462 = vmul.u32.u64.compose %v6461, %v6460
    %v6463 = vextract.low.u32 %v6462
    %v6464 = vextract.high.u32 %v6462
    %v6465 = vmul.u32.u64.compose %v6461, %v6456
    %v6466 = vextract.low.u32 %v6465
    %v6467 = vextract.high.u32 %v6465
    %v6468 = vmul.u32 %v6461, %v6452
    %v6469 = vadd.s32 %v6464, %v6466
    %vm6470 = vc.u32 %v6464, %v6466
    %v6471 = vadd.s32 %v6467, 1
    %v6472 = vsel %vm6470, %v6471, %v6467
    %v6473 = vadd.s32 %v6468, %v6472
    %v6474 = vadd.s32 %v6473, 536870912
    %v6475 = vshrl.u32 %v6474, 30
    %v6476 = vshll.u32 %v6475, 30
    %v6477 = vsub.s32 %v6473, %v6476
    %vm6478 = vcmp.lt.s32.totalorder %v6477, 0
    %v6479 = vsub.s32 0, %v6477
    %v6480 = vsel %vm6478, %v6479, %v6477
    %v6481 = vclz %v6480
    %v6482 = vsub.s32 %v6481, 2
    %vm6483 = vcmp.gt.s32.totalorder 0, %v6482
    %v6484 = vsel %vm6483, 0, %v6482
    %v6485 = vsub.s32 32, %v6484
    %v6486 = vshll.u32 %v6477, %v6484
    %v6487 = vshrl.u32 %v6469, %v6485
    %v6488 = vor.u32 %v6486, %v6487
    %v6489 = vsub.s32 4294967266, %v6484
    %v6490 = vadd.s32 %v6489, 127
    %v6491 = vshll.u32 %v6490, 23
    %v6492 = vor.u32 4788187, %v6491
    %v6493 = vand.u32 2147483647, %v6492
    %v6495 = vcvt.s32.f32 %v6488
    %v6496 = vmul.f32 %v6495, %v6493
    %v6497 = vxor.u32 %v6496, 2147483648
    %v6498 = vsel %vm6415, %v6497, %v6496
    %v6499 = vsub.s32 4, %v6475
    %v6500 = vsel %vm6415, %v6499, %v6475
    %v6501 = vsel %vm6414, %v5789, %v6498
    %v6502 = vsel %vm6414, 0, %v6500
    %v6503 = vcosq.f32.pop %v6501
    %v6504 = vsinq.f32.pop %v6501
    %vm6505 = vweird.f32 %v5789
    %v6506 = vand.u32 %v6502, 3
    %vm6507 = vcmp.lt.s32.totalorder %v6506, 2
    %vm6508 = vcmp.eq.s32.totalorder %v6506, 0
    %v6509 = vxor.u32 %v6504, 2147483648
    %v6510 = vsel %vm6508, %v6503, %v6509
    %vm6511 = vcmp.eq.s32.totalorder %v6506, 2
    %v6512 = vxor.u32 %v6503, 2147483648
    %v6513 = vsel %vm6511, %v6512, %v6504
    %v6514 = vsel %vm6507, %v6510, %v6513
    %v6515 = vsel %vm6505, nan, %v6514
    %v6516 = vand.u32 2147483647, %v5790
    %vm6517 = vcmp.le.f32.partialorder %v6516, 0.7853982
    %vm6518 = vcmp.lt.s32.totalorder %v5790, 0
    %v6519 = vand.u32 %v5790, 2139095040
    %v6520 = vshrl.u32 %v6519, 23
    %v6521 = vsub.s32 %v6520, 127
    %v6522 = vand.u32 2147483647, %v5790
    %v6523 = vand.u32 %v6522, 8388607
    %v6524 = vor.u32 %v6523, 8388608
    %v6525 = vsub.s32 0, %v6524
    %v6526 = vadd.s32 %v6521, 1
    %vm6527 = vcmp.gt.s32.totalorder %v6526, 0
    %v6528 = vsel %vm6527, %v6526, 0
    %v6529 = vshrl.u32 %v6528, 5
    %v6530 = vand.u32 %v6528, 31
    %v6531 = vsub.s32 32, %v6530
    %v6532 = vshrl.u32 683565275, %v6531
    %v6533 = vshll.u32 683565275, %v6530
    %v6534 = vshrl.u32 2475754826, %v6531
    %v6535 = vor.u32 %v6533, %v6534
    %v6536 = vshll.u32 2475754826, %v6530
    %v6537 = vshrl.u32 2131351028, %v6531
    %v6538 = vor.u32 %v6536, %v6537
    %v6539 = vshll.u32 2131351028, %v6530
    %v6540 = vshrl.u32 2102212464, %v6531
    %v6541 = vor.u32 %v6539, %v6540
    %v6542 = vshll.u32 2102212464, %v6530
    %v6543 = vshrl.u32 920167782, %v6531
    %v6544 = vor.u32 %v6542, %v6543
    %v6545 = vshll.u32 920167782, %v6530
    %v6546 = vshrl.u32 1326507024, %v6531
    %v6547 = vor.u32 %v6545, %v6546
    %vm6548 = vcmp.lt.s32.totalorder %v6529, 1
    %vm6549 = vcmp.lt.s32.totalorder %v6529, 2
    %vm6550 = vcmp.lt.s32.totalorder %v6529, 3
    %vm6551 = vcmp.lt.s32.totalorder %v6529, 4
    %v6552 = vsel %vm6548, %v6532, %v6535
    %v6553 = vsel %vm6551, %v6541, 2102212464
    %v6554 = vsel %vm6550, %v6538, %v6553
    %v6555 = vsel %vm6549, %v6552, %v6554
    %v6556 = vsel %vm6548, %v6535, %v6538
    %v6557 = vsel %vm6551, %v6544, 920167782
    %v6558 = vsel %vm6550, %v6541, %v6557
    %v6559 = vsel %vm6549, %v6556, %v6558
    %v6560 = vsel %vm6548, %v6538, %v6541
    %v6561 = vsel %vm6551, %v6547, 1326507024
    %v6562 = vsel %vm6550, %v6544, %v6561
    %v6563 = vsel %vm6549, %v6560, %v6562
    %v6564 = vshll.u32 %v6524, 8
    %v6565 = vmul.u32.u64.compose %v6564, %v6563
    %v6566 = vextract.low.u32 %v6565
    %v6567 = vextract.high.u32 %v6565
    %v6568 = vmul.u32.u64.compose %v6564, %v6559
    %v6569 = vextract.low.u32 %v6568
    %v6570 = vextract.high.u32 %v6568
    %v6571 = vmul.u32 %v6564, %v6555
    %v6572 = vadd.s32 %v6567, %v6569
    %vm6573 = vc.u32 %v6567, %v6569
    %v6574 = vadd.s32 %v6570, 1
    %v6575 = vsel %vm6573, %v6574, %v6570
    %v6576 = vadd.s32 %v6571, %v6575
    %v6577 = vadd.s32 %v6576, 536870912
    %v6578 = vshrl.u32 %v6577, 30
    %v6579 = vshll.u32 %v6578, 30
    %v6580 = vsub.s32 %v6576, %v6579
    %vm6581 = vcmp.lt.s32.totalorder %v6580, 0
    %v6582 = vsub.s32 0, %v6580
    %v6583 = vsel %vm6581, %v6582, %v6580
    %v6584 = vclz %v6583
    %v6585 = vsub.s32 %v6584, 2
    %vm6586 = vcmp.gt.s32.totalorder 0, %v6585
    %v6587 = vsel %vm6586, 0, %v6585
    %v6588 = vsub.s32 32, %v6587
    %v6589 = vshll.u32 %v6580, %v6587
    %v6590 = vshrl.u32 %v6572, %v6588
    %v6591 = vor.u32 %v6589, %v6590
    %v6592 = vsub.s32 4294967266, %v6587
    %v6593 = vadd.s32 %v6592, 127
    %v6594 = vshll.u32 %v6593, 23
    %v6595 = vor.u32 4788187, %v6594
    %v6596 = vand.u32 2147483647, %v6595
    %v6598 = vcvt.s32.f32 %v6591
    %v6599 = vmul.f32 %v6598, %v6596
    %v6600 = vxor.u32 %v6599, 2147483648
    %v6601 = vsel %vm6518, %v6600, %v6599
    %v6602 = vsub.s32 4, %v6578
    %v6603 = vsel %vm6518, %v6602, %v6578
    %v6604 = vsel %vm6517, %v5790, %v6601
    %v6605 = vsel %vm6517, 0, %v6603
    %v6606 = vcosq.f32.pop %v6604
    %v6607 = vsinq.f32.pop %v6604
    %vm6608 = vweird.f32 %v5790
    %v6609 = vand.u32 %v6605, 3
    %vm6610 = vcmp.lt.s32.totalorder %v6609, 2
    %vm6611 = vcmp.eq.s32.totalorder %v6609, 0
    %v6612 = vxor.u32 %v6607, 2147483648
    %v6613 = vsel %vm6611, %v6606, %v6612
    %vm6614 = vcmp.eq.s32.totalorder %v6609, 2
    %v6615 = vxor.u32 %v6606, 2147483648
    %v6616 = vsel %vm6614, %v6615, %v6607
    %v6617 = vsel %vm6610, %v6613, %v6616
    %v6618 = vsel %vm6608, nan, %v6617
    %v6619 = vmul.f32 %v5894, 2.0
    %v6620 = vmul.f32 %v5998, 2.0
    %v6621 = vmul.f32 %v6102, 2.0
    %v6622 = vmul.f32 %v6206, 2.0
    %v6623 = vmul.f32 %v6619, %v6309
    %v6624 = vmul.f32 %v6620, %v6412
    %v6625 = vmul.f32 %v6621, %v6515
    %v6626 = vmul.f32 %v6622, %v6618
    %v6627 = vmul.f32 %v6619, %v5894
    %v6628 = vmul.f32 %v6620, %v5998
    %v6629 = vmul.f32 %v6621, %v6102
    %v6630 = vmul.f32 %v6622, %v6206
    %v6631 = vsub.f32 1.0, %v6627
    %v6632 = vsub.f32 1.0, %v6628
    %v6633 = vsub.f32 1.0, %v6629
    %v6634 = vsub.f32 1.0, %v6630
    %v6635 = vld [vmem:[%s2 + $0x20] sm:$0xff]
    %v6636 = vld [vmem:[%s2 + $0x28] sm:$0xff]
    %v6637 = vld [vmem:[%s2 + $0x30] sm:$0xff]
    %v6638 = vld [vmem:[%s2 + $0x38] sm:$0xff]
    %v6643 = vrot.slane %v6623, 4
    %v6644 = vrot.slane %v6624, 4
    %v6645 = vrot.slane %v6625, 4
    %v6646 = vrot.slane %v6626, 4
    %v6655 = vrot.slane %v6631, 4
    %v6656 = vrot.slane %v6632, 4
    %v6657 = vrot.slane %v6633, 4
    %v6658 = vrot.slane %v6634, 4
    %v6663 = vsel %vm130, %v5894, %v6643
    %v6664 = vsel %vm130, %v5998, %v6644
    %v6665 = vsel %vm130, %v6102, %v6645
    %v6666 = vsel %vm130, %v6206, %v6646
    %v6667 = vsel %vm130, %v6309, %v6655
    %v6668 = vsel %vm130, %v6412, %v6656
    %v6669 = vsel %vm130, %v6515, %v6657
    %v6670 = vsel %vm130, %v6618, %v6658
    %v6671 = vld [vmem:[%s4 + $0x68] sm:$0xff]
    %v6672 = vld [vmem:[%s4 + $0x70] sm:$0xff]
    %v6673 = vld [vmem:[%s4 + $0x78] sm:$0xff]
    %v6674 = vld [vmem:[%s4 + $0x80] sm:$0xff]
    %v6675 = vld [vmem:[%s5] sm:$0xff]
    %v6676 = vld [vmem:[%s5 + $0x8] sm:$0xff]
    %v6677 = vld [vmem:[%s5 + $0x10] sm:$0xff]
    %v6678 = vld [vmem:[%s5 + $0x18] sm:$0xff]
    %v6680 = vsel %vm3056, %v6675, 0
    %v6683 = vsel %vm3056, %v6676, 0
    %v6686 = vsel %vm3056, %v6677, 0
    %v6689 = vsel %vm3056, %v6678, 0
    %6691 = vmatprep.subr.mxu0 0.0
    %6692 = vmatpush1.msra.mxu0 0.0
    %6693 = vmatprep.subr.mxu0 0.0
    %6694 = vmatpush1.msra.mxu0 0.0
    %6695 = vmatprep.subr.mxu0 0.0
    %6696 = vmatpush1.msra.mxu0 0.0
    %6697 = vmatprep.subr.mxu0 0.0
    %6698 = vmatpush1.msra.mxu0 0.0
    %6699 = vmatprep.subr.mxu0 0.0
    %6700 = vmatpush1.msra.mxu0 0.0
    %6701 = vmatprep.subr.mxu0 0.0
    %6702 = vmatpush1.msra.mxu0 0.0
    %6703 = vmatprep.subr.mxu0 0.0
    %6704 = vmatpush1.msra.mxu0 0.0
    %6705 = vmatprep.subr.mxu0 0.0
    %6706 = vmatpush1.msra.mxu0 0.0
    %6707 = vmatprep.subr.mxu0 0.0
    %6708 = vmatpush1.msra.mxu0 0.0
    %6709 = vmatprep.subr.mxu0 0.0
    %6710 = vmatpush1.msra.mxu0 0.0
    %6711 = vmatprep.subr.mxu0 0.0
    %6712 = vmatpush1.msra.mxu0 0.0
    %6713 = vmatprep.subr.mxu0 0.0
    %6714 = vmatpush1.msra.mxu0 0.0
    %6715 = vmatprep.subr.mxu0 0.0
    %6716 = vmatpush1.msra.mxu0 0.0
    %6717 = vmatprep.subr.mxu0 %v6636
    %6718 = vmatpush1.msra.mxu0 %v6635
    %6719 = vmatprep.subr.mxu0 %v6668
    %6720 = vmatpush1.msra.mxu0 %v6667
    %6721 = vmatprep.subr.mxu0 %v6664
    %6722 = vmatpush1.msra.mxu0 %v6663
    %6723 = vmatprep.subr.mxu0 0.0
    %6724 = vmatpush2.msra.mxu0 0.0
    %6725 = vmatprep.subr.mxu0 0.0
    %6726 = vmatpush2.msra.mxu0 0.0
    %6727 = vmatprep.subr.mxu0 0.0
    %6728 = vmatpush2.msra.mxu0 0.0
    %6729 = vmatprep.subr.mxu0 0.0
    %6730 = vmatpush2.msra.mxu0 0.0
    %6731 = vmatprep.subr.mxu0 0.0
    %6732 = vmatpush2.msra.mxu0 0.0
    %6733 = vmatprep.subr.mxu0 0.0
    %6734 = vmatpush2.msra.mxu0 0.0
    %6735 = vmatprep.subr.mxu0 0.0
    %6736 = vmatpush2.msra.mxu0 0.0
    %6737 = vmatprep.subr.mxu0 0.0
    %6738 = vmatpush2.msra.mxu0 0.0
    %6739 = vmatprep.subr.mxu0 0.0
    %6740 = vmatpush2.msra.mxu0 0.0
    %6741 = vmatprep.subr.mxu0 0.0
    %6742 = vmatpush2.msra.mxu0 0.0
    %6743 = vmatprep.subr.mxu0 0.0
    %6744 = vmatpush2.msra.mxu0 0.0
    %6745 = vmatprep.subr.mxu0 0.0
    %6746 = vmatpush2.msra.mxu0 0.0
    %6747 = vmatprep.subr.mxu0 0.0
    %6748 = vmatpush2.msra.mxu0 0.0
    %6749 = vmatprep.subr.mxu0 0.0
    %6750 = vmatpush2.msra.mxu0 0.0
    %6751 = vmatprep.subr.mxu0 0.0
    %6752 = vmatpush2.msra.mxu0 0.0
    %6753 = vmatprep.subr.mxu0 0.0
    %6754 = vmatpush2.msra.mxu0 0.0
    %6755 = vmatprep.mubr.f32.mxu0 0.0
    %6756 = vmatmul.mubr.f32.gmra.mxu0 %v6680
    %v6757 = vpop.f32.mrf.mxu0
    %v6758 = vadd.f32 0.0, %v6757
    %v6759 = vpop.f32.mrf.mxu0
    %v6760 = vadd.f32 0.0, %v6759
    %6761 = vmatprep.mubr.f32.mxu0 0.0
    %6762 = vmatmul.mubr.f32.gmra.mxu0 %v6683
    %v6763 = vpop.f32.mrf.mxu0
    %v6764 = vadd.f32 0.0, %v6763
    %v6765 = vpop.f32.mrf.mxu0
    %v6766 = vadd.f32 0.0, %v6765
    %6767 = vmatprep.mubr.f32.mxu0 0.0
    %6768 = vmatmul.mubr.f32.gmra.mxu0 %v6686
    %v6769 = vpop.f32.mrf.mxu0
    %v6770 = vadd.f32 0.0, %v6769
    %v6771 = vpop.f32.mrf.mxu0
    %v6772 = vadd.f32 0.0, %v6771
    %6773 = vmatprep.mubr.f32.mxu0 0.0
    %6774 = vmatmul.mubr.f32.gmra.mxu0 %v6689
    %v6775 = vpop.f32.mrf.mxu0
    %v6776 = vadd.f32 0.0, %v6775
    %v6777 = vpop.f32.mrf.mxu0
    %v6778 = vadd.f32 0.0, %v6777
    %6779 = vdwg.mxu0
    %6780 = vmatprep.subr.mxu0 0.0
    %6781 = vmatpush1.msra.mxu0 0.0
    %6782 = vmatprep.subr.mxu0 0.0
    %6783 = vmatpush1.msra.mxu0 0.0
    %6784 = vmatprep.subr.mxu0 0.0
    %6785 = vmatpush1.msra.mxu0 0.0
    %6786 = vmatprep.subr.mxu0 0.0
    %6787 = vmatpush1.msra.mxu0 0.0
    %6788 = vmatprep.subr.mxu0 0.0
    %6789 = vmatpush1.msra.mxu0 0.0
    %6790 = vmatprep.subr.mxu0 0.0
    %6791 = vmatpush1.msra.mxu0 0.0
    %6792 = vmatprep.subr.mxu0 0.0
    %6793 = vmatpush1.msra.mxu0 0.0
    %6794 = vmatprep.subr.mxu0 0.0
    %6795 = vmatpush1.msra.mxu0 0.0
    %6796 = vmatprep.subr.mxu0 0.0
    %6797 = vmatpush1.msra.mxu0 0.0
    %6798 = vmatprep.subr.mxu0 0.0
    %6799 = vmatpush1.msra.mxu0 0.0
    %6800 = vmatprep.subr.mxu0 0.0
    %6801 = vmatpush1.msra.mxu0 0.0
    %6802 = vmatprep.subr.mxu0 0.0
    %6803 = vmatpush1.msra.mxu0 0.0
    %6804 = vmatprep.subr.mxu0 0.0
    %6805 = vmatpush1.msra.mxu0 0.0
    %6806 = vmatprep.subr.mxu0 %v6638
    %6807 = vmatpush1.msra.mxu0 %v6637
    %6808 = vmatprep.subr.mxu0 %v6670
    %6809 = vmatpush1.msra.mxu0 %v6669
    %6810 = vmatprep.subr.mxu0 %v6666
    %6811 = vmatpush1.msra.mxu0 %v6665
    %6812 = vmatprep.subr.mxu0 0.0
    %6813 = vmatpush2.msra.mxu0 0.0
    %6814 = vmatprep.subr.mxu0 0.0
    %6815 = vmatpush2.msra.mxu0 0.0
    %6816 = vmatprep.subr.mxu0 0.0
    %6817 = vmatpush2.msra.mxu0 0.0
    %6818 = vmatprep.subr.mxu0 0.0
    %6819 = vmatpush2.msra.mxu0 0.0
    %6820 = vmatprep.subr.mxu0 0.0
    %6821 = vmatpush2.msra.mxu0 0.0
    %6822 = vmatprep.subr.mxu0 0.0
    %6823 = vmatpush2.msra.mxu0 0.0
    %6824 = vmatprep.subr.mxu0 0.0
    %6825 = vmatpush2.msra.mxu0 0.0
    %6826 = vmatprep.subr.mxu0 0.0
    %6827 = vmatpush2.msra.mxu0 0.0
    %6828 = vmatprep.subr.mxu0 0.0
    %6829 = vmatpush2.msra.mxu0 0.0
    %6830 = vmatprep.subr.mxu0 0.0
    %6831 = vmatpush2.msra.mxu0 0.0
    %6832 = vmatprep.subr.mxu0 0.0
    %6833 = vmatpush2.msra.mxu0 0.0
    %6834 = vmatprep.subr.mxu0 0.0
    %6835 = vmatpush2.msra.mxu0 0.0
    %6836 = vmatprep.subr.mxu0 0.0
    %6837 = vmatpush2.msra.mxu0 0.0
    %6838 = vmatprep.subr.mxu0 0.0
    %6839 = vmatpush2.msra.mxu0 0.0
    %6840 = vmatprep.subr.mxu0 0.0
    %6841 = vmatpush2.msra.mxu0 0.0
    %6842 = vmatprep.subr.mxu0 0.0
    %6843 = vmatpush2.msra.mxu0 0.0
    %6844 = vmatprep.mubr.f32.mxu0 0.0
    %6845 = vmatmul.mubr.f32.gmra.mxu0 %v6680
    %v6846 = vpop.f32.mrf.mxu0
    %v6847 = vadd.f32 0.0, %v6846
    %v6848 = vpop.f32.mrf.mxu0
    %v6849 = vadd.f32 0.0, %v6848
    %6850 = vmatprep.mubr.f32.mxu0 0.0
    %6851 = vmatmul.mubr.f32.gmra.mxu0 %v6683
    %v6852 = vpop.f32.mrf.mxu0
    %v6853 = vadd.f32 0.0, %v6852
    %v6854 = vpop.f32.mrf.mxu0
    %v6855 = vadd.f32 0.0, %v6854
    %6856 = vmatprep.mubr.f32.mxu0 0.0
    %6857 = vmatmul.mubr.f32.gmra.mxu0 %v6686
    %v6858 = vpop.f32.mrf.mxu0
    %v6859 = vadd.f32 0.0, %v6858
    %v6860 = vpop.f32.mrf.mxu0
    %v6861 = vadd.f32 0.0, %v6860
    %6862 = vmatprep.mubr.f32.mxu0 0.0
    %6863 = vmatmul.mubr.f32.gmra.mxu0 %v6689
    %v6864 = vpop.f32.mrf.mxu0
    %v6865 = vadd.f32 0.0, %v6864
    %v6866 = vpop.f32.mrf.mxu0
    %v6867 = vadd.f32 0.0, %v6866
    %6868 = vdwg.mxu0
    %v6870 = vsel %vm1227, %v6671, 0
    %v6873 = vsel %vm1227, %v6672, 0
    %v6876 = vsel %vm1227, %v6673, 0
    %v6879 = vsel %vm1227, %v6674, 0
    %6881 = vmatprep.subr.mxu0 0.0
    %6882 = vmatpush1.msra.mxu0 0.0
    %6883 = vmatprep.subr.mxu0 0.0
    %6884 = vmatpush1.msra.mxu0 0.0
    %6885 = vmatprep.subr.mxu0 0.0
    %6886 = vmatpush1.msra.mxu0 0.0
    %6887 = vmatprep.subr.mxu0 0.0
    %6888 = vmatpush1.msra.mxu0 0.0
    %6889 = vmatprep.subr.mxu0 0.0
    %6890 = vmatpush1.msra.mxu0 0.0
    %6891 = vmatprep.subr.mxu0 0.0
    %6892 = vmatpush1.msra.mxu0 0.0
    %6893 = vmatprep.subr.mxu0 0.0
    %6894 = vmatpush1.msra.mxu0 0.0
    %6895 = vmatprep.subr.mxu0 0.0
    %6896 = vmatpush1.msra.mxu0 0.0
    %6897 = vmatprep.subr.mxu0 0.0
    %6898 = vmatpush1.msra.mxu0 0.0
    %6899 = vmatprep.subr.mxu0 0.0
    %6900 = vmatpush1.msra.mxu0 0.0
    %6901 = vmatprep.subr.mxu0 0.0
    %6902 = vmatpush1.msra.mxu0 0.0
    %6903 = vmatprep.subr.mxu0 0.0
    %6904 = vmatpush1.msra.mxu0 0.0
    %6905 = vmatprep.subr.mxu0 %v5714
    %6906 = vmatpush1.msra.mxu0 %v5713
    %6907 = vmatprep.subr.mxu0 %v5710
    %6908 = vmatpush1.msra.mxu0 %v5709
    %6909 = vmatprep.subr.mxu0 %v5706
    %6910 = vmatpush1.msra.mxu0 %v5705
    %6911 = vmatprep.subr.mxu0 %v5702
    %6912 = vmatpush1.msra.mxu0 %v5701
    %6913 = vmatprep.subr.mxu0 0.0
    %6914 = vmatpush2.msra.mxu0 0.0
    %6915 = vmatprep.subr.mxu0 0.0
    %6916 = vmatpush2.msra.mxu0 0.0
    %6917 = vmatprep.subr.mxu0 0.0
    %6918 = vmatpush2.msra.mxu0 0.0
    %6919 = vmatprep.subr.mxu0 0.0
    %6920 = vmatpush2.msra.mxu0 0.0
    %6921 = vmatprep.subr.mxu0 0.0
    %6922 = vmatpush2.msra.mxu0 0.0
    %6923 = vmatprep.subr.mxu0 0.0
    %6924 = vmatpush2.msra.mxu0 0.0
    %6925 = vmatprep.subr.mxu0 0.0
    %6926 = vmatpush2.msra.mxu0 0.0
    %6927 = vmatprep.subr.mxu0 0.0
    %6928 = vmatpush2.msra.mxu0 0.0
    %6929 = vmatprep.subr.mxu0 0.0
    %6930 = vmatpush2.msra.mxu0 0.0
    %6931 = vmatprep.subr.mxu0 0.0
    %6932 = vmatpush2.msra.mxu0 0.0
    %6933 = vmatprep.subr.mxu0 0.0
    %6934 = vmatpush2.msra.mxu0 0.0
    %6935 = vmatprep.subr.mxu0 0.0
    %6936 = vmatpush2.msra.mxu0 0.0
    %6937 = vmatprep.subr.mxu0 0.0
    %6938 = vmatpush2.msra.mxu0 0.0
    %6939 = vmatprep.subr.mxu0 0.0
    %6940 = vmatpush2.msra.mxu0 0.0
    %6941 = vmatprep.subr.mxu0 0.0
    %6942 = vmatpush2.msra.mxu0 0.0
    %6943 = vmatprep.subr.mxu0 0.0
    %6944 = vmatpush2.msra.mxu0 0.0
    %6945 = vmatprep.mubr.f32.mxu0 0.0
    %6946 = vmatmul.mubr.f32.gmra.mxu0 %v6870
    %v6947 = vpop.f32.mrf.mxu0
    %v6948 = vadd.f32 %v6758, %v6947
    %v6949 = vpop.f32.mrf.mxu0
    %v6950 = vadd.f32 %v6760, %v6949
    %6951 = vmatprep.mubr.f32.mxu0 0.0
    %6952 = vmatmul.mubr.f32.gmra.mxu0 %v6873
    %v6953 = vpop.f32.mrf.mxu0
    %v6954 = vadd.f32 %v6764, %v6953
    %v6955 = vpop.f32.mrf.mxu0
    %v6956 = vadd.f32 %v6766, %v6955
    %6957 = vmatprep.mubr.f32.mxu0 0.0
    %6958 = vmatmul.mubr.f32.gmra.mxu0 %v6876
    %v6959 = vpop.f32.mrf.mxu0
    %v6960 = vadd.f32 %v6770, %v6959
    %v6961 = vpop.f32.mrf.mxu0
    %v6962 = vadd.f32 %v6772, %v6961
    %6963 = vmatprep.mubr.f32.mxu0 0.0
    %6964 = vmatmul.mubr.f32.gmra.mxu0 %v6879
    %v6965 = vpop.f32.mrf.mxu0
    %v6966 = vadd.f32 %v6776, %v6965
    %v6967 = vpop.f32.mrf.mxu0
    %v6968 = vadd.f32 %v6778, %v6967
    %6969 = vdwg.mxu0
    %6970 = vmatprep.subr.mxu0 0.0
    %6971 = vmatpush1.msra.mxu0 0.0
    %6972 = vmatprep.subr.mxu0 0.0
    %6973 = vmatpush1.msra.mxu0 0.0
    %6974 = vmatprep.subr.mxu0 0.0
    %6975 = vmatpush1.msra.mxu0 0.0
    %6976 = vmatprep.subr.mxu0 0.0
    %6977 = vmatpush1.msra.mxu0 0.0
    %6978 = vmatprep.subr.mxu0 0.0
    %6979 = vmatpush1.msra.mxu0 0.0
    %6980 = vmatprep.subr.mxu0 0.0
    %6981 = vmatpush1.msra.mxu0 0.0
    %6982 = vmatprep.subr.mxu0 0.0
    %6983 = vmatpush1.msra.mxu0 0.0
    %6984 = vmatprep.subr.mxu0 0.0
    %6985 = vmatpush1.msra.mxu0 0.0
    %6986 = vmatprep.subr.mxu0 0.0
    %6987 = vmatpush1.msra.mxu0 0.0
    %6988 = vmatprep.subr.mxu0 0.0
    %6989 = vmatpush1.msra.mxu0 0.0
    %6990 = vmatprep.subr.mxu0 0.0
    %6991 = vmatpush1.msra.mxu0 0.0
    %6992 = vmatprep.subr.mxu0 0.0
    %6993 = vmatpush1.msra.mxu0 0.0
    %6994 = vmatprep.subr.mxu0 %v5716
    %6995 = vmatpush1.msra.mxu0 %v5715
    %6996 = vmatprep.subr.mxu0 %v5712
    %6997 = vmatpush1.msra.mxu0 %v5711
    %6998 = vmatprep.subr.mxu0 %v5708
    %6999 = vmatpush1.msra.mxu0 %v5707
    %7000 = vmatprep.subr.mxu0 %v5704
    %7001 = vmatpush1.msra.mxu0 %v5703
    %7002 = vmatprep.subr.mxu0 0.0
    %7003 = vmatpush2.msra.mxu0 0.0
    %7004 = vmatprep.subr.mxu0 0.0
    %7005 = vmatpush2.msra.mxu0 0.0
    %7006 = vmatprep.subr.mxu0 0.0
    %7007 = vmatpush2.msra.mxu0 0.0
    %7008 = vmatprep.subr.mxu0 0.0
    %7009 = vmatpush2.msra.mxu0 0.0
    %7010 = vmatprep.subr.mxu0 0.0
    %7011 = vmatpush2.msra.mxu0 0.0
    %7012 = vmatprep.subr.mxu0 0.0
    %7013 = vmatpush2.msra.mxu0 0.0
    %7014 = vmatprep.subr.mxu0 0.0
    %7015 = vmatpush2.msra.mxu0 0.0
    %7016 = vmatprep.subr.mxu0 0.0
    %7017 = vmatpush2.msra.mxu0 0.0
    %7018 = vmatprep.subr.mxu0 0.0
    %7019 = vmatpush2.msra.mxu0 0.0
    %7020 = vmatprep.subr.mxu0 0.0
    %7021 = vmatpush2.msra.mxu0 0.0
    %7022 = vmatprep.subr.mxu0 0.0
    %7023 = vmatpush2.msra.mxu0 0.0
    %7024 = vmatprep.subr.mxu0 0.0
    %7025 = vmatpush2.msra.mxu0 0.0
    %7026 = vmatprep.subr.mxu0 0.0
    %7027 = vmatpush2.msra.mxu0 0.0
    %7028 = vmatprep.subr.mxu0 0.0
    %7029 = vmatpush2.msra.mxu0 0.0
    %7030 = vmatprep.subr.mxu0 0.0
    %7031 = vmatpush2.msra.mxu0 0.0
    %7032 = vmatprep.subr.mxu0 0.0
    %7033 = vmatpush2.msra.mxu0 0.0
    %7034 = vmatprep.mubr.f32.mxu0 0.0
    %7035 = vmatmul.mubr.f32.gmra.mxu0 %v6870
    %v7036 = vpop.f32.mrf.mxu0
    %v7037 = vadd.f32 %v6847, %v7036
    %v7038 = vpop.f32.mrf.mxu0
    %v7039 = vadd.f32 %v6849, %v7038
    %7040 = vmatprep.mubr.f32.mxu0 0.0
    %7041 = vmatmul.mubr.f32.gmra.mxu0 %v6873
    %v7042 = vpop.f32.mrf.mxu0
    %v7043 = vadd.f32 %v6853, %v7042
    %v7044 = vpop.f32.mrf.mxu0
    %v7045 = vadd.f32 %v6855, %v7044
    %7046 = vmatprep.mubr.f32.mxu0 0.0
    %7047 = vmatmul.mubr.f32.gmra.mxu0 %v6876
    %v7048 = vpop.f32.mrf.mxu0
    %v7049 = vadd.f32 %v6859, %v7048
    %v7050 = vpop.f32.mrf.mxu0
    %v7051 = vadd.f32 %v6861, %v7050
    %7052 = vmatprep.mubr.f32.mxu0 0.0
    %7053 = vmatmul.mubr.f32.gmra.mxu0 %v6879
    %v7054 = vpop.f32.mrf.mxu0
    %v7055 = vadd.f32 %v6865, %v7054
    %v7056 = vpop.f32.mrf.mxu0
    %v7057 = vadd.f32 %v6867, %v7056
    %7058 = vdwg.mxu0
    %v7059 = vmax.f32 %v6948, 0.0
    %v7060 = vmax.f32 %v6950, 0.0
    %v7061 = vmax.f32 %v7037, 0.0
    %v7062 = vmax.f32 %v7039, 0.0
    %v7063 = vmax.f32 %v6954, 0.0
    %v7064 = vmax.f32 %v6956, 0.0
    %v7065 = vmax.f32 %v7043, 0.0
    %v7066 = vmax.f32 %v7045, 0.0
    %v7067 = vmax.f32 %v6960, 0.0
    %v7068 = vmax.f32 %v6962, 0.0
    %v7069 = vmax.f32 %v7049, 0.0
    %v7070 = vmax.f32 %v7051, 0.0
    %v7071 = vmax.f32 %v6966, 0.0
    %v7072 = vmax.f32 %v6968, 0.0
    %v7073 = vmax.f32 %v7055, 0.0
    %v7074 = vmax.f32 %v7057, 0.0
    %v7075 = vld [vmem:[%s4 + $0x88] sm:$0x7]
    %v7076 = vld [vmem:[%s6 + $0x48] sm:$0x7]
    %7078 = vset.pattern.permute.xlu0 0
    %7079 = vperm.xlu0 %7078, %v7076
    %v7080 = vpop.permute.xlu0 %7079
    %v7083 = vsel %vm1227, %v7075, 0
    %7085 = vmatprep.subr.mxu0 0.0
    %7086 = vmatpush1.msra.mxu0 0.0
    %7087 = vmatprep.subr.mxu0 0.0
    %7088 = vmatpush1.msra.mxu0 0.0
    %7089 = vmatprep.subr.mxu0 0.0
    %7090 = vmatpush1.msra.mxu0 0.0
    %7091 = vmatprep.subr.mxu0 0.0
    %7092 = vmatpush1.msra.mxu0 0.0
    %7093 = vmatprep.subr.mxu0 0.0
    %7094 = vmatpush1.msra.mxu0 0.0
    %7095 = vmatprep.subr.mxu0 0.0
    %7096 = vmatpush1.msra.mxu0 0.0
    %7097 = vmatprep.subr.mxu0 0.0
    %7098 = vmatpush1.msra.mxu0 0.0
    %7099 = vmatprep.subr.mxu0 0.0
    %7100 = vmatpush1.msra.mxu0 0.0
    %7101 = vmatprep.subr.mxu0 0.0
    %7102 = vmatpush1.msra.mxu0 0.0
    %7103 = vmatprep.subr.mxu0 0.0
    %7104 = vmatpush1.msra.mxu0 0.0
    %7105 = vmatprep.subr.mxu0 0.0
    %7106 = vmatpush1.msra.mxu0 0.0
    %7107 = vmatprep.subr.mxu0 0.0
    %7108 = vmatpush1.msra.mxu0 0.0
    %7109 = vmatprep.subr.mxu0 %v7072
    %7110 = vmatpush1.msra.mxu0 %v7071
    %7111 = vmatprep.subr.mxu0 %v7068
    %7112 = vmatpush1.msra.mxu0 %v7067
    %7113 = vmatprep.subr.mxu0 %v7064
    %7114 = vmatpush1.msra.mxu0 %v7063
    %7115 = vmatprep.subr.mxu0 %v7060
    %7116 = vmatpush1.msra.mxu0 %v7059
    %7117 = vmatprep.subr.mxu0 0.0
    %7118 = vmatpush2.msra.mxu0 0.0
    %7119 = vmatprep.subr.mxu0 0.0
    %7120 = vmatpush2.msra.mxu0 0.0
    %7121 = vmatprep.subr.mxu0 0.0
    %7122 = vmatpush2.msra.mxu0 0.0
    %7123 = vmatprep.subr.mxu0 0.0
    %7124 = vmatpush2.msra.mxu0 0.0
    %7125 = vmatprep.subr.mxu0 0.0
    %7126 = vmatpush2.msra.mxu0 0.0
    %7127 = vmatprep.subr.mxu0 0.0
    %7128 = vmatpush2.msra.mxu0 0.0
    %7129 = vmatprep.subr.mxu0 0.0
    %7130 = vmatpush2.msra.mxu0 0.0
    %7131 = vmatprep.subr.mxu0 0.0
    %7132 = vmatpush2.msra.mxu0 0.0
    %7133 = vmatprep.subr.mxu0 0.0
    %7134 = vmatpush2.msra.mxu0 0.0
    %7135 = vmatprep.subr.mxu0 0.0
    %7136 = vmatpush2.msra.mxu0 0.0
    %7137 = vmatprep.subr.mxu0 0.0
    %7138 = vmatpush2.msra.mxu0 0.0
    %7139 = vmatprep.subr.mxu0 0.0
    %7140 = vmatpush2.msra.mxu0 0.0
    %7141 = vmatprep.subr.mxu0 0.0
    %7142 = vmatpush2.msra.mxu0 0.0
    %7143 = vmatprep.subr.mxu0 0.0
    %7144 = vmatpush2.msra.mxu0 0.0
    %7145 = vmatprep.subr.mxu0 0.0
    %7146 = vmatpush2.msra.mxu0 0.0
    %7147 = vmatprep.subr.mxu0 0.0
    %7148 = vmatpush2.msra.mxu0 0.0
    %7149 = vmatprep.mubr.f32.mxu0 0.0
    %7150 = vmatmul.mubr.f32.gmra.mxu0 %v7083
    %v7151 = vpop.f32.mrf.mxu0
    %v7152 = vadd.f32 %v7080, %v7151
    %v7153 = vpop.f32.mrf.mxu0
    %v7154 = vadd.f32 %v7080, %v7153
    %7155 = vdwg.mxu0
    %7156 = vmatprep.subr.mxu0 0.0
    %7157 = vmatpush1.msra.mxu0 0.0
    %7158 = vmatprep.subr.mxu0 0.0
    %7159 = vmatpush1.msra.mxu0 0.0
    %7160 = vmatprep.subr.mxu0 0.0
    %7161 = vmatpush1.msra.mxu0 0.0
    %7162 = vmatprep.subr.mxu0 0.0
    %7163 = vmatpush1.msra.mxu0 0.0
    %7164 = vmatprep.subr.mxu0 0.0
    %7165 = vmatpush1.msra.mxu0 0.0
    %7166 = vmatprep.subr.mxu0 0.0
    %7167 = vmatpush1.msra.mxu0 0.0
    %7168 = vmatprep.subr.mxu0 0.0
    %7169 = vmatpush1.msra.mxu0 0.0
    %7170 = vmatprep.subr.mxu0 0.0
    %7171 = vmatpush1.msra.mxu0 0.0
    %7172 = vmatprep.subr.mxu0 0.0
    %7173 = vmatpush1.msra.mxu0 0.0
    %7174 = vmatprep.subr.mxu0 0.0
    %7175 = vmatpush1.msra.mxu0 0.0
    %7176 = vmatprep.subr.mxu0 0.0
    %7177 = vmatpush1.msra.mxu0 0.0
    %7178 = vmatprep.subr.mxu0 0.0
    %7179 = vmatpush1.msra.mxu0 0.0
    %7180 = vmatprep.subr.mxu0 %v7074
    %7181 = vmatpush1.msra.mxu0 %v7073
    %7182 = vmatprep.subr.mxu0 %v7070
    %7183 = vmatpush1.msra.mxu0 %v7069
    %7184 = vmatprep.subr.mxu0 %v7066
    %7185 = vmatpush1.msra.mxu0 %v7065
    %7186 = vmatprep.subr.mxu0 %v7062
    %7187 = vmatpush1.msra.mxu0 %v7061
    %7188 = vmatprep.subr.mxu0 0.0
    %7189 = vmatpush2.msra.mxu0 0.0
    %7190 = vmatprep.subr.mxu0 0.0
    %7191 = vmatpush2.msra.mxu0 0.0
    %7192 = vmatprep.subr.mxu0 0.0
    %7193 = vmatpush2.msra.mxu0 0.0
    %7194 = vmatprep.subr.mxu0 0.0
    %7195 = vmatpush2.msra.mxu0 0.0
    %7196 = vmatprep.subr.mxu0 0.0
    %7197 = vmatpush2.msra.mxu0 0.0
    %7198 = vmatprep.subr.mxu0 0.0
    %7199 = vmatpush2.msra.mxu0 0.0
    %7200 = vmatprep.subr.mxu0 0.0
    %7201 = vmatpush2.msra.mxu0 0.0
    %7202 = vmatprep.subr.mxu0 0.0
    %7203 = vmatpush2.msra.mxu0 0.0
    %7204 = vmatprep.subr.mxu0 0.0
    %7205 = vmatpush2.msra.mxu0 0.0
    %7206 = vmatprep.subr.mxu0 0.0
    %7207 = vmatpush2.msra.mxu0 0.0
    %7208 = vmatprep.subr.mxu0 0.0
    %7209 = vmatpush2.msra.mxu0 0.0
    %7210 = vmatprep.subr.mxu0 0.0
    %7211 = vmatpush2.msra.mxu0 0.0
    %7212 = vmatprep.subr.mxu0 0.0
    %7213 = vmatpush2.msra.mxu0 0.0
    %7214 = vmatprep.subr.mxu0 0.0
    %7215 = vmatpush2.msra.mxu0 0.0
    %7216 = vmatprep.subr.mxu0 0.0
    %7217 = vmatpush2.msra.mxu0 0.0
    %7218 = vmatprep.subr.mxu0 0.0
    %7219 = vmatpush2.msra.mxu0 0.0
    %7220 = vmatprep.mubr.f32.mxu0 0.0
    %7221 = vmatmul.mubr.f32.gmra.mxu0 %v7083
    %v7222 = vpop.f32.mrf.mxu0
    %v7223 = vadd.f32 %v7080, %v7222
    %v7224 = vpop.f32.mrf.mxu0
    %v7225 = vadd.f32 %v7080, %v7224
    %7226 = vdwg.mxu0
    %v7227 = vsub.f32 0.0, %v7152
    %v7228 = vsub.f32 0.0, %v7154
    %v7229 = vsub.f32 0.0, %v7223
    %v7230 = vsub.f32 0.0, %v7225
    %v7231 = vmul.f32 %v7227, 1.442695
    %v7232 = vpow.pop %v7231
    %v7233 = vmul.f32 %v7228, 1.442695
    %v7234 = vpow.pop %v7233
    %v7235 = vmul.f32 %v7229, 1.442695
    %v7236 = vpow.pop %v7235
    %v7237 = vmul.f32 %v7230, 1.442695
    %v7238 = vpow.pop %v7237
    %v7239 = vadd.f32 %v7232, 1.0
    %v7240 = vadd.f32 %v7234, 1.0
    %v7241 = vadd.f32 %v7236, 1.0
    %v7242 = vadd.f32 %v7238, 1.0
    %v7243 = vrcp.pop %v7239
    %v7244 = vmul.f32 1.0, %v7243
    %v7245 = vrcp.pop %v7240
    %v7246 = vmul.f32 1.0, %v7245
    %v7247 = vrcp.pop %v7241
    %v7248 = vmul.f32 1.0, %v7247
    %v7249 = vrcp.pop %v7242
    %v7250 = vmul.f32 1.0, %v7249
    %v7255 = vrot.slane %v5773, 5
    %v7256 = vrot.slane %v5774, 5
    %v7257 = vrot.slane %v5775, 5
    %v7258 = vrot.slane %v5776, 5
    %v7263 = vsel %vm105, %v7244, %v7255
    %v7264 = vsel %vm105, %v7246, %v7256
    %v7265 = vsel %vm105, %v7248, %v7257
    %v7266 = vsel %vm105, %v7250, %v7258
    %v7271 = vcombine.low %v7263, %v7264
    %v7272 = vcombine.low %v7265, %v7266
    %7275 = vst [vmem:[#allocation2 + $0x10] sm:$0xff] %v7271
    %7276 = vst [vmem:[#allocation2 + $0x18] sm:$0xff] %v7272
    // Predicated region
    $region30: #{tpu_custom_call.1} parent=1 // pred_check
      _
    $region31: #{tpu_custom_call.1} parent=1 // pred_check_branch
      %7278 = sbr.rel (0) target = $region33
    $region32: #{tpu_custom_call.1} parent=1 // pred_region
      %s7280 = ssub.s32 512, 512
      %7281 = vsyncadd [#allocation3], %s7280
      %s7283 = sshll.u32 [#allocation2], 4
      %s7284 = int_to_ptr.vmem [resolvable:$true] %s7283
      %7286 = dma.vmem_to_hbm [thread:$0]  %s7284, 512, %s7, [#allocation3]
    $region33: #{tpu_custom_call.1} parent=1 // pred_fallthru
      _
    // Predicated region
    $region34: #{tpu_custom_call.1} parent=1 // pred_check
      _
    $region35: #{tpu_custom_call.1} parent=1 // pred_check_branch
      %7288 = sbr.rel (0) target = $region37
    $region36: #{tpu_custom_call.1} parent=1 // pred_region
      %7289 = dma.done [#allocation3], 512
    $region37: #{tpu_custom_call.1} parent=1 // pred_fallthru
      _
    %7290 = vsyncpa [#allocation3], 1

</llo_original>
